<compile_context>
chip_gen: v6e
topology: v6e:2x2x1
jax: 0.10.0
libtpu: 0.0.40
codegen_flags: <defaults>
</compile_context>

<pallas_src>
import functools

import numpy as np
import jax
import jax.numpy as jnp
from jax.experimental import pallas as pl
from jax.experimental.pallas import tpu as pltpu

BN_EPS = 1e-5

# Set to jnp.bfloat16 on v5e/v6e/v7x to halve the (HBM-bandwidth-bound) weight stream and get
# native bf16 MXU throughput; all bias/ReLU/BatchNorm epilogue math stays f32.  float32 keeps
# exact parity with the f32 PyTorch reference (bf16 will not bit-match).
MXU_DTYPE = jnp.float32


# ---------------- Pallas kernel (whole forward, one branch per grid step) ----------------

def siamese_kernel(x_ref,
                   wm1_ref, q1_ref, wm2_ref, q2_ref, wm3_ref, q3_ref, m_ref,
                   fw1_ref, fb1_ref, fw2_ref, fb2_ref, fw3_ref, fb3_ref,
                   out_ref,
                   a0_ref, a1_ref, a2_ref, y3_ref, *, N, H, W):
    """SiameseNetwork forward for ONE branch (grid axis 0 = branch index).

    Activation packing: rows = (n, h), lanes = w*8 + c  (lane-dense, W*8 = 128 for W=16).
    wm*: (3, W*Cin, W*8) conv weights with the W-direction reflection folded in (one per dy).
    q* : (3, W*8) rows = [bias, gamma, beta], pre-expanded to packed lanes.
    m  : (W*8, W*8) BatchNorm projector, m[i, j] = 1 iff lanes i and j carry the same channel.
    fw1: (H, W*8, 512) fc1 weight with PyTorch's NCHW flatten folded in; fw2/fw3 zero-padded
         to 512 / 128 lanes.  a0/a1/a2: H-reflection-padded activations; y3: staged conv out.
    """
    NH = N * H
    inv_cnt = 1.0 / float(N * H * W)

    def store_hpadded(dst_ref, y):
        # dst: (N, HPAD, kc). Rows [1..H] = image rows, row 0 / row H+1 = reflection rows
        # (rows beyond H+1 are alignment padding and never read).  Per-image stride HPAD is a
        # multiple of 8 sublanes, so every tap load starts image-aligned.
        kc = dst_ref.shape[2]
        y3d = y.reshape(N, H, kc)
        dst_ref[:, 1:1 + H, :] = y3d                            # all N images, one store
        dst_ref[:, 0:1, :] = y3d[:, 1:2, :]                     # ReflectionPad2d top (row 1)
        dst_ref[:, H + 1:H + 2, :] = y3d[:, H - 2:H - 1, :]     # bottom (row H-2)

    def conv_relu_bn(a_ref, wm_ref, q_ref):
        kc_in = a_ref.shape[2]
        kc_out = wm_ref.shape[2]
        # 3x3 conv as three row-shifted lane-dense GEMMs (dy-outer => 3 MXU weight pushes per
        # layer with an (N*H)-row LHS); W-direction reflection is already folded into wm.
        acc = jnp.zeros((NH, kc_out), jnp.float32)
        for dy in range(3):
            tap = a_ref[:, dy:dy + H, :].reshape(NH, kc_in)
            acc = acc + jnp.dot(tap.astype(MXU_DTYPE), wm_ref[dy],
                                preferred_element_type=jnp.float32)
        y = jnp.maximum(acc + q_ref[0:1, :], 0.0)               # conv bias + ReLU(inplace)
        # BatchNorm2d training-mode batch stats over (N, H, W) per channel: one projector
        # matmul on the tile-aligned concat of [y, y*y] yields per-channel sum / sum-of-squares
        # already expanded to packed lanes (projector loaded into the MXU once per layer).
        # TODO(synk): E[x^2] - mean^2 can cancel for large means; fine at this scale, switch
        # to a two-pass (y - mean) variance for the real 100x100 port.
        proj = jnp.dot(jnp.concatenate([y, y * y], axis=0), m_ref[...],
                       preferred_element_type=jnp.float32)
        mean = jnp.sum(proj[:NH, :], axis=0, keepdims=True) * inv_cnt
        ex2 = jnp.sum(proj[NH:, :], axis=0, keepdims=True) * inv_cnt
        var = ex2 - mean * mean                                 # biased var (PyTorch train BN)
        scale = q_ref[1:2, :] * jax.lax.rsqrt(var + BN_EPS)     # gamma * rsqrt(var + eps)
        return (y - mean) * scale + q_ref[2:3, :]               # + beta

    # ---- conv stack: every intermediate stays in VMEM ----
    store_hpadded(a0_ref, x_ref[0, :, :])                       # ReflectionPad (H) of input
    y = conv_relu_bn(a0_ref, wm1_ref, q1_ref)                   # (N*H, 128); 4 real + 4 zero ch
    store_hpadded(a1_ref, y)
    y = conv_relu_bn(a1_ref, wm2_ref, q2_ref)                   # (N*H, 128)
    store_hpadded(a2_ref, y)
    y = conv_relu_bn(a2_ref, wm3_ref, q3_ref)                   # (N*H, 128)

    # ---- fused fc head: fc1 -> ReLU -> fc2 -> ReLU -> fc3 (per branch) ----
    # Stage the conv output so fc1 can walk h with aligned strided (N, 128) loads; fw1 is
    # packed (H, 128, 512) with the (c,h,w) flatten folded in, so no transpose / lane-relayout
    # is needed and every GEMM is 128/512-lane dense.
    for n in range(N):
        y3_ref[n, :, :] = y[n * H:(n + 1) * H, :]
    fch = fw1_ref.shape[2]
    h1 = jnp.zeros((N, fch), jnp.float32)
    for h in range(H):                                          # fw1 streams once per step
        h1 = h1 + jnp.dot(y3_ref[:, h, :].astype(MXU_DTYPE), fw1_ref[h],
                          preferred_element_type=jnp.float32)
    h1 = jnp.maximum(h1 + fb1_ref[...], 0.0)
    h2 = jnp.maximum(jnp.dot(h1.astype(MXU_DTYPE), fw2_ref[...],
                             preferred_element_type=jnp.float32) + fb2_ref[...], 0.0)
    out_ref[0, :, :] = jnp.dot(h2.astype(MXU_DTYPE), fw3_ref[...],
                               preferred_element_type=jnp.float32) + fb3_ref[...]


# ---------------- pallas_call wrapper ----------------

def siamese_pallas_call(x, pp, N, H, W):
    HPAD = ((H + 2 + 7) // 8) * 8                               # H+2 rounded up to 8 sublanes
    nout = pp["fb3"].shape[1]
    c2 = lambda b: (0, 0)                                       # weights: constant index maps
    c3 = lambda b: (0, 0, 0)                                    # -> DMA'd once, reused per step
    kernel = functools.partial(siamese_kernel, N=N, H=H, W=W)
    # TODO(synk): at the real 100x100 size, keep the fc stack as a separate K-tiled kernel
    # (fc1's f32 weight ~160 MB exceeds VMEM on every generation: bf16 weights + K tiles sized
    # for v7x's 64 MiB/TC VMEM, "arbitrary" K axis with a pl.when-initialized f32 accumulator),
    # and re-block the conv lanes since W*8 = 800 is not a multiple of 128.
    # TODO(synk): if VMEM headroom ever matters, request pipeline_mode=pl.Buffered(1) on the
    # constant-index weight specs (nothing to double-buffer across a 2-step grid).
    return pl.pallas_call(
        kernel,
        out_shape=jax.ShapeDtypeStruct((2, N, nout), jnp.float32),
        grid=(2,),                                              # one grid step per branch
        in_specs=[
            pl.BlockSpec((1, N * H, W), lambda b: (b, 0, 0)),
            pl.BlockSpec(pp["wm1"].shape, c3), pl.BlockSpec(pp["q1"].shape, c2),
            pl.BlockSpec(pp["wm2"].shape, c3), pl.BlockSpec(pp["q2"].shape, c2),
            pl.BlockSpec(pp["wm3"].shape, c3), pl.BlockSpec(pp["q3"].shape, c2),
            pl.BlockSpec(pp["m"].shape, c2),
            pl.BlockSpec(pp["fw1"].shape, c3), pl.BlockSpec(pp["fb1"].shape, c2),
            pl.BlockSpec(pp["fw2"].shape, c2), pl.BlockSpec(pp["fb2"].shape, c2),
            pl.BlockSpec(pp["fw3"].shape, c2), pl.BlockSpec(pp["fb3"].shape, c2),
        ],
        out_specs=pl.BlockSpec((1, N, nout), lambda b: (b, 0, 0)),
        scratch_shapes=[
            pltpu.VMEM((N, HPAD, W), jnp.float32),              # H-padded input (Cin = 1)
            pltpu.VMEM((N, HPAD, W * 8), jnp.float32),          # H-padded conv1 output
            pltpu.VMEM((N, HPAD, W * 8), jnp.float32),          # H-padded conv2 output
            pltpu.VMEM((N, H, W * 8), jnp.float32),             # staged conv3 output for fc1
        ],
        compiler_params=pltpu.CompilerParams(
            dimension_semantics=("parallel",),                  # 2 branches -> 2 TCs on v7x
            vmem_limit_bytes=48 * 1024 * 1024),
    )(x, pp["wm1"], pp["q1"], pp["wm2"], pp["q2"], pp["wm3"], pp["q3"], pp["m"],
      pp["fw1"], pp["fb1"], pp["fw2"], pp["fb2"], pp["fw3"], pp["fb3"])


def siamese_forward(input1, input2, pp, N, H, W):
    # Shared weights: run both branches inside one kernel with the branch as the grid axis,
    # so BatchNorm batch statistics stay per-branch exactly as in two forward_once() calls.
    x = jnp.stack([input1, input2], axis=0).reshape(2, N * H, W)   # Cin=1 -> (branch, n*h, w)
    out = siamese_pallas_call(x, pp, N, H, W)                      # (2, N, 128) lane-dense
    out = out[:, :, :5]                                            # drop fc3 lane padding
    return out[0], out[1]


# ---------------- Parameter packing (one-time, outside the kernel) ----------------

def pack_params(p, H, W):
    """Pack PyTorch-layout params into the kernel's lane-dense layouts (done once at init)."""
    FCH = 512      # fc hidden 500 -> 512 (lane-dense; zero padding is exact through ReLU)
    NOUT = 128     # fc3 output 5 -> 128 lanes (sliced back to 5 in the wrapper)
    CP = 8         # all conv layers padded to 8 channels -> W*8 = 128 lanes

    def reflect_mats():
        # R[dx][w_in, w_out] = 1 iff reflect(w_out + dx - 1) == w_in  (ReflectionPad2d(1), W)
        mats = []
        for dx in range(3):
            m = np.zeros((W, W), np.float32)
            for wo in range(W):
                wi = wo + dx - 1
                wi = 1 if wi < 0 else (W - 2 if wi > W - 1 else wi)
                m[wi, wo] = 1.0
            mats.append(m)
        return mats

    R = reflect_mats()

    def conv_pack(w, b, g, be):
        # Zero-pad in/out channels to CP.  Padded output channels keep gamma = beta = 0 so the
        # rsqrt(0 + eps) scale of a zero-variance channel never leaks into the output.
        cout, cin = int(w.shape[0]), int(w.shape[1])
        cin_p = cin if cin == 1 else CP                 # layer 1 keeps its single input channel
        w = jnp.pad(w, ((0, CP - cout), (0, cin_p - cin), (0, 0), (0, 0)))
        b = jnp.pad(b, (0, CP - cout))
        g = jnp.pad(g, (0, CP - cout))
        be = jnp.pad(be, (0, CP - cout))
        # wm[dy][w_in*Cin+ci, w_out*CP+co] = sum_dx R[dx][w_in, w_out] * w[co, ci, dy, dx]
        wm = jnp.stack(
            [sum(jnp.kron(jnp.asarray(R[dx]), w[:, :, dy, dx].T) for dx in range(3))
             for dy in range(3)], axis=0).astype(MXU_DTYPE)          # (3, W*Cin, W*CP)
        q = jnp.stack([jnp.tile(b, W), jnp.tile(g, W), jnp.tile(be, W)],
                      axis=0).astype(jnp.float32)                    # (3, W*CP) lane-expanded
        return wm, q

    wm1, q1 = conv_pack(p["w1"], p["b1"], p["g1"], p["be1"])
    wm2, q2 = conv_pack(p["w2"], p["b2"], p["g2"], p["be2"])
    wm3, q3 = conv_pack(p["w3"], p["b3"], p["g3"], p["be3"])

    i = np.arange(W * CP)
    m = jnp.asarray((i[:, None] % CP == i[None, :] % CP).astype(np.float32))  # BN projector

    # Fold PyTorch's NCHW flatten (.view(N, -1)) into fc1: conv-output rows are (n, h) and
    # lanes (w, c), so reorder fc1's rows (c, h, w) -> (h, w, c) and shape them (H, W*8, FCH).
    nf = int(p["fw1"].shape[1])
    fw1 = jnp.transpose(p["fw1"].reshape(8, H, W, nf), (1, 2, 0, 3)).reshape(H, W * 8, nf)
    fw1 = jnp.pad(fw1, ((0, 0), (0, 0), (0, FCH - nf)))
    fb1 = jnp.pad(p["fb1"], (0, FCH - nf)).reshape(1, FCH)
    fw2 = jnp.pad(p["fw2"], ((0, FCH - nf), (0, FCH - nf)))
    fb2 = jnp.pad(p["fb2"], (0, FCH - nf)).reshape(1, FCH)
    no = int(p["fw3"].shape[1])
    fw3 = jnp.pad(p["fw3"], ((0, FCH - nf), (0, NOUT - no)))
    fb3 = jnp.pad(p["fb3"], (0, NOUT - no)).reshape(1, NOUT)

    return {
        "wm1": wm1, "q1": q1, "wm2": wm2, "q2": q2, "wm3": wm3, "q3": q3, "m": m,
        "fw1": fw1.astype(MXU_DTYPE), "fb1": fb1,
        "fw2": fw2.astype(MXU_DTYPE), "fb2": fb2,
        "fw3": fw3.astype(MXU_DTYPE), "fb3": fb3,
    }


# ---------------- Deterministic parameter init (PyTorch layouts) ----------------

def init_params(key, H, W):
    ks = jax.random.split(key, 12)

    def conv_w(k, cout, cin):
        return jax.random.normal(k, (cout, cin, 3, 3), jnp.float32) / jnp.sqrt(cin * 9.0)

    def lin_w(k, fin, fout):  # stored (in, out); fw1 rows follow PyTorch's (C,H,W) flatten
        return jax.random.normal(k, (fin, fout), jnp.float32) / jnp.sqrt(float(fin))

    return {
        "w1": conv_w(ks[0], 4, 1), "b1": 0.01 * jax.random.normal(ks[1], (4,), jnp.float32),
        "g1": jnp.ones((4,), jnp.float32), "be1": jnp.zeros((4,), jnp.float32),
        "w2": conv_w(ks[2], 8, 4), "b2": 0.01 * jax.random.normal(ks[3], (8,), jnp.float32),
        "g2": jnp.ones((8,), jnp.float32), "be2": jnp.zeros((8,), jnp.float32),
        "w3": conv_w(ks[4], 8, 8), "b3": 0.01 * jax.random.normal(ks[5], (8,), jnp.float32),
        "g3": jnp.ones((8,), jnp.float32), "be3": jnp.zeros((8,), jnp.float32),
        "fw1": lin_w(ks[6], 8 * H * W, 500), "fb1": 0.01 * jax.random.normal(ks[7], (500,), jnp.float32),
        "fw2": lin_w(ks[8], 500, 500), "fb2": 0.01 * jax.random.normal(ks[9], (500,), jnp.float32),
        "fw3": lin_w(ks[10], 500, 5), "fb3": 0.01 * jax.random.normal(ks[11], (5,), jnp.float32),
    }


# ---------------- Pure-JAX reference (PyTorch semantics) for in-script validation ----------

def reference_forward_once(x, p):
    def conv_relu_bn(x, w, b, g, be):
        xp = jnp.pad(x, ((0, 0), (0, 0), (1, 1), (1, 1)), mode="reflect")
        y = jax.lax.conv_general_dilated(
            xp, w, window_strides=(1, 1), padding="VALID",
            dimension_numbers=("NCHW", "OIHW", "NCHW")) + b[None, :, None, None]
        y = jnp.maximum(y, 0.0)
        mean = jnp.mean(y, axis=(0, 2, 3), keepdims=True)
        var = jnp.mean((y - mean) ** 2, axis=(0, 2, 3), keepdims=True)     # biased (train BN)
        return (y - mean) * (g[None, :, None, None] * jax.lax.rsqrt(var + BN_EPS)) \
            + be[None, :, None, None]

    y = conv_relu_bn(x, p["w1"], p["b1"], p["g1"], p["be1"])
    y = conv_relu_bn(y, p["w2"], p["b2"], p["g2"], p["be2"])
    y = conv_relu_bn(y, p["w3"], p["b3"], p["g3"], p["be3"])
    f = y.reshape(y.shape[0], -1)                                          # NCHW flatten
    h = jnp.maximum(f @ p["fw1"] + p["fb1"], 0.0)
    h = jnp.maximum(h @ p["fw2"] + p["fb2"], 0.0)
    return h @ p["fw3"] + p["fb3"]


if __name__ == "__main__":
    key = jax.random.PRNGKey(0)
    k1, k2, kp = jax.random.split(key, 3)

    N, H, W = 2, 16, 16        # demo size (original module uses 100x100; see TODOs above)
    input1 = jax.random.normal(k1, (N, 1, H, W), jnp.float32)
    input2 = jax.random.normal(k2, (N, 1, H, W), jnp.float32)

    params = init_params(kp, H, W)
    packed = pack_params(params, H, W)

    # TODO(synk): self.cnt forward counter and BatchNorm running-stat/momentum updates are
    # training-side state, not part of the forward math, so they are not reproduced.
    fwd = jax.jit(lambda a, b: siamese_forward(a, b, packed, N, H, W))
    out1, out2 = fwd(input1, input2)
    jax.block_until_ready((out1, out2))

    assert out1.shape == (N, 5) and out2.shape == (N, 5)
    assert out1.dtype == jnp.float32 and out2.dtype == jnp.float32

    if MXU_DTYPE == jnp.float32:   # bf16 weights intentionally won't bit-match the reference
        with jax.default_matmul_precision("highest"):
            ref1 = reference_forward_once(input1, params)
            ref2 = reference_forward_once(input2, params)
        np.testing.assert_allclose(np.asarray(out1), np.asarray(ref1), rtol=2e-2, atol=2e-2)
        np.testing.assert_allclose(np.asarray(out2), np.asarray(ref2), rtol=2e-2, atol=2e-2)

    print("KERNEL_OK")
</pallas_src>

<mosaic_0001>
module attributes {stable_mosaic.version = 11 : i64} {
  func.func @siamese_kernel(%arg0: i32, %arg1: memref<1x32x16xf32, #tpu.memory_space<vmem>>, %arg2: memref<3x16x128xf32, #tpu.memory_space<vmem>>, %arg3: memref<3x128xf32, #tpu.memory_space<vmem>>, %arg4: memref<3x128x128xf32, #tpu.memory_space<vmem>>, %arg5: memref<3x128xf32, #tpu.memory_space<vmem>>, %arg6: memref<3x128x128xf32, #tpu.memory_space<vmem>>, %arg7: memref<3x128xf32, #tpu.memory_space<vmem>>, %arg8: memref<128x128xf32, #tpu.memory_space<vmem>>, %arg9: memref<16x128x512xf32, #tpu.memory_space<vmem>>, %arg10: memref<1x512xf32, #tpu.memory_space<vmem>>, %arg11: memref<512x512xf32, #tpu.memory_space<vmem>>, %arg12: memref<1x512xf32, #tpu.memory_space<vmem>>, %arg13: memref<512x128xf32, #tpu.memory_space<vmem>>, %arg14: memref<1x128xf32, #tpu.memory_space<vmem>>, %arg15: memref<1x2x128xf32, #tpu.memory_space<vmem>>, %arg16: memref<2x24x16xf32, #tpu.memory_space<vmem>>, %arg17: memref<2x24x128xf32, #tpu.memory_space<vmem>>, %arg18: memref<2x24x128xf32, #tpu.memory_space<vmem>>, %arg19: memref<2x16x128xf32, #tpu.memory_space<vmem>>) attributes {dimension_semantics = [#tpu.dimension_semantics<parallel>], iteration_bounds = array<i64: 2>, scalar_prefetch = 0 : i64, scratch_operands = 4 : i64, tpu.core_type = #tpu.core_type<tc>, window_params = [{transform_indices = @transform_0, window_bounds = array<i64: 1, 32, 16>}, {pipeline_mode = #tpu.pipeline_mode<synchronous>, transform_indices = @transform_1, window_bounds = array<i64: 3, 16, 128>}, {pipeline_mode = #tpu.pipeline_mode<synchronous>, transform_indices = @transform_2, window_bounds = array<i64: 3, 128>}, {pipeline_mode = #tpu.pipeline_mode<synchronous>, transform_indices = @transform_3, window_bounds = array<i64: 3, 128, 128>}, {pipeline_mode = #tpu.pipeline_mode<synchronous>, transform_indices = @transform_4, window_bounds = array<i64: 3, 128>}, {pipeline_mode = #tpu.pipeline_mode<synchronous>, transform_indices = @transform_5, window_bounds = array<i64: 3, 128, 128>}, {pipeline_mode = #tpu.pipeline_mode<synchronous>, transform_indices = @transform_6, window_bounds = array<i64: 3, 128>}, {pipeline_mode = #tpu.pipeline_mode<synchronous>, transform_indices = @transform_7, window_bounds = array<i64: 128, 128>}, {pipeline_mode = #tpu.pipeline_mode<synchronous>, transform_indices = @transform_8, window_bounds = array<i64: 16, 128, 512>}, {pipeline_mode = #tpu.pipeline_mode<synchronous>, transform_indices = @transform_9, window_bounds = array<i64: 1, 512>}, {pipeline_mode = #tpu.pipeline_mode<synchronous>, transform_indices = @transform_10, window_bounds = array<i64: 512, 512>}, {pipeline_mode = #tpu.pipeline_mode<synchronous>, transform_indices = @transform_11, window_bounds = array<i64: 1, 512>}, {pipeline_mode = #tpu.pipeline_mode<synchronous>, transform_indices = @transform_12, window_bounds = array<i64: 512, 128>}, {pipeline_mode = #tpu.pipeline_mode<synchronous>, transform_indices = @transform_13, window_bounds = array<i64: 1, 128>}, {transform_indices = @transform_14, window_bounds = array<i64: 1, 2, 128>}]} {
    %c0 = arith.constant 0 : index
    %c0_0 = arith.constant 0 : index
    %c0_1 = arith.constant 0 : index
    %0 = vector.load %arg1[%c0, %c0_0, %c0_1] : memref<1x32x16xf32, #tpu.memory_space<vmem>>, vector<1x32x16xf32>
    %1 = vector.shape_cast %0 : vector<1x32x16xf32> to vector<32x16xf32>
    %2 = vector.shape_cast %1 : vector<32x16xf32> to vector<2x16x16xf32>
    %c0_2 = arith.constant 0 : index
    %c1 = arith.constant 1 : index
    %c0_3 = arith.constant 0 : index
    %3 = vector.load %arg16[%c0_2, %c1, %c0_3] : memref<2x24x16xf32, #tpu.memory_space<vmem>>, vector<2x16x16xf32>
    tpu.vector_store %arg16[%c0_2, %c1, %c0_3], %2 {strides = array<i32>} : memref<2x24x16xf32, #tpu.memory_space<vmem>>, vector<2x16x16xf32>,
    %4 = vector.extract_strided_slice %2 {offsets = [0, 1, 0], sizes = [2, 1, 16], strides = [1, 1, 1]} : vector<2x16x16xf32> to vector<2x1x16xf32>
    %c0_4 = arith.constant 0 : index
    %c0_5 = arith.constant 0 : index
    %c0_6 = arith.constant 0 : index
    %5 = vector.load %arg16[%c0_4, %c0_5, %c0_6] : memref<2x24x16xf32, #tpu.memory_space<vmem>>, vector<2x1x16xf32>
    tpu.vector_store %arg16[%c0_4, %c0_5, %c0_6], %4 {strides = array<i32>} : memref<2x24x16xf32, #tpu.memory_space<vmem>>, vector<2x1x16xf32>,
    %6 = vector.extract_strided_slice %2 {offsets = [0, 14, 0], sizes = [2, 1, 16], strides = [1, 1, 1]} : vector<2x16x16xf32> to vector<2x1x16xf32>
    %c0_7 = arith.constant 0 : index
    %c17 = arith.constant 17 : index
    %c0_8 = arith.constant 0 : index
    %7 = vector.load %arg16[%c0_7, %c17, %c0_8] : memref<2x24x16xf32, #tpu.memory_space<vmem>>, vector<2x1x16xf32>
    tpu.vector_store %arg16[%c0_7, %c17, %c0_8], %6 {strides = array<i32>} : memref<2x24x16xf32, #tpu.memory_space<vmem>>, vector<2x1x16xf32>,
    %cst = arith.constant 0.000000e+00 : f32
    %8 = vector.broadcast %cst : f32 to vector<32x128xf32>
    %c0_9 = arith.constant 0 : index
    %c0_10 = arith.constant 0 : index
    %c0_11 = arith.constant 0 : index
    %9 = vector.load %arg16[%c0_9, %c0_10, %c0_11] : memref<2x24x16xf32, #tpu.memory_space<vmem>>, vector<2x16x16xf32>
    %10 = vector.shape_cast %9 : vector<2x16x16xf32> to vector<32x16xf32>
    %c0_12 = arith.constant 0 : index
    %c0_13 = arith.constant 0 : index
    %c0_14 = arith.constant 0 : index
    %11 = vector.load %arg2[%c0_12, %c0_13, %c0_14] : memref<3x16x128xf32, #tpu.memory_space<vmem>>, vector<1x16x128xf32>
    %12 = vector.shape_cast %11 : vector<1x16x128xf32> to vector<16x128xf32>
    %cst_15 = arith.constant dense<0.000000e+00> : vector<32x128xf32>
    %13 = tpu.matmul %10, %12, %cst_15 {dimension_numbers = #tpu.dot_dimension_numbers<[1], [0], [0], [1], [0, 0, 1, 1], [], []>} : vector<32x16xf32>, vector<16x128xf32>, vector<32x128xf32> -> vector<32x128xf32>
    %14 = arith.addf %8, %13 : vector<32x128xf32>
    %c0_16 = arith.constant 0 : index
    %c1_17 = arith.constant 1 : index
    %c0_18 = arith.constant 0 : index
    %15 = vector.load %arg16[%c0_16, %c1_17, %c0_18] : memref<2x24x16xf32, #tpu.memory_space<vmem>>, vector<2x16x16xf32>
    %16 = vector.shape_cast %15 : vector<2x16x16xf32> to vector<32x16xf32>
    %c1_19 = arith.constant 1 : index
    %c0_20 = arith.constant 0 : index
    %c0_21 = arith.constant 0 : index
    %17 = vector.load %arg2[%c1_19, %c0_20, %c0_21] : memref<3x16x128xf32, #tpu.memory_space<vmem>>, vector<1x16x128xf32>
    %18 = vector.shape_cast %17 : vector<1x16x128xf32> to vector<16x128xf32>
    %cst_22 = arith.constant dense<0.000000e+00> : vector<32x128xf32>
    %19 = tpu.matmul %16, %18, %cst_22 {dimension_numbers = #tpu.dot_dimension_numbers<[1], [0], [0], [1], [0, 0, 1, 1], [], []>} : vector<32x16xf32>, vector<16x128xf32>, vector<32x128xf32> -> vector<32x128xf32>
    %20 = arith.addf %14, %19 : vector<32x128xf32>
    %c0_23 = arith.constant 0 : index
    %c2 = arith.constant 2 : index
    %c0_24 = arith.constant 0 : index
    %21 = vector.load %arg16[%c0_23, %c2, %c0_24] : memref<2x24x16xf32, #tpu.memory_space<vmem>>, vector<2x16x16xf32>
    %22 = vector.shape_cast %21 : vector<2x16x16xf32> to vector<32x16xf32>
    %c2_25 = arith.constant 2 : index
    %c0_26 = arith.constant 0 : index
    %c0_27 = arith.constant 0 : index
    %23 = vector.load %arg2[%c2_25, %c0_26, %c0_27] : memref<3x16x128xf32, #tpu.memory_space<vmem>>, vector<1x16x128xf32>
    %24 = vector.shape_cast %23 : vector<1x16x128xf32> to vector<16x128xf32>
    %cst_28 = arith.constant dense<0.000000e+00> : vector<32x128xf32>
    %25 = tpu.matmul %22, %24, %cst_28 {dimension_numbers = #tpu.dot_dimension_numbers<[1], [0], [0], [1], [0, 0, 1, 1], [], []>} : vector<32x16xf32>, vector<16x128xf32>, vector<32x128xf32> -> vector<32x128xf32>
    %26 = arith.addf %20, %25 : vector<32x128xf32>
    %c0_29 = arith.constant 0 : index
    %c0_30 = arith.constant 0 : index
    %27 = vector.load %arg3[%c0_29, %c0_30] : memref<3x128xf32, #tpu.memory_space<vmem>>, vector<1x128xf32>
    %28 = vector.broadcast %27 : vector<1x128xf32> to vector<32x128xf32>
    %29 = arith.addf %26, %28 : vector<32x128xf32>
    %cst_31 = arith.constant 0.000000e+00 : f32
    %30 = vector.broadcast %cst_31 : f32 to vector<32x128xf32>
    %31 = arith.maximumf %29, %30 : vector<32x128xf32>
    %32 = arith.mulf %31, %31 : vector<32x128xf32>
    %33 = tpu.concatenate %31, %32 in 0 : vector<32x128xf32>, vector<32x128xf32> -> vector<64x128xf32>
    %c0_32 = arith.constant 0 : index
    %c0_33 = arith.constant 0 : index
    %34 = vector.load %arg8[%c0_32, %c0_33] : memref<128x128xf32, #tpu.memory_space<vmem>>, vector<128x128xf32>
    %cst_34 = arith.constant dense<0.000000e+00> : vector<64x128xf32>
    %35 = tpu.matmul %33, %34, %cst_34 {dimension_numbers = #tpu.dot_dimension_numbers<[1], [0], [0], [1], [0, 0, 1, 1], [], []>} : vector<64x128xf32>, vector<128x128xf32>, vector<64x128xf32> -> vector<64x128xf32>
    %36 = vector.extract_strided_slice %35 {offsets = [0, 0], sizes = [32, 128], strides = [1, 1]} : vector<64x128xf32> to vector<32x128xf32>
    %cst_35 = arith.constant dense<0.000000e+00> : vector<128xf32>
    %37 = vector.multi_reduction <add>, %36, %cst_35 [0] : vector<32x128xf32> to vector<128xf32>
    %38 = vector.shape_cast %37 : vector<128xf32> to vector<1x128xf32>
    %cst_36 = arith.constant 0.001953125 : f32
    %39 = vector.broadcast %cst_36 : f32 to vector<1x128xf32>
    %40 = arith.mulf %38, %39 : vector<1x128xf32>
    %41 = vector.extract_strided_slice %35 {offsets = [32, 0], sizes = [32, 128], strides = [1, 1]} : vector<64x128xf32> to vector<32x128xf32>
    %cst_37 = arith.constant dense<0.000000e+00> : vector<128xf32>
    %42 = vector.multi_reduction <add>, %41, %cst_37 [0] : vector<32x128xf32> to vector<128xf32>
    %43 = vector.shape_cast %42 : vector<128xf32> to vector<1x128xf32>
    %cst_38 = arith.constant 0.001953125 : f32
    %44 = vector.broadcast %cst_38 : f32 to vector<1x128xf32>
    %45 = arith.mulf %43, %44 : vector<1x128xf32>
    %46 = arith.mulf %40, %40 : vector<1x128xf32>
    %47 = arith.subf %45, %46 : vector<1x128xf32>
    %c1_39 = arith.constant 1 : index
    %c0_40 = arith.constant 0 : index
    %48 = vector.load %arg3[%c1_39, %c0_40] : memref<3x128xf32, #tpu.memory_space<vmem>>, vector<1x128xf32>
    %cst_41 = arith.constant 9.99999974E-6 : f32
    %49 = vector.broadcast %cst_41 : f32 to vector<1x128xf32>
    %50 = arith.addf %47, %49 : vector<1x128xf32>
    %51 = math.rsqrt %50 : vector<1x128xf32>
    %52 = arith.mulf %48, %51 : vector<1x128xf32>
    %53 = vector.broadcast %40 : vector<1x128xf32> to vector<32x128xf32>
    %54 = arith.subf %31, %53 : vector<32x128xf32>
    %55 = vector.broadcast %52 : vector<1x128xf32> to vector<32x128xf32>
    %56 = arith.mulf %54, %55 : vector<32x128xf32>
    %c2_42 = arith.constant 2 : index
    %c0_43 = arith.constant 0 : index
    %57 = vector.load %arg3[%c2_42, %c0_43] : memref<3x128xf32, #tpu.memory_space<vmem>>, vector<1x128xf32>
    %58 = vector.broadcast %57 : vector<1x128xf32> to vector<32x128xf32>
    %59 = arith.addf %56, %58 : vector<32x128xf32>
    %60 = vector.shape_cast %59 : vector<32x128xf32> to vector<2x16x128xf32>
    %c0_44 = arith.constant 0 : index
    %c1_45 = arith.constant 1 : index
    %c0_46 = arith.constant 0 : index
    %61 = vector.load %arg17[%c0_44, %c1_45, %c0_46] : memref<2x24x128xf32, #tpu.memory_space<vmem>>, vector<2x16x128xf32>
    tpu.vector_store %arg17[%c0_44, %c1_45, %c0_46], %60 {strides = array<i32>} : memref<2x24x128xf32, #tpu.memory_space<vmem>>, vector<2x16x128xf32>,
    %62 = vector.extract_strided_slice %60 {offsets = [0, 1, 0], sizes = [2, 1, 128], strides = [1, 1, 1]} : vector<2x16x128xf32> to vector<2x1x128xf32>
    %c0_47 = arith.constant 0 : index
    %c0_48 = arith.constant 0 : index
    %c0_49 = arith.constant 0 : index
    %63 = vector.load %arg17[%c0_47, %c0_48, %c0_49] : memref<2x24x128xf32, #tpu.memory_space<vmem>>, vector<2x1x128xf32>
    tpu.vector_store %arg17[%c0_47, %c0_48, %c0_49], %62 {strides = array<i32>} : memref<2x24x128xf32, #tpu.memory_space<vmem>>, vector<2x1x128xf32>,
    %64 = vector.extract_strided_slice %60 {offsets = [0, 14, 0], sizes = [2, 1, 128], strides = [1, 1, 1]} : vector<2x16x128xf32> to vector<2x1x128xf32>
    %c0_50 = arith.constant 0 : index
    %c17_51 = arith.constant 17 : index
    %c0_52 = arith.constant 0 : index
    %65 = vector.load %arg17[%c0_50, %c17_51, %c0_52] : memref<2x24x128xf32, #tpu.memory_space<vmem>>, vector<2x1x128xf32>
    tpu.vector_store %arg17[%c0_50, %c17_51, %c0_52], %64 {strides = array<i32>} : memref<2x24x128xf32, #tpu.memory_space<vmem>>, vector<2x1x128xf32>,
    %cst_53 = arith.constant 0.000000e+00 : f32
    %66 = vector.broadcast %cst_53 : f32 to vector<32x128xf32>
    %c0_54 = arith.constant 0 : index
    %c0_55 = arith.constant 0 : index
    %c0_56 = arith.constant 0 : index
    %67 = vector.load %arg17[%c0_54, %c0_55, %c0_56] : memref<2x24x128xf32, #tpu.memory_space<vmem>>, vector<2x16x128xf32>
    %68 = vector.shape_cast %67 : vector<2x16x128xf32> to vector<32x128xf32>
    %c0_57 = arith.constant 0 : index
    %c0_58 = arith.constant 0 : index
    %c0_59 = arith.constant 0 : index
    %69 = vector.load %arg4[%c0_57, %c0_58, %c0_59] : memref<3x128x128xf32, #tpu.memory_space<vmem>>, vector<1x128x128xf32>
    %70 = vector.shape_cast %69 : vector<1x128x128xf32> to vector<128x128xf32>
    %cst_60 = arith.constant dense<0.000000e+00> : vector<32x128xf32>
    %71 = tpu.matmul %68, %70, %cst_60 {dimension_numbers = #tpu.dot_dimension_numbers<[1], [0], [0], [1], [0, 0, 1, 1], [], []>} : vector<32x128xf32>, vector<128x128xf32>, vector<32x128xf32> -> vector<32x128xf32>
    %72 = arith.addf %66, %71 : vector<32x128xf32>
    %c0_61 = arith.constant 0 : index
    %c1_62 = arith.constant 1 : index
    %c0_63 = arith.constant 0 : index
    %73 = vector.load %arg17[%c0_61, %c1_62, %c0_63] : memref<2x24x128xf32, #tpu.memory_space<vmem>>, vector<2x16x128xf32>
    %74 = vector.shape_cast %73 : vector<2x16x128xf32> to vector<32x128xf32>
    %c1_64 = arith.constant 1 : index
    %c0_65 = arith.constant 0 : index
    %c0_66 = arith.constant 0 : index
    %75 = vector.load %arg4[%c1_64, %c0_65, %c0_66] : memref<3x128x128xf32, #tpu.memory_space<vmem>>, vector<1x128x128xf32>
    %76 = vector.shape_cast %75 : vector<1x128x128xf32> to vector<128x128xf32>
    %cst_67 = arith.constant dense<0.000000e+00> : vector<32x128xf32>
    %77 = tpu.matmul %74, %76, %cst_67 {dimension_numbers = #tpu.dot_dimension_numbers<[1], [0], [0], [1], [0, 0, 1, 1], [], []>} : vector<32x128xf32>, vector<128x128xf32>, vector<32x128xf32> -> vector<32x128xf32>
    %78 = arith.addf %72, %77 : vector<32x128xf32>
    %c0_68 = arith.constant 0 : index
    %c2_69 = arith.constant 2 : index
    %c0_70 = arith.constant 0 : index
    %79 = vector.load %arg17[%c0_68, %c2_69, %c0_70] : memref<2x24x128xf32, #tpu.memory_space<vmem>>, vector<2x16x128xf32>
    %80 = vector.shape_cast %79 : vector<2x16x128xf32> to vector<32x128xf32>
    %c2_71 = arith.constant 2 : index
    %c0_72 = arith.constant 0 : index
    %c0_73 = arith.constant 0 : index
    %81 = vector.load %arg4[%c2_71, %c0_72, %c0_73] : memref<3x128x128xf32, #tpu.memory_space<vmem>>, vector<1x128x128xf32>
    %82 = vector.shape_cast %81 : vector<1x128x128xf32> to vector<128x128xf32>
    %cst_74 = arith.constant dense<0.000000e+00> : vector<32x128xf32>
    %83 = tpu.matmul %80, %82, %cst_74 {dimension_numbers = #tpu.dot_dimension_numbers<[1], [0], [0], [1], [0, 0, 1, 1], [], []>} : vector<32x128xf32>, vector<128x128xf32>, vector<32x128xf32> -> vector<32x128xf32>
    %84 = arith.addf %78, %83 : vector<32x128xf32>
    %c0_75 = arith.constant 0 : index
    %c0_76 = arith.constant 0 : index
    %85 = vector.load %arg5[%c0_75, %c0_76] : memref<3x128xf32, #tpu.memory_space<vmem>>, vector<1x128xf32>
    %86 = vector.broadcast %85 : vector<1x128xf32> to vector<32x128xf32>
    %87 = arith.addf %84, %86 : vector<32x128xf32>
    %cst_77 = arith.constant 0.000000e+00 : f32
    %88 = vector.broadcast %cst_77 : f32 to vector<32x128xf32>
    %89 = arith.maximumf %87, %88 : vector<32x128xf32>
    %90 = arith.mulf %89, %89 : vector<32x128xf32>
    %91 = tpu.concatenate %89, %90 in 0 : vector<32x128xf32>, vector<32x128xf32> -> vector<64x128xf32>
    %c0_78 = arith.constant 0 : index
    %c0_79 = arith.constant 0 : index
    %92 = vector.load %arg8[%c0_78, %c0_79] : memref<128x128xf32, #tpu.memory_space<vmem>>, vector<128x128xf32>
    %cst_80 = arith.constant dense<0.000000e+00> : vector<64x128xf32>
    %93 = tpu.matmul %91, %92, %cst_80 {dimension_numbers = #tpu.dot_dimension_numbers<[1], [0], [0], [1], [0, 0, 1, 1], [], []>} : vector<64x128xf32>, vector<128x128xf32>, vector<64x128xf32> -> vector<64x128xf32>
    %94 = vector.extract_strided_slice %93 {offsets = [0, 0], sizes = [32, 128], strides = [1, 1]} : vector<64x128xf32> to vector<32x128xf32>
    %cst_81 = arith.constant dense<0.000000e+00> : vector<128xf32>
    %95 = vector.multi_reduction <add>, %94, %cst_81 [0] : vector<32x128xf32> to vector<128xf32>
    %96 = vector.shape_cast %95 : vector<128xf32> to vector<1x128xf32>
    %cst_82 = arith.constant 0.001953125 : f32
    %97 = vector.broadcast %cst_82 : f32 to vector<1x128xf32>
    %98 = arith.mulf %96, %97 : vector<1x128xf32>
    %99 = vector.extract_strided_slice %93 {offsets = [32, 0], sizes = [32, 128], strides = [1, 1]} : vector<64x128xf32> to vector<32x128xf32>
    %cst_83 = arith.constant dense<0.000000e+00> : vector<128xf32>
    %100 = vector.multi_reduction <add>, %99, %cst_83 [0] : vector<32x128xf32> to vector<128xf32>
    %101 = vector.shape_cast %100 : vector<128xf32> to vector<1x128xf32>
    %cst_84 = arith.constant 0.001953125 : f32
    %102 = vector.broadcast %cst_84 : f32 to vector<1x128xf32>
    %103 = arith.mulf %101, %102 : vector<1x128xf32>
    %104 = arith.mulf %98, %98 : vector<1x128xf32>
    %105 = arith.subf %103, %104 : vector<1x128xf32>
    %c1_85 = arith.constant 1 : index
    %c0_86 = arith.constant 0 : index
    %106 = vector.load %arg5[%c1_85, %c0_86] : memref<3x128xf32, #tpu.memory_space<vmem>>, vector<1x128xf32>
    %cst_87 = arith.constant 9.99999974E-6 : f32
    %107 = vector.broadcast %cst_87 : f32 to vector<1x128xf32>
    %108 = arith.addf %105, %107 : vector<1x128xf32>
    %109 = math.rsqrt %108 : vector<1x128xf32>
    %110 = arith.mulf %106, %109 : vector<1x128xf32>
    %111 = vector.broadcast %98 : vector<1x128xf32> to vector<32x128xf32>
    %112 = arith.subf %89, %111 : vector<32x128xf32>
    %113 = vector.broadcast %110 : vector<1x128xf32> to vector<32x128xf32>
    %114 = arith.mulf %112, %113 : vector<32x128xf32>
    %c2_88 = arith.constant 2 : index
    %c0_89 = arith.constant 0 : index
    %115 = vector.load %arg5[%c2_88, %c0_89] : memref<3x128xf32, #tpu.memory_space<vmem>>, vector<1x128xf32>
    %116 = vector.broadcast %115 : vector<1x128xf32> to vector<32x128xf32>
    %117 = arith.addf %114, %116 : vector<32x128xf32>
    %118 = vector.shape_cast %117 : vector<32x128xf32> to vector<2x16x128xf32>
    %c0_90 = arith.constant 0 : index
    %c1_91 = arith.constant 1 : index
    %c0_92 = arith.constant 0 : index
    %119 = vector.load %arg18[%c0_90, %c1_91, %c0_92] : memref<2x24x128xf32, #tpu.memory_space<vmem>>, vector<2x16x128xf32>
    tpu.vector_store %arg18[%c0_90, %c1_91, %c0_92], %118 {strides = array<i32>} : memref<2x24x128xf32, #tpu.memory_space<vmem>>, vector<2x16x128xf32>,
    %120 = vector.extract_strided_slice %118 {offsets = [0, 1, 0], sizes = [2, 1, 128], strides = [1, 1, 1]} : vector<2x16x128xf32> to vector<2x1x128xf32>
    %c0_93 = arith.constant 0 : index
    %c0_94 = arith.constant 0 : index
    %c0_95 = arith.constant 0 : index
    %121 = vector.load %arg18[%c0_93, %c0_94, %c0_95] : memref<2x24x128xf32, #tpu.memory_space<vmem>>, vector<2x1x128xf32>
    tpu.vector_store %arg18[%c0_93, %c0_94, %c0_95], %120 {strides = array<i32>} : memref<2x24x128xf32, #tpu.memory_space<vmem>>, vector<2x1x128xf32>,
    %122 = vector.extract_strided_slice %118 {offsets = [0, 14, 0], sizes = [2, 1, 128], strides = [1, 1, 1]} : vector<2x16x128xf32> to vector<2x1x128xf32>
    %c0_96 = arith.constant 0 : index
    %c17_97 = arith.constant 17 : index
    %c0_98 = arith.constant 0 : index
    %123 = vector.load %arg18[%c0_96, %c17_97, %c0_98] : memref<2x24x128xf32, #tpu.memory_space<vmem>>, vector<2x1x128xf32>
    tpu.vector_store %arg18[%c0_96, %c17_97, %c0_98], %122 {strides = array<i32>} : memref<2x24x128xf32, #tpu.memory_space<vmem>>, vector<2x1x128xf32>,
    %cst_99 = arith.constant 0.000000e+00 : f32
    %124 = vector.broadcast %cst_99 : f32 to vector<32x128xf32>
    %c0_100 = arith.constant 0 : index
    %c0_101 = arith.constant 0 : index
    %c0_102 = arith.constant 0 : index
    %125 = vector.load %arg18[%c0_100, %c0_101, %c0_102] : memref<2x24x128xf32, #tpu.memory_space<vmem>>, vector<2x16x128xf32>
    %126 = vector.shape_cast %125 : vector<2x16x128xf32> to vector<32x128xf32>
    %c0_103 = arith.constant 0 : index
    %c0_104 = arith.constant 0 : index
    %c0_105 = arith.constant 0 : index
    %127 = vector.load %arg6[%c0_103, %c0_104, %c0_105] : memref<3x128x128xf32, #tpu.memory_space<vmem>>, vector<1x128x128xf32>
    %128 = vector.shape_cast %127 : vector<1x128x128xf32> to vector<128x128xf32>
    %cst_106 = arith.constant dense<0.000000e+00> : vector<32x128xf32>
    %129 = tpu.matmul %126, %128, %cst_106 {dimension_numbers = #tpu.dot_dimension_numbers<[1], [0], [0], [1], [0, 0, 1, 1], [], []>} : vector<32x128xf32>, vector<128x128xf32>, vector<32x128xf32> -> vector<32x128xf32>
    %130 = arith.addf %124, %129 : vector<32x128xf32>
    %c0_107 = arith.constant 0 : index
    %c1_108 = arith.constant 1 : index
    %c0_109 = arith.constant 0 : index
    %131 = vector.load %arg18[%c0_107, %c1_108, %c0_109] : memref<2x24x128xf32, #tpu.memory_space<vmem>>, vector<2x16x128xf32>
    %132 = vector.shape_cast %131 : vector<2x16x128xf32> to vector<32x128xf32>
    %c1_110 = arith.constant 1 : index
    %c0_111 = arith.constant 0 : index
    %c0_112 = arith.constant 0 : index
    %133 = vector.load %arg6[%c1_110, %c0_111, %c0_112] : memref<3x128x128xf32, #tpu.memory_space<vmem>>, vector<1x128x128xf32>
    %134 = vector.shape_cast %133 : vector<1x128x128xf32> to vector<128x128xf32>
    %cst_113 = arith.constant dense<0.000000e+00> : vector<32x128xf32>
    %135 = tpu.matmul %132, %134, %cst_113 {dimension_numbers = #tpu.dot_dimension_numbers<[1], [0], [0], [1], [0, 0, 1, 1], [], []>} : vector<32x128xf32>, vector<128x128xf32>, vector<32x128xf32> -> vector<32x128xf32>
    %136 = arith.addf %130, %135 : vector<32x128xf32>
    %c0_114 = arith.constant 0 : index
    %c2_115 = arith.constant 2 : index
    %c0_116 = arith.constant 0 : index
    %137 = vector.load %arg18[%c0_114, %c2_115, %c0_116] : memref<2x24x128xf32, #tpu.memory_space<vmem>>, vector<2x16x128xf32>
    %138 = vector.shape_cast %137 : vector<2x16x128xf32> to vector<32x128xf32>
    %c2_117 = arith.constant 2 : index
    %c0_118 = arith.constant 0 : index
    %c0_119 = arith.constant 0 : index
    %139 = vector.load %arg6[%c2_117, %c0_118, %c0_119] : memref<3x128x128xf32, #tpu.memory_space<vmem>>, vector<1x128x128xf32>
    %140 = vector.shape_cast %139 : vector<1x128x128xf32> to vector<128x128xf32>
    %cst_120 = arith.constant dense<0.000000e+00> : vector<32x128xf32>
    %141 = tpu.matmul %138, %140, %cst_120 {dimension_numbers = #tpu.dot_dimension_numbers<[1], [0], [0], [1], [0, 0, 1, 1], [], []>} : vector<32x128xf32>, vector<128x128xf32>, vector<32x128xf32> -> vector<32x128xf32>
    %142 = arith.addf %136, %141 : vector<32x128xf32>
    %c0_121 = arith.constant 0 : index
    %c0_122 = arith.constant 0 : index
    %143 = vector.load %arg7[%c0_121, %c0_122] : memref<3x128xf32, #tpu.memory_space<vmem>>, vector<1x128xf32>
    %144 = vector.broadcast %143 : vector<1x128xf32> to vector<32x128xf32>
    %145 = arith.addf %142, %144 : vector<32x128xf32>
    %cst_123 = arith.constant 0.000000e+00 : f32
    %146 = vector.broadcast %cst_123 : f32 to vector<32x128xf32>
    %147 = arith.maximumf %145, %146 : vector<32x128xf32>
    %148 = arith.mulf %147, %147 : vector<32x128xf32>
    %149 = tpu.concatenate %147, %148 in 0 : vector<32x128xf32>, vector<32x128xf32> -> vector<64x128xf32>
    %c0_124 = arith.constant 0 : index
    %c0_125 = arith.constant 0 : index
    %150 = vector.load %arg8[%c0_124, %c0_125] : memref<128x128xf32, #tpu.memory_space<vmem>>, vector<128x128xf32>
    %cst_126 = arith.constant dense<0.000000e+00> : vector<64x128xf32>
    %151 = tpu.matmul %149, %150, %cst_126 {dimension_numbers = #tpu.dot_dimension_numbers<[1], [0], [0], [1], [0, 0, 1, 1], [], []>} : vector<64x128xf32>, vector<128x128xf32>, vector<64x128xf32> -> vector<64x128xf32>
    %152 = vector.extract_strided_slice %151 {offsets = [0, 0], sizes = [32, 128], strides = [1, 1]} : vector<64x128xf32> to vector<32x128xf32>
    %cst_127 = arith.constant dense<0.000000e+00> : vector<128xf32>
    %153 = vector.multi_reduction <add>, %152, %cst_127 [0] : vector<32x128xf32> to vector<128xf32>
    %154 = vector.shape_cast %153 : vector<128xf32> to vector<1x128xf32>
    %cst_128 = arith.constant 0.001953125 : f32
    %155 = vector.broadcast %cst_128 : f32 to vector<1x128xf32>
    %156 = arith.mulf %154, %155 : vector<1x128xf32>
    %157 = vector.extract_strided_slice %151 {offsets = [32, 0], sizes = [32, 128], strides = [1, 1]} : vector<64x128xf32> to vector<32x128xf32>
    %cst_129 = arith.constant dense<0.000000e+00> : vector<128xf32>
    %158 = vector.multi_reduction <add>, %157, %cst_129 [0] : vector<32x128xf32> to vector<128xf32>
    %159 = vector.shape_cast %158 : vector<128xf32> to vector<1x128xf32>
    %cst_130 = arith.constant 0.001953125 : f32
    %160 = vector.broadcast %cst_130 : f32 to vector<1x128xf32>
    %161 = arith.mulf %159, %160 : vector<1x128xf32>
    %162 = arith.mulf %156, %156 : vector<1x128xf32>
    %163 = arith.subf %161, %162 : vector<1x128xf32>
    %c1_131 = arith.constant 1 : index
    %c0_132 = arith.constant 0 : index
    %164 = vector.load %arg7[%c1_131, %c0_132] : memref<3x128xf32, #tpu.memory_space<vmem>>, vector<1x128xf32>
    %cst_133 = arith.constant 9.99999974E-6 : f32
    %165 = vector.broadcast %cst_133 : f32 to vector<1x128xf32>
    %166 = arith.addf %163, %165 : vector<1x128xf32>
    %167 = math.rsqrt %166 : vector<1x128xf32>
    %168 = arith.mulf %164, %167 : vector<1x128xf32>
    %169 = vector.broadcast %156 : vector<1x128xf32> to vector<32x128xf32>
    %170 = arith.subf %147, %169 : vector<32x128xf32>
    %171 = vector.broadcast %168 : vector<1x128xf32> to vector<32x128xf32>
    %172 = arith.mulf %170, %171 : vector<32x128xf32>
    %c2_134 = arith.constant 2 : index
    %c0_135 = arith.constant 0 : index
    %173 = vector.load %arg7[%c2_134, %c0_135] : memref<3x128xf32, #tpu.memory_space<vmem>>, vector<1x128xf32>
    %174 = vector.broadcast %173 : vector<1x128xf32> to vector<32x128xf32>
    %175 = arith.addf %172, %174 : vector<32x128xf32>
    %176 = vector.extract_strided_slice %175 {offsets = [0, 0], sizes = [16, 128], strides = [1, 1]} : vector<32x128xf32> to vector<16x128xf32>
    %c0_136 = arith.constant 0 : index
    %c0_137 = arith.constant 0 : index
    %c0_138 = arith.constant 0 : index
    %177 = vector.load %arg19[%c0_136, %c0_137, %c0_138] : memref<2x16x128xf32, #tpu.memory_space<vmem>>, vector<1x16x128xf32>
    %178 = vector.shape_cast %177 : vector<1x16x128xf32> to vector<16x128xf32>
    %179 = vector.shape_cast %176 : vector<16x128xf32> to vector<1x16x128xf32>
    tpu.vector_store %arg19[%c0_136, %c0_137, %c0_138], %179 {strides = array<i32>} : memref<2x16x128xf32, #tpu.memory_space<vmem>>, vector<1x16x128xf32>,
    %180 = vector.extract_strided_slice %175 {offsets = [16, 0], sizes = [16, 128], strides = [1, 1]} : vector<32x128xf32> to vector<16x128xf32>
    %c1_139 = arith.constant 1 : index
    %c0_140 = arith.constant 0 : index
    %c0_141 = arith.constant 0 : index
    %181 = vector.load %arg19[%c1_139, %c0_140, %c0_141] : memref<2x16x128xf32, #tpu.memory_space<vmem>>, vector<1x16x128xf32>
    %182 = vector.shape_cast %181 : vector<1x16x128xf32> to vector<16x128xf32>
    %183 = vector.shape_cast %180 : vector<16x128xf32> to vector<1x16x128xf32>
    tpu.vector_store %arg19[%c1_139, %c0_140, %c0_141], %183 {strides = array<i32>} : memref<2x16x128xf32, #tpu.memory_space<vmem>>, vector<1x16x128xf32>,
    %cst_142 = arith.constant 0.000000e+00 : f32
    %184 = vector.broadcast %cst_142 : f32 to vector<2x512xf32>
    %c0_143 = arith.constant 0 : index
    %c0_144 = arith.constant 0 : index
    %c0_145 = arith.constant 0 : index
    %185 = vector.load %arg19[%c0_143, %c0_144, %c0_145] : memref<2x16x128xf32, #tpu.memory_space<vmem>>, vector<2x1x128xf32>
    %186 = vector.shape_cast %185 : vector<2x1x128xf32> to vector<2x128xf32>
    %c0_146 = arith.constant 0 : index
    %c0_147 = arith.constant 0 : index
    %c0_148 = arith.constant 0 : index
    %187 = vector.load %arg9[%c0_146, %c0_147, %c0_148] : memref<16x128x512xf32, #tpu.memory_space<vmem>>, vector<1x128x512xf32>
    %188 = vector.shape_cast %187 : vector<1x128x512xf32> to vector<128x512xf32>
    %cst_149 = arith.constant dense<0.000000e+00> : vector<2x512xf32>
    %189 = tpu.matmul %186, %188, %cst_149 {dimension_numbers = #tpu.dot_dimension_numbers<[1], [0], [0], [1], [0, 0, 1, 1], [], []>} : vector<2x128xf32>, vector<128x512xf32>, vector<2x512xf32> -> vector<2x512xf32>
    %190 = arith.addf %184, %189 : vector<2x512xf32>
    %c0_150 = arith.constant 0 : index
    %c1_151 = arith.constant 1 : index
    %c0_152 = arith.constant 0 : index
    %191 = vector.load %arg19[%c0_150, %c1_151, %c0_152] : memref<2x16x128xf32, #tpu.memory_space<vmem>>, vector<2x1x128xf32>
    %192 = vector.shape_cast %191 : vector<2x1x128xf32> to vector<2x128xf32>
    %c1_153 = arith.constant 1 : index
    %c0_154 = arith.constant 0 : index
    %c0_155 = arith.constant 0 : index
    %193 = vector.load %arg9[%c1_153, %c0_154, %c0_155] : memref<16x128x512xf32, #tpu.memory_space<vmem>>, vector<1x128x512xf32>
    %194 = vector.shape_cast %193 : vector<1x128x512xf32> to vector<128x512xf32>
    %cst_156 = arith.constant dense<0.000000e+00> : vector<2x512xf32>
    %195 = tpu.matmul %192, %194, %cst_156 {dimension_numbers = #tpu.dot_dimension_numbers<[1], [0], [0], [1], [0, 0, 1, 1], [], []>} : vector<2x128xf32>, vector<128x512xf32>, vector<2x512xf32> -> vector<2x512xf32>
    %196 = arith.addf %190, %195 : vector<2x512xf32>
    %c0_157 = arith.constant 0 : index
    %c2_158 = arith.constant 2 : index
    %c0_159 = arith.constant 0 : index
    %197 = vector.load %arg19[%c0_157, %c2_158, %c0_159] : memref<2x16x128xf32, #tpu.memory_space<vmem>>, vector<2x1x128xf32>
    %198 = vector.shape_cast %197 : vector<2x1x128xf32> to vector<2x128xf32>
    %c2_160 = arith.constant 2 : index
    %c0_161 = arith.constant 0 : index
    %c0_162 = arith.constant 0 : index
    %199 = vector.load %arg9[%c2_160, %c0_161, %c0_162] : memref<16x128x512xf32, #tpu.memory_space<vmem>>, vector<1x128x512xf32>
    %200 = vector.shape_cast %199 : vector<1x128x512xf32> to vector<128x512xf32>
    %cst_163 = arith.constant dense<0.000000e+00> : vector<2x512xf32>
    %201 = tpu.matmul %198, %200, %cst_163 {dimension_numbers = #tpu.dot_dimension_numbers<[1], [0], [0], [1], [0, 0, 1, 1], [], []>} : vector<2x128xf32>, vector<128x512xf32>, vector<2x512xf32> -> vector<2x512xf32>
    %202 = arith.addf %196, %201 : vector<2x512xf32>
    %c0_164 = arith.constant 0 : index
    %c3 = arith.constant 3 : index
    %c0_165 = arith.constant 0 : index
    %203 = vector.load %arg19[%c0_164, %c3, %c0_165] : memref<2x16x128xf32, #tpu.memory_space<vmem>>, vector<2x1x128xf32>
    %204 = vector.shape_cast %203 : vector<2x1x128xf32> to vector<2x128xf32>
    %c3_166 = arith.constant 3 : index
    %c0_167 = arith.constant 0 : index
    %c0_168 = arith.constant 0 : index
    %205 = vector.load %arg9[%c3_166, %c0_167, %c0_168] : memref<16x128x512xf32, #tpu.memory_space<vmem>>, vector<1x128x512xf32>
    %206 = vector.shape_cast %205 : vector<1x128x512xf32> to vector<128x512xf32>
    %cst_169 = arith.constant dense<0.000000e+00> : vector<2x512xf32>
    %207 = tpu.matmul %204, %206, %cst_169 {dimension_numbers = #tpu.dot_dimension_numbers<[1], [0], [0], [1], [0, 0, 1, 1], [], []>} : vector<2x128xf32>, vector<128x512xf32>, vector<2x512xf32> -> vector<2x512xf32>
    %208 = arith.addf %202, %207 : vector<2x512xf32>
    %c0_170 = arith.constant 0 : index
    %c4 = arith.constant 4 : index
    %c0_171 = arith.constant 0 : index
    %209 = vector.load %arg19[%c0_170, %c4, %c0_171] : memref<2x16x128xf32, #tpu.memory_space<vmem>>, vector<2x1x128xf32>
    %210 = vector.shape_cast %209 : vector<2x1x128xf32> to vector<2x128xf32>
    %c4_172 = arith.constant 4 : index
    %c0_173 = arith.constant 0 : index
    %c0_174 = arith.constant 0 : index
    %211 = vector.load %arg9[%c4_172, %c0_173, %c0_174] : memref<16x128x512xf32, #tpu.memory_space<vmem>>, vector<1x128x512xf32>
    %212 = vector.shape_cast %211 : vector<1x128x512xf32> to vector<128x512xf32>
    %cst_175 = arith.constant dense<0.000000e+00> : vector<2x512xf32>
    %213 = tpu.matmul %210, %212, %cst_175 {dimension_numbers = #tpu.dot_dimension_numbers<[1], [0], [0], [1], [0, 0, 1, 1], [], []>} : vector<2x128xf32>, vector<128x512xf32>, vector<2x512xf32> -> vector<2x512xf32>
    %214 = arith.addf %208, %213 : vector<2x512xf32>
    %c0_176 = arith.constant 0 : index
    %c5 = arith.constant 5 : index
    %c0_177 = arith.constant 0 : index
    %215 = vector.load %arg19[%c0_176, %c5, %c0_177] : memref<2x16x128xf32, #tpu.memory_space<vmem>>, vector<2x1x128xf32>
    %216 = vector.shape_cast %215 : vector<2x1x128xf32> to vector<2x128xf32>
    %c5_178 = arith.constant 5 : index
    %c0_179 = arith.constant 0 : index
    %c0_180 = arith.constant 0 : index
    %217 = vector.load %arg9[%c5_178, %c0_179, %c0_180] : memref<16x128x512xf32, #tpu.memory_space<vmem>>, vector<1x128x512xf32>
    %218 = vector.shape_cast %217 : vector<1x128x512xf32> to vector<128x512xf32>
    %cst_181 = arith.constant dense<0.000000e+00> : vector<2x512xf32>
    %219 = tpu.matmul %216, %218, %cst_181 {dimension_numbers = #tpu.dot_dimension_numbers<[1], [0], [0], [1], [0, 0, 1, 1], [], []>} : vector<2x128xf32>, vector<128x512xf32>, vector<2x512xf32> -> vector<2x512xf32>
    %220 = arith.addf %214, %219 : vector<2x512xf32>
    %c0_182 = arith.constant 0 : index
    %c6 = arith.constant 6 : index
    %c0_183 = arith.constant 0 : index
    %221 = vector.load %arg19[%c0_182, %c6, %c0_183] : memref<2x16x128xf32, #tpu.memory_space<vmem>>, vector<2x1x128xf32>
    %222 = vector.shape_cast %221 : vector<2x1x128xf32> to vector<2x128xf32>
    %c6_184 = arith.constant 6 : index
    %c0_185 = arith.constant 0 : index
    %c0_186 = arith.constant 0 : index
    %223 = vector.load %arg9[%c6_184, %c0_185, %c0_186] : memref<16x128x512xf32, #tpu.memory_space<vmem>>, vector<1x128x512xf32>
    %224 = vector.shape_cast %223 : vector<1x128x512xf32> to vector<128x512xf32>
    %cst_187 = arith.constant dense<0.000000e+00> : vector<2x512xf32>
    %225 = tpu.matmul %222, %224, %cst_187 {dimension_numbers = #tpu.dot_dimension_numbers<[1], [0], [0], [1], [0, 0, 1, 1], [], []>} : vector<2x128xf32>, vector<128x512xf32>, vector<2x512xf32> -> vector<2x512xf32>
    %226 = arith.addf %220, %225 : vector<2x512xf32>
    %c0_188 = arith.constant 0 : index
    %c7 = arith.constant 7 : index
    %c0_189 = arith.constant 0 : index
    %227 = vector.load %arg19[%c0_188, %c7, %c0_189] : memref<2x16x128xf32, #tpu.memory_space<vmem>>, vector<2x1x128xf32>
    %228 = vector.shape_cast %227 : vector<2x1x128xf32> to vector<2x128xf32>
    %c7_190 = arith.constant 7 : index
    %c0_191 = arith.constant 0 : index
    %c0_192 = arith.constant 0 : index
    %229 = vector.load %arg9[%c7_190, %c0_191, %c0_192] : memref<16x128x512xf32, #tpu.memory_space<vmem>>, vector<1x128x512xf32>
    %230 = vector.shape_cast %229 : vector<1x128x512xf32> to vector<128x512xf32>
    %cst_193 = arith.constant dense<0.000000e+00> : vector<2x512xf32>
    %231 = tpu.matmul %228, %230, %cst_193 {dimension_numbers = #tpu.dot_dimension_numbers<[1], [0], [0], [1], [0, 0, 1, 1], [], []>} : vector<2x128xf32>, vector<128x512xf32>, vector<2x512xf32> -> vector<2x512xf32>
    %232 = arith.addf %226, %231 : vector<2x512xf32>
    %c0_194 = arith.constant 0 : index
    %c8 = arith.constant 8 : index
    %c0_195 = arith.constant 0 : index
    %233 = vector.load %arg19[%c0_194, %c8, %c0_195] : memref<2x16x128xf32, #tpu.memory_space<vmem>>, vector<2x1x128xf32>
    %234 = vector.shape_cast %233 : vector<2x1x128xf32> to vector<2x128xf32>
    %c8_196 = arith.constant 8 : index
    %c0_197 = arith.constant 0 : index
    %c0_198 = arith.constant 0 : index
    %235 = vector.load %arg9[%c8_196, %c0_197, %c0_198] : memref<16x128x512xf32, #tpu.memory_space<vmem>>, vector<1x128x512xf32>
    %236 = vector.shape_cast %235 : vector<1x128x512xf32> to vector<128x512xf32>
    %cst_199 = arith.constant dense<0.000000e+00> : vector<2x512xf32>
    %237 = tpu.matmul %234, %236, %cst_199 {dimension_numbers = #tpu.dot_dimension_numbers<[1], [0], [0], [1], [0, 0, 1, 1], [], []>} : vector<2x128xf32>, vector<128x512xf32>, vector<2x512xf32> -> vector<2x512xf32>
    %238 = arith.addf %232, %237 : vector<2x512xf32>
    %c0_200 = arith.constant 0 : index
    %c9 = arith.constant 9 : index
    %c0_201 = arith.constant 0 : index
    %239 = vector.load %arg19[%c0_200, %c9, %c0_201] : memref<2x16x128xf32, #tpu.memory_space<vmem>>, vector<2x1x128xf32>
    %240 = vector.shape_cast %239 : vector<2x1x128xf32> to vector<2x128xf32>
    %c9_202 = arith.constant 9 : index
    %c0_203 = arith.constant 0 : index
    %c0_204 = arith.constant 0 : index
    %241 = vector.load %arg9[%c9_202, %c0_203, %c0_204] : memref<16x128x512xf32, #tpu.memory_space<vmem>>, vector<1x128x512xf32>
    %242 = vector.shape_cast %241 : vector<1x128x512xf32> to vector<128x512xf32>
    %cst_205 = arith.constant dense<0.000000e+00> : vector<2x512xf32>
    %243 = tpu.matmul %240, %242, %cst_205 {dimension_numbers = #tpu.dot_dimension_numbers<[1], [0], [0], [1], [0, 0, 1, 1], [], []>} : vector<2x128xf32>, vector<128x512xf32>, vector<2x512xf32> -> vector<2x512xf32>
    %244 = arith.addf %238, %243 : vector<2x512xf32>
    %c0_206 = arith.constant 0 : index
    %c10 = arith.constant 10 : index
    %c0_207 = arith.constant 0 : index
    %245 = vector.load %arg19[%c0_206, %c10, %c0_207] : memref<2x16x128xf32, #tpu.memory_space<vmem>>, vector<2x1x128xf32>
    %246 = vector.shape_cast %245 : vector<2x1x128xf32> to vector<2x128xf32>
    %c10_208 = arith.constant 10 : index
    %c0_209 = arith.constant 0 : index
    %c0_210 = arith.constant 0 : index
    %247 = vector.load %arg9[%c10_208, %c0_209, %c0_210] : memref<16x128x512xf32, #tpu.memory_space<vmem>>, vector<1x128x512xf32>
    %248 = vector.shape_cast %247 : vector<1x128x512xf32> to vector<128x512xf32>
    %cst_211 = arith.constant dense<0.000000e+00> : vector<2x512xf32>
    %249 = tpu.matmul %246, %248, %cst_211 {dimension_numbers = #tpu.dot_dimension_numbers<[1], [0], [0], [1], [0, 0, 1, 1], [], []>} : vector<2x128xf32>, vector<128x512xf32>, vector<2x512xf32> -> vector<2x512xf32>
    %250 = arith.addf %244, %249 : vector<2x512xf32>
    %c0_212 = arith.constant 0 : index
    %c11 = arith.constant 11 : index
    %c0_213 = arith.constant 0 : index
    %251 = vector.load %arg19[%c0_212, %c11, %c0_213] : memref<2x16x128xf32, #tpu.memory_space<vmem>>, vector<2x1x128xf32>
    %252 = vector.shape_cast %251 : vector<2x1x128xf32> to vector<2x128xf32>
    %c11_214 = arith.constant 11 : index
    %c0_215 = arith.constant 0 : index
    %c0_216 = arith.constant 0 : index
    %253 = vector.load %arg9[%c11_214, %c0_215, %c0_216] : memref<16x128x512xf32, #tpu.memory_space<vmem>>, vector<1x128x512xf32>
    %254 = vector.shape_cast %253 : vector<1x128x512xf32> to vector<128x512xf32>
    %cst_217 = arith.constant dense<0.000000e+00> : vector<2x512xf32>
    %255 = tpu.matmul %252, %254, %cst_217 {dimension_numbers = #tpu.dot_dimension_numbers<[1], [0], [0], [1], [0, 0, 1, 1], [], []>} : vector<2x128xf32>, vector<128x512xf32>, vector<2x512xf32> -> vector<2x512xf32>
    %256 = arith.addf %250, %255 : vector<2x512xf32>
    %c0_218 = arith.constant 0 : index
    %c12 = arith.constant 12 : index
    %c0_219 = arith.constant 0 : index
    %257 = vector.load %arg19[%c0_218, %c12, %c0_219] : memref<2x16x128xf32, #tpu.memory_space<vmem>>, vector<2x1x128xf32>
    %258 = vector.shape_cast %257 : vector<2x1x128xf32> to vector<2x128xf32>
    %c12_220 = arith.constant 12 : index
    %c0_221 = arith.constant 0 : index
    %c0_222 = arith.constant 0 : index
    %259 = vector.load %arg9[%c12_220, %c0_221, %c0_222] : memref<16x128x512xf32, #tpu.memory_space<vmem>>, vector<1x128x512xf32>
    %260 = vector.shape_cast %259 : vector<1x128x512xf32> to vector<128x512xf32>
    %cst_223 = arith.constant dense<0.000000e+00> : vector<2x512xf32>
    %261 = tpu.matmul %258, %260, %cst_223 {dimension_numbers = #tpu.dot_dimension_numbers<[1], [0], [0], [1], [0, 0, 1, 1], [], []>} : vector<2x128xf32>, vector<128x512xf32>, vector<2x512xf32> -> vector<2x512xf32>
    %262 = arith.addf %256, %261 : vector<2x512xf32>
    %c0_224 = arith.constant 0 : index
    %c13 = arith.constant 13 : index
    %c0_225 = arith.constant 0 : index
    %263 = vector.load %arg19[%c0_224, %c13, %c0_225] : memref<2x16x128xf32, #tpu.memory_space<vmem>>, vector<2x1x128xf32>
    %264 = vector.shape_cast %263 : vector<2x1x128xf32> to vector<2x128xf32>
    %c13_226 = arith.constant 13 : index
    %c0_227 = arith.constant 0 : index
    %c0_228 = arith.constant 0 : index
    %265 = vector.load %arg9[%c13_226, %c0_227, %c0_228] : memref<16x128x512xf32, #tpu.memory_space<vmem>>, vector<1x128x512xf32>
    %266 = vector.shape_cast %265 : vector<1x128x512xf32> to vector<128x512xf32>
    %cst_229 = arith.constant dense<0.000000e+00> : vector<2x512xf32>
    %267 = tpu.matmul %264, %266, %cst_229 {dimension_numbers = #tpu.dot_dimension_numbers<[1], [0], [0], [1], [0, 0, 1, 1], [], []>} : vector<2x128xf32>, vector<128x512xf32>, vector<2x512xf32> -> vector<2x512xf32>
    %268 = arith.addf %262, %267 : vector<2x512xf32>
    %c0_230 = arith.constant 0 : index
    %c14 = arith.constant 14 : index
    %c0_231 = arith.constant 0 : index
    %269 = vector.load %arg19[%c0_230, %c14, %c0_231] : memref<2x16x128xf32, #tpu.memory_space<vmem>>, vector<2x1x128xf32>
    %270 = vector.shape_cast %269 : vector<2x1x128xf32> to vector<2x128xf32>
    %c14_232 = arith.constant 14 : index
    %c0_233 = arith.constant 0 : index
    %c0_234 = arith.constant 0 : index
    %271 = vector.load %arg9[%c14_232, %c0_233, %c0_234] : memref<16x128x512xf32, #tpu.memory_space<vmem>>, vector<1x128x512xf32>
    %272 = vector.shape_cast %271 : vector<1x128x512xf32> to vector<128x512xf32>
    %cst_235 = arith.constant dense<0.000000e+00> : vector<2x512xf32>
    %273 = tpu.matmul %270, %272, %cst_235 {dimension_numbers = #tpu.dot_dimension_numbers<[1], [0], [0], [1], [0, 0, 1, 1], [], []>} : vector<2x128xf32>, vector<128x512xf32>, vector<2x512xf32> -> vector<2x512xf32>
    %274 = arith.addf %268, %273 : vector<2x512xf32>
    %c0_236 = arith.constant 0 : index
    %c15 = arith.constant 15 : index
    %c0_237 = arith.constant 0 : index
    %275 = vector.load %arg19[%c0_236, %c15, %c0_237] : memref<2x16x128xf32, #tpu.memory_space<vmem>>, vector<2x1x128xf32>
    %276 = vector.shape_cast %275 : vector<2x1x128xf32> to vector<2x128xf32>
    %c15_238 = arith.constant 15 : index
    %c0_239 = arith.constant 0 : index
    %c0_240 = arith.constant 0 : index
    %277 = vector.load %arg9[%c15_238, %c0_239, %c0_240] : memref<16x128x512xf32, #tpu.memory_space<vmem>>, vector<1x128x512xf32>
    %278 = vector.shape_cast %277 : vector<1x128x512xf32> to vector<128x512xf32>
    %cst_241 = arith.constant dense<0.000000e+00> : vector<2x512xf32>
    %279 = tpu.matmul %276, %278, %cst_241 {dimension_numbers = #tpu.dot_dimension_numbers<[1], [0], [0], [1], [0, 0, 1, 1], [], []>} : vector<2x128xf32>, vector<128x512xf32>, vector<2x512xf32> -> vector<2x512xf32>
    %280 = arith.addf %274, %279 : vector<2x512xf32>
    %c0_242 = arith.constant 0 : index
    %c0_243 = arith.constant 0 : index
    %281 = vector.load %arg10[%c0_242, %c0_243] : memref<1x512xf32, #tpu.memory_space<vmem>>, vector<1x512xf32>
    %282 = vector.broadcast %281 : vector<1x512xf32> to vector<2x512xf32>
    %283 = arith.addf %280, %282 : vector<2x512xf32>
    %cst_244 = arith.constant 0.000000e+00 : f32
    %284 = vector.broadcast %cst_244 : f32 to vector<2x512xf32>
    %285 = arith.maximumf %283, %284 : vector<2x512xf32>
    %c0_245 = arith.constant 0 : index
    %c0_246 = arith.constant 0 : index
    %286 = vector.load %arg11[%c0_245, %c0_246] : memref<512x512xf32, #tpu.memory_space<vmem>>, vector<512x512xf32>
    %cst_247 = arith.constant dense<0.000000e+00> : vector<2x512xf32>
    %287 = tpu.matmul %285, %286, %cst_247 {dimension_numbers = #tpu.dot_dimension_numbers<[1], [0], [0], [1], [0, 0, 1, 1], [], []>} : vector<2x512xf32>, vector<512x512xf32>, vector<2x512xf32> -> vector<2x512xf32>
    %c0_248 = arith.constant 0 : index
    %c0_249 = arith.constant 0 : index
    %288 = vector.load %arg12[%c0_248, %c0_249] : memref<1x512xf32, #tpu.memory_space<vmem>>, vector<1x512xf32>
    %289 = vector.broadcast %288 : vector<1x512xf32> to vector<2x512xf32>
    %290 = arith.addf %287, %289 : vector<2x512xf32>
    %cst_250 = arith.constant 0.000000e+00 : f32
    %291 = vector.broadcast %cst_250 : f32 to vector<2x512xf32>
    %292 = arith.maximumf %290, %291 : vector<2x512xf32>
    %c0_251 = arith.constant 0 : index
    %c0_252 = arith.constant 0 : index
    %293 = vector.load %arg13[%c0_251, %c0_252] : memref<512x128xf32, #tpu.memory_space<vmem>>, vector<512x128xf32>
    %cst_253 = arith.constant dense<0.000000e+00> : vector<2x128xf32>
    %294 = tpu.matmul %292, %293, %cst_253 {dimension_numbers = #tpu.dot_dimension_numbers<[1], [0], [0], [1], [0, 0, 1, 1], [], []>} : vector<2x512xf32>, vector<512x128xf32>, vector<2x128xf32> -> vector<2x128xf32>
    %c0_254 = arith.constant 0 : index
    %c0_255 = arith.constant 0 : index
    %295 = vector.load %arg14[%c0_254, %c0_255] : memref<1x128xf32, #tpu.memory_space<vmem>>, vector<1x128xf32>
    %296 = vector.broadcast %295 : vector<1x128xf32> to vector<2x128xf32>
    %297 = arith.addf %294, %296 : vector<2x128xf32>
    %c0_256 = arith.constant 0 : index
    %c0_257 = arith.constant 0 : index
    %c0_258 = arith.constant 0 : index
    %298 = vector.load %arg15[%c0_256, %c0_257, %c0_258] : memref<1x2x128xf32, #tpu.memory_space<vmem>>, vector<1x2x128xf32>
    %299 = vector.shape_cast %298 : vector<1x2x128xf32> to vector<2x128xf32>
    %300 = vector.shape_cast %297 : vector<2x128xf32> to vector<1x2x128xf32>
    tpu.vector_store %arg15[%c0_256, %c0_257, %c0_258], %300 {strides = array<i32>} : memref<1x2x128xf32, #tpu.memory_space<vmem>>, vector<1x2x128xf32>,
    return
  }
  func.func @transform_0(%arg0: i32) -> (i32, i32, i32) {
    %c0_i32 = arith.constant 0 : i32
    %c0_i32_0 = arith.constant 0 : i32
    %c0_i32_1 = arith.constant 0 : i32
    return %arg0, %c0_i32, %c0_i32_0 : i32, i32, i32
  }
  func.func @transform_1(%arg0: i32) -> (i32, i32, i32) {
    %c0_i32 = arith.constant 0 : i32
    %c0_i32_0 = arith.constant 0 : i32
    %c0_i32_1 = arith.constant 0 : i32
    %c0_i32_2 = arith.constant 0 : i32
    return %c0_i32, %c0_i32_0, %c0_i32_1 : i32, i32, i32
  }
  func.func @transform_2(%arg0: i32) -> (i32, i32) {
    %c0_i32 = arith.constant 0 : i32
    %c0_i32_0 = arith.constant 0 : i32
    %c0_i32_1 = arith.constant 0 : i32
    return %c0_i32, %c0_i32_0 : i32, i32
  }
  func.func @transform_3(%arg0: i32) -> (i32, i32, i32) {
    %c0_i32 = arith.constant 0 : i32
    %c0_i32_0 = arith.constant 0 : i32
    %c0_i32_1 = arith.constant 0 : i32
    %c0_i32_2 = arith.constant 0 : i32
    return %c0_i32, %c0_i32_0, %c0_i32_1 : i32, i32, i32
  }
  func.func @transform_4(%arg0: i32) -> (i32, i32) {
    %c0_i32 = arith.constant 0 : i32
    %c0_i32_0 = arith.constant 0 : i32
    %c0_i32_1 = arith.constant 0 : i32
    return %c0_i32, %c0_i32_0 : i32, i32
  }
  func.func @transform_5(%arg0: i32) -> (i32, i32, i32) {
    %c0_i32 = arith.constant 0 : i32
    %c0_i32_0 = arith.constant 0 : i32
    %c0_i32_1 = arith.constant 0 : i32
    %c0_i32_2 = arith.constant 0 : i32
    return %c0_i32, %c0_i32_0, %c0_i32_1 : i32, i32, i32
  }
  func.func @transform_6(%arg0: i32) -> (i32, i32) {
    %c0_i32 = arith.constant 0 : i32
    %c0_i32_0 = arith.constant 0 : i32
    %c0_i32_1 = arith.constant 0 : i32
    return %c0_i32, %c0_i32_0 : i32, i32
  }
  func.func @transform_7(%arg0: i32) -> (i32, i32) {
    %c0_i32 = arith.constant 0 : i32
    %c0_i32_0 = arith.constant 0 : i32
    %c0_i32_1 = arith.constant 0 : i32
    return %c0_i32, %c0_i32_0 : i32, i32
  }
  func.func @transform_8(%arg0: i32) -> (i32, i32, i32) {
    %c0_i32 = arith.constant 0 : i32
    %c0_i32_0 = arith.constant 0 : i32
    %c0_i32_1 = arith.constant 0 : i32
    %c0_i32_2 = arith.constant 0 : i32
    return %c0_i32, %c0_i32_0, %c0_i32_1 : i32, i32, i32
  }
  func.func @transform_9(%arg0: i32) -> (i32, i32) {
    %c0_i32 = arith.constant 0 : i32
    %c0_i32_0 = arith.constant 0 : i32
    %c0_i32_1 = arith.constant 0 : i32
    return %c0_i32, %c0_i32_0 : i32, i32
  }
  func.func @transform_10(%arg0: i32) -> (i32, i32) {
    %c0_i32 = arith.constant 0 : i32
    %c0_i32_0 = arith.constant 0 : i32
    %c0_i32_1 = arith.constant 0 : i32
    return %c0_i32, %c0_i32_0 : i32, i32
  }
  func.func @transform_11(%arg0: i32) -> (i32, i32) {
    %c0_i32 = arith.constant 0 : i32
    %c0_i32_0 = arith.constant 0 : i32
    %c0_i32_1 = arith.constant 0 : i32
    return %c0_i32, %c0_i32_0 : i32, i32
  }
  func.func @transform_12(%arg0: i32) -> (i32, i32) {
    %c0_i32 = arith.constant 0 : i32
    %c0_i32_0 = arith.constant 0 : i32
    %c0_i32_1 = arith.constant 0 : i32
    return %c0_i32, %c0_i32_0 : i32, i32
  }
  func.func @transform_13(%arg0: i32) -> (i32, i32) {
    %c0_i32 = arith.constant 0 : i32
    %c0_i32_0 = arith.constant 0 : i32
    %c0_i32_1 = arith.constant 0 : i32
    return %c0_i32, %c0_i32_0 : i32, i32
  }
  func.func @transform_14(%arg0: i32) -> (i32, i32, i32) {
    %c0_i32 = arith.constant 0 : i32
    %c0_i32_0 = arith.constant 0 : i32
    %c0_i32_1 = arith.constant 0 : i32
    return %arg0, %c0_i32, %c0_i32_0 : i32, i32, i32
  }
}

</mosaic_0001>

<llo_original>
// kernel: _lambda_.1
$region0: #{_lambda_.1}
  #allocation0 [shape = 'u32[]', space=smem, size = 0x4, offset = 0x4, fixed_abs, tag = 'smem constant byte address 0x4 - core index']
  #allocation1 [shape = 'u32[144,128]{1,0:T(1,128)}', space=vmem, size = 0x12000, scoped, tag = 'internal scratch']
  #allocation2 [shape = 'f32[2,24,16]{2,1,0:T(8,128)}', space=vmem, size = 0x6000, scoped, tag = 'scratch operand']
  #allocation3 [shape = 'f32[2,24,128]{2,1,0:T(8,128)}', space=vmem, size = 0x6000, scoped, tag = 'scratch operand']
  #allocation4 [shape = 'f32[2,24,128]{2,1,0:T(8,128)}', space=vmem, size = 0x6000, scoped, tag = 'scratch operand']
  #allocation5 [shape = 'f32[2,16,128]{2,1,0:T(8,128)}', space=vmem, size = 0x4000, scoped, tag = 'scratch operand']
  %s0 = inlined_call_operand.vmem [shape: f32[2,32,16], index: 0, kind: input, shape index: {}]
  %s1 = inlined_call_operand.hbm [shape: f32[3,16,128], index: 1, kind: input, shape index: {}]
  %s2 = inlined_call_operand.hbm [shape: f32[3,128], index: 2, kind: input, shape index: {}]
  %s3 = inlined_call_operand.hbm [shape: f32[3,128,128], index: 3, kind: input, shape index: {}]
  %s4 = inlined_call_operand.hbm [shape: f32[3,128], index: 4, kind: input, shape index: {}]
  %s5 = inlined_call_operand.hbm [shape: f32[3,128,128], index: 5, kind: input, shape index: {}]
  %s6 = inlined_call_operand.hbm [shape: f32[3,128], index: 6, kind: input, shape index: {}]
  %s7 = inlined_call_operand.hbm [shape: f32[128,128], index: 7, kind: input, shape index: {}]
  %s8 = inlined_call_operand.hbm [shape: f32[16,128,512], index: 8, kind: input, shape index: {}]
  %s9 = inlined_call_operand.hbm [shape: f32[1,512], index: 9, kind: input, shape index: {}]
  %s10 = inlined_call_operand.hbm [shape: f32[512,512], index: 10, kind: input, shape index: {}]
  %s11 = inlined_call_operand.hbm [shape: f32[1,512], index: 11, kind: input, shape index: {}]
  %s12 = inlined_call_operand.hbm [shape: f32[512,128], index: 12, kind: input, shape index: {}]
  %s13 = inlined_call_operand.hbm [shape: f32[1,128], index: 13, kind: input, shape index: {}]
  %s14 = inlined_call_operand.vmem [shape: f32[2,2,128], index: 14, kind: output, shape index: {}]
  %s15 = sld [smem:[#allocation0]]
  $region141: #{_lambda_.1} parent=0
    _
  %s17 = ssub.s32 1, %s15
  %s18 = scalar_select 0, %s17, %s15
  $region1: #{_lambda_.1} parent=0
    #allocation6 [shape = 'u8[24576]{0}', space=vmem, size = 0x6000, scoped, tag = 'input window, operand 1, single buffered']
    #allocation7 [shape = 's32[2]{0}', space=sflag, size = 0x8, scoped, tag = 'scoped memory for _lambda_.1']
    #allocation8 [shape = 'u8[2048]{0}', space=vmem, size = 0x800, scoped, tag = 'input window, operand 2, single buffered']
    #allocation9 [shape = 's32[1]{0}', space=sflag, size = 0x4, scoped, tag = 'scoped memory for _lambda_.1']
    #allocation10 [shape = 'u8[196608]{0}', space=vmem, size = 0x30000, scoped, tag = 'input window, operand 3, single buffered']
    #allocation11 [shape = 'u8[2048]{0}', space=vmem, size = 0x800, scoped, tag = 'input window, operand 4, single buffered']
    #allocation12 [shape = 's32[1]{0}', space=sflag, size = 0x4, scoped, tag = 'scoped memory for _lambda_.1']
    #allocation13 [shape = 'u8[196608]{0}', space=vmem, size = 0x30000, scoped, tag = 'input window, operand 5, single buffered']
    #allocation14 [shape = 'u8[2048]{0}', space=vmem, size = 0x800, scoped, tag = 'input window, operand 6, single buffered']
    #allocation15 [shape = 's32[1]{0}', space=sflag, size = 0x4, scoped, tag = 'scoped memory for _lambda_.1']
    #allocation16 [shape = 'u8[65536]{0}', space=vmem, size = 0x10000, scoped, tag = 'input window, operand 7, single buffered']
    #allocation17 [shape = 'u8[4194304]{0}', space=vmem, size = 0x400000, scoped, tag = 'input window, operand 8, single buffered']
    #allocation18 [shape = 's32[1]{0}', space=sflag, size = 0x4, scoped, tag = 'scoped memory for _lambda_.1']
    #allocation19 [shape = 'u8[2048]{0}', space=vmem, size = 0x800, scoped, tag = 'input window, operand 9, single buffered']
    #allocation20 [shape = 'u8[1048576]{0}', space=vmem, size = 0x100000, scoped, tag = 'input window, operand 10, single buffered']
    #allocation21 [shape = 's32[1]{0}', space=sflag, size = 0x4, scoped, tag = 'scoped memory for _lambda_.1']
    #allocation22 [shape = 'u8[2048]{0}', space=vmem, size = 0x800, scoped, tag = 'input window, operand 11, single buffered']
    #allocation23 [shape = 'u8[262144]{0}', space=vmem, size = 0x40000, scoped, tag = 'input window, operand 12, single buffered']
    #allocation24 [shape = 's32[1]{0}', space=sflag, size = 0x4, scoped, tag = 'scoped memory for _lambda_.1']
    #allocation25 [shape = 'u8[512]{0}', space=vmem, size = 0x400, scoped, tag = 'input window, operand 13, single buffered']
    %19 = vsyncpa [#allocation7], 0
    %20 = vsyncpa [#allocation9], 0
    %21 = vsyncpa [#allocation12], 0
    %22 = vsyncpa [#allocation15], 0
    %23 = vsyncpa [#allocation18], 0
    %24 = vsyncpa [#allocation21], 0
    %25 = vsyncpa [#allocation24], 0
    loop: start=0, step=1, limit=4
    $region2: #{_lambda_.1} parent=1 // loop_pre_header
      _
    $region3: #{_lambda_.1} parent=1 // loop_header
      %s27 = sphi 0, %s31
      %p28 = scmp.ge.s32.totalorder %s27, 4
      %s37 = sphi 0, %s39
      %s40 = sphi 0, %s37
      %s41 = sphi 0, %s40
      %s57 = sphi 0, %s41
      %s61 = sphi 0, %s61
      %s63 = sphi 0, %s61
      %s64 = sphi 0, %s63
      %s78 = sphi 0, %s64
      %s82 = sphi 0, %s82
      %s84 = sphi 0, %s82
      %s85 = sphi 0, %s84
      %s99 = sphi 0, %s85
      %s103 = sphi 0, %s103
      %s105 = sphi 0, %s103
      %s106 = sphi 0, %s105
      %s120 = sphi 0, %s106
      %s124 = sphi 0, %s124
      %s126 = sphi 0, %s124
      %s127 = sphi 0, %s126
      %s141 = sphi 0, %s127
      %s145 = sphi 0, %s145
      %s147 = sphi 0, %s145
      %s148 = sphi 0, %s147
      %s162 = sphi 0, %s148
      %s166 = sphi 0, %s166
      %s168 = sphi 0, %s166
      %s169 = sphi 0, %s168
      %s183 = sphi 0, %s169
      %s187 = sphi 0, %s187
      %s189 = sphi 0, %s187
      %s190 = sphi 0, %s189
      %s204 = sphi 0, %s190
      %s208 = sphi 0, %s208
      %s210 = sphi 0, %s208
      %s211 = sphi 0, %s210
      %s225 = sphi 0, %s211
      %s229 = sphi 0, %s229
      %s231 = sphi 0, %s229
      %s232 = sphi 0, %s231
      %s246 = sphi 0, %s232
      %s250 = sphi 0, %s250
      %s252 = sphi 0, %s250
      %s253 = sphi 0, %s252
      %s267 = sphi 0, %s253
      %s271 = sphi 0, %s271
      %s273 = sphi 0, %s271
      %s274 = sphi 0, %s273
      %s288 = sphi 0, %s274
      %s292 = sphi 0, %s292
      %s294 = sphi 0, %s292
      %s295 = sphi 0, %s294
      %s309 = sphi 0, %s295
      %s313 = sphi 0, %s313
      %s315 = sphi 0, %s313
      %s316 = sphi 0, %s315
      %s330 = sphi 0, %s316
      %s336 = sphi 0, %s338
      %s339 = sphi 0, %s336
      %s340 = sphi 0, %s339
      %s356 = sphi 0, %s340
    $region4: #{_lambda_.1} parent=1 // loop_header_branch
      %30 = sbr.rel (%p28) target = $region8
    $region5: #{_lambda_.1} parent=1 // loop_body
      %s32 = ssub.s32 %s27, 1
      %s33 = ssub.s32 %s27, 2
      %s34 = sadd.s32 %s27, 1
      %s35 = ssub.s32 %s27, %s34
      %p36 = scmp.eq.s32.totalorder %s35, 0
      %s38 = sadd.s32 %s37, 1
      %s39 = scalar_select %p36, %s37, %s38
      %p42 = pneg %p36
      %p43 = scmp.eq.s32.totalorder %s27, 1
      %p44 = por %p42, %p43
      %p45 = scmp.ne.s32.totalorder %s37, %s40
      %p46 = scmp.eq.s32.totalorder %s27, 0
      %p47 = por %p45, %p46
      %p48 = scmp.ne.s32.totalorder %s37, %s40
      %p49 = scmp.eq.s32.totalorder %s32, 1
      %p50 = por %p48, %p49
      %p51 = scmp.ne.s32.totalorder %s40, %s41
      %p52 = scmp.eq.s32.totalorder %s32, 0
      %p53 = por %p51, %p52
      %p54 = scmp.ne.s32.totalorder %s40, %s41
      %p55 = scmp.eq.s32.totalorder %s33, 1
      %p56 = por %p54, %p55
      %p58 = scmp.ne.s32.totalorder %s41, %s57
      %p59 = scmp.eq.s32.totalorder %s33, 0
      %p60 = por %p58, %p59
      %s62 = sadd.s32 %s61, 1
      %p65 = scmp.eq.s32.totalorder %s27, 1
      %p66 = scmp.ne.s32.totalorder %s61, %s63
      %p67 = scmp.eq.s32.totalorder %s27, 0
      %p68 = por %p66, %p67
      %p69 = scmp.ne.s32.totalorder %s61, %s63
      %p70 = scmp.eq.s32.totalorder %s32, 1
      %p71 = por %p69, %p70
      %p72 = scmp.ne.s32.totalorder %s63, %s64
      %p73 = scmp.eq.s32.totalorder %s32, 0
      %p74 = por %p72, %p73
      %p75 = scmp.ne.s32.totalorder %s63, %s64
      %p76 = scmp.eq.s32.totalorder %s33, 1
      %p77 = por %p75, %p76
      %p79 = scmp.ne.s32.totalorder %s64, %s78
      %p80 = scmp.eq.s32.totalorder %s33, 0
      %p81 = por %p79, %p80
      %s83 = sadd.s32 %s82, 1
      %p86 = scmp.eq.s32.totalorder %s27, 1
      %p87 = scmp.ne.s32.totalorder %s82, %s84
      %p88 = scmp.eq.s32.totalorder %s27, 0
      %p89 = por %p87, %p88
      %p90 = scmp.ne.s32.totalorder %s82, %s84
      %p91 = scmp.eq.s32.totalorder %s32, 1
      %p92 = por %p90, %p91
      %p93 = scmp.ne.s32.totalorder %s84, %s85
      %p94 = scmp.eq.s32.totalorder %s32, 0
      %p95 = por %p93, %p94
      %p96 = scmp.ne.s32.totalorder %s84, %s85
      %p97 = scmp.eq.s32.totalorder %s33, 1
      %p98 = por %p96, %p97
      %p100 = scmp.ne.s32.totalorder %s85, %s99
      %p101 = scmp.eq.s32.totalorder %s33, 0
      %p102 = por %p100, %p101
      %s104 = sadd.s32 %s103, 1
      %p107 = scmp.eq.s32.totalorder %s27, 1
      %p108 = scmp.ne.s32.totalorder %s103, %s105
      %p109 = scmp.eq.s32.totalorder %s27, 0
      %p110 = por %p108, %p109
      %p111 = scmp.ne.s32.totalorder %s103, %s105
      %p112 = scmp.eq.s32.totalorder %s32, 1
      %p113 = por %p111, %p112
      %p114 = scmp.ne.s32.totalorder %s105, %s106
      %p115 = scmp.eq.s32.totalorder %s32, 0
      %p116 = por %p114, %p115
      %p117 = scmp.ne.s32.totalorder %s105, %s106
      %p118 = scmp.eq.s32.totalorder %s33, 1
      %p119 = por %p117, %p118
      %p121 = scmp.ne.s32.totalorder %s106, %s120
      %p122 = scmp.eq.s32.totalorder %s33, 0
      %p123 = por %p121, %p122
      %s125 = sadd.s32 %s124, 1
      %p128 = scmp.eq.s32.totalorder %s27, 1
      %p129 = scmp.ne.s32.totalorder %s124, %s126
      %p130 = scmp.eq.s32.totalorder %s27, 0
      %p131 = por %p129, %p130
      %p132 = scmp.ne.s32.totalorder %s124, %s126
      %p133 = scmp.eq.s32.totalorder %s32, 1
      %p134 = por %p132, %p133
      %p135 = scmp.ne.s32.totalorder %s126, %s127
      %p136 = scmp.eq.s32.totalorder %s32, 0
      %p137 = por %p135, %p136
      %p138 = scmp.ne.s32.totalorder %s126, %s127
      %p139 = scmp.eq.s32.totalorder %s33, 1
      %p140 = por %p138, %p139
      %p142 = scmp.ne.s32.totalorder %s127, %s141
      %p143 = scmp.eq.s32.totalorder %s33, 0
      %p144 = por %p142, %p143
      %s146 = sadd.s32 %s145, 1
      %p149 = scmp.eq.s32.totalorder %s27, 1
      %p150 = scmp.ne.s32.totalorder %s145, %s147
      %p151 = scmp.eq.s32.totalorder %s27, 0
      %p152 = por %p150, %p151
      %p153 = scmp.ne.s32.totalorder %s145, %s147
      %p154 = scmp.eq.s32.totalorder %s32, 1
      %p155 = por %p153, %p154
      %p156 = scmp.ne.s32.totalorder %s147, %s148
      %p157 = scmp.eq.s32.totalorder %s32, 0
      %p158 = por %p156, %p157
      %p159 = scmp.ne.s32.totalorder %s147, %s148
      %p160 = scmp.eq.s32.totalorder %s33, 1
      %p161 = por %p159, %p160
      %p163 = scmp.ne.s32.totalorder %s148, %s162
      %p164 = scmp.eq.s32.totalorder %s33, 0
      %p165 = por %p163, %p164
      %s167 = sadd.s32 %s166, 1
      %p170 = scmp.eq.s32.totalorder %s27, 1
      %p171 = scmp.ne.s32.totalorder %s166, %s168
      %p172 = scmp.eq.s32.totalorder %s27, 0
      %p173 = por %p171, %p172
      %p174 = scmp.ne.s32.totalorder %s166, %s168
      %p175 = scmp.eq.s32.totalorder %s32, 1
      %p176 = por %p174, %p175
      %p177 = scmp.ne.s32.totalorder %s168, %s169
      %p178 = scmp.eq.s32.totalorder %s32, 0
      %p179 = por %p177, %p178
      %p180 = scmp.ne.s32.totalorder %s168, %s169
      %p181 = scmp.eq.s32.totalorder %s33, 1
      %p182 = por %p180, %p181
      %p184 = scmp.ne.s32.totalorder %s169, %s183
      %p185 = scmp.eq.s32.totalorder %s33, 0
      %p186 = por %p184, %p185
      %s188 = sadd.s32 %s187, 1
      %p191 = scmp.eq.s32.totalorder %s27, 1
      %p192 = scmp.ne.s32.totalorder %s187, %s189
      %p193 = scmp.eq.s32.totalorder %s27, 0
      %p194 = por %p192, %p193
      %p195 = scmp.ne.s32.totalorder %s187, %s189
      %p196 = scmp.eq.s32.totalorder %s32, 1
      %p197 = por %p195, %p196
      %p198 = scmp.ne.s32.totalorder %s189, %s190
      %p199 = scmp.eq.s32.totalorder %s32, 0
      %p200 = por %p198, %p199
      %p201 = scmp.ne.s32.totalorder %s189, %s190
      %p202 = scmp.eq.s32.totalorder %s33, 1
      %p203 = por %p201, %p202
      %p205 = scmp.ne.s32.totalorder %s190, %s204
      %p206 = scmp.eq.s32.totalorder %s33, 0
      %p207 = por %p205, %p206
      %s209 = sadd.s32 %s208, 1
      %p212 = scmp.eq.s32.totalorder %s27, 1
      %p213 = scmp.ne.s32.totalorder %s208, %s210
      %p214 = scmp.eq.s32.totalorder %s27, 0
      %p215 = por %p213, %p214
      %p216 = scmp.ne.s32.totalorder %s208, %s210
      %p217 = scmp.eq.s32.totalorder %s32, 1
      %p218 = por %p216, %p217
      %p219 = scmp.ne.s32.totalorder %s210, %s211
      %p220 = scmp.eq.s32.totalorder %s32, 0
      %p221 = por %p219, %p220
      %p222 = scmp.ne.s32.totalorder %s210, %s211
      %p223 = scmp.eq.s32.totalorder %s33, 1
      %p224 = por %p222, %p223
      %p226 = scmp.ne.s32.totalorder %s211, %s225
      %p227 = scmp.eq.s32.totalorder %s33, 0
      %p228 = por %p226, %p227
      %s230 = sadd.s32 %s229, 1
      %p233 = scmp.eq.s32.totalorder %s27, 1
      %p234 = scmp.ne.s32.totalorder %s229, %s231
      %p235 = scmp.eq.s32.totalorder %s27, 0
      %p236 = por %p234, %p235
      %p237 = scmp.ne.s32.totalorder %s229, %s231
      %p238 = scmp.eq.s32.totalorder %s32, 1
      %p239 = por %p237, %p238
      %p240 = scmp.ne.s32.totalorder %s231, %s232
      %p241 = scmp.eq.s32.totalorder %s32, 0
      %p242 = por %p240, %p241
      %p243 = scmp.ne.s32.totalorder %s231, %s232
      %p244 = scmp.eq.s32.totalorder %s33, 1
      %p245 = por %p243, %p244
      %p247 = scmp.ne.s32.totalorder %s232, %s246
      %p248 = scmp.eq.s32.totalorder %s33, 0
      %p249 = por %p247, %p248
      %s251 = sadd.s32 %s250, 1
      %p254 = scmp.eq.s32.totalorder %s27, 1
      %p255 = scmp.ne.s32.totalorder %s250, %s252
      %p256 = scmp.eq.s32.totalorder %s27, 0
      %p257 = por %p255, %p256
      %p258 = scmp.ne.s32.totalorder %s250, %s252
      %p259 = scmp.eq.s32.totalorder %s32, 1
      %p260 = por %p258, %p259
      %p261 = scmp.ne.s32.totalorder %s252, %s253
      %p262 = scmp.eq.s32.totalorder %s32, 0
      %p263 = por %p261, %p262
      %p264 = scmp.ne.s32.totalorder %s252, %s253
      %p265 = scmp.eq.s32.totalorder %s33, 1
      %p266 = por %p264, %p265
      %p268 = scmp.ne.s32.totalorder %s253, %s267
      %p269 = scmp.eq.s32.totalorder %s33, 0
      %p270 = por %p268, %p269
      %s272 = sadd.s32 %s271, 1
      %p275 = scmp.eq.s32.totalorder %s27, 1
      %p276 = scmp.ne.s32.totalorder %s271, %s273
      %p277 = scmp.eq.s32.totalorder %s27, 0
      %p278 = por %p276, %p277
      %p279 = scmp.ne.s32.totalorder %s271, %s273
      %p280 = scmp.eq.s32.totalorder %s32, 1
      %p281 = por %p279, %p280
      %p282 = scmp.ne.s32.totalorder %s273, %s274
      %p283 = scmp.eq.s32.totalorder %s32, 0
      %p284 = por %p282, %p283
      %p285 = scmp.ne.s32.totalorder %s273, %s274
      %p286 = scmp.eq.s32.totalorder %s33, 1
      %p287 = por %p285, %p286
      %p289 = scmp.ne.s32.totalorder %s274, %s288
      %p290 = scmp.eq.s32.totalorder %s33, 0
      %p291 = por %p289, %p290
      %s293 = sadd.s32 %s292, 1
      %p296 = scmp.eq.s32.totalorder %s27, 1
      %p297 = scmp.ne.s32.totalorder %s292, %s294
      %p298 = scmp.eq.s32.totalorder %s27, 0
      %p299 = por %p297, %p298
      %p300 = scmp.ne.s32.totalorder %s292, %s294
      %p301 = scmp.eq.s32.totalorder %s32, 1
      %p302 = por %p300, %p301
      %p303 = scmp.ne.s32.totalorder %s294, %s295
      %p304 = scmp.eq.s32.totalorder %s32, 0
      %p305 = por %p303, %p304
      %p306 = scmp.ne.s32.totalorder %s294, %s295
      %p307 = scmp.eq.s32.totalorder %s33, 1
      %p308 = por %p306, %p307
      %p310 = scmp.ne.s32.totalorder %s295, %s309
      %p311 = scmp.eq.s32.totalorder %s33, 0
      %p312 = por %p310, %p311
      %s314 = sadd.s32 %s313, 1
      %p317 = scmp.eq.s32.totalorder %s27, 1
      %p318 = scmp.ne.s32.totalorder %s313, %s315
      %p319 = scmp.eq.s32.totalorder %s27, 0
      %p320 = por %p318, %p319
      %p321 = scmp.ne.s32.totalorder %s313, %s315
      %p322 = scmp.eq.s32.totalorder %s32, 1
      %p323 = por %p321, %p322
      %p324 = scmp.ne.s32.totalorder %s315, %s316
      %p325 = scmp.eq.s32.totalorder %s32, 0
      %p326 = por %p324, %p325
      %p327 = scmp.ne.s32.totalorder %s315, %s316
      %p328 = scmp.eq.s32.totalorder %s33, 1
      %p329 = por %p327, %p328
      %p331 = scmp.ne.s32.totalorder %s316, %s330
      %p332 = scmp.eq.s32.totalorder %s33, 0
      %p333 = por %p331, %p332
      %s334 = ssub.s32 %s27, %s34
      %p335 = scmp.eq.s32.totalorder %s334, 0
      %s337 = sadd.s32 %s336, 1
      %s338 = scalar_select %p335, %s336, %s337
      %p341 = pneg %p335
      %p342 = scmp.eq.s32.totalorder %s27, 1
      %p343 = por %p341, %p342
      %p344 = scmp.ne.s32.totalorder %s336, %s339
      %p345 = scmp.eq.s32.totalorder %s27, 0
      %p346 = por %p344, %p345
      %p347 = scmp.ne.s32.totalorder %s336, %s339
      %p348 = scmp.eq.s32.totalorder %s32, 1
      %p349 = por %p347, %p348
      %p350 = scmp.ne.s32.totalorder %s339, %s340
      %p351 = scmp.eq.s32.totalorder %s32, 0
      %p352 = por %p350, %p351
      %p353 = scmp.ne.s32.totalorder %s339, %s340
      %p354 = scmp.eq.s32.totalorder %s33, 1
      %p355 = por %p353, %p354
      %p357 = scmp.ne.s32.totalorder %s340, %s356
      %p358 = scmp.eq.s32.totalorder %s33, 0
      %p359 = por %p357, %p358
      %p360 = scmp.le.s32.totalorder 1, %s27
      %p361 = scmp.lt.s32.totalorder %s27, 3
      %p362 = pnand %p360, %p361
      %p363 = pneg %p362
      // Predicated region
      $region9: #{_lambda_.1} parent=5 // pred_check
        _
      $region10: #{_lambda_.1} parent=5 // pred_check_branch
        %365 = sbr.rel (%p362) target = $region12
      $region11: #{_lambda_.1} parent=5 // pred_region
        %s366 = ssub.s32 %s27, 1
        // Predicated region
        $region13: #{_lambda_.1} parent=11 // pred_check
          %p367 = pneg %p74
        $region14: #{_lambda_.1} parent=11 // pred_check_branch
          %369 = sbr.rel (%p367) target = $region16
        $region15: #{_lambda_.1} parent=11 // pred_region
          %s371 = ssub.s32 768, 768
          %372 = vsyncadd [#allocation7], %s371
          %s373 = sshll.u32 [#allocation6], 4
          %s374 = int_to_ptr.vmem [resolvable:$true] %s373
          %379 = dma.hbm_to_vmem [thread:$0]  %s1, 768, %s374, [#allocation7], 128, 128, 8
        $region16: #{_lambda_.1} parent=11 // pred_fallthru
          _
        // Predicated region
        $region17: #{_lambda_.1} parent=11 // pred_check
          %p380 = pneg %p95
        $region18: #{_lambda_.1} parent=11 // pred_check_branch
          %382 = sbr.rel (%p380) target = $region20
        $region19: #{_lambda_.1} parent=11 // pred_region
          %s384 = ssub.s32 64, 64
          %385 = vsyncadd [#allocation9], %s384
          %s387 = sshll.u32 [#allocation8], 4
          %s388 = int_to_ptr.vmem [resolvable:$true] %s387
          %390 = dma.hbm_to_vmem [thread:$0]  %s2, 64, %s388, [#allocation9]
        $region20: #{_lambda_.1} parent=11 // pred_fallthru
          _
        // Predicated region
        $region21: #{_lambda_.1} parent=11 // pred_check
          %p391 = pneg %p116
        $region22: #{_lambda_.1} parent=11 // pred_check_branch
          %393 = sbr.rel (%p391) target = $region24
        $region23: #{_lambda_.1} parent=11 // pred_region
          %s395 = ssub.s32 6144, 6144
          %396 = vsyncadd [#allocation9], %s395
          %s397 = sshll.u32 [#allocation10], 4
          %s398 = int_to_ptr.vmem [resolvable:$true] %s397
          %403 = dma.hbm_to_vmem [thread:$0]  %s3, 6144, %s398, [#allocation9], 128, 128, 8
        $region24: #{_lambda_.1} parent=11 // pred_fallthru
          _
        // Predicated region
        $region25: #{_lambda_.1} parent=11 // pred_check
          %p404 = pneg %p137
        $region26: #{_lambda_.1} parent=11 // pred_check_branch
          %406 = sbr.rel (%p404) target = $region28
        $region27: #{_lambda_.1} parent=11 // pred_region
          %s408 = ssub.s32 64, 64
          %409 = vsyncadd [#allocation12], %s408
          %s411 = sshll.u32 [#allocation11], 4
          %s412 = int_to_ptr.vmem [resolvable:$true] %s411
          %414 = dma.hbm_to_vmem [thread:$0]  %s4, 64, %s412, [#allocation12]
        $region28: #{_lambda_.1} parent=11 // pred_fallthru
          _
        // Predicated region
        $region29: #{_lambda_.1} parent=11 // pred_check
          %p415 = pneg %p158
        $region30: #{_lambda_.1} parent=11 // pred_check_branch
          %417 = sbr.rel (%p415) target = $region32
        $region31: #{_lambda_.1} parent=11 // pred_region
          %s419 = ssub.s32 6144, 6144
          %420 = vsyncadd [#allocation12], %s419
          %s421 = sshll.u32 [#allocation13], 4
          %s422 = int_to_ptr.vmem [resolvable:$true] %s421
          %427 = dma.hbm_to_vmem [thread:$0]  %s5, 6144, %s422, [#allocation12], 128, 128, 8
        $region32: #{_lambda_.1} parent=11 // pred_fallthru
          _
        // Predicated region
        $region33: #{_lambda_.1} parent=11 // pred_check
          %p428 = pneg %p179
        $region34: #{_lambda_.1} parent=11 // pred_check_branch
          %430 = sbr.rel (%p428) target = $region36
        $region35: #{_lambda_.1} parent=11 // pred_region
          %s432 = ssub.s32 64, 64
          %433 = vsyncadd [#allocation15], %s432
          %s435 = sshll.u32 [#allocation14], 4
          %s436 = int_to_ptr.vmem [resolvable:$true] %s435
          %438 = dma.hbm_to_vmem [thread:$0]  %s6, 64, %s436, [#allocation15]
        $region36: #{_lambda_.1} parent=11 // pred_fallthru
          _
        // Predicated region
        $region37: #{_lambda_.1} parent=11 // pred_check
          %p439 = pneg %p200
        $region38: #{_lambda_.1} parent=11 // pred_check_branch
          %441 = sbr.rel (%p439) target = $region40
        $region39: #{_lambda_.1} parent=11 // pred_region
          %s443 = ssub.s32 2048, 2048
          %444 = vsyncadd [#allocation15], %s443
          %s445 = sshll.u32 [#allocation16], 4
          %s446 = int_to_ptr.vmem [resolvable:$true] %s445
          %451 = dma.hbm_to_vmem [thread:$0]  %s7, 2048, %s446, [#allocation15], 128, 128, 8
        $region40: #{_lambda_.1} parent=11 // pred_fallthru
          _
        // Predicated region
        $region41: #{_lambda_.1} parent=11 // pred_check
          %p452 = pneg %p221
        $region42: #{_lambda_.1} parent=11 // pred_check_branch
          %454 = sbr.rel (%p452) target = $region44
        $region43: #{_lambda_.1} parent=11 // pred_region
          %s456 = ssub.s32 131072, 131072
          %457 = vsyncadd [#allocation18], %s456
          %s458 = sshll.u32 [#allocation17], 4
          %s459 = int_to_ptr.vmem [resolvable:$true] %s458
          %464 = dma.hbm_to_vmem [thread:$0]  %s8, 131072, %s459, [#allocation18], 512, 512, 32
        $region44: #{_lambda_.1} parent=11 // pred_fallthru
          _
        // Predicated region
        $region45: #{_lambda_.1} parent=11 // pred_check
          %p465 = pneg %p242
        $region46: #{_lambda_.1} parent=11 // pred_check_branch
          %467 = sbr.rel (%p465) target = $region48
        $region47: #{_lambda_.1} parent=11 // pred_region
          %s469 = ssub.s32 64, 64
          %470 = vsyncadd [#allocation18], %s469
          %s472 = sshll.u32 [#allocation19], 4
          %s473 = int_to_ptr.vmem [resolvable:$true] %s472
          %475 = dma.hbm_to_vmem [thread:$0]  %s9, 64, %s473, [#allocation18]
        $region48: #{_lambda_.1} parent=11 // pred_fallthru
          _
        // Predicated region
        $region49: #{_lambda_.1} parent=11 // pred_check
          %p476 = pneg %p263
        $region50: #{_lambda_.1} parent=11 // pred_check_branch
          %478 = sbr.rel (%p476) target = $region52
        $region51: #{_lambda_.1} parent=11 // pred_region
          %s480 = ssub.s32 32768, 32768
          %481 = vsyncadd [#allocation21], %s480
          %s482 = sshll.u32 [#allocation20], 4
          %s483 = int_to_ptr.vmem [resolvable:$true] %s482
          %488 = dma.hbm_to_vmem [thread:$0]  %s10, 32768, %s483, [#allocation21], 512, 512, 32
        $region52: #{_lambda_.1} parent=11 // pred_fallthru
          _
        // Predicated region
        $region53: #{_lambda_.1} parent=11 // pred_check
          %p489 = pneg %p284
        $region54: #{_lambda_.1} parent=11 // pred_check_branch
          %491 = sbr.rel (%p489) target = $region56
        $region55: #{_lambda_.1} parent=11 // pred_region
          %s493 = ssub.s32 64, 64
          %494 = vsyncadd [#allocation21], %s493
          %s496 = sshll.u32 [#allocation22], 4
          %s497 = int_to_ptr.vmem [resolvable:$true] %s496
          %499 = dma.hbm_to_vmem [thread:$0]  %s11, 64, %s497, [#allocation21]
        $region56: #{_lambda_.1} parent=11 // pred_fallthru
          _
        // Predicated region
        $region57: #{_lambda_.1} parent=11 // pred_check
          %p500 = pneg %p305
        $region58: #{_lambda_.1} parent=11 // pred_check_branch
          %502 = sbr.rel (%p500) target = $region60
        $region59: #{_lambda_.1} parent=11 // pred_region
          %s504 = ssub.s32 8192, 8192
          %505 = vsyncadd [#allocation24], %s504
          %s506 = sshll.u32 [#allocation23], 4
          %s507 = int_to_ptr.vmem [resolvable:$true] %s506
          %512 = dma.hbm_to_vmem [thread:$0]  %s12, 8192, %s507, [#allocation24], 128, 128, 8
        $region60: #{_lambda_.1} parent=11 // pred_fallthru
          _
        // Predicated region
        $region61: #{_lambda_.1} parent=11 // pred_check
          %p513 = pneg %p326
        $region62: #{_lambda_.1} parent=11 // pred_check_branch
          %515 = sbr.rel (%p513) target = $region64
        $region63: #{_lambda_.1} parent=11 // pred_region
          %s517 = ssub.s32 16, 16
          %518 = vsyncadd [#allocation24], %s517
          %s520 = sshll.u32 [#allocation25], 4
          %s521 = int_to_ptr.vmem [resolvable:$true] %s520
          %523 = dma.hbm_to_vmem [thread:$0]  %s13, 16, %s521, [#allocation24]
        $region64: #{_lambda_.1} parent=11 // pred_fallthru
          _
      $region12: #{_lambda_.1} parent=5 // pred_fallthru
        _
      %p524 = scmp.lt.s32.totalorder %s27, 2
      // Predicated region
      $region65: #{_lambda_.1} parent=5 // pred_check
        %p525 = pneg %p524
      $region66: #{_lambda_.1} parent=5 // pred_check_branch
        %527 = sbr.rel (%p525) target = $region68
      $region67: #{_lambda_.1} parent=5 // pred_region
        // Predicated region
        $region69: #{_lambda_.1} parent=67 // pred_check
          %p528 = pneg %p47
        $region70: #{_lambda_.1} parent=67 // pred_check_branch
          %530 = sbr.rel (%p528) target = $region72
        $region71: #{_lambda_.1} parent=67 // pred_region
          %p531 = scmp.lt.s32.totalorder %s27, 1
          %s532 = scalar_select %p531, %s27, 1
          %s533 = smul.addr %s532, 4
          %s534 = smul.addr %s533, 8
          %s535 = scalar_lea.vmem %s0, %s534
        $region72: #{_lambda_.1} parent=67 // pred_fallthru
          _
      $region68: #{_lambda_.1} parent=5 // pred_fallthru
        _
      %p536 = scmp.le.s32.totalorder 1, %s27
      %p537 = scmp.lt.s32.totalorder %s27, 3
      %p538 = pnand %p536, %p537
      %p539 = pneg %p538
      // Predicated region
      $region73: #{_lambda_.1} parent=5 // pred_check
        _
      $region74: #{_lambda_.1} parent=5 // pred_check_branch
        %541 = sbr.rel (%p538) target = $region76
      $region75: #{_lambda_.1} parent=5 // pred_region
        %s542 = ssub.s32 %s27, 1
        // Predicated region
        $region77: #{_lambda_.1} parent=75 // pred_check
          %p543 = pneg %p74
        $region78: #{_lambda_.1} parent=75 // pred_check_branch
          %545 = sbr.rel (%p543) target = $region80
        $region79: #{_lambda_.1} parent=75 // pred_region
          %546 = dma.done [#allocation7], 768
        $region80: #{_lambda_.1} parent=75 // pred_fallthru
          _
        // Predicated region
        $region81: #{_lambda_.1} parent=75 // pred_check
          %p547 = pneg %p95
        $region82: #{_lambda_.1} parent=75 // pred_check_branch
          %549 = sbr.rel (%p547) target = $region84
        $region83: #{_lambda_.1} parent=75 // pred_region
          %550 = dma.done [#allocation9], 64
        $region84: #{_lambda_.1} parent=75 // pred_fallthru
          _
        // Predicated region
        $region85: #{_lambda_.1} parent=75 // pred_check
          %p551 = pneg %p116
        $region86: #{_lambda_.1} parent=75 // pred_check_branch
          %553 = sbr.rel (%p551) target = $region88
        $region87: #{_lambda_.1} parent=75 // pred_region
          %554 = dma.done [#allocation9], 6144
        $region88: #{_lambda_.1} parent=75 // pred_fallthru
          _
        // Predicated region
        $region89: #{_lambda_.1} parent=75 // pred_check
          %p555 = pneg %p137
        $region90: #{_lambda_.1} parent=75 // pred_check_branch
          %557 = sbr.rel (%p555) target = $region92
        $region91: #{_lambda_.1} parent=75 // pred_region
          %558 = dma.done [#allocation12], 64
        $region92: #{_lambda_.1} parent=75 // pred_fallthru
          _
        // Predicated region
        $region93: #{_lambda_.1} parent=75 // pred_check
          %p559 = pneg %p158
        $region94: #{_lambda_.1} parent=75 // pred_check_branch
          %561 = sbr.rel (%p559) target = $region96
        $region95: #{_lambda_.1} parent=75 // pred_region
          %562 = dma.done [#allocation12], 6144
        $region96: #{_lambda_.1} parent=75 // pred_fallthru
          _
        // Predicated region
        $region97: #{_lambda_.1} parent=75 // pred_check
          %p563 = pneg %p179
        $region98: #{_lambda_.1} parent=75 // pred_check_branch
          %565 = sbr.rel (%p563) target = $region100
        $region99: #{_lambda_.1} parent=75 // pred_region
          %566 = dma.done [#allocation15], 64
        $region100: #{_lambda_.1} parent=75 // pred_fallthru
          _
        // Predicated region
        $region101: #{_lambda_.1} parent=75 // pred_check
          %p567 = pneg %p200
        $region102: #{_lambda_.1} parent=75 // pred_check_branch
          %569 = sbr.rel (%p567) target = $region104
        $region103: #{_lambda_.1} parent=75 // pred_region
          %570 = dma.done [#allocation15], 2048
        $region104: #{_lambda_.1} parent=75 // pred_fallthru
          _
        // Predicated region
        $region105: #{_lambda_.1} parent=75 // pred_check
          %p571 = pneg %p221
        $region106: #{_lambda_.1} parent=75 // pred_check_branch
          %573 = sbr.rel (%p571) target = $region108
        $region107: #{_lambda_.1} parent=75 // pred_region
          %574 = dma.done [#allocation18], 131072
        $region108: #{_lambda_.1} parent=75 // pred_fallthru
          _
        // Predicated region
        $region109: #{_lambda_.1} parent=75 // pred_check
          %p575 = pneg %p242
        $region110: #{_lambda_.1} parent=75 // pred_check_branch
          %577 = sbr.rel (%p575) target = $region112
        $region111: #{_lambda_.1} parent=75 // pred_region
          %578 = dma.done [#allocation18], 64
        $region112: #{_lambda_.1} parent=75 // pred_fallthru
          _
        // Predicated region
        $region113: #{_lambda_.1} parent=75 // pred_check
          %p579 = pneg %p263
        $region114: #{_lambda_.1} parent=75 // pred_check_branch
          %581 = sbr.rel (%p579) target = $region116
        $region115: #{_lambda_.1} parent=75 // pred_region
          %582 = dma.done [#allocation21], 32768
        $region116: #{_lambda_.1} parent=75 // pred_fallthru
          _
        // Predicated region
        $region117: #{_lambda_.1} parent=75 // pred_check
          %p583 = pneg %p284
        $region118: #{_lambda_.1} parent=75 // pred_check_branch
          %585 = sbr.rel (%p583) target = $region120
        $region119: #{_lambda_.1} parent=75 // pred_region
          %586 = dma.done [#allocation21], 64
        $region120: #{_lambda_.1} parent=75 // pred_fallthru
          _
        // Predicated region
        $region121: #{_lambda_.1} parent=75 // pred_check
          %p587 = pneg %p305
        $region122: #{_lambda_.1} parent=75 // pred_check_branch
          %589 = sbr.rel (%p587) target = $region124
        $region123: #{_lambda_.1} parent=75 // pred_region
          %590 = dma.done [#allocation24], 8192
        $region124: #{_lambda_.1} parent=75 // pred_fallthru
          _
        // Predicated region
        $region125: #{_lambda_.1} parent=75 // pred_check
          %p591 = pneg %p326
        $region126: #{_lambda_.1} parent=75 // pred_check_branch
          %593 = sbr.rel (%p591) target = $region128
        $region127: #{_lambda_.1} parent=75 // pred_region
          %594 = dma.done [#allocation24], 16
        $region128: #{_lambda_.1} parent=75 // pred_fallthru
          _
        %p595 = scmp.lt.s32.totalorder %s32, 1
        %s596 = scalar_select %p595, %s32, 1
        %s597 = smul.addr %s596, 4
        %s598 = smul.addr %s597, 8
        %s599 = scalar_lea.vmem %s0, %s598
        %p600 = pneg %p53
        %p601 = pneg %p50
        %p602 = pneg %p74
        %p603 = pneg %p71
        %p604 = pneg %p95
        %p605 = pneg %p92
        %p606 = pneg %p116
        %p607 = pneg %p113
        %p608 = pneg %p137
        %p609 = pneg %p134
        %p610 = pneg %p158
        %p611 = pneg %p155
        %p612 = pneg %p179
        %p613 = pneg %p176
        %p614 = pneg %p200
        %p615 = pneg %p197
        %p616 = pneg %p221
        %p617 = pneg %p218
        %p618 = pneg %p242
        %p619 = pneg %p239
        %p620 = pneg %p263
        %p621 = pneg %p260
        %p622 = pneg %p284
        %p623 = pneg %p281
        %p624 = pneg %p305
        %p625 = pneg %p302
        %p626 = pneg %p326
        %p627 = pneg %p323
        %p628 = pneg %p352
        %p629 = pneg %p349
        %p630 = scmp.lt.s32.totalorder %s32, 1
        %s631 = scalar_select %p630, %s32, 1
        %s632 = smul.addr %s631, 2
        %s633 = scalar_lea.vmem %s14, %s632
        %p634 = scmp.lt.s32.totalorder %s32, 1
        %s635 = scalar_select %p634, %s32, 1
        %s636 = smul.addr %s635, 4
        %s637 = smul.addr %s636, 8
        %s638 = scalar_lea.vmem %s0, %s637
        %p639 = scmp.lt.s32.totalorder %s32, 1
        %s640 = scalar_select %p639, %s32, 1
        %s641 = smul.addr %s640, 2
        %s642 = scalar_lea.vmem %s14, %s641
        %v643 = vld [vmem:[%s638] sm:$0xff]
        %v644 = vld [vmem:[%s638 + $0x8] sm:$0xff]
        %v645 = vld [vmem:[%s638 + $0x10] sm:$0xff]
        %v646 = vld [vmem:[%s638 + $0x18] sm:$0xff]
        %vm647 = vcmask 130048
        %648 = vst.msk [vmem:[#allocation2 + $0x1] sm:$0xff] %vm647, %v643
        %649 = vst.msk [vmem:[#allocation2 + $0x9] sm:$0xff] %vm647, %v644
        %650 = vst.msk [vmem:[#allocation2 + $0x19] sm:$0xff] %vm647, %v645
        %651 = vst.msk [vmem:[#allocation2 + $0x21] sm:$0xff] %vm647, %v646
        %vm652 = vcmask 123905
        %653 = vst.msk [vmem:[#allocation2 - $0x1] sm:$0x2] %vm652, %v643
        %654 = vst.msk [vmem:[#allocation2 + $0x17] sm:$0x2] %vm652, %v645
        %vm655 = vcmask 129030
        %656 = vst.msk [vmem:[#allocation2 + $0xb] sm:$0x40] %vm655, %v644
        %657 = vst.msk [vmem:[#allocation2 + $0x23] sm:$0x40] %vm655, %v646
        %v658 = vld [vmem:[#allocation2] sm:$0xff]
        %v659 = vld [vmem:[#allocation2 + $0x8] sm:$0xff]
        %v660 = vld [vmem:[#allocation2 + $0x18] sm:$0xff]
        %v661 = vld [vmem:[#allocation2 + $0x20] sm:$0xff]
        %v662 = vld [vmem:[#allocation6] sm:$0xff]
        %v663 = vld [vmem:[#allocation6 + $0x8] sm:$0xff]
        %v664 = vld [vmem:[#allocation2 + $0x1] sm:$0xff]
        %v665 = vld [vmem:[#allocation2 + $0x9] sm:$0xff]
        %v666 = vld [vmem:[#allocation2 + $0x19] sm:$0xff]
        %v667 = vld [vmem:[#allocation2 + $0x21] sm:$0xff]
        %s668 = scalar_lea.vmem [#allocation6], 16
        %v669 = vld [vmem:[%s668] sm:$0xff]
        %v670 = vld [vmem:[%s668 + $0x8] sm:$0xff]
        %v672 = vsel %vm647, %v664, 0
        %v675 = vsel %vm647, %v665, 0
        %v678 = vsel %vm647, %v666, 0
        %v681 = vsel %vm647, %v667, 0
        %683 = vmatprep.subr.mxu0 0.0
        %684 = vmatpush1.msra.mxu0 0.0
        %685 = vmatprep.subr.mxu0 0.0
        %686 = vmatpush1.msra.mxu0 0.0
        %687 = vmatprep.subr.mxu0 0.0
        %688 = vmatpush1.msra.mxu0 0.0
        %689 = vmatprep.subr.mxu0 0.0
        %690 = vmatpush1.msra.mxu0 0.0
        %691 = vmatprep.subr.mxu0 0.0
        %692 = vmatpush1.msra.mxu0 0.0
        %693 = vmatprep.subr.mxu0 0.0
        %694 = vmatpush1.msra.mxu0 0.0
        %695 = vmatprep.subr.mxu0 0.0
        %696 = vmatpush1.msra.mxu0 0.0
        %697 = vmatprep.subr.mxu0 0.0
        %698 = vmatpush1.msra.mxu0 0.0
        %699 = vmatprep.subr.mxu0 0.0
        %700 = vmatpush1.msra.mxu0 0.0
        %701 = vmatprep.subr.mxu0 0.0
        %702 = vmatpush1.msra.mxu0 0.0
        %703 = vmatprep.subr.mxu0 0.0
        %704 = vmatpush1.msra.mxu0 0.0
        %705 = vmatprep.subr.mxu0 0.0
        %706 = vmatpush1.msra.mxu0 0.0
        %707 = vmatprep.subr.mxu0 0.0
        %708 = vmatpush1.msra.mxu0 0.0
        %709 = vmatprep.subr.mxu0 0.0
        %710 = vmatpush1.msra.mxu0 0.0
        %711 = vmatprep.subr.mxu0 0.0
        %712 = vmatpush1.msra.mxu0 %v670
        %713 = vmatprep.subr.mxu0 0.0
        %714 = vmatpush1.msra.mxu0 %v669
        %715 = vmatprep.subr.mxu0 0.0
        %716 = vmatpush2.msra.mxu0 0.0
        %717 = vmatprep.subr.mxu0 0.0
        %718 = vmatpush2.msra.mxu0 0.0
        %719 = vmatprep.subr.mxu0 0.0
        %720 = vmatpush2.msra.mxu0 0.0
        %721 = vmatprep.subr.mxu0 0.0
        %722 = vmatpush2.msra.mxu0 0.0
        %723 = vmatprep.subr.mxu0 0.0
        %724 = vmatpush2.msra.mxu0 0.0
        %725 = vmatprep.subr.mxu0 0.0
        %726 = vmatpush2.msra.mxu0 0.0
        %727 = vmatprep.subr.mxu0 0.0
        %728 = vmatpush2.msra.mxu0 0.0
        %729 = vmatprep.subr.mxu0 0.0
        %730 = vmatpush2.msra.mxu0 0.0
        %731 = vmatprep.subr.mxu0 0.0
        %732 = vmatpush2.msra.mxu0 0.0
        %733 = vmatprep.subr.mxu0 0.0
        %734 = vmatpush2.msra.mxu0 0.0
        %735 = vmatprep.subr.mxu0 0.0
        %736 = vmatpush2.msra.mxu0 0.0
        %737 = vmatprep.subr.mxu0 0.0
        %738 = vmatpush2.msra.mxu0 0.0
        %739 = vmatprep.subr.mxu0 0.0
        %740 = vmatpush2.msra.mxu0 0.0
        %741 = vmatprep.subr.mxu0 0.0
        %742 = vmatpush2.msra.mxu0 0.0
        %743 = vmatprep.subr.mxu0 0.0
        %744 = vmatpush2.msra.mxu0 0.0
        %745 = vmatprep.subr.mxu0 0.0
        %746 = vmatpush2.msra.mxu0 0.0
        %747 = vmatprep.mubr.f32.mxu0 0.0
        %748 = vmatmul.mubr.f32.gmra.mxu0 %v672
        %v749 = vpop.f32.mrf.mxu0
        %v750 = vadd.f32 0.0, %v749
        %v751 = vpop.f32.mrf.mxu0
        %752 = vmatprep.mubr.f32.mxu0 0.0
        %753 = vmatmul.mubr.f32.gmra.mxu0 %v675
        %v754 = vpop.f32.mrf.mxu0
        %v755 = vadd.f32 0.0, %v754
        %v756 = vpop.f32.mrf.mxu0
        %757 = vmatprep.mubr.f32.mxu0 0.0
        %758 = vmatmul.mubr.f32.gmra.mxu0 %v678
        %v759 = vpop.f32.mrf.mxu0
        %v760 = vadd.f32 0.0, %v759
        %v761 = vpop.f32.mrf.mxu0
        %762 = vmatprep.mubr.f32.mxu0 0.0
        %763 = vmatmul.mubr.f32.gmra.mxu0 %v681
        %v764 = vpop.f32.mrf.mxu0
        %v765 = vadd.f32 0.0, %v764
        %v766 = vpop.f32.mrf.mxu0
        %767 = vdwg.mxu0
        %v769 = vsel %vm647, %v658, 0
        %v772 = vsel %vm647, %v659, 0
        %v775 = vsel %vm647, %v660, 0
        %v778 = vsel %vm647, %v661, 0
        %780 = vmatprep.subr.mxu0 0.0
        %781 = vmatpush1.msra.mxu0 0.0
        %782 = vmatprep.subr.mxu0 0.0
        %783 = vmatpush1.msra.mxu0 0.0
        %784 = vmatprep.subr.mxu0 0.0
        %785 = vmatpush1.msra.mxu0 0.0
        %786 = vmatprep.subr.mxu0 0.0
        %787 = vmatpush1.msra.mxu0 0.0
        %788 = vmatprep.subr.mxu0 0.0
        %789 = vmatpush1.msra.mxu0 0.0
        %790 = vmatprep.subr.mxu0 0.0
        %791 = vmatpush1.msra.mxu0 0.0
        %792 = vmatprep.subr.mxu0 0.0
        %793 = vmatpush1.msra.mxu0 0.0
        %794 = vmatprep.subr.mxu0 0.0
        %795 = vmatpush1.msra.mxu0 0.0
        %796 = vmatprep.subr.mxu0 0.0
        %797 = vmatpush1.msra.mxu0 0.0
        %798 = vmatprep.subr.mxu0 0.0
        %799 = vmatpush1.msra.mxu0 0.0
        %800 = vmatprep.subr.mxu0 0.0
        %801 = vmatpush1.msra.mxu0 0.0
        %802 = vmatprep.subr.mxu0 0.0
        %803 = vmatpush1.msra.mxu0 0.0
        %804 = vmatprep.subr.mxu0 0.0
        %805 = vmatpush1.msra.mxu0 0.0
        %806 = vmatprep.subr.mxu0 0.0
        %807 = vmatpush1.msra.mxu0 0.0
        %808 = vmatprep.subr.mxu0 0.0
        %809 = vmatpush1.msra.mxu0 %v663
        %810 = vmatprep.subr.mxu0 0.0
        %811 = vmatpush1.msra.mxu0 %v662
        %812 = vmatprep.subr.mxu0 0.0
        %813 = vmatpush2.msra.mxu0 0.0
        %814 = vmatprep.subr.mxu0 0.0
        %815 = vmatpush2.msra.mxu0 0.0
        %816 = vmatprep.subr.mxu0 0.0
        %817 = vmatpush2.msra.mxu0 0.0
        %818 = vmatprep.subr.mxu0 0.0
        %819 = vmatpush2.msra.mxu0 0.0
        %820 = vmatprep.subr.mxu0 0.0
        %821 = vmatpush2.msra.mxu0 0.0
        %822 = vmatprep.subr.mxu0 0.0
        %823 = vmatpush2.msra.mxu0 0.0
        %824 = vmatprep.subr.mxu0 0.0
        %825 = vmatpush2.msra.mxu0 0.0
        %826 = vmatprep.subr.mxu0 0.0
        %827 = vmatpush2.msra.mxu0 0.0
        %828 = vmatprep.subr.mxu0 0.0
        %829 = vmatpush2.msra.mxu0 0.0
        %830 = vmatprep.subr.mxu0 0.0
        %831 = vmatpush2.msra.mxu0 0.0
        %832 = vmatprep.subr.mxu0 0.0
        %833 = vmatpush2.msra.mxu0 0.0
        %834 = vmatprep.subr.mxu0 0.0
        %835 = vmatpush2.msra.mxu0 0.0
        %836 = vmatprep.subr.mxu0 0.0
        %837 = vmatpush2.msra.mxu0 0.0
        %838 = vmatprep.subr.mxu0 0.0
        %839 = vmatpush2.msra.mxu0 0.0
        %840 = vmatprep.subr.mxu0 0.0
        %841 = vmatpush2.msra.mxu0 0.0
        %842 = vmatprep.subr.mxu0 0.0
        %843 = vmatpush2.msra.mxu0 0.0
        %844 = vmatprep.mubr.f32.mxu0 0.0
        %845 = vmatmul.mubr.f32.gmra.mxu0 %v769
        %v846 = vpop.f32.mrf.mxu0
        %v847 = vadd.f32 %v750, %v846
        %v848 = vpop.f32.mrf.mxu0
        %849 = vmatprep.mubr.f32.mxu0 0.0
        %850 = vmatmul.mubr.f32.gmra.mxu0 %v772
        %v851 = vpop.f32.mrf.mxu0
        %v852 = vadd.f32 %v755, %v851
        %v853 = vpop.f32.mrf.mxu0
        %854 = vmatprep.mubr.f32.mxu0 0.0
        %855 = vmatmul.mubr.f32.gmra.mxu0 %v775
        %v856 = vpop.f32.mrf.mxu0
        %v857 = vadd.f32 %v760, %v856
        %v858 = vpop.f32.mrf.mxu0
        %859 = vmatprep.mubr.f32.mxu0 0.0
        %860 = vmatmul.mubr.f32.gmra.mxu0 %v778
        %v861 = vpop.f32.mrf.mxu0
        %v862 = vadd.f32 %v765, %v861
        %v863 = vpop.f32.mrf.mxu0
        %864 = vdwg.mxu0
        %v865 = vld [vmem:[#allocation2 + $0x2] sm:$0xff]
        %v866 = vld [vmem:[#allocation2 + $0xa] sm:$0xff]
        %v867 = vld [vmem:[#allocation2 + $0x1a] sm:$0xff]
        %v868 = vld [vmem:[#allocation2 + $0x22] sm:$0xff]
        %s869 = scalar_lea.vmem [#allocation6], 32
        %v870 = vld [vmem:[%s869] sm:$0xff]
        %v871 = vld [vmem:[%s869 + $0x8] sm:$0xff]
        %v873 = vsel %vm647, %v865, 0
        %v876 = vsel %vm647, %v866, 0
        %v879 = vsel %vm647, %v867, 0
        %v882 = vsel %vm647, %v868, 0
        %884 = vmatprep.subr.mxu0 0.0
        %885 = vmatpush1.msra.mxu0 0.0
        %886 = vmatprep.subr.mxu0 0.0
        %887 = vmatpush1.msra.mxu0 0.0
        %888 = vmatprep.subr.mxu0 0.0
        %889 = vmatpush1.msra.mxu0 0.0
        %890 = vmatprep.subr.mxu0 0.0
        %891 = vmatpush1.msra.mxu0 0.0
        %892 = vmatprep.subr.mxu0 0.0
        %893 = vmatpush1.msra.mxu0 0.0
        %894 = vmatprep.subr.mxu0 0.0
        %895 = vmatpush1.msra.mxu0 0.0
        %896 = vmatprep.subr.mxu0 0.0
        %897 = vmatpush1.msra.mxu0 0.0
        %898 = vmatprep.subr.mxu0 0.0
        %899 = vmatpush1.msra.mxu0 0.0
        %900 = vmatprep.subr.mxu0 0.0
        %901 = vmatpush1.msra.mxu0 0.0
        %902 = vmatprep.subr.mxu0 0.0
        %903 = vmatpush1.msra.mxu0 0.0
        %904 = vmatprep.subr.mxu0 0.0
        %905 = vmatpush1.msra.mxu0 0.0
        %906 = vmatprep.subr.mxu0 0.0
        %907 = vmatpush1.msra.mxu0 0.0
        %908 = vmatprep.subr.mxu0 0.0
        %909 = vmatpush1.msra.mxu0 0.0
        %910 = vmatprep.subr.mxu0 0.0
        %911 = vmatpush1.msra.mxu0 0.0
        %912 = vmatprep.subr.mxu0 0.0
        %913 = vmatpush1.msra.mxu0 %v871
        %914 = vmatprep.subr.mxu0 0.0
        %915 = vmatpush1.msra.mxu0 %v870
        %916 = vmatprep.subr.mxu0 0.0
        %917 = vmatpush2.msra.mxu0 0.0
        %918 = vmatprep.subr.mxu0 0.0
        %919 = vmatpush2.msra.mxu0 0.0
        %920 = vmatprep.subr.mxu0 0.0
        %921 = vmatpush2.msra.mxu0 0.0
        %922 = vmatprep.subr.mxu0 0.0
        %923 = vmatpush2.msra.mxu0 0.0
        %924 = vmatprep.subr.mxu0 0.0
        %925 = vmatpush2.msra.mxu0 0.0
        %926 = vmatprep.subr.mxu0 0.0
        %927 = vmatpush2.msra.mxu0 0.0
        %928 = vmatprep.subr.mxu0 0.0
        %929 = vmatpush2.msra.mxu0 0.0
        %930 = vmatprep.subr.mxu0 0.0
        %931 = vmatpush2.msra.mxu0 0.0
        %932 = vmatprep.subr.mxu0 0.0
        %933 = vmatpush2.msra.mxu0 0.0
        %934 = vmatprep.subr.mxu0 0.0
        %935 = vmatpush2.msra.mxu0 0.0
        %936 = vmatprep.subr.mxu0 0.0
        %937 = vmatpush2.msra.mxu0 0.0
        %938 = vmatprep.subr.mxu0 0.0
        %939 = vmatpush2.msra.mxu0 0.0
        %940 = vmatprep.subr.mxu0 0.0
        %941 = vmatpush2.msra.mxu0 0.0
        %942 = vmatprep.subr.mxu0 0.0
        %943 = vmatpush2.msra.mxu0 0.0
        %944 = vmatprep.subr.mxu0 0.0
        %945 = vmatpush2.msra.mxu0 0.0
        %946 = vmatprep.subr.mxu0 0.0
        %947 = vmatpush2.msra.mxu0 0.0
        %948 = vmatprep.mubr.f32.mxu0 0.0
        %949 = vmatmul.mubr.f32.gmra.mxu0 %v873
        %v950 = vpop.f32.mrf.mxu0
        %v951 = vadd.f32 0.0, %v950
        %v952 = vpop.f32.mrf.mxu0
        %953 = vmatprep.mubr.f32.mxu0 0.0
        %954 = vmatmul.mubr.f32.gmra.mxu0 %v876
        %v955 = vpop.f32.mrf.mxu0
        %v956 = vadd.f32 0.0, %v955
        %v957 = vpop.f32.mrf.mxu0
        %958 = vmatprep.mubr.f32.mxu0 0.0
        %959 = vmatmul.mubr.f32.gmra.mxu0 %v879
        %v960 = vpop.f32.mrf.mxu0
        %v961 = vadd.f32 0.0, %v960
        %v962 = vpop.f32.mrf.mxu0
        %963 = vmatprep.mubr.f32.mxu0 0.0
        %964 = vmatmul.mubr.f32.gmra.mxu0 %v882
        %v965 = vpop.f32.mrf.mxu0
        %v966 = vadd.f32 0.0, %v965
        %v967 = vpop.f32.mrf.mxu0
        %968 = vdwg.mxu0
        %v969 = vadd.f32 %v847, %v951
        %v970 = vadd.f32 %v852, %v956
        %v971 = vadd.f32 %v857, %v961
        %v972 = vadd.f32 %v862, %v966
        %v973 = vld [vmem:[#allocation8] sm:$0x1]
        %v974 = vlaneseq
        %v975 = vshrl.u32 %v974, 7
        %v976 = vsub.s32 0, %v975
        %v977 = vrot.slane %v973, %v976
        %v978 = vadd.f32 %v969, %v977
        %v979 = vadd.f32 %v970, %v977
        %v980 = vadd.f32 %v971, %v977
        %v981 = vadd.f32 %v972, %v977
        %v982 = vmax.f32 %v978, 0.0
        %v983 = vmax.f32 %v979, 0.0
        %v984 = vmax.f32 %v980, 0.0
        %v985 = vmax.f32 %v981, 0.0
        %v986 = vmul.f32 %v982, %v982
        %v987 = vmul.f32 %v983, %v983
        %v988 = vmul.f32 %v984, %v984
        %v989 = vmul.f32 %v985, %v985
        %v990 = vld [vmem:[#allocation16] sm:$0xff]
        %v991 = vld [vmem:[#allocation16 + $0x8] sm:$0xff]
        %v992 = vld [vmem:[#allocation16 + $0x10] sm:$0xff]
        %v993 = vld [vmem:[#allocation16 + $0x18] sm:$0xff]
        %v994 = vld [vmem:[#allocation16 + $0x20] sm:$0xff]
        %v995 = vld [vmem:[#allocation16 + $0x28] sm:$0xff]
        %v996 = vld [vmem:[#allocation16 + $0x30] sm:$0xff]
        %v997 = vld [vmem:[#allocation16 + $0x38] sm:$0xff]
        %v998 = vld [vmem:[#allocation16 + $0x40] sm:$0xff]
        %v999 = vld [vmem:[#allocation16 + $0x48] sm:$0xff]
        %v1000 = vld [vmem:[#allocation16 + $0x50] sm:$0xff]
        %v1001 = vld [vmem:[#allocation16 + $0x58] sm:$0xff]
        %v1002 = vld [vmem:[#allocation16 + $0x60] sm:$0xff]
        %v1003 = vld [vmem:[#allocation16 + $0x68] sm:$0xff]
        %v1004 = vld [vmem:[#allocation16 + $0x70] sm:$0xff]
        %v1005 = vld [vmem:[#allocation16 + $0x78] sm:$0xff]
        %1006 = vmatprep.subr.mxu0 0.0
        %1007 = vmatpush1.msra.mxu0 %v1005
        %1008 = vmatprep.subr.mxu0 0.0
        %1009 = vmatpush1.msra.mxu0 %v1004
        %1010 = vmatprep.subr.mxu0 0.0
        %1011 = vmatpush1.msra.mxu0 %v1003
        %1012 = vmatprep.subr.mxu0 0.0
        %1013 = vmatpush1.msra.mxu0 %v1002
        %1014 = vmatprep.subr.mxu0 0.0
        %1015 = vmatpush1.msra.mxu0 %v1001
        %1016 = vmatprep.subr.mxu0 0.0
        %1017 = vmatpush1.msra.mxu0 %v1000
        %1018 = vmatprep.subr.mxu0 0.0
        %1019 = vmatpush1.msra.mxu0 %v999
        %1020 = vmatprep.subr.mxu0 0.0
        %1021 = vmatpush1.msra.mxu0 %v998
        %1022 = vmatprep.subr.mxu0 0.0
        %1023 = vmatpush1.msra.mxu0 %v997
        %1024 = vmatprep.subr.mxu0 0.0
        %1025 = vmatpush1.msra.mxu0 %v996
        %1026 = vmatprep.subr.mxu0 0.0
        %1027 = vmatpush1.msra.mxu0 %v995
        %1028 = vmatprep.subr.mxu0 0.0
        %1029 = vmatpush1.msra.mxu0 %v994
        %1030 = vmatprep.subr.mxu0 0.0
        %1031 = vmatpush1.msra.mxu0 %v993
        %1032 = vmatprep.subr.mxu0 0.0
        %1033 = vmatpush1.msra.mxu0 %v992
        %1034 = vmatprep.subr.mxu0 0.0
        %1035 = vmatpush1.msra.mxu0 %v991
        %1036 = vmatprep.subr.mxu0 0.0
        %1037 = vmatpush1.msra.mxu0 %v990
        %1038 = vmatprep.subr.mxu0 0.0
        %1039 = vmatpush2.msra.mxu0 0.0
        %1040 = vmatprep.subr.mxu0 0.0
        %1041 = vmatpush2.msra.mxu0 0.0
        %1042 = vmatprep.subr.mxu0 0.0
        %1043 = vmatpush2.msra.mxu0 0.0
        %1044 = vmatprep.subr.mxu0 0.0
        %1045 = vmatpush2.msra.mxu0 0.0
        %1046 = vmatprep.subr.mxu0 0.0
        %1047 = vmatpush2.msra.mxu0 0.0
        %1048 = vmatprep.subr.mxu0 0.0
        %1049 = vmatpush2.msra.mxu0 0.0
        %1050 = vmatprep.subr.mxu0 0.0
        %1051 = vmatpush2.msra.mxu0 0.0
        %1052 = vmatprep.subr.mxu0 0.0
        %1053 = vmatpush2.msra.mxu0 0.0
        %1054 = vmatprep.subr.mxu0 0.0
        %1055 = vmatpush2.msra.mxu0 0.0
        %1056 = vmatprep.subr.mxu0 0.0
        %1057 = vmatpush2.msra.mxu0 0.0
        %1058 = vmatprep.subr.mxu0 0.0
        %1059 = vmatpush2.msra.mxu0 0.0
        %1060 = vmatprep.subr.mxu0 0.0
        %1061 = vmatpush2.msra.mxu0 0.0
        %1062 = vmatprep.subr.mxu0 0.0
        %1063 = vmatpush2.msra.mxu0 0.0
        %1064 = vmatprep.subr.mxu0 0.0
        %1065 = vmatpush2.msra.mxu0 0.0
        %1066 = vmatprep.subr.mxu0 0.0
        %1067 = vmatpush2.msra.mxu0 0.0
        %1068 = vmatprep.subr.mxu0 0.0
        %1069 = vmatpush2.msra.mxu0 0.0
        %1070 = vmatprep.mubr.f32.mxu0 0.0
        %1071 = vmatmul.mubr.f32.gmra.mxu0 %v982
        %v1072 = vpop.f32.mrf.mxu0
        %v1073 = vadd.f32 0.0, %v1072
        %v1074 = vpop.f32.mrf.mxu0
        %1075 = vmatprep.mubr.f32.mxu0 0.0
        %1076 = vmatmul.mubr.f32.gmra.mxu0 %v983
        %v1077 = vpop.f32.mrf.mxu0
        %v1078 = vadd.f32 0.0, %v1077
        %v1079 = vpop.f32.mrf.mxu0
        %1080 = vmatprep.mubr.f32.mxu0 0.0
        %1081 = vmatmul.mubr.f32.gmra.mxu0 %v984
        %v1082 = vpop.f32.mrf.mxu0
        %v1083 = vadd.f32 0.0, %v1082
        %v1084 = vpop.f32.mrf.mxu0
        %1085 = vmatprep.mubr.f32.mxu0 0.0
        %1086 = vmatmul.mubr.f32.gmra.mxu0 %v985
        %v1087 = vpop.f32.mrf.mxu0
        %v1088 = vadd.f32 0.0, %v1087
        %v1089 = vpop.f32.mrf.mxu0
        %1090 = vmatprep.mubr.f32.mxu0 0.0
        %1091 = vmatmul.mubr.f32.gmra.mxu0 %v986
        %v1092 = vpop.f32.mrf.mxu0
        %v1093 = vadd.f32 0.0, %v1092
        %v1094 = vpop.f32.mrf.mxu0
        %1095 = vmatprep.mubr.f32.mxu0 0.0
        %1096 = vmatmul.mubr.f32.gmra.mxu0 %v987
        %v1097 = vpop.f32.mrf.mxu0
        %v1098 = vadd.f32 0.0, %v1097
        %v1099 = vpop.f32.mrf.mxu0
        %1100 = vmatprep.mubr.f32.mxu0 0.0
        %1101 = vmatmul.mubr.f32.gmra.mxu0 %v988
        %v1102 = vpop.f32.mrf.mxu0
        %v1103 = vadd.f32 0.0, %v1102
        %v1104 = vpop.f32.mrf.mxu0
        %1105 = vmatprep.mubr.f32.mxu0 0.0
        %1106 = vmatmul.mubr.f32.gmra.mxu0 %v989
        %v1107 = vpop.f32.mrf.mxu0
        %v1108 = vadd.f32 0.0, %v1107
        %v1109 = vpop.f32.mrf.mxu0
        %1110 = vdwg.mxu0
        %v1111 = vadd.f32 %v1073, %v1078
        %v1112 = vadd.f32 %v1111, %v1083
        %v1113 = vadd.f32 %v1112, %v1088
        %v1114 = vrot.slane %v1113, 4
        %v1115 = vadd.f32 %v1113, %v1114
        %v1116 = vrot.slane %v1115, 2
        %v1117 = vadd.f32 %v1115, %v1116
        %v1118 = vrot.slane %v1117, 1
        %v1119 = vadd.f32 %v1117, %v1118
        %v1120 = vmul.f32 %v1119, 0.001953125
        %v1121 = vadd.f32 %v1093, %v1098
        %v1122 = vadd.f32 %v1121, %v1103
        %v1123 = vadd.f32 %v1122, %v1108
        %v1124 = vrot.slane %v1123, 4
        %v1125 = vadd.f32 %v1123, %v1124
        %v1126 = vrot.slane %v1125, 2
        %v1127 = vadd.f32 %v1125, %v1126
        %v1128 = vrot.slane %v1127, 1
        %v1129 = vadd.f32 %v1127, %v1128
        %v1130 = vmul.f32 %v1129, 0.001953125
        %v1131 = vmul.f32 %v1120, %v1120
        %v1132 = vsub.f32 %v1130, %v1131
        %v1133 = vld [vmem:[#allocation8 + $0x1] sm:$0x1]
        %v1134 = vadd.f32 %v1132, 1e-05
        %v1135 = vrsqrt.pop %v1134
        %v1136 = vmul.f32 %v1133, %v1135
        %v1137 = vsub.f32 %v982, %v1120
        %v1138 = vsub.f32 %v983, %v1120
        %v1139 = vsub.f32 %v984, %v1120
        %v1140 = vsub.f32 %v985, %v1120
        %v1141 = vlaneseq
        %v1142 = vshrl.u32 %v1141, 7
        %v1143 = vsub.s32 0, %v1142
        %v1144 = vrot.slane %v1136, %v1143
        %v1145 = vmul.f32 %v1137, %v1144
        %v1146 = vmul.f32 %v1138, %v1144
        %v1147 = vmul.f32 %v1139, %v1144
        %v1148 = vmul.f32 %v1140, %v1144
        %v1149 = vld [vmem:[#allocation8 + $0x2] sm:$0x1]
        %v1150 = vlaneseq
        %v1151 = vshrl.u32 %v1150, 7
        %v1152 = vsub.s32 0, %v1151
        %v1153 = vrot.slane %v1149, %v1152
        %v1154 = vadd.f32 %v1145, %v1153
        %v1155 = vadd.f32 %v1146, %v1153
        %v1156 = vadd.f32 %v1147, %v1153
        %v1157 = vadd.f32 %v1148, %v1153
        %1158 = vst [vmem:[#allocation3 + $0x1] sm:$0xff] %v1154
        %1159 = vst [vmem:[#allocation3 + $0x9] sm:$0xff] %v1155
        %1160 = vst [vmem:[#allocation3 + $0x19] sm:$0xff] %v1156
        %1161 = vst [vmem:[#allocation3 + $0x21] sm:$0xff] %v1157
        %1162 = vst [vmem:[#allocation3 - $0x1] sm:$0x2] %v1154
        %1163 = vst [vmem:[#allocation3 + $0x17] sm:$0x2] %v1156
        %1164 = vst [vmem:[#allocation3 + $0xb] sm:$0x40] %v1155
        %1165 = vst [vmem:[#allocation3 + $0x23] sm:$0x40] %v1157
        %v1166 = vld [vmem:[#allocation3] sm:$0xff]
        %v1167 = vld [vmem:[#allocation3 + $0x8] sm:$0xff]
        %v1168 = vld [vmem:[#allocation3 + $0x18] sm:$0xff]
        %v1169 = vld [vmem:[#allocation3 + $0x20] sm:$0xff]
        %v1170 = vld [vmem:[#allocation10] sm:$0xff]
        %v1171 = vld [vmem:[#allocation10 + $0x8] sm:$0xff]
        %v1172 = vld [vmem:[#allocation10 + $0x10] sm:$0xff]
        %v1173 = vld [vmem:[#allocation10 + $0x18] sm:$0xff]
        %v1174 = vld [vmem:[#allocation10 + $0x20] sm:$0xff]
        %v1175 = vld [vmem:[#allocation10 + $0x28] sm:$0xff]
        %v1176 = vld [vmem:[#allocation10 + $0x30] sm:$0xff]
        %v1177 = vld [vmem:[#allocation10 + $0x38] sm:$0xff]
        %v1178 = vld [vmem:[#allocation10 + $0x40] sm:$0xff]
        %v1179 = vld [vmem:[#allocation10 + $0x48] sm:$0xff]
        %v1180 = vld [vmem:[#allocation10 + $0x50] sm:$0xff]
        %v1181 = vld [vmem:[#allocation10 + $0x58] sm:$0xff]
        %v1182 = vld [vmem:[#allocation10 + $0x60] sm:$0xff]
        %v1183 = vld [vmem:[#allocation10 + $0x68] sm:$0xff]
        %v1184 = vld [vmem:[#allocation10 + $0x70] sm:$0xff]
        %v1185 = vld [vmem:[#allocation10 + $0x78] sm:$0xff]
        %v1186 = vld [vmem:[#allocation3 + $0x1] sm:$0xff]
        %v1187 = vld [vmem:[#allocation3 + $0x9] sm:$0xff]
        %v1188 = vld [vmem:[#allocation3 + $0x19] sm:$0xff]
        %v1189 = vld [vmem:[#allocation3 + $0x21] sm:$0xff]
        %s1190 = scalar_lea.vmem [#allocation10], 128
        %v1191 = vld [vmem:[%s1190] sm:$0xff]
        %v1192 = vld [vmem:[%s1190 + $0x8] sm:$0xff]
        %v1193 = vld [vmem:[%s1190 + $0x10] sm:$0xff]
        %v1194 = vld [vmem:[%s1190 + $0x18] sm:$0xff]
        %v1195 = vld [vmem:[%s1190 + $0x20] sm:$0xff]
        %v1196 = vld [vmem:[%s1190 + $0x28] sm:$0xff]
        %v1197 = vld [vmem:[%s1190 + $0x30] sm:$0xff]
        %v1198 = vld [vmem:[%s1190 + $0x38] sm:$0xff]
        %v1199 = vld [vmem:[%s1190 + $0x40] sm:$0xff]
        %v1200 = vld [vmem:[%s1190 + $0x48] sm:$0xff]
        %v1201 = vld [vmem:[%s1190 + $0x50] sm:$0xff]
        %v1202 = vld [vmem:[%s1190 + $0x58] sm:$0xff]
        %v1203 = vld [vmem:[%s1190 + $0x60] sm:$0xff]
        %v1204 = vld [vmem:[%s1190 + $0x68] sm:$0xff]
        %v1205 = vld [vmem:[%s1190 + $0x70] sm:$0xff]
        %v1206 = vld [vmem:[%s1190 + $0x78] sm:$0xff]
        %1207 = vmatprep.subr.mxu0 0.0
        %1208 = vmatpush1.msra.mxu0 %v1206
        %1209 = vmatprep.subr.mxu0 0.0
        %1210 = vmatpush1.msra.mxu0 %v1205
        %1211 = vmatprep.subr.mxu0 0.0
        %1212 = vmatpush1.msra.mxu0 %v1204
        %1213 = vmatprep.subr.mxu0 0.0
        %1214 = vmatpush1.msra.mxu0 %v1203
        %1215 = vmatprep.subr.mxu0 0.0
        %1216 = vmatpush1.msra.mxu0 %v1202
        %1217 = vmatprep.subr.mxu0 0.0
        %1218 = vmatpush1.msra.mxu0 %v1201
        %1219 = vmatprep.subr.mxu0 0.0
        %1220 = vmatpush1.msra.mxu0 %v1200
        %1221 = vmatprep.subr.mxu0 0.0
        %1222 = vmatpush1.msra.mxu0 %v1199
        %1223 = vmatprep.subr.mxu0 0.0
        %1224 = vmatpush1.msra.mxu0 %v1198
        %1225 = vmatprep.subr.mxu0 0.0
        %1226 = vmatpush1.msra.mxu0 %v1197
        %1227 = vmatprep.subr.mxu0 0.0
        %1228 = vmatpush1.msra.mxu0 %v1196
        %1229 = vmatprep.subr.mxu0 0.0
        %1230 = vmatpush1.msra.mxu0 %v1195
        %1231 = vmatprep.subr.mxu0 0.0
        %1232 = vmatpush1.msra.mxu0 %v1194
        %1233 = vmatprep.subr.mxu0 0.0
        %1234 = vmatpush1.msra.mxu0 %v1193
        %1235 = vmatprep.subr.mxu0 0.0
        %1236 = vmatpush1.msra.mxu0 %v1192
        %1237 = vmatprep.subr.mxu0 0.0
        %1238 = vmatpush1.msra.mxu0 %v1191
        %1239 = vmatprep.subr.mxu0 0.0
        %1240 = vmatpush2.msra.mxu0 0.0
        %1241 = vmatprep.subr.mxu0 0.0
        %1242 = vmatpush2.msra.mxu0 0.0
        %1243 = vmatprep.subr.mxu0 0.0
        %1244 = vmatpush2.msra.mxu0 0.0
        %1245 = vmatprep.subr.mxu0 0.0
        %1246 = vmatpush2.msra.mxu0 0.0
        %1247 = vmatprep.subr.mxu0 0.0
        %1248 = vmatpush2.msra.mxu0 0.0
        %1249 = vmatprep.subr.mxu0 0.0
        %1250 = vmatpush2.msra.mxu0 0.0
        %1251 = vmatprep.subr.mxu0 0.0
        %1252 = vmatpush2.msra.mxu0 0.0
        %1253 = vmatprep.subr.mxu0 0.0
        %1254 = vmatpush2.msra.mxu0 0.0
        %1255 = vmatprep.subr.mxu0 0.0
        %1256 = vmatpush2.msra.mxu0 0.0
        %1257 = vmatprep.subr.mxu0 0.0
        %1258 = vmatpush2.msra.mxu0 0.0
        %1259 = vmatprep.subr.mxu0 0.0
        %1260 = vmatpush2.msra.mxu0 0.0
        %1261 = vmatprep.subr.mxu0 0.0
        %1262 = vmatpush2.msra.mxu0 0.0
        %1263 = vmatprep.subr.mxu0 0.0
        %1264 = vmatpush2.msra.mxu0 0.0
        %1265 = vmatprep.subr.mxu0 0.0
        %1266 = vmatpush2.msra.mxu0 0.0
        %1267 = vmatprep.subr.mxu0 0.0
        %1268 = vmatpush2.msra.mxu0 0.0
        %1269 = vmatprep.subr.mxu0 0.0
        %1270 = vmatpush2.msra.mxu0 0.0
        %1271 = vmatprep.mubr.f32.mxu0 0.0
        %1272 = vmatmul.mubr.f32.gmra.mxu0 %v1186
        %v1273 = vpop.f32.mrf.mxu0
        %v1274 = vadd.f32 0.0, %v1273
        %v1275 = vpop.f32.mrf.mxu0
        %1276 = vmatprep.mubr.f32.mxu0 0.0
        %1277 = vmatmul.mubr.f32.gmra.mxu0 %v1187
        %v1278 = vpop.f32.mrf.mxu0
        %v1279 = vadd.f32 0.0, %v1278
        %v1280 = vpop.f32.mrf.mxu0
        %1281 = vmatprep.mubr.f32.mxu0 0.0
        %1282 = vmatmul.mubr.f32.gmra.mxu0 %v1188
        %v1283 = vpop.f32.mrf.mxu0
        %v1284 = vadd.f32 0.0, %v1283
        %v1285 = vpop.f32.mrf.mxu0
        %1286 = vmatprep.mubr.f32.mxu0 0.0
        %1287 = vmatmul.mubr.f32.gmra.mxu0 %v1189
        %v1288 = vpop.f32.mrf.mxu0
        %v1289 = vadd.f32 0.0, %v1288
        %v1290 = vpop.f32.mrf.mxu0
        %1291 = vdwg.mxu0
        %1292 = vmatprep.subr.mxu0 0.0
        %1293 = vmatpush1.msra.mxu0 %v1185
        %1294 = vmatprep.subr.mxu0 0.0
        %1295 = vmatpush1.msra.mxu0 %v1184
        %1296 = vmatprep.subr.mxu0 0.0
        %1297 = vmatpush1.msra.mxu0 %v1183
        %1298 = vmatprep.subr.mxu0 0.0
        %1299 = vmatpush1.msra.mxu0 %v1182
        %1300 = vmatprep.subr.mxu0 0.0
        %1301 = vmatpush1.msra.mxu0 %v1181
        %1302 = vmatprep.subr.mxu0 0.0
        %1303 = vmatpush1.msra.mxu0 %v1180
        %1304 = vmatprep.subr.mxu0 0.0
        %1305 = vmatpush1.msra.mxu0 %v1179
        %1306 = vmatprep.subr.mxu0 0.0
        %1307 = vmatpush1.msra.mxu0 %v1178
        %1308 = vmatprep.subr.mxu0 0.0
        %1309 = vmatpush1.msra.mxu0 %v1177
        %1310 = vmatprep.subr.mxu0 0.0
        %1311 = vmatpush1.msra.mxu0 %v1176
        %1312 = vmatprep.subr.mxu0 0.0
        %1313 = vmatpush1.msra.mxu0 %v1175
        %1314 = vmatprep.subr.mxu0 0.0
        %1315 = vmatpush1.msra.mxu0 %v1174
        %1316 = vmatprep.subr.mxu0 0.0
        %1317 = vmatpush1.msra.mxu0 %v1173
        %1318 = vmatprep.subr.mxu0 0.0
        %1319 = vmatpush1.msra.mxu0 %v1172
        %1320 = vmatprep.subr.mxu0 0.0
        %1321 = vmatpush1.msra.mxu0 %v1171
        %1322 = vmatprep.subr.mxu0 0.0
        %1323 = vmatpush1.msra.mxu0 %v1170
        %1324 = vmatprep.subr.mxu0 0.0
        %1325 = vmatpush2.msra.mxu0 0.0
        %1326 = vmatprep.subr.mxu0 0.0
        %1327 = vmatpush2.msra.mxu0 0.0
        %1328 = vmatprep.subr.mxu0 0.0
        %1329 = vmatpush2.msra.mxu0 0.0
        %1330 = vmatprep.subr.mxu0 0.0
        %1331 = vmatpush2.msra.mxu0 0.0
        %1332 = vmatprep.subr.mxu0 0.0
        %1333 = vmatpush2.msra.mxu0 0.0
        %1334 = vmatprep.subr.mxu0 0.0
        %1335 = vmatpush2.msra.mxu0 0.0
        %1336 = vmatprep.subr.mxu0 0.0
        %1337 = vmatpush2.msra.mxu0 0.0
        %1338 = vmatprep.subr.mxu0 0.0
        %1339 = vmatpush2.msra.mxu0 0.0
        %1340 = vmatprep.subr.mxu0 0.0
        %1341 = vmatpush2.msra.mxu0 0.0
        %1342 = vmatprep.subr.mxu0 0.0
        %1343 = vmatpush2.msra.mxu0 0.0
        %1344 = vmatprep.subr.mxu0 0.0
        %1345 = vmatpush2.msra.mxu0 0.0
        %1346 = vmatprep.subr.mxu0 0.0
        %1347 = vmatpush2.msra.mxu0 0.0
        %1348 = vmatprep.subr.mxu0 0.0
        %1349 = vmatpush2.msra.mxu0 0.0
        %1350 = vmatprep.subr.mxu0 0.0
        %1351 = vmatpush2.msra.mxu0 0.0
        %1352 = vmatprep.subr.mxu0 0.0
        %1353 = vmatpush2.msra.mxu0 0.0
        %1354 = vmatprep.subr.mxu0 0.0
        %1355 = vmatpush2.msra.mxu0 0.0
        %1356 = vmatprep.mubr.f32.mxu0 0.0
        %1357 = vmatmul.mubr.f32.gmra.mxu0 %v1166
        %v1358 = vpop.f32.mrf.mxu0
        %v1359 = vadd.f32 %v1274, %v1358
        %v1360 = vpop.f32.mrf.mxu0
        %1361 = vmatprep.mubr.f32.mxu0 0.0
        %1362 = vmatmul.mubr.f32.gmra.mxu0 %v1167
        %v1363 = vpop.f32.mrf.mxu0
        %v1364 = vadd.f32 %v1279, %v1363
        %v1365 = vpop.f32.mrf.mxu0
        %1366 = vmatprep.mubr.f32.mxu0 0.0
        %1367 = vmatmul.mubr.f32.gmra.mxu0 %v1168
        %v1368 = vpop.f32.mrf.mxu0
        %v1369 = vadd.f32 %v1284, %v1368
        %v1370 = vpop.f32.mrf.mxu0
        %1371 = vmatprep.mubr.f32.mxu0 0.0
        %1372 = vmatmul.mubr.f32.gmra.mxu0 %v1169
        %v1373 = vpop.f32.mrf.mxu0
        %v1374 = vadd.f32 %v1289, %v1373
        %v1375 = vpop.f32.mrf.mxu0
        %1376 = vdwg.mxu0
        %v1377 = vld [vmem:[#allocation3 + $0x2] sm:$0xff]
        %v1378 = vld [vmem:[#allocation3 + $0xa] sm:$0xff]
        %v1379 = vld [vmem:[#allocation3 + $0x1a] sm:$0xff]
        %v1380 = vld [vmem:[#allocation3 + $0x22] sm:$0xff]
        %s1381 = scalar_lea.vmem [#allocation10], 256
        %v1382 = vld [vmem:[%s1381] sm:$0xff]
        %v1383 = vld [vmem:[%s1381 + $0x8] sm:$0xff]
        %v1384 = vld [vmem:[%s1381 + $0x10] sm:$0xff]
        %v1385 = vld [vmem:[%s1381 + $0x18] sm:$0xff]
        %v1386 = vld [vmem:[%s1381 + $0x20] sm:$0xff]
        %v1387 = vld [vmem:[%s1381 + $0x28] sm:$0xff]
        %v1388 = vld [vmem:[%s1381 + $0x30] sm:$0xff]
        %v1389 = vld [vmem:[%s1381 + $0x38] sm:$0xff]
        %v1390 = vld [vmem:[%s1381 + $0x40] sm:$0xff]
        %v1391 = vld [vmem:[%s1381 + $0x48] sm:$0xff]
        %v1392 = vld [vmem:[%s1381 + $0x50] sm:$0xff]
        %v1393 = vld [vmem:[%s1381 + $0x58] sm:$0xff]
        %v1394 = vld [vmem:[%s1381 + $0x60] sm:$0xff]
        %v1395 = vld [vmem:[%s1381 + $0x68] sm:$0xff]
        %v1396 = vld [vmem:[%s1381 + $0x70] sm:$0xff]
        %v1397 = vld [vmem:[%s1381 + $0x78] sm:$0xff]
        %1398 = vmatprep.subr.mxu0 0.0
        %1399 = vmatpush1.msra.mxu0 %v1397
        %1400 = vmatprep.subr.mxu0 0.0
        %1401 = vmatpush1.msra.mxu0 %v1396
        %1402 = vmatprep.subr.mxu0 0.0
        %1403 = vmatpush1.msra.mxu0 %v1395
        %1404 = vmatprep.subr.mxu0 0.0
        %1405 = vmatpush1.msra.mxu0 %v1394
        %1406 = vmatprep.subr.mxu0 0.0
        %1407 = vmatpush1.msra.mxu0 %v1393
        %1408 = vmatprep.subr.mxu0 0.0
        %1409 = vmatpush1.msra.mxu0 %v1392
        %1410 = vmatprep.subr.mxu0 0.0
        %1411 = vmatpush1.msra.mxu0 %v1391
        %1412 = vmatprep.subr.mxu0 0.0
        %1413 = vmatpush1.msra.mxu0 %v1390
        %1414 = vmatprep.subr.mxu0 0.0
        %1415 = vmatpush1.msra.mxu0 %v1389
        %1416 = vmatprep.subr.mxu0 0.0
        %1417 = vmatpush1.msra.mxu0 %v1388
        %1418 = vmatprep.subr.mxu0 0.0
        %1419 = vmatpush1.msra.mxu0 %v1387
        %1420 = vmatprep.subr.mxu0 0.0
        %1421 = vmatpush1.msra.mxu0 %v1386
        %1422 = vmatprep.subr.mxu0 0.0
        %1423 = vmatpush1.msra.mxu0 %v1385
        %1424 = vmatprep.subr.mxu0 0.0
        %1425 = vmatpush1.msra.mxu0 %v1384
        %1426 = vmatprep.subr.mxu0 0.0
        %1427 = vmatpush1.msra.mxu0 %v1383
        %1428 = vmatprep.subr.mxu0 0.0
        %1429 = vmatpush1.msra.mxu0 %v1382
        %1430 = vmatprep.subr.mxu0 0.0
        %1431 = vmatpush2.msra.mxu0 0.0
        %1432 = vmatprep.subr.mxu0 0.0
        %1433 = vmatpush2.msra.mxu0 0.0
        %1434 = vmatprep.subr.mxu0 0.0
        %1435 = vmatpush2.msra.mxu0 0.0
        %1436 = vmatprep.subr.mxu0 0.0
        %1437 = vmatpush2.msra.mxu0 0.0
        %1438 = vmatprep.subr.mxu0 0.0
        %1439 = vmatpush2.msra.mxu0 0.0
        %1440 = vmatprep.subr.mxu0 0.0
        %1441 = vmatpush2.msra.mxu0 0.0
        %1442 = vmatprep.subr.mxu0 0.0
        %1443 = vmatpush2.msra.mxu0 0.0
        %1444 = vmatprep.subr.mxu0 0.0
        %1445 = vmatpush2.msra.mxu0 0.0
        %1446 = vmatprep.subr.mxu0 0.0
        %1447 = vmatpush2.msra.mxu0 0.0
        %1448 = vmatprep.subr.mxu0 0.0
        %1449 = vmatpush2.msra.mxu0 0.0
        %1450 = vmatprep.subr.mxu0 0.0
        %1451 = vmatpush2.msra.mxu0 0.0
        %1452 = vmatprep.subr.mxu0 0.0
        %1453 = vmatpush2.msra.mxu0 0.0
        %1454 = vmatprep.subr.mxu0 0.0
        %1455 = vmatpush2.msra.mxu0 0.0
        %1456 = vmatprep.subr.mxu0 0.0
        %1457 = vmatpush2.msra.mxu0 0.0
        %1458 = vmatprep.subr.mxu0 0.0
        %1459 = vmatpush2.msra.mxu0 0.0
        %1460 = vmatprep.subr.mxu0 0.0
        %1461 = vmatpush2.msra.mxu0 0.0
        %1462 = vmatprep.mubr.f32.mxu0 0.0
        %1463 = vmatmul.mubr.f32.gmra.mxu0 %v1377
        %v1464 = vpop.f32.mrf.mxu0
        %v1465 = vadd.f32 0.0, %v1464
        %v1466 = vpop.f32.mrf.mxu0
        %1467 = vmatprep.mubr.f32.mxu0 0.0
        %1468 = vmatmul.mubr.f32.gmra.mxu0 %v1378
        %v1469 = vpop.f32.mrf.mxu0
        %v1470 = vadd.f32 0.0, %v1469
        %v1471 = vpop.f32.mrf.mxu0
        %1472 = vmatprep.mubr.f32.mxu0 0.0
        %1473 = vmatmul.mubr.f32.gmra.mxu0 %v1379
        %v1474 = vpop.f32.mrf.mxu0
        %v1475 = vadd.f32 0.0, %v1474
        %v1476 = vpop.f32.mrf.mxu0
        %1477 = vmatprep.mubr.f32.mxu0 0.0
        %1478 = vmatmul.mubr.f32.gmra.mxu0 %v1380
        %v1479 = vpop.f32.mrf.mxu0
        %v1480 = vadd.f32 0.0, %v1479
        %v1481 = vpop.f32.mrf.mxu0
        %1482 = vdwg.mxu0
        %v1483 = vadd.f32 %v1359, %v1465
        %v1484 = vadd.f32 %v1364, %v1470
        %v1485 = vadd.f32 %v1369, %v1475
        %v1486 = vadd.f32 %v1374, %v1480
        %v1487 = vld [vmem:[#allocation11] sm:$0x1]
        %v1488 = vlaneseq
        %v1489 = vshrl.u32 %v1488, 7
        %v1490 = vsub.s32 0, %v1489
        %v1491 = vrot.slane %v1487, %v1490
        %v1492 = vadd.f32 %v1483, %v1491
        %v1493 = vadd.f32 %v1484, %v1491
        %v1494 = vadd.f32 %v1485, %v1491
        %v1495 = vadd.f32 %v1486, %v1491
        %v1496 = vmax.f32 %v1492, 0.0
        %v1497 = vmax.f32 %v1493, 0.0
        %v1498 = vmax.f32 %v1494, 0.0
        %v1499 = vmax.f32 %v1495, 0.0
        %v1500 = vmul.f32 %v1496, %v1496
        %v1501 = vmul.f32 %v1497, %v1497
        %v1502 = vmul.f32 %v1498, %v1498
        %v1503 = vmul.f32 %v1499, %v1499
        %v1504 = vld [vmem:[#allocation16] sm:$0xff]
        %v1505 = vld [vmem:[#allocation16 + $0x8] sm:$0xff]
        %v1506 = vld [vmem:[#allocation16 + $0x10] sm:$0xff]
        %v1507 = vld [vmem:[#allocation16 + $0x18] sm:$0xff]
        %v1508 = vld [vmem:[#allocation16 + $0x20] sm:$0xff]
        %v1509 = vld [vmem:[#allocation16 + $0x28] sm:$0xff]
        %v1510 = vld [vmem:[#allocation16 + $0x30] sm:$0xff]
        %v1511 = vld [vmem:[#allocation16 + $0x38] sm:$0xff]
        %v1512 = vld [vmem:[#allocation16 + $0x40] sm:$0xff]
        %v1513 = vld [vmem:[#allocation16 + $0x48] sm:$0xff]
        %v1514 = vld [vmem:[#allocation16 + $0x50] sm:$0xff]
        %v1515 = vld [vmem:[#allocation16 + $0x58] sm:$0xff]
        %v1516 = vld [vmem:[#allocation16 + $0x60] sm:$0xff]
        %v1517 = vld [vmem:[#allocation16 + $0x68] sm:$0xff]
        %v1518 = vld [vmem:[#allocation16 + $0x70] sm:$0xff]
        %v1519 = vld [vmem:[#allocation16 + $0x78] sm:$0xff]
        %1520 = vmatprep.subr.mxu0 0.0
        %1521 = vmatpush1.msra.mxu0 %v1519
        %1522 = vmatprep.subr.mxu0 0.0
        %1523 = vmatpush1.msra.mxu0 %v1518
        %1524 = vmatprep.subr.mxu0 0.0
        %1525 = vmatpush1.msra.mxu0 %v1517
        %1526 = vmatprep.subr.mxu0 0.0
        %1527 = vmatpush1.msra.mxu0 %v1516
        %1528 = vmatprep.subr.mxu0 0.0
        %1529 = vmatpush1.msra.mxu0 %v1515
        %1530 = vmatprep.subr.mxu0 0.0
        %1531 = vmatpush1.msra.mxu0 %v1514
        %1532 = vmatprep.subr.mxu0 0.0
        %1533 = vmatpush1.msra.mxu0 %v1513
        %1534 = vmatprep.subr.mxu0 0.0
        %1535 = vmatpush1.msra.mxu0 %v1512
        %1536 = vmatprep.subr.mxu0 0.0
        %1537 = vmatpush1.msra.mxu0 %v1511
        %1538 = vmatprep.subr.mxu0 0.0
        %1539 = vmatpush1.msra.mxu0 %v1510
        %1540 = vmatprep.subr.mxu0 0.0
        %1541 = vmatpush1.msra.mxu0 %v1509
        %1542 = vmatprep.subr.mxu0 0.0
        %1543 = vmatpush1.msra.mxu0 %v1508
        %1544 = vmatprep.subr.mxu0 0.0
        %1545 = vmatpush1.msra.mxu0 %v1507
        %1546 = vmatprep.subr.mxu0 0.0
        %1547 = vmatpush1.msra.mxu0 %v1506
        %1548 = vmatprep.subr.mxu0 0.0
        %1549 = vmatpush1.msra.mxu0 %v1505
        %1550 = vmatprep.subr.mxu0 0.0
        %1551 = vmatpush1.msra.mxu0 %v1504
        %1552 = vmatprep.subr.mxu0 0.0
        %1553 = vmatpush2.msra.mxu0 0.0
        %1554 = vmatprep.subr.mxu0 0.0
        %1555 = vmatpush2.msra.mxu0 0.0
        %1556 = vmatprep.subr.mxu0 0.0
        %1557 = vmatpush2.msra.mxu0 0.0
        %1558 = vmatprep.subr.mxu0 0.0
        %1559 = vmatpush2.msra.mxu0 0.0
        %1560 = vmatprep.subr.mxu0 0.0
        %1561 = vmatpush2.msra.mxu0 0.0
        %1562 = vmatprep.subr.mxu0 0.0
        %1563 = vmatpush2.msra.mxu0 0.0
        %1564 = vmatprep.subr.mxu0 0.0
        %1565 = vmatpush2.msra.mxu0 0.0
        %1566 = vmatprep.subr.mxu0 0.0
        %1567 = vmatpush2.msra.mxu0 0.0
        %1568 = vmatprep.subr.mxu0 0.0
        %1569 = vmatpush2.msra.mxu0 0.0
        %1570 = vmatprep.subr.mxu0 0.0
        %1571 = vmatpush2.msra.mxu0 0.0
        %1572 = vmatprep.subr.mxu0 0.0
        %1573 = vmatpush2.msra.mxu0 0.0
        %1574 = vmatprep.subr.mxu0 0.0
        %1575 = vmatpush2.msra.mxu0 0.0
        %1576 = vmatprep.subr.mxu0 0.0
        %1577 = vmatpush2.msra.mxu0 0.0
        %1578 = vmatprep.subr.mxu0 0.0
        %1579 = vmatpush2.msra.mxu0 0.0
        %1580 = vmatprep.subr.mxu0 0.0
        %1581 = vmatpush2.msra.mxu0 0.0
        %1582 = vmatprep.subr.mxu0 0.0
        %1583 = vmatpush2.msra.mxu0 0.0
        %1584 = vmatprep.mubr.f32.mxu0 0.0
        %1585 = vmatmul.mubr.f32.gmra.mxu0 %v1496
        %v1586 = vpop.f32.mrf.mxu0
        %v1587 = vadd.f32 0.0, %v1586
        %v1588 = vpop.f32.mrf.mxu0
        %1589 = vmatprep.mubr.f32.mxu0 0.0
        %1590 = vmatmul.mubr.f32.gmra.mxu0 %v1497
        %v1591 = vpop.f32.mrf.mxu0
        %v1592 = vadd.f32 0.0, %v1591
        %v1593 = vpop.f32.mrf.mxu0
        %1594 = vmatprep.mubr.f32.mxu0 0.0
        %1595 = vmatmul.mubr.f32.gmra.mxu0 %v1498
        %v1596 = vpop.f32.mrf.mxu0
        %v1597 = vadd.f32 0.0, %v1596
        %v1598 = vpop.f32.mrf.mxu0
        %1599 = vmatprep.mubr.f32.mxu0 0.0
        %1600 = vmatmul.mubr.f32.gmra.mxu0 %v1499
        %v1601 = vpop.f32.mrf.mxu0
        %v1602 = vadd.f32 0.0, %v1601
        %v1603 = vpop.f32.mrf.mxu0
        %1604 = vmatprep.mubr.f32.mxu0 0.0
        %1605 = vmatmul.mubr.f32.gmra.mxu0 %v1500
        %v1606 = vpop.f32.mrf.mxu0
        %v1607 = vadd.f32 0.0, %v1606
        %v1608 = vpop.f32.mrf.mxu0
        %1609 = vmatprep.mubr.f32.mxu0 0.0
        %1610 = vmatmul.mubr.f32.gmra.mxu0 %v1501
        %v1611 = vpop.f32.mrf.mxu0
        %v1612 = vadd.f32 0.0, %v1611
        %v1613 = vpop.f32.mrf.mxu0
        %1614 = vmatprep.mubr.f32.mxu0 0.0
        %1615 = vmatmul.mubr.f32.gmra.mxu0 %v1502
        %v1616 = vpop.f32.mrf.mxu0
        %v1617 = vadd.f32 0.0, %v1616
        %v1618 = vpop.f32.mrf.mxu0
        %1619 = vmatprep.mubr.f32.mxu0 0.0
        %1620 = vmatmul.mubr.f32.gmra.mxu0 %v1503
        %v1621 = vpop.f32.mrf.mxu0
        %v1622 = vadd.f32 0.0, %v1621
        %v1623 = vpop.f32.mrf.mxu0
        %1624 = vdwg.mxu0
        %v1625 = vadd.f32 %v1587, %v1592
        %v1626 = vadd.f32 %v1625, %v1597
        %v1627 = vadd.f32 %v1626, %v1602
        %v1628 = vrot.slane %v1627, 4
        %v1629 = vadd.f32 %v1627, %v1628
        %v1630 = vrot.slane %v1629, 2
        %v1631 = vadd.f32 %v1629, %v1630
        %v1632 = vrot.slane %v1631, 1
        %v1633 = vadd.f32 %v1631, %v1632
        %v1634 = vmul.f32 %v1633, 0.001953125
        %v1635 = vadd.f32 %v1607, %v1612
        %v1636 = vadd.f32 %v1635, %v1617
        %v1637 = vadd.f32 %v1636, %v1622
        %v1638 = vrot.slane %v1637, 4
        %v1639 = vadd.f32 %v1637, %v1638
        %v1640 = vrot.slane %v1639, 2
        %v1641 = vadd.f32 %v1639, %v1640
        %v1642 = vrot.slane %v1641, 1
        %v1643 = vadd.f32 %v1641, %v1642
        %v1644 = vmul.f32 %v1643, 0.001953125
        %v1645 = vmul.f32 %v1634, %v1634
        %v1646 = vsub.f32 %v1644, %v1645
        %v1647 = vld [vmem:[#allocation11 + $0x1] sm:$0x1]
        %v1648 = vadd.f32 %v1646, 1e-05
        %v1649 = vrsqrt.pop %v1648
        %v1650 = vmul.f32 %v1647, %v1649
        %v1651 = vsub.f32 %v1496, %v1634
        %v1652 = vsub.f32 %v1497, %v1634
        %v1653 = vsub.f32 %v1498, %v1634
        %v1654 = vsub.f32 %v1499, %v1634
        %v1655 = vlaneseq
        %v1656 = vshrl.u32 %v1655, 7
        %v1657 = vsub.s32 0, %v1656
        %v1658 = vrot.slane %v1650, %v1657
        %v1659 = vmul.f32 %v1651, %v1658
        %v1660 = vmul.f32 %v1652, %v1658
        %v1661 = vmul.f32 %v1653, %v1658
        %v1662 = vmul.f32 %v1654, %v1658
        %v1663 = vld [vmem:[#allocation11 + $0x2] sm:$0x1]
        %v1664 = vlaneseq
        %v1665 = vshrl.u32 %v1664, 7
        %v1666 = vsub.s32 0, %v1665
        %v1667 = vrot.slane %v1663, %v1666
        %v1668 = vadd.f32 %v1659, %v1667
        %v1669 = vadd.f32 %v1660, %v1667
        %v1670 = vadd.f32 %v1661, %v1667
        %v1671 = vadd.f32 %v1662, %v1667
        %1672 = vst [vmem:[#allocation4 + $0x1] sm:$0xff] %v1668
        %1673 = vst [vmem:[#allocation4 + $0x9] sm:$0xff] %v1669
        %1674 = vst [vmem:[#allocation4 + $0x19] sm:$0xff] %v1670
        %1675 = vst [vmem:[#allocation4 + $0x21] sm:$0xff] %v1671
        %1676 = vst [vmem:[#allocation4 - $0x1] sm:$0x2] %v1668
        %1677 = vst [vmem:[#allocation4 + $0x17] sm:$0x2] %v1670
        %1678 = vst [vmem:[#allocation4 + $0xb] sm:$0x40] %v1669
        %1679 = vst [vmem:[#allocation4 + $0x23] sm:$0x40] %v1671
        %v1680 = vld [vmem:[#allocation4] sm:$0xff]
        %v1681 = vld [vmem:[#allocation4 + $0x8] sm:$0xff]
        %v1682 = vld [vmem:[#allocation4 + $0x18] sm:$0xff]
        %v1683 = vld [vmem:[#allocation4 + $0x20] sm:$0xff]
        %v1684 = vld [vmem:[#allocation13] sm:$0xff]
        %v1685 = vld [vmem:[#allocation13 + $0x8] sm:$0xff]
        %v1686 = vld [vmem:[#allocation13 + $0x10] sm:$0xff]
        %v1687 = vld [vmem:[#allocation13 + $0x18] sm:$0xff]
        %v1688 = vld [vmem:[#allocation13 + $0x20] sm:$0xff]
        %v1689 = vld [vmem:[#allocation13 + $0x28] sm:$0xff]
        %v1690 = vld [vmem:[#allocation13 + $0x30] sm:$0xff]
        %v1691 = vld [vmem:[#allocation13 + $0x38] sm:$0xff]
        %v1692 = vld [vmem:[#allocation13 + $0x40] sm:$0xff]
        %v1693 = vld [vmem:[#allocation13 + $0x48] sm:$0xff]
        %v1694 = vld [vmem:[#allocation13 + $0x50] sm:$0xff]
        %v1695 = vld [vmem:[#allocation13 + $0x58] sm:$0xff]
        %v1696 = vld [vmem:[#allocation13 + $0x60] sm:$0xff]
        %v1697 = vld [vmem:[#allocation13 + $0x68] sm:$0xff]
        %v1698 = vld [vmem:[#allocation13 + $0x70] sm:$0xff]
        %v1699 = vld [vmem:[#allocation13 + $0x78] sm:$0xff]
        %v1700 = vld [vmem:[#allocation4 + $0x1] sm:$0xff]
        %v1701 = vld [vmem:[#allocation4 + $0x9] sm:$0xff]
        %v1702 = vld [vmem:[#allocation4 + $0x19] sm:$0xff]
        %v1703 = vld [vmem:[#allocation4 + $0x21] sm:$0xff]
        %s1704 = scalar_lea.vmem [#allocation13], 128
        %v1705 = vld [vmem:[%s1704] sm:$0xff]
        %v1706 = vld [vmem:[%s1704 + $0x8] sm:$0xff]
        %v1707 = vld [vmem:[%s1704 + $0x10] sm:$0xff]
        %v1708 = vld [vmem:[%s1704 + $0x18] sm:$0xff]
        %v1709 = vld [vmem:[%s1704 + $0x20] sm:$0xff]
        %v1710 = vld [vmem:[%s1704 + $0x28] sm:$0xff]
        %v1711 = vld [vmem:[%s1704 + $0x30] sm:$0xff]
        %v1712 = vld [vmem:[%s1704 + $0x38] sm:$0xff]
        %v1713 = vld [vmem:[%s1704 + $0x40] sm:$0xff]
        %v1714 = vld [vmem:[%s1704 + $0x48] sm:$0xff]
        %v1715 = vld [vmem:[%s1704 + $0x50] sm:$0xff]
        %v1716 = vld [vmem:[%s1704 + $0x58] sm:$0xff]
        %v1717 = vld [vmem:[%s1704 + $0x60] sm:$0xff]
        %v1718 = vld [vmem:[%s1704 + $0x68] sm:$0xff]
        %v1719 = vld [vmem:[%s1704 + $0x70] sm:$0xff]
        %v1720 = vld [vmem:[%s1704 + $0x78] sm:$0xff]
        %1721 = vmatprep.subr.mxu0 0.0
        %1722 = vmatpush1.msra.mxu0 %v1720
        %1723 = vmatprep.subr.mxu0 0.0
        %1724 = vmatpush1.msra.mxu0 %v1719
        %1725 = vmatprep.subr.mxu0 0.0
        %1726 = vmatpush1.msra.mxu0 %v1718
        %1727 = vmatprep.subr.mxu0 0.0
        %1728 = vmatpush1.msra.mxu0 %v1717
        %1729 = vmatprep.subr.mxu0 0.0
        %1730 = vmatpush1.msra.mxu0 %v1716
        %1731 = vmatprep.subr.mxu0 0.0
        %1732 = vmatpush1.msra.mxu0 %v1715
        %1733 = vmatprep.subr.mxu0 0.0
        %1734 = vmatpush1.msra.mxu0 %v1714
        %1735 = vmatprep.subr.mxu0 0.0
        %1736 = vmatpush1.msra.mxu0 %v1713
        %1737 = vmatprep.subr.mxu0 0.0
        %1738 = vmatpush1.msra.mxu0 %v1712
        %1739 = vmatprep.subr.mxu0 0.0
        %1740 = vmatpush1.msra.mxu0 %v1711
        %1741 = vmatprep.subr.mxu0 0.0
        %1742 = vmatpush1.msra.mxu0 %v1710
        %1743 = vmatprep.subr.mxu0 0.0
        %1744 = vmatpush1.msra.mxu0 %v1709
        %1745 = vmatprep.subr.mxu0 0.0
        %1746 = vmatpush1.msra.mxu0 %v1708
        %1747 = vmatprep.subr.mxu0 0.0
        %1748 = vmatpush1.msra.mxu0 %v1707
        %1749 = vmatprep.subr.mxu0 0.0
        %1750 = vmatpush1.msra.mxu0 %v1706
        %1751 = vmatprep.subr.mxu0 0.0
        %1752 = vmatpush1.msra.mxu0 %v1705
        %1753 = vmatprep.subr.mxu0 0.0
        %1754 = vmatpush2.msra.mxu0 0.0
        %1755 = vmatprep.subr.mxu0 0.0
        %1756 = vmatpush2.msra.mxu0 0.0
        %1757 = vmatprep.subr.mxu0 0.0
        %1758 = vmatpush2.msra.mxu0 0.0
        %1759 = vmatprep.subr.mxu0 0.0
        %1760 = vmatpush2.msra.mxu0 0.0
        %1761 = vmatprep.subr.mxu0 0.0
        %1762 = vmatpush2.msra.mxu0 0.0
        %1763 = vmatprep.subr.mxu0 0.0
        %1764 = vmatpush2.msra.mxu0 0.0
        %1765 = vmatprep.subr.mxu0 0.0
        %1766 = vmatpush2.msra.mxu0 0.0
        %1767 = vmatprep.subr.mxu0 0.0
        %1768 = vmatpush2.msra.mxu0 0.0
        %1769 = vmatprep.subr.mxu0 0.0
        %1770 = vmatpush2.msra.mxu0 0.0
        %1771 = vmatprep.subr.mxu0 0.0
        %1772 = vmatpush2.msra.mxu0 0.0
        %1773 = vmatprep.subr.mxu0 0.0
        %1774 = vmatpush2.msra.mxu0 0.0
        %1775 = vmatprep.subr.mxu0 0.0
        %1776 = vmatpush2.msra.mxu0 0.0
        %1777 = vmatprep.subr.mxu0 0.0
        %1778 = vmatpush2.msra.mxu0 0.0
        %1779 = vmatprep.subr.mxu0 0.0
        %1780 = vmatpush2.msra.mxu0 0.0
        %1781 = vmatprep.subr.mxu0 0.0
        %1782 = vmatpush2.msra.mxu0 0.0
        %1783 = vmatprep.subr.mxu0 0.0
        %1784 = vmatpush2.msra.mxu0 0.0
        %1785 = vmatprep.mubr.f32.mxu0 0.0
        %1786 = vmatmul.mubr.f32.gmra.mxu0 %v1700
        %v1787 = vpop.f32.mrf.mxu0
        %v1788 = vadd.f32 0.0, %v1787
        %v1789 = vpop.f32.mrf.mxu0
        %1790 = vmatprep.mubr.f32.mxu0 0.0
        %1791 = vmatmul.mubr.f32.gmra.mxu0 %v1701
        %v1792 = vpop.f32.mrf.mxu0
        %v1793 = vadd.f32 0.0, %v1792
        %v1794 = vpop.f32.mrf.mxu0
        %1795 = vmatprep.mubr.f32.mxu0 0.0
        %1796 = vmatmul.mubr.f32.gmra.mxu0 %v1702
        %v1797 = vpop.f32.mrf.mxu0
        %v1798 = vadd.f32 0.0, %v1797
        %v1799 = vpop.f32.mrf.mxu0
        %1800 = vmatprep.mubr.f32.mxu0 0.0
        %1801 = vmatmul.mubr.f32.gmra.mxu0 %v1703
        %v1802 = vpop.f32.mrf.mxu0
        %v1803 = vadd.f32 0.0, %v1802
        %v1804 = vpop.f32.mrf.mxu0
        %1805 = vdwg.mxu0
        %1806 = vmatprep.subr.mxu0 0.0
        %1807 = vmatpush1.msra.mxu0 %v1699
        %1808 = vmatprep.subr.mxu0 0.0
        %1809 = vmatpush1.msra.mxu0 %v1698
        %1810 = vmatprep.subr.mxu0 0.0
        %1811 = vmatpush1.msra.mxu0 %v1697
        %1812 = vmatprep.subr.mxu0 0.0
        %1813 = vmatpush1.msra.mxu0 %v1696
        %1814 = vmatprep.subr.mxu0 0.0
        %1815 = vmatpush1.msra.mxu0 %v1695
        %1816 = vmatprep.subr.mxu0 0.0
        %1817 = vmatpush1.msra.mxu0 %v1694
        %1818 = vmatprep.subr.mxu0 0.0
        %1819 = vmatpush1.msra.mxu0 %v1693
        %1820 = vmatprep.subr.mxu0 0.0
        %1821 = vmatpush1.msra.mxu0 %v1692
        %1822 = vmatprep.subr.mxu0 0.0
        %1823 = vmatpush1.msra.mxu0 %v1691
        %1824 = vmatprep.subr.mxu0 0.0
        %1825 = vmatpush1.msra.mxu0 %v1690
        %1826 = vmatprep.subr.mxu0 0.0
        %1827 = vmatpush1.msra.mxu0 %v1689
        %1828 = vmatprep.subr.mxu0 0.0
        %1829 = vmatpush1.msra.mxu0 %v1688
        %1830 = vmatprep.subr.mxu0 0.0
        %1831 = vmatpush1.msra.mxu0 %v1687
        %1832 = vmatprep.subr.mxu0 0.0
        %1833 = vmatpush1.msra.mxu0 %v1686
        %1834 = vmatprep.subr.mxu0 0.0
        %1835 = vmatpush1.msra.mxu0 %v1685
        %1836 = vmatprep.subr.mxu0 0.0
        %1837 = vmatpush1.msra.mxu0 %v1684
        %1838 = vmatprep.subr.mxu0 0.0
        %1839 = vmatpush2.msra.mxu0 0.0
        %1840 = vmatprep.subr.mxu0 0.0
        %1841 = vmatpush2.msra.mxu0 0.0
        %1842 = vmatprep.subr.mxu0 0.0
        %1843 = vmatpush2.msra.mxu0 0.0
        %1844 = vmatprep.subr.mxu0 0.0
        %1845 = vmatpush2.msra.mxu0 0.0
        %1846 = vmatprep.subr.mxu0 0.0
        %1847 = vmatpush2.msra.mxu0 0.0
        %1848 = vmatprep.subr.mxu0 0.0
        %1849 = vmatpush2.msra.mxu0 0.0
        %1850 = vmatprep.subr.mxu0 0.0
        %1851 = vmatpush2.msra.mxu0 0.0
        %1852 = vmatprep.subr.mxu0 0.0
        %1853 = vmatpush2.msra.mxu0 0.0
        %1854 = vmatprep.subr.mxu0 0.0
        %1855 = vmatpush2.msra.mxu0 0.0
        %1856 = vmatprep.subr.mxu0 0.0
        %1857 = vmatpush2.msra.mxu0 0.0
        %1858 = vmatprep.subr.mxu0 0.0
        %1859 = vmatpush2.msra.mxu0 0.0
        %1860 = vmatprep.subr.mxu0 0.0
        %1861 = vmatpush2.msra.mxu0 0.0
        %1862 = vmatprep.subr.mxu0 0.0
        %1863 = vmatpush2.msra.mxu0 0.0
        %1864 = vmatprep.subr.mxu0 0.0
        %1865 = vmatpush2.msra.mxu0 0.0
        %1866 = vmatprep.subr.mxu0 0.0
        %1867 = vmatpush2.msra.mxu0 0.0
        %1868 = vmatprep.subr.mxu0 0.0
        %1869 = vmatpush2.msra.mxu0 0.0
        %1870 = vmatprep.mubr.f32.mxu0 0.0
        %1871 = vmatmul.mubr.f32.gmra.mxu0 %v1680
        %v1872 = vpop.f32.mrf.mxu0
        %v1873 = vadd.f32 %v1788, %v1872
        %v1874 = vpop.f32.mrf.mxu0
        %1875 = vmatprep.mubr.f32.mxu0 0.0
        %1876 = vmatmul.mubr.f32.gmra.mxu0 %v1681
        %v1877 = vpop.f32.mrf.mxu0
        %v1878 = vadd.f32 %v1793, %v1877
        %v1879 = vpop.f32.mrf.mxu0
        %1880 = vmatprep.mubr.f32.mxu0 0.0
        %1881 = vmatmul.mubr.f32.gmra.mxu0 %v1682
        %v1882 = vpop.f32.mrf.mxu0
        %v1883 = vadd.f32 %v1798, %v1882
        %v1884 = vpop.f32.mrf.mxu0
        %1885 = vmatprep.mubr.f32.mxu0 0.0
        %1886 = vmatmul.mubr.f32.gmra.mxu0 %v1683
        %v1887 = vpop.f32.mrf.mxu0
        %v1888 = vadd.f32 %v1803, %v1887
        %v1889 = vpop.f32.mrf.mxu0
        %1890 = vdwg.mxu0
        %v1891 = vld [vmem:[#allocation4 + $0x2] sm:$0xff]
        %v1892 = vld [vmem:[#allocation4 + $0xa] sm:$0xff]
        %v1893 = vld [vmem:[#allocation4 + $0x1a] sm:$0xff]
        %v1894 = vld [vmem:[#allocation4 + $0x22] sm:$0xff]
        %s1895 = scalar_lea.vmem [#allocation13], 256
        %v1896 = vld [vmem:[%s1895] sm:$0xff]
        %v1897 = vld [vmem:[%s1895 + $0x8] sm:$0xff]
        %v1898 = vld [vmem:[%s1895 + $0x10] sm:$0xff]
        %v1899 = vld [vmem:[%s1895 + $0x18] sm:$0xff]
        %v1900 = vld [vmem:[%s1895 + $0x20] sm:$0xff]
        %v1901 = vld [vmem:[%s1895 + $0x28] sm:$0xff]
        %v1902 = vld [vmem:[%s1895 + $0x30] sm:$0xff]
        %v1903 = vld [vmem:[%s1895 + $0x38] sm:$0xff]
        %v1904 = vld [vmem:[%s1895 + $0x40] sm:$0xff]
        %v1905 = vld [vmem:[%s1895 + $0x48] sm:$0xff]
        %v1906 = vld [vmem:[%s1895 + $0x50] sm:$0xff]
        %v1907 = vld [vmem:[%s1895 + $0x58] sm:$0xff]
        %v1908 = vld [vmem:[%s1895 + $0x60] sm:$0xff]
        %v1909 = vld [vmem:[%s1895 + $0x68] sm:$0xff]
        %v1910 = vld [vmem:[%s1895 + $0x70] sm:$0xff]
        %v1911 = vld [vmem:[%s1895 + $0x78] sm:$0xff]
        %1912 = vmatprep.subr.mxu0 0.0
        %1913 = vmatpush1.msra.mxu0 %v1911
        %1914 = vmatprep.subr.mxu0 0.0
        %1915 = vmatpush1.msra.mxu0 %v1910
        %1916 = vmatprep.subr.mxu0 0.0
        %1917 = vmatpush1.msra.mxu0 %v1909
        %1918 = vmatprep.subr.mxu0 0.0
        %1919 = vmatpush1.msra.mxu0 %v1908
        %1920 = vmatprep.subr.mxu0 0.0
        %1921 = vmatpush1.msra.mxu0 %v1907
        %1922 = vmatprep.subr.mxu0 0.0
        %1923 = vmatpush1.msra.mxu0 %v1906
        %1924 = vmatprep.subr.mxu0 0.0
        %1925 = vmatpush1.msra.mxu0 %v1905
        %1926 = vmatprep.subr.mxu0 0.0
        %1927 = vmatpush1.msra.mxu0 %v1904
        %1928 = vmatprep.subr.mxu0 0.0
        %1929 = vmatpush1.msra.mxu0 %v1903
        %1930 = vmatprep.subr.mxu0 0.0
        %1931 = vmatpush1.msra.mxu0 %v1902
        %1932 = vmatprep.subr.mxu0 0.0
        %1933 = vmatpush1.msra.mxu0 %v1901
        %1934 = vmatprep.subr.mxu0 0.0
        %1935 = vmatpush1.msra.mxu0 %v1900
        %1936 = vmatprep.subr.mxu0 0.0
        %1937 = vmatpush1.msra.mxu0 %v1899
        %1938 = vmatprep.subr.mxu0 0.0
        %1939 = vmatpush1.msra.mxu0 %v1898
        %1940 = vmatprep.subr.mxu0 0.0
        %1941 = vmatpush1.msra.mxu0 %v1897
        %1942 = vmatprep.subr.mxu0 0.0
        %1943 = vmatpush1.msra.mxu0 %v1896
        %1944 = vmatprep.subr.mxu0 0.0
        %1945 = vmatpush2.msra.mxu0 0.0
        %1946 = vmatprep.subr.mxu0 0.0
        %1947 = vmatpush2.msra.mxu0 0.0
        %1948 = vmatprep.subr.mxu0 0.0
        %1949 = vmatpush2.msra.mxu0 0.0
        %1950 = vmatprep.subr.mxu0 0.0
        %1951 = vmatpush2.msra.mxu0 0.0
        %1952 = vmatprep.subr.mxu0 0.0
        %1953 = vmatpush2.msra.mxu0 0.0
        %1954 = vmatprep.subr.mxu0 0.0
        %1955 = vmatpush2.msra.mxu0 0.0
        %1956 = vmatprep.subr.mxu0 0.0
        %1957 = vmatpush2.msra.mxu0 0.0
        %1958 = vmatprep.subr.mxu0 0.0
        %1959 = vmatpush2.msra.mxu0 0.0
        %1960 = vmatprep.subr.mxu0 0.0
        %1961 = vmatpush2.msra.mxu0 0.0
        %1962 = vmatprep.subr.mxu0 0.0
        %1963 = vmatpush2.msra.mxu0 0.0
        %1964 = vmatprep.subr.mxu0 0.0
        %1965 = vmatpush2.msra.mxu0 0.0
        %1966 = vmatprep.subr.mxu0 0.0
        %1967 = vmatpush2.msra.mxu0 0.0
        %1968 = vmatprep.subr.mxu0 0.0
        %1969 = vmatpush2.msra.mxu0 0.0
        %1970 = vmatprep.subr.mxu0 0.0
        %1971 = vmatpush2.msra.mxu0 0.0
        %1972 = vmatprep.subr.mxu0 0.0
        %1973 = vmatpush2.msra.mxu0 0.0
        %1974 = vmatprep.subr.mxu0 0.0
        %1975 = vmatpush2.msra.mxu0 0.0
        %1976 = vmatprep.mubr.f32.mxu0 0.0
        %1977 = vmatmul.mubr.f32.gmra.mxu0 %v1891
        %v1978 = vpop.f32.mrf.mxu0
        %v1979 = vadd.f32 0.0, %v1978
        %v1980 = vpop.f32.mrf.mxu0
        %1981 = vmatprep.mubr.f32.mxu0 0.0
        %1982 = vmatmul.mubr.f32.gmra.mxu0 %v1892
        %v1983 = vpop.f32.mrf.mxu0
        %v1984 = vadd.f32 0.0, %v1983
        %v1985 = vpop.f32.mrf.mxu0
        %1986 = vmatprep.mubr.f32.mxu0 0.0
        %1987 = vmatmul.mubr.f32.gmra.mxu0 %v1893
        %v1988 = vpop.f32.mrf.mxu0
        %v1989 = vadd.f32 0.0, %v1988
        %v1990 = vpop.f32.mrf.mxu0
        %1991 = vmatprep.mubr.f32.mxu0 0.0
        %1992 = vmatmul.mubr.f32.gmra.mxu0 %v1894
        %v1993 = vpop.f32.mrf.mxu0
        %v1994 = vadd.f32 0.0, %v1993
        %v1995 = vpop.f32.mrf.mxu0
        %1996 = vdwg.mxu0
        %v1997 = vadd.f32 %v1873, %v1979
        %v1998 = vadd.f32 %v1878, %v1984
        %v1999 = vadd.f32 %v1883, %v1989
        %v2000 = vadd.f32 %v1888, %v1994
        %v2001 = vld [vmem:[#allocation14] sm:$0x1]
        %v2002 = vlaneseq
        %v2003 = vshrl.u32 %v2002, 7
        %v2004 = vsub.s32 0, %v2003
        %v2005 = vrot.slane %v2001, %v2004
        %v2006 = vadd.f32 %v1997, %v2005
        %v2007 = vadd.f32 %v1998, %v2005
        %v2008 = vadd.f32 %v1999, %v2005
        %v2009 = vadd.f32 %v2000, %v2005
        %v2010 = vmax.f32 %v2006, 0.0
        %v2011 = vmax.f32 %v2007, 0.0
        %v2012 = vmax.f32 %v2008, 0.0
        %v2013 = vmax.f32 %v2009, 0.0
        %v2014 = vmul.f32 %v2010, %v2010
        %v2015 = vmul.f32 %v2011, %v2011
        %v2016 = vmul.f32 %v2012, %v2012
        %v2017 = vmul.f32 %v2013, %v2013
        %v2018 = vld [vmem:[#allocation16] sm:$0xff]
        %v2019 = vld [vmem:[#allocation16 + $0x8] sm:$0xff]
        %v2020 = vld [vmem:[#allocation16 + $0x10] sm:$0xff]
        %v2021 = vld [vmem:[#allocation16 + $0x18] sm:$0xff]
        %v2022 = vld [vmem:[#allocation16 + $0x20] sm:$0xff]
        %v2023 = vld [vmem:[#allocation16 + $0x28] sm:$0xff]
        %v2024 = vld [vmem:[#allocation16 + $0x30] sm:$0xff]
        %v2025 = vld [vmem:[#allocation16 + $0x38] sm:$0xff]
        %v2026 = vld [vmem:[#allocation16 + $0x40] sm:$0xff]
        %v2027 = vld [vmem:[#allocation16 + $0x48] sm:$0xff]
        %v2028 = vld [vmem:[#allocation16 + $0x50] sm:$0xff]
        %v2029 = vld [vmem:[#allocation16 + $0x58] sm:$0xff]
        %v2030 = vld [vmem:[#allocation16 + $0x60] sm:$0xff]
        %v2031 = vld [vmem:[#allocation16 + $0x68] sm:$0xff]
        %v2032 = vld [vmem:[#allocation16 + $0x70] sm:$0xff]
        %v2033 = vld [vmem:[#allocation16 + $0x78] sm:$0xff]
        %2034 = vmatprep.subr.mxu0 0.0
        %2035 = vmatpush1.msra.mxu0 %v2033
        %2036 = vmatprep.subr.mxu0 0.0
        %2037 = vmatpush1.msra.mxu0 %v2032
        %2038 = vmatprep.subr.mxu0 0.0
        %2039 = vmatpush1.msra.mxu0 %v2031
        %2040 = vmatprep.subr.mxu0 0.0
        %2041 = vmatpush1.msra.mxu0 %v2030
        %2042 = vmatprep.subr.mxu0 0.0
        %2043 = vmatpush1.msra.mxu0 %v2029
        %2044 = vmatprep.subr.mxu0 0.0
        %2045 = vmatpush1.msra.mxu0 %v2028
        %2046 = vmatprep.subr.mxu0 0.0
        %2047 = vmatpush1.msra.mxu0 %v2027
        %2048 = vmatprep.subr.mxu0 0.0
        %2049 = vmatpush1.msra.mxu0 %v2026
        %2050 = vmatprep.subr.mxu0 0.0
        %2051 = vmatpush1.msra.mxu0 %v2025
        %2052 = vmatprep.subr.mxu0 0.0
        %2053 = vmatpush1.msra.mxu0 %v2024
        %2054 = vmatprep.subr.mxu0 0.0
        %2055 = vmatpush1.msra.mxu0 %v2023
        %2056 = vmatprep.subr.mxu0 0.0
        %2057 = vmatpush1.msra.mxu0 %v2022
        %2058 = vmatprep.subr.mxu0 0.0
        %2059 = vmatpush1.msra.mxu0 %v2021
        %2060 = vmatprep.subr.mxu0 0.0
        %2061 = vmatpush1.msra.mxu0 %v2020
        %2062 = vmatprep.subr.mxu0 0.0
        %2063 = vmatpush1.msra.mxu0 %v2019
        %2064 = vmatprep.subr.mxu0 0.0
        %2065 = vmatpush1.msra.mxu0 %v2018
        %2066 = vmatprep.subr.mxu0 0.0
        %2067 = vmatpush2.msra.mxu0 0.0
        %2068 = vmatprep.subr.mxu0 0.0
        %2069 = vmatpush2.msra.mxu0 0.0
        %2070 = vmatprep.subr.mxu0 0.0
        %2071 = vmatpush2.msra.mxu0 0.0
        %2072 = vmatprep.subr.mxu0 0.0
        %2073 = vmatpush2.msra.mxu0 0.0
        %2074 = vmatprep.subr.mxu0 0.0
        %2075 = vmatpush2.msra.mxu0 0.0
        %2076 = vmatprep.subr.mxu0 0.0
        %2077 = vmatpush2.msra.mxu0 0.0
        %2078 = vmatprep.subr.mxu0 0.0
        %2079 = vmatpush2.msra.mxu0 0.0
        %2080 = vmatprep.subr.mxu0 0.0
        %2081 = vmatpush2.msra.mxu0 0.0
        %2082 = vmatprep.subr.mxu0 0.0
        %2083 = vmatpush2.msra.mxu0 0.0
        %2084 = vmatprep.subr.mxu0 0.0
        %2085 = vmatpush2.msra.mxu0 0.0
        %2086 = vmatprep.subr.mxu0 0.0
        %2087 = vmatpush2.msra.mxu0 0.0
        %2088 = vmatprep.subr.mxu0 0.0
        %2089 = vmatpush2.msra.mxu0 0.0
        %2090 = vmatprep.subr.mxu0 0.0
        %2091 = vmatpush2.msra.mxu0 0.0
        %2092 = vmatprep.subr.mxu0 0.0
        %2093 = vmatpush2.msra.mxu0 0.0
        %2094 = vmatprep.subr.mxu0 0.0
        %2095 = vmatpush2.msra.mxu0 0.0
        %2096 = vmatprep.subr.mxu0 0.0
        %2097 = vmatpush2.msra.mxu0 0.0
        %2098 = vmatprep.mubr.f32.mxu0 0.0
        %2099 = vmatmul.mubr.f32.gmra.mxu0 %v2010
        %v2100 = vpop.f32.mrf.mxu0
        %v2101 = vadd.f32 0.0, %v2100
        %v2102 = vpop.f32.mrf.mxu0
        %2103 = vmatprep.mubr.f32.mxu0 0.0
        %2104 = vmatmul.mubr.f32.gmra.mxu0 %v2011
        %v2105 = vpop.f32.mrf.mxu0
        %v2106 = vadd.f32 0.0, %v2105
        %v2107 = vpop.f32.mrf.mxu0
        %2108 = vmatprep.mubr.f32.mxu0 0.0
        %2109 = vmatmul.mubr.f32.gmra.mxu0 %v2012
        %v2110 = vpop.f32.mrf.mxu0
        %v2111 = vadd.f32 0.0, %v2110
        %v2112 = vpop.f32.mrf.mxu0
        %2113 = vmatprep.mubr.f32.mxu0 0.0
        %2114 = vmatmul.mubr.f32.gmra.mxu0 %v2013
        %v2115 = vpop.f32.mrf.mxu0
        %v2116 = vadd.f32 0.0, %v2115
        %v2117 = vpop.f32.mrf.mxu0
        %2118 = vmatprep.mubr.f32.mxu0 0.0
        %2119 = vmatmul.mubr.f32.gmra.mxu0 %v2014
        %v2120 = vpop.f32.mrf.mxu0
        %v2121 = vadd.f32 0.0, %v2120
        %v2122 = vpop.f32.mrf.mxu0
        %2123 = vmatprep.mubr.f32.mxu0 0.0
        %2124 = vmatmul.mubr.f32.gmra.mxu0 %v2015
        %v2125 = vpop.f32.mrf.mxu0
        %v2126 = vadd.f32 0.0, %v2125
        %v2127 = vpop.f32.mrf.mxu0
        %2128 = vmatprep.mubr.f32.mxu0 0.0
        %2129 = vmatmul.mubr.f32.gmra.mxu0 %v2016
        %v2130 = vpop.f32.mrf.mxu0
        %v2131 = vadd.f32 0.0, %v2130
        %v2132 = vpop.f32.mrf.mxu0
        %2133 = vmatprep.mubr.f32.mxu0 0.0
        %2134 = vmatmul.mubr.f32.gmra.mxu0 %v2017
        %v2135 = vpop.f32.mrf.mxu0
        %v2136 = vadd.f32 0.0, %v2135
        %v2137 = vpop.f32.mrf.mxu0
        %2138 = vdwg.mxu0
        %v2139 = vadd.f32 %v2101, %v2106
        %v2140 = vadd.f32 %v2139, %v2111
        %v2141 = vadd.f32 %v2140, %v2116
        %v2142 = vrot.slane %v2141, 4
        %v2143 = vadd.f32 %v2141, %v2142
        %v2144 = vrot.slane %v2143, 2
        %v2145 = vadd.f32 %v2143, %v2144
        %v2146 = vrot.slane %v2145, 1
        %v2147 = vadd.f32 %v2145, %v2146
        %v2148 = vmul.f32 %v2147, 0.001953125
        %v2149 = vadd.f32 %v2121, %v2126
        %v2150 = vadd.f32 %v2149, %v2131
        %v2151 = vadd.f32 %v2150, %v2136
        %v2152 = vrot.slane %v2151, 4
        %v2153 = vadd.f32 %v2151, %v2152
        %v2154 = vrot.slane %v2153, 2
        %v2155 = vadd.f32 %v2153, %v2154
        %v2156 = vrot.slane %v2155, 1
        %v2157 = vadd.f32 %v2155, %v2156
        %v2158 = vmul.f32 %v2157, 0.001953125
        %v2159 = vmul.f32 %v2148, %v2148
        %v2160 = vsub.f32 %v2158, %v2159
        %v2161 = vld [vmem:[#allocation14 + $0x1] sm:$0x1]
        %v2162 = vadd.f32 %v2160, 1e-05
        %v2163 = vrsqrt.pop %v2162
        %v2164 = vmul.f32 %v2161, %v2163
        %v2165 = vsub.f32 %v2010, %v2148
        %v2166 = vsub.f32 %v2011, %v2148
        %v2167 = vsub.f32 %v2012, %v2148
        %v2168 = vsub.f32 %v2013, %v2148
        %v2169 = vlaneseq
        %v2170 = vshrl.u32 %v2169, 7
        %v2171 = vsub.s32 0, %v2170
        %v2172 = vrot.slane %v2164, %v2171
        %v2173 = vmul.f32 %v2165, %v2172
        %v2174 = vmul.f32 %v2166, %v2172
        %v2175 = vmul.f32 %v2167, %v2172
        %v2176 = vmul.f32 %v2168, %v2172
        %v2177 = vld [vmem:[#allocation14 + $0x2] sm:$0x1]
        %v2178 = vlaneseq
        %v2179 = vshrl.u32 %v2178, 7
        %v2180 = vsub.s32 0, %v2179
        %v2181 = vrot.slane %v2177, %v2180
        %v2182 = vadd.f32 %v2173, %v2181
        %v2183 = vadd.f32 %v2174, %v2181
        %v2184 = vadd.f32 %v2175, %v2181
        %v2185 = vadd.f32 %v2176, %v2181
        %2186 = vst [vmem:[#allocation5] sm:$0xff] %v2182
        %2187 = vst [vmem:[#allocation5 + $0x8] sm:$0xff] %v2183
        %s2188 = scalar_lea.vmem [#allocation5], 16
        %2189 = vst [vmem:[%s2188] sm:$0xff] %v2184
        %2190 = vst [vmem:[%s2188 + $0x8] sm:$0xff] %v2185
        %v2191 = vld [vmem:[#allocation5] sm:$0x1]
        %v2192 = vld [vmem:[#allocation5 + $0x10] sm:$0x1]
        %v2193 = vld [vmem:[#allocation17] sm:$0xff]
        %v2194 = vld [vmem:[#allocation17 + $0x8] sm:$0xff]
        %v2195 = vld [vmem:[#allocation17 + $0x10] sm:$0xff]
        %v2196 = vld [vmem:[#allocation17 + $0x18] sm:$0xff]
        %v2197 = vld [vmem:[#allocation17 + $0x20] sm:$0xff]
        %v2198 = vld [vmem:[#allocation17 + $0x28] sm:$0xff]
        %v2199 = vld [vmem:[#allocation17 + $0x30] sm:$0xff]
        %v2200 = vld [vmem:[#allocation17 + $0x38] sm:$0xff]
        %v2201 = vld [vmem:[#allocation17 + $0x40] sm:$0xff]
        %v2202 = vld [vmem:[#allocation17 + $0x48] sm:$0xff]
        %v2203 = vld [vmem:[#allocation17 + $0x50] sm:$0xff]
        %v2204 = vld [vmem:[#allocation17 + $0x58] sm:$0xff]
        %v2205 = vld [vmem:[#allocation17 + $0x60] sm:$0xff]
        %v2206 = vld [vmem:[#allocation17 + $0x68] sm:$0xff]
        %v2207 = vld [vmem:[#allocation17 + $0x70] sm:$0xff]
        %v2208 = vld [vmem:[#allocation17 + $0x78] sm:$0xff]
        %v2209 = vld [vmem:[#allocation17 + $0x80] sm:$0xff]
        %v2210 = vld [vmem:[#allocation17 + $0x88] sm:$0xff]
        %v2211 = vld [vmem:[#allocation17 + $0x90] sm:$0xff]
        %v2212 = vld [vmem:[#allocation17 + $0x98] sm:$0xff]
        %v2213 = vld [vmem:[#allocation17 + $0xa0] sm:$0xff]
        %v2214 = vld [vmem:[#allocation17 + $0xa8] sm:$0xff]
        %v2215 = vld [vmem:[#allocation17 + $0xb0] sm:$0xff]
        %v2216 = vld [vmem:[#allocation17 + $0xb8] sm:$0xff]
        %v2217 = vld [vmem:[#allocation17 + $0xc0] sm:$0xff]
        %v2218 = vld [vmem:[#allocation17 + $0xc8] sm:$0xff]
        %v2219 = vld [vmem:[#allocation17 + $0xd0] sm:$0xff]
        %v2220 = vld [vmem:[#allocation17 + $0xd8] sm:$0xff]
        %v2221 = vld [vmem:[#allocation17 + $0xe0] sm:$0xff]
        %v2222 = vld [vmem:[#allocation17 + $0xe8] sm:$0xff]
        %v2223 = vld [vmem:[#allocation17 + $0xf0] sm:$0xff]
        %v2224 = vld [vmem:[#allocation17 + $0xf8] sm:$0xff]
        %v2225 = vld [vmem:[#allocation17 + $0x100] sm:$0xff]
        %v2226 = vld [vmem:[#allocation17 + $0x108] sm:$0xff]
        %v2227 = vld [vmem:[#allocation17 + $0x110] sm:$0xff]
        %v2228 = vld [vmem:[#allocation17 + $0x118] sm:$0xff]
        %v2229 = vld [vmem:[#allocation17 + $0x120] sm:$0xff]
        %v2230 = vld [vmem:[#allocation17 + $0x128] sm:$0xff]
        %v2231 = vld [vmem:[#allocation17 + $0x130] sm:$0xff]
        %v2232 = vld [vmem:[#allocation17 + $0x138] sm:$0xff]
        %v2233 = vld [vmem:[#allocation17 + $0x140] sm:$0xff]
        %v2234 = vld [vmem:[#allocation17 + $0x148] sm:$0xff]
        %v2235 = vld [vmem:[#allocation17 + $0x150] sm:$0xff]
        %v2236 = vld [vmem:[#allocation17 + $0x158] sm:$0xff]
        %v2237 = vld [vmem:[#allocation17 + $0x160] sm:$0xff]
        %v2238 = vld [vmem:[#allocation17 + $0x168] sm:$0xff]
        %v2239 = vld [vmem:[#allocation17 + $0x170] sm:$0xff]
        %v2240 = vld [vmem:[#allocation17 + $0x178] sm:$0xff]
        %v2241 = vld [vmem:[#allocation17 + $0x180] sm:$0xff]
        %v2242 = vld [vmem:[#allocation17 + $0x188] sm:$0xff]
        %v2243 = vld [vmem:[#allocation17 + $0x190] sm:$0xff]
        %v2244 = vld [vmem:[#allocation17 + $0x198] sm:$0xff]
        %v2245 = vld [vmem:[#allocation17 + $0x1a0] sm:$0xff]
        %v2246 = vld [vmem:[#allocation17 + $0x1a8] sm:$0xff]
        %v2247 = vld [vmem:[#allocation17 + $0x1b0] sm:$0xff]
        %v2248 = vld [vmem:[#allocation17 + $0x1b8] sm:$0xff]
        %v2249 = vld [vmem:[#allocation17 + $0x1c0] sm:$0xff]
        %v2250 = vld [vmem:[#allocation17 + $0x1c8] sm:$0xff]
        %v2251 = vld [vmem:[#allocation17 + $0x1d0] sm:$0xff]
        %v2252 = vld [vmem:[#allocation17 + $0x1d8] sm:$0xff]
        %v2253 = vld [vmem:[#allocation17 + $0x1e0] sm:$0xff]
        %v2254 = vld [vmem:[#allocation17 + $0x1e8] sm:$0xff]
        %v2255 = vld [vmem:[#allocation17 + $0x1f0] sm:$0xff]
        %v2256 = vld [vmem:[#allocation17 + $0x1f8] sm:$0xff]
        %v2257 = vld [vmem:[#allocation5 + $0x1] sm:$0x1]
        %v2258 = vld [vmem:[#allocation5 + $0x11] sm:$0x1]
        %s2259 = scalar_lea.vmem [#allocation17], 512
        %v2260 = vld [vmem:[%s2259] sm:$0xff]
        %v2261 = vld [vmem:[%s2259 + $0x8] sm:$0xff]
        %v2262 = vld [vmem:[%s2259 + $0x10] sm:$0xff]
        %v2263 = vld [vmem:[%s2259 + $0x18] sm:$0xff]
        %v2264 = vld [vmem:[%s2259 + $0x20] sm:$0xff]
        %v2265 = vld [vmem:[%s2259 + $0x28] sm:$0xff]
        %v2266 = vld [vmem:[%s2259 + $0x30] sm:$0xff]
        %v2267 = vld [vmem:[%s2259 + $0x38] sm:$0xff]
        %v2268 = vld [vmem:[%s2259 + $0x40] sm:$0xff]
        %v2269 = vld [vmem:[%s2259 + $0x48] sm:$0xff]
        %v2270 = vld [vmem:[%s2259 + $0x50] sm:$0xff]
        %v2271 = vld [vmem:[%s2259 + $0x58] sm:$0xff]
        %v2272 = vld [vmem:[%s2259 + $0x60] sm:$0xff]
        %v2273 = vld [vmem:[%s2259 + $0x68] sm:$0xff]
        %v2274 = vld [vmem:[%s2259 + $0x70] sm:$0xff]
        %v2275 = vld [vmem:[%s2259 + $0x78] sm:$0xff]
        %v2276 = vld [vmem:[%s2259 + $0x80] sm:$0xff]
        %v2277 = vld [vmem:[%s2259 + $0x88] sm:$0xff]
        %v2278 = vld [vmem:[%s2259 + $0x90] sm:$0xff]
        %v2279 = vld [vmem:[%s2259 + $0x98] sm:$0xff]
        %v2280 = vld [vmem:[%s2259 + $0xa0] sm:$0xff]
        %v2281 = vld [vmem:[%s2259 + $0xa8] sm:$0xff]
        %v2282 = vld [vmem:[%s2259 + $0xb0] sm:$0xff]
        %v2283 = vld [vmem:[%s2259 + $0xb8] sm:$0xff]
        %v2284 = vld [vmem:[%s2259 + $0xc0] sm:$0xff]
        %v2285 = vld [vmem:[%s2259 + $0xc8] sm:$0xff]
        %v2286 = vld [vmem:[%s2259 + $0xd0] sm:$0xff]
        %v2287 = vld [vmem:[%s2259 + $0xd8] sm:$0xff]
        %v2288 = vld [vmem:[%s2259 + $0xe0] sm:$0xff]
        %v2289 = vld [vmem:[%s2259 + $0xe8] sm:$0xff]
        %v2290 = vld [vmem:[%s2259 + $0xf0] sm:$0xff]
        %v2291 = vld [vmem:[%s2259 + $0xf8] sm:$0xff]
        %v2292 = vld [vmem:[%s2259 + $0x100] sm:$0xff]
        %v2293 = vld [vmem:[%s2259 + $0x108] sm:$0xff]
        %v2294 = vld [vmem:[%s2259 + $0x110] sm:$0xff]
        %v2295 = vld [vmem:[%s2259 + $0x118] sm:$0xff]
        %v2296 = vld [vmem:[%s2259 + $0x120] sm:$0xff]
        %v2297 = vld [vmem:[%s2259 + $0x128] sm:$0xff]
        %v2298 = vld [vmem:[%s2259 + $0x130] sm:$0xff]
        %v2299 = vld [vmem:[%s2259 + $0x138] sm:$0xff]
        %v2300 = vld [vmem:[%s2259 + $0x140] sm:$0xff]
        %v2301 = vld [vmem:[%s2259 + $0x148] sm:$0xff]
        %v2302 = vld [vmem:[%s2259 + $0x150] sm:$0xff]
        %v2303 = vld [vmem:[%s2259 + $0x158] sm:$0xff]
        %v2304 = vld [vmem:[%s2259 + $0x160] sm:$0xff]
        %v2305 = vld [vmem:[%s2259 + $0x168] sm:$0xff]
        %v2306 = vld [vmem:[%s2259 + $0x170] sm:$0xff]
        %v2307 = vld [vmem:[%s2259 + $0x178] sm:$0xff]
        %v2308 = vld [vmem:[%s2259 + $0x180] sm:$0xff]
        %v2309 = vld [vmem:[%s2259 + $0x188] sm:$0xff]
        %v2310 = vld [vmem:[%s2259 + $0x190] sm:$0xff]
        %v2311 = vld [vmem:[%s2259 + $0x198] sm:$0xff]
        %v2312 = vld [vmem:[%s2259 + $0x1a0] sm:$0xff]
        %v2313 = vld [vmem:[%s2259 + $0x1a8] sm:$0xff]
        %v2314 = vld [vmem:[%s2259 + $0x1b0] sm:$0xff]
        %v2315 = vld [vmem:[%s2259 + $0x1b8] sm:$0xff]
        %v2316 = vld [vmem:[%s2259 + $0x1c0] sm:$0xff]
        %v2317 = vld [vmem:[%s2259 + $0x1c8] sm:$0xff]
        %v2318 = vld [vmem:[%s2259 + $0x1d0] sm:$0xff]
        %v2319 = vld [vmem:[%s2259 + $0x1d8] sm:$0xff]
        %v2320 = vld [vmem:[%s2259 + $0x1e0] sm:$0xff]
        %v2321 = vld [vmem:[%s2259 + $0x1e8] sm:$0xff]
        %v2322 = vld [vmem:[%s2259 + $0x1f0] sm:$0xff]
        %v2323 = vld [vmem:[%s2259 + $0x1f8] sm:$0xff]
        %v2326 = vrot.slane %v2258, 7
        %vm2327 = vcmask 1041409
        %v2328 = vsel %vm2327, %v2326, %v2257
        %2330 = vmatprep.subr.mxu0 %v2321
        %2331 = vmatpush1.msra.mxu0 %v2320
        %2332 = vmatprep.subr.mxu0 %v2317
        %2333 = vmatpush1.msra.mxu0 %v2316
        %2334 = vmatprep.subr.mxu0 %v2313
        %2335 = vmatpush1.msra.mxu0 %v2312
        %2336 = vmatprep.subr.mxu0 %v2309
        %2337 = vmatpush1.msra.mxu0 %v2308
        %2338 = vmatprep.subr.mxu0 %v2305
        %2339 = vmatpush1.msra.mxu0 %v2304
        %2340 = vmatprep.subr.mxu0 %v2301
        %2341 = vmatpush1.msra.mxu0 %v2300
        %2342 = vmatprep.subr.mxu0 %v2297
        %2343 = vmatpush1.msra.mxu0 %v2296
        %2344 = vmatprep.subr.mxu0 %v2293
        %2345 = vmatpush1.msra.mxu0 %v2292
        %2346 = vmatprep.subr.mxu0 %v2289
        %2347 = vmatpush1.msra.mxu0 %v2288
        %2348 = vmatprep.subr.mxu0 %v2285
        %2349 = vmatpush1.msra.mxu0 %v2284
        %2350 = vmatprep.subr.mxu0 %v2281
        %2351 = vmatpush1.msra.mxu0 %v2280
        %2352 = vmatprep.subr.mxu0 %v2277
        %2353 = vmatpush1.msra.mxu0 %v2276
        %2354 = vmatprep.subr.mxu0 %v2273
        %2355 = vmatpush1.msra.mxu0 %v2272
        %2356 = vmatprep.subr.mxu0 %v2269
        %2357 = vmatpush1.msra.mxu0 %v2268
        %2358 = vmatprep.subr.mxu0 %v2265
        %2359 = vmatpush1.msra.mxu0 %v2264
        %2360 = vmatprep.subr.mxu0 %v2261
        %2361 = vmatpush1.msra.mxu0 %v2260
        %2362 = vmatprep.subr.mxu0 0.0
        %2363 = vmatpush2.msra.mxu0 0.0
        %2364 = vmatprep.subr.mxu0 0.0
        %2365 = vmatpush2.msra.mxu0 0.0
        %2366 = vmatprep.subr.mxu0 0.0
        %2367 = vmatpush2.msra.mxu0 0.0
        %2368 = vmatprep.subr.mxu0 0.0
        %2369 = vmatpush2.msra.mxu0 0.0
        %2370 = vmatprep.subr.mxu0 0.0
        %2371 = vmatpush2.msra.mxu0 0.0
        %2372 = vmatprep.subr.mxu0 0.0
        %2373 = vmatpush2.msra.mxu0 0.0
        %2374 = vmatprep.subr.mxu0 0.0
        %2375 = vmatpush2.msra.mxu0 0.0
        %2376 = vmatprep.subr.mxu0 0.0
        %2377 = vmatpush2.msra.mxu0 0.0
        %2378 = vmatprep.subr.mxu0 0.0
        %2379 = vmatpush2.msra.mxu0 0.0
        %2380 = vmatprep.subr.mxu0 0.0
        %2381 = vmatpush2.msra.mxu0 0.0
        %2382 = vmatprep.subr.mxu0 0.0
        %2383 = vmatpush2.msra.mxu0 0.0
        %2384 = vmatprep.subr.mxu0 0.0
        %2385 = vmatpush2.msra.mxu0 0.0
        %2386 = vmatprep.subr.mxu0 0.0
        %2387 = vmatpush2.msra.mxu0 0.0
        %2388 = vmatprep.subr.mxu0 0.0
        %2389 = vmatpush2.msra.mxu0 0.0
        %2390 = vmatprep.subr.mxu0 0.0
        %2391 = vmatpush2.msra.mxu0 0.0
        %2392 = vmatprep.subr.mxu0 0.0
        %2393 = vmatpush2.msra.mxu0 0.0
        %2394 = vmatprep.mubr.f32.mxu0 0.0
        %2395 = vmatmul.mubr.f32.gmra.mxu0 %v2328
        %v2396 = vpop.f32.mrf.mxu0
        %v2397 = vadd.f32 0.0, %v2396
        %v2398 = vpop.f32.mrf.mxu0
        %v2399 = vadd.f32 0.0, %v2398
        %2400 = vdwg.mxu0
        %2401 = vmatprep.subr.mxu0 %v2323
        %2402 = vmatpush1.msra.mxu0 %v2322
        %2403 = vmatprep.subr.mxu0 %v2319
        %2404 = vmatpush1.msra.mxu0 %v2318
        %2405 = vmatprep.subr.mxu0 %v2315
        %2406 = vmatpush1.msra.mxu0 %v2314
        %2407 = vmatprep.subr.mxu0 %v2311
        %2408 = vmatpush1.msra.mxu0 %v2310
        %2409 = vmatprep.subr.mxu0 %v2307
        %2410 = vmatpush1.msra.mxu0 %v2306
        %2411 = vmatprep.subr.mxu0 %v2303
        %2412 = vmatpush1.msra.mxu0 %v2302
        %2413 = vmatprep.subr.mxu0 %v2299
        %2414 = vmatpush1.msra.mxu0 %v2298
        %2415 = vmatprep.subr.mxu0 %v2295
        %2416 = vmatpush1.msra.mxu0 %v2294
        %2417 = vmatprep.subr.mxu0 %v2291
        %2418 = vmatpush1.msra.mxu0 %v2290
        %2419 = vmatprep.subr.mxu0 %v2287
        %2420 = vmatpush1.msra.mxu0 %v2286
        %2421 = vmatprep.subr.mxu0 %v2283
        %2422 = vmatpush1.msra.mxu0 %v2282
        %2423 = vmatprep.subr.mxu0 %v2279
        %2424 = vmatpush1.msra.mxu0 %v2278
        %2425 = vmatprep.subr.mxu0 %v2275
        %2426 = vmatpush1.msra.mxu0 %v2274
        %2427 = vmatprep.subr.mxu0 %v2271
        %2428 = vmatpush1.msra.mxu0 %v2270
        %2429 = vmatprep.subr.mxu0 %v2267
        %2430 = vmatpush1.msra.mxu0 %v2266
        %2431 = vmatprep.subr.mxu0 %v2263
        %2432 = vmatpush1.msra.mxu0 %v2262
        %2433 = vmatprep.subr.mxu0 0.0
        %2434 = vmatpush2.msra.mxu0 0.0
        %2435 = vmatprep.subr.mxu0 0.0
        %2436 = vmatpush2.msra.mxu0 0.0
        %2437 = vmatprep.subr.mxu0 0.0
        %2438 = vmatpush2.msra.mxu0 0.0
        %2439 = vmatprep.subr.mxu0 0.0
        %2440 = vmatpush2.msra.mxu0 0.0
        %2441 = vmatprep.subr.mxu0 0.0
        %2442 = vmatpush2.msra.mxu0 0.0
        %2443 = vmatprep.subr.mxu0 0.0
        %2444 = vmatpush2.msra.mxu0 0.0
        %2445 = vmatprep.subr.mxu0 0.0
        %2446 = vmatpush2.msra.mxu0 0.0
        %2447 = vmatprep.subr.mxu0 0.0
        %2448 = vmatpush2.msra.mxu0 0.0
        %2449 = vmatprep.subr.mxu0 0.0
        %2450 = vmatpush2.msra.mxu0 0.0
        %2451 = vmatprep.subr.mxu0 0.0
        %2452 = vmatpush2.msra.mxu0 0.0
        %2453 = vmatprep.subr.mxu0 0.0
        %2454 = vmatpush2.msra.mxu0 0.0
        %2455 = vmatprep.subr.mxu0 0.0
        %2456 = vmatpush2.msra.mxu0 0.0
        %2457 = vmatprep.subr.mxu0 0.0
        %2458 = vmatpush2.msra.mxu0 0.0
        %2459 = vmatprep.subr.mxu0 0.0
        %2460 = vmatpush2.msra.mxu0 0.0
        %2461 = vmatprep.subr.mxu0 0.0
        %2462 = vmatpush2.msra.mxu0 0.0
        %2463 = vmatprep.subr.mxu0 0.0
        %2464 = vmatpush2.msra.mxu0 0.0
        %2465 = vmatprep.mubr.f32.mxu0 0.0
        %2466 = vmatmul.mubr.f32.gmra.mxu0 %v2328
        %v2467 = vpop.f32.mrf.mxu0
        %v2468 = vadd.f32 0.0, %v2467
        %v2469 = vpop.f32.mrf.mxu0
        %v2470 = vadd.f32 0.0, %v2469
        %2471 = vdwg.mxu0
        %v2474 = vrot.slane %v2192, 7
        %v2475 = vsel %vm2327, %v2474, %v2191
        %2477 = vmatprep.subr.mxu0 %v2254
        %2478 = vmatpush1.msra.mxu0 %v2253
        %2479 = vmatprep.subr.mxu0 %v2250
        %2480 = vmatpush1.msra.mxu0 %v2249
        %2481 = vmatprep.subr.mxu0 %v2246
        %2482 = vmatpush1.msra.mxu0 %v2245
        %2483 = vmatprep.subr.mxu0 %v2242
        %2484 = vmatpush1.msra.mxu0 %v2241
        %2485 = vmatprep.subr.mxu0 %v2238
        %2486 = vmatpush1.msra.mxu0 %v2237
        %2487 = vmatprep.subr.mxu0 %v2234
        %2488 = vmatpush1.msra.mxu0 %v2233
        %2489 = vmatprep.subr.mxu0 %v2230
        %2490 = vmatpush1.msra.mxu0 %v2229
        %2491 = vmatprep.subr.mxu0 %v2226
        %2492 = vmatpush1.msra.mxu0 %v2225
        %2493 = vmatprep.subr.mxu0 %v2222
        %2494 = vmatpush1.msra.mxu0 %v2221
        %2495 = vmatprep.subr.mxu0 %v2218
        %2496 = vmatpush1.msra.mxu0 %v2217
        %2497 = vmatprep.subr.mxu0 %v2214
        %2498 = vmatpush1.msra.mxu0 %v2213
        %2499 = vmatprep.subr.mxu0 %v2210
        %2500 = vmatpush1.msra.mxu0 %v2209
        %2501 = vmatprep.subr.mxu0 %v2206
        %2502 = vmatpush1.msra.mxu0 %v2205
        %2503 = vmatprep.subr.mxu0 %v2202
        %2504 = vmatpush1.msra.mxu0 %v2201
        %2505 = vmatprep.subr.mxu0 %v2198
        %2506 = vmatpush1.msra.mxu0 %v2197
        %2507 = vmatprep.subr.mxu0 %v2194
        %2508 = vmatpush1.msra.mxu0 %v2193
        %2509 = vmatprep.subr.mxu0 0.0
        %2510 = vmatpush2.msra.mxu0 0.0
        %2511 = vmatprep.subr.mxu0 0.0
        %2512 = vmatpush2.msra.mxu0 0.0
        %2513 = vmatprep.subr.mxu0 0.0
        %2514 = vmatpush2.msra.mxu0 0.0
        %2515 = vmatprep.subr.mxu0 0.0
        %2516 = vmatpush2.msra.mxu0 0.0
        %2517 = vmatprep.subr.mxu0 0.0
        %2518 = vmatpush2.msra.mxu0 0.0
        %2519 = vmatprep.subr.mxu0 0.0
        %2520 = vmatpush2.msra.mxu0 0.0
        %2521 = vmatprep.subr.mxu0 0.0
        %2522 = vmatpush2.msra.mxu0 0.0
        %2523 = vmatprep.subr.mxu0 0.0
        %2524 = vmatpush2.msra.mxu0 0.0
        %2525 = vmatprep.subr.mxu0 0.0
        %2526 = vmatpush2.msra.mxu0 0.0
        %2527 = vmatprep.subr.mxu0 0.0
        %2528 = vmatpush2.msra.mxu0 0.0
        %2529 = vmatprep.subr.mxu0 0.0
        %2530 = vmatpush2.msra.mxu0 0.0
        %2531 = vmatprep.subr.mxu0 0.0
        %2532 = vmatpush2.msra.mxu0 0.0
        %2533 = vmatprep.subr.mxu0 0.0
        %2534 = vmatpush2.msra.mxu0 0.0
        %2535 = vmatprep.subr.mxu0 0.0
        %2536 = vmatpush2.msra.mxu0 0.0
        %2537 = vmatprep.subr.mxu0 0.0
        %2538 = vmatpush2.msra.mxu0 0.0
        %2539 = vmatprep.subr.mxu0 0.0
        %2540 = vmatpush2.msra.mxu0 0.0
        %2541 = vmatprep.mubr.f32.mxu0 0.0
        %2542 = vmatmul.mubr.f32.gmra.mxu0 %v2475
        %v2543 = vpop.f32.mrf.mxu0
        %v2544 = vadd.f32 %v2397, %v2543
        %v2545 = vpop.f32.mrf.mxu0
        %v2546 = vadd.f32 %v2399, %v2545
        %2547 = vdwg.mxu0
        %2548 = vmatprep.subr.mxu0 %v2256
        %2549 = vmatpush1.msra.mxu0 %v2255
        %2550 = vmatprep.subr.mxu0 %v2252
        %2551 = vmatpush1.msra.mxu0 %v2251
        %2552 = vmatprep.subr.mxu0 %v2248
        %2553 = vmatpush1.msra.mxu0 %v2247
        %2554 = vmatprep.subr.mxu0 %v2244
        %2555 = vmatpush1.msra.mxu0 %v2243
        %2556 = vmatprep.subr.mxu0 %v2240
        %2557 = vmatpush1.msra.mxu0 %v2239
        %2558 = vmatprep.subr.mxu0 %v2236
        %2559 = vmatpush1.msra.mxu0 %v2235
        %2560 = vmatprep.subr.mxu0 %v2232
        %2561 = vmatpush1.msra.mxu0 %v2231
        %2562 = vmatprep.subr.mxu0 %v2228
        %2563 = vmatpush1.msra.mxu0 %v2227
        %2564 = vmatprep.subr.mxu0 %v2224
        %2565 = vmatpush1.msra.mxu0 %v2223
        %2566 = vmatprep.subr.mxu0 %v2220
        %2567 = vmatpush1.msra.mxu0 %v2219
        %2568 = vmatprep.subr.mxu0 %v2216
        %2569 = vmatpush1.msra.mxu0 %v2215
        %2570 = vmatprep.subr.mxu0 %v2212
        %2571 = vmatpush1.msra.mxu0 %v2211
        %2572 = vmatprep.subr.mxu0 %v2208
        %2573 = vmatpush1.msra.mxu0 %v2207
        %2574 = vmatprep.subr.mxu0 %v2204
        %2575 = vmatpush1.msra.mxu0 %v2203
        %2576 = vmatprep.subr.mxu0 %v2200
        %2577 = vmatpush1.msra.mxu0 %v2199
        %2578 = vmatprep.subr.mxu0 %v2196
        %2579 = vmatpush1.msra.mxu0 %v2195
        %2580 = vmatprep.subr.mxu0 0.0
        %2581 = vmatpush2.msra.mxu0 0.0
        %2582 = vmatprep.subr.mxu0 0.0
        %2583 = vmatpush2.msra.mxu0 0.0
        %2584 = vmatprep.subr.mxu0 0.0
        %2585 = vmatpush2.msra.mxu0 0.0
        %2586 = vmatprep.subr.mxu0 0.0
        %2587 = vmatpush2.msra.mxu0 0.0
        %2588 = vmatprep.subr.mxu0 0.0
        %2589 = vmatpush2.msra.mxu0 0.0
        %2590 = vmatprep.subr.mxu0 0.0
        %2591 = vmatpush2.msra.mxu0 0.0
        %2592 = vmatprep.subr.mxu0 0.0
        %2593 = vmatpush2.msra.mxu0 0.0
        %2594 = vmatprep.subr.mxu0 0.0
        %2595 = vmatpush2.msra.mxu0 0.0
        %2596 = vmatprep.subr.mxu0 0.0
        %2597 = vmatpush2.msra.mxu0 0.0
        %2598 = vmatprep.subr.mxu0 0.0
        %2599 = vmatpush2.msra.mxu0 0.0
        %2600 = vmatprep.subr.mxu0 0.0
        %2601 = vmatpush2.msra.mxu0 0.0
        %2602 = vmatprep.subr.mxu0 0.0
        %2603 = vmatpush2.msra.mxu0 0.0
        %2604 = vmatprep.subr.mxu0 0.0
        %2605 = vmatpush2.msra.mxu0 0.0
        %2606 = vmatprep.subr.mxu0 0.0
        %2607 = vmatpush2.msra.mxu0 0.0
        %2608 = vmatprep.subr.mxu0 0.0
        %2609 = vmatpush2.msra.mxu0 0.0
        %2610 = vmatprep.subr.mxu0 0.0
        %2611 = vmatpush2.msra.mxu0 0.0
        %2612 = vmatprep.mubr.f32.mxu0 0.0
        %2613 = vmatmul.mubr.f32.gmra.mxu0 %v2475
        %v2614 = vpop.f32.mrf.mxu0
        %v2615 = vadd.f32 %v2468, %v2614
        %v2616 = vpop.f32.mrf.mxu0
        %v2617 = vadd.f32 %v2470, %v2616
        %2618 = vdwg.mxu0
        %v2619 = vld [vmem:[#allocation5 + $0x2] sm:$0x1]
        %v2620 = vld [vmem:[#allocation5 + $0x12] sm:$0x1]
        %s2621 = scalar_lea.vmem [#allocation17], 1024
        %v2622 = vld [vmem:[%s2621] sm:$0xff]
        %v2623 = vld [vmem:[%s2621 + $0x8] sm:$0xff]
        %v2624 = vld [vmem:[%s2621 + $0x10] sm:$0xff]
        %v2625 = vld [vmem:[%s2621 + $0x18] sm:$0xff]
        %v2626 = vld [vmem:[%s2621 + $0x20] sm:$0xff]
        %v2627 = vld [vmem:[%s2621 + $0x28] sm:$0xff]
        %v2628 = vld [vmem:[%s2621 + $0x30] sm:$0xff]
        %v2629 = vld [vmem:[%s2621 + $0x38] sm:$0xff]
        %v2630 = vld [vmem:[%s2621 + $0x40] sm:$0xff]
        %v2631 = vld [vmem:[%s2621 + $0x48] sm:$0xff]
        %v2632 = vld [vmem:[%s2621 + $0x50] sm:$0xff]
        %v2633 = vld [vmem:[%s2621 + $0x58] sm:$0xff]
        %v2634 = vld [vmem:[%s2621 + $0x60] sm:$0xff]
        %v2635 = vld [vmem:[%s2621 + $0x68] sm:$0xff]
        %v2636 = vld [vmem:[%s2621 + $0x70] sm:$0xff]
        %v2637 = vld [vmem:[%s2621 + $0x78] sm:$0xff]
        %v2638 = vld [vmem:[%s2621 + $0x80] sm:$0xff]
        %v2639 = vld [vmem:[%s2621 + $0x88] sm:$0xff]
        %v2640 = vld [vmem:[%s2621 + $0x90] sm:$0xff]
        %v2641 = vld [vmem:[%s2621 + $0x98] sm:$0xff]
        %v2642 = vld [vmem:[%s2621 + $0xa0] sm:$0xff]
        %v2643 = vld [vmem:[%s2621 + $0xa8] sm:$0xff]
        %v2644 = vld [vmem:[%s2621 + $0xb0] sm:$0xff]
        %v2645 = vld [vmem:[%s2621 + $0xb8] sm:$0xff]
        %v2646 = vld [vmem:[%s2621 + $0xc0] sm:$0xff]
        %v2647 = vld [vmem:[%s2621 + $0xc8] sm:$0xff]
        %v2648 = vld [vmem:[%s2621 + $0xd0] sm:$0xff]
        %v2649 = vld [vmem:[%s2621 + $0xd8] sm:$0xff]
        %v2650 = vld [vmem:[%s2621 + $0xe0] sm:$0xff]
        %v2651 = vld [vmem:[%s2621 + $0xe8] sm:$0xff]
        %v2652 = vld [vmem:[%s2621 + $0xf0] sm:$0xff]
        %v2653 = vld [vmem:[%s2621 + $0xf8] sm:$0xff]
        %v2654 = vld [vmem:[%s2621 + $0x100] sm:$0xff]
        %v2655 = vld [vmem:[%s2621 + $0x108] sm:$0xff]
        %v2656 = vld [vmem:[%s2621 + $0x110] sm:$0xff]
        %v2657 = vld [vmem:[%s2621 + $0x118] sm:$0xff]
        %v2658 = vld [vmem:[%s2621 + $0x120] sm:$0xff]
        %v2659 = vld [vmem:[%s2621 + $0x128] sm:$0xff]
        %v2660 = vld [vmem:[%s2621 + $0x130] sm:$0xff]
        %v2661 = vld [vmem:[%s2621 + $0x138] sm:$0xff]
        %v2662 = vld [vmem:[%s2621 + $0x140] sm:$0xff]
        %v2663 = vld [vmem:[%s2621 + $0x148] sm:$0xff]
        %v2664 = vld [vmem:[%s2621 + $0x150] sm:$0xff]
        %v2665 = vld [vmem:[%s2621 + $0x158] sm:$0xff]
        %v2666 = vld [vmem:[%s2621 + $0x160] sm:$0xff]
        %v2667 = vld [vmem:[%s2621 + $0x168] sm:$0xff]
        %v2668 = vld [vmem:[%s2621 + $0x170] sm:$0xff]
        %v2669 = vld [vmem:[%s2621 + $0x178] sm:$0xff]
        %v2670 = vld [vmem:[%s2621 + $0x180] sm:$0xff]
        %v2671 = vld [vmem:[%s2621 + $0x188] sm:$0xff]
        %v2672 = vld [vmem:[%s2621 + $0x190] sm:$0xff]
        %v2673 = vld [vmem:[%s2621 + $0x198] sm:$0xff]
        %v2674 = vld [vmem:[%s2621 + $0x1a0] sm:$0xff]
        %v2675 = vld [vmem:[%s2621 + $0x1a8] sm:$0xff]
        %v2676 = vld [vmem:[%s2621 + $0x1b0] sm:$0xff]
        %v2677 = vld [vmem:[%s2621 + $0x1b8] sm:$0xff]
        %v2678 = vld [vmem:[%s2621 + $0x1c0] sm:$0xff]
        %v2679 = vld [vmem:[%s2621 + $0x1c8] sm:$0xff]
        %v2680 = vld [vmem:[%s2621 + $0x1d0] sm:$0xff]
        %v2681 = vld [vmem:[%s2621 + $0x1d8] sm:$0xff]
        %v2682 = vld [vmem:[%s2621 + $0x1e0] sm:$0xff]
        %v2683 = vld [vmem:[%s2621 + $0x1e8] sm:$0xff]
        %v2684 = vld [vmem:[%s2621 + $0x1f0] sm:$0xff]
        %v2685 = vld [vmem:[%s2621 + $0x1f8] sm:$0xff]
        %v2688 = vrot.slane %v2620, 7
        %v2689 = vsel %vm2327, %v2688, %v2619
        %2691 = vmatprep.subr.mxu0 %v2683
        %2692 = vmatpush1.msra.mxu0 %v2682
        %2693 = vmatprep.subr.mxu0 %v2679
        %2694 = vmatpush1.msra.mxu0 %v2678
        %2695 = vmatprep.subr.mxu0 %v2675
        %2696 = vmatpush1.msra.mxu0 %v2674
        %2697 = vmatprep.subr.mxu0 %v2671
        %2698 = vmatpush1.msra.mxu0 %v2670
        %2699 = vmatprep.subr.mxu0 %v2667
        %2700 = vmatpush1.msra.mxu0 %v2666
        %2701 = vmatprep.subr.mxu0 %v2663
        %2702 = vmatpush1.msra.mxu0 %v2662
        %2703 = vmatprep.subr.mxu0 %v2659
        %2704 = vmatpush1.msra.mxu0 %v2658
        %2705 = vmatprep.subr.mxu0 %v2655
        %2706 = vmatpush1.msra.mxu0 %v2654
        %2707 = vmatprep.subr.mxu0 %v2651
        %2708 = vmatpush1.msra.mxu0 %v2650
        %2709 = vmatprep.subr.mxu0 %v2647
        %2710 = vmatpush1.msra.mxu0 %v2646
        %2711 = vmatprep.subr.mxu0 %v2643
        %2712 = vmatpush1.msra.mxu0 %v2642
        %2713 = vmatprep.subr.mxu0 %v2639
        %2714 = vmatpush1.msra.mxu0 %v2638
        %2715 = vmatprep.subr.mxu0 %v2635
        %2716 = vmatpush1.msra.mxu0 %v2634
        %2717 = vmatprep.subr.mxu0 %v2631
        %2718 = vmatpush1.msra.mxu0 %v2630
        %2719 = vmatprep.subr.mxu0 %v2627
        %2720 = vmatpush1.msra.mxu0 %v2626
        %2721 = vmatprep.subr.mxu0 %v2623
        %2722 = vmatpush1.msra.mxu0 %v2622
        %2723 = vmatprep.subr.mxu0 0.0
        %2724 = vmatpush2.msra.mxu0 0.0
        %2725 = vmatprep.subr.mxu0 0.0
        %2726 = vmatpush2.msra.mxu0 0.0
        %2727 = vmatprep.subr.mxu0 0.0
        %2728 = vmatpush2.msra.mxu0 0.0
        %2729 = vmatprep.subr.mxu0 0.0
        %2730 = vmatpush2.msra.mxu0 0.0
        %2731 = vmatprep.subr.mxu0 0.0
        %2732 = vmatpush2.msra.mxu0 0.0
        %2733 = vmatprep.subr.mxu0 0.0
        %2734 = vmatpush2.msra.mxu0 0.0
        %2735 = vmatprep.subr.mxu0 0.0
        %2736 = vmatpush2.msra.mxu0 0.0
        %2737 = vmatprep.subr.mxu0 0.0
        %2738 = vmatpush2.msra.mxu0 0.0
        %2739 = vmatprep.subr.mxu0 0.0
        %2740 = vmatpush2.msra.mxu0 0.0
        %2741 = vmatprep.subr.mxu0 0.0
        %2742 = vmatpush2.msra.mxu0 0.0
        %2743 = vmatprep.subr.mxu0 0.0
        %2744 = vmatpush2.msra.mxu0 0.0
        %2745 = vmatprep.subr.mxu0 0.0
        %2746 = vmatpush2.msra.mxu0 0.0
        %2747 = vmatprep.subr.mxu0 0.0
        %2748 = vmatpush2.msra.mxu0 0.0
        %2749 = vmatprep.subr.mxu0 0.0
        %2750 = vmatpush2.msra.mxu0 0.0
        %2751 = vmatprep.subr.mxu0 0.0
        %2752 = vmatpush2.msra.mxu0 0.0
        %2753 = vmatprep.subr.mxu0 0.0
        %2754 = vmatpush2.msra.mxu0 0.0
        %2755 = vmatprep.mubr.f32.mxu0 0.0
        %2756 = vmatmul.mubr.f32.gmra.mxu0 %v2689
        %v2757 = vpop.f32.mrf.mxu0
        %v2758 = vadd.f32 0.0, %v2757
        %v2759 = vpop.f32.mrf.mxu0
        %v2760 = vadd.f32 0.0, %v2759
        %2761 = vdwg.mxu0
        %2762 = vmatprep.subr.mxu0 %v2685
        %2763 = vmatpush1.msra.mxu0 %v2684
        %2764 = vmatprep.subr.mxu0 %v2681
        %2765 = vmatpush1.msra.mxu0 %v2680
        %2766 = vmatprep.subr.mxu0 %v2677
        %2767 = vmatpush1.msra.mxu0 %v2676
        %2768 = vmatprep.subr.mxu0 %v2673
        %2769 = vmatpush1.msra.mxu0 %v2672
        %2770 = vmatprep.subr.mxu0 %v2669
        %2771 = vmatpush1.msra.mxu0 %v2668
        %2772 = vmatprep.subr.mxu0 %v2665
        %2773 = vmatpush1.msra.mxu0 %v2664
        %2774 = vmatprep.subr.mxu0 %v2661
        %2775 = vmatpush1.msra.mxu0 %v2660
        %2776 = vmatprep.subr.mxu0 %v2657
        %2777 = vmatpush1.msra.mxu0 %v2656
        %2778 = vmatprep.subr.mxu0 %v2653
        %2779 = vmatpush1.msra.mxu0 %v2652
        %2780 = vmatprep.subr.mxu0 %v2649
        %2781 = vmatpush1.msra.mxu0 %v2648
        %2782 = vmatprep.subr.mxu0 %v2645
        %2783 = vmatpush1.msra.mxu0 %v2644
        %2784 = vmatprep.subr.mxu0 %v2641
        %2785 = vmatpush1.msra.mxu0 %v2640
        %2786 = vmatprep.subr.mxu0 %v2637
        %2787 = vmatpush1.msra.mxu0 %v2636
        %2788 = vmatprep.subr.mxu0 %v2633
        %2789 = vmatpush1.msra.mxu0 %v2632
        %2790 = vmatprep.subr.mxu0 %v2629
        %2791 = vmatpush1.msra.mxu0 %v2628
        %2792 = vmatprep.subr.mxu0 %v2625
        %2793 = vmatpush1.msra.mxu0 %v2624
        %2794 = vmatprep.subr.mxu0 0.0
        %2795 = vmatpush2.msra.mxu0 0.0
        %2796 = vmatprep.subr.mxu0 0.0
        %2797 = vmatpush2.msra.mxu0 0.0
        %2798 = vmatprep.subr.mxu0 0.0
        %2799 = vmatpush2.msra.mxu0 0.0
        %2800 = vmatprep.subr.mxu0 0.0
        %2801 = vmatpush2.msra.mxu0 0.0
        %2802 = vmatprep.subr.mxu0 0.0
        %2803 = vmatpush2.msra.mxu0 0.0
        %2804 = vmatprep.subr.mxu0 0.0
        %2805 = vmatpush2.msra.mxu0 0.0
        %2806 = vmatprep.subr.mxu0 0.0
        %2807 = vmatpush2.msra.mxu0 0.0
        %2808 = vmatprep.subr.mxu0 0.0
        %2809 = vmatpush2.msra.mxu0 0.0
        %2810 = vmatprep.subr.mxu0 0.0
        %2811 = vmatpush2.msra.mxu0 0.0
        %2812 = vmatprep.subr.mxu0 0.0
        %2813 = vmatpush2.msra.mxu0 0.0
        %2814 = vmatprep.subr.mxu0 0.0
        %2815 = vmatpush2.msra.mxu0 0.0
        %2816 = vmatprep.subr.mxu0 0.0
        %2817 = vmatpush2.msra.mxu0 0.0
        %2818 = vmatprep.subr.mxu0 0.0
        %2819 = vmatpush2.msra.mxu0 0.0
        %2820 = vmatprep.subr.mxu0 0.0
        %2821 = vmatpush2.msra.mxu0 0.0
        %2822 = vmatprep.subr.mxu0 0.0
        %2823 = vmatpush2.msra.mxu0 0.0
        %2824 = vmatprep.subr.mxu0 0.0
        %2825 = vmatpush2.msra.mxu0 0.0
        %2826 = vmatprep.mubr.f32.mxu0 0.0
        %2827 = vmatmul.mubr.f32.gmra.mxu0 %v2689
        %v2828 = vpop.f32.mrf.mxu0
        %v2829 = vadd.f32 0.0, %v2828
        %v2830 = vpop.f32.mrf.mxu0
        %v2831 = vadd.f32 0.0, %v2830
        %2832 = vdwg.mxu0
        %v2833 = vadd.f32 %v2544, %v2758
        %v2834 = vadd.f32 %v2546, %v2760
        %v2835 = vadd.f32 %v2615, %v2829
        %v2836 = vadd.f32 %v2617, %v2831
        %v2837 = vld [vmem:[#allocation5 + $0x3] sm:$0x1]
        %v2838 = vld [vmem:[#allocation5 + $0x13] sm:$0x1]
        %s2839 = scalar_lea.vmem [#allocation17], 1536
        %v2840 = vld [vmem:[%s2839] sm:$0xff]
        %v2841 = vld [vmem:[%s2839 + $0x8] sm:$0xff]
        %v2842 = vld [vmem:[%s2839 + $0x10] sm:$0xff]
        %v2843 = vld [vmem:[%s2839 + $0x18] sm:$0xff]
        %v2844 = vld [vmem:[%s2839 + $0x20] sm:$0xff]
        %v2845 = vld [vmem:[%s2839 + $0x28] sm:$0xff]
        %v2846 = vld [vmem:[%s2839 + $0x30] sm:$0xff]
        %v2847 = vld [vmem:[%s2839 + $0x38] sm:$0xff]
        %v2848 = vld [vmem:[%s2839 + $0x40] sm:$0xff]
        %v2849 = vld [vmem:[%s2839 + $0x48] sm:$0xff]
        %v2850 = vld [vmem:[%s2839 + $0x50] sm:$0xff]
        %v2851 = vld [vmem:[%s2839 + $0x58] sm:$0xff]
        %v2852 = vld [vmem:[%s2839 + $0x60] sm:$0xff]
        %v2853 = vld [vmem:[%s2839 + $0x68] sm:$0xff]
        %v2854 = vld [vmem:[%s2839 + $0x70] sm:$0xff]
        %v2855 = vld [vmem:[%s2839 + $0x78] sm:$0xff]
        %v2856 = vld [vmem:[%s2839 + $0x80] sm:$0xff]
        %v2857 = vld [vmem:[%s2839 + $0x88] sm:$0xff]
        %v2858 = vld [vmem:[%s2839 + $0x90] sm:$0xff]
        %v2859 = vld [vmem:[%s2839 + $0x98] sm:$0xff]
        %v2860 = vld [vmem:[%s2839 + $0xa0] sm:$0xff]
        %v2861 = vld [vmem:[%s2839 + $0xa8] sm:$0xff]
        %v2862 = vld [vmem:[%s2839 + $0xb0] sm:$0xff]
        %v2863 = vld [vmem:[%s2839 + $0xb8] sm:$0xff]
        %v2864 = vld [vmem:[%s2839 + $0xc0] sm:$0xff]
        %v2865 = vld [vmem:[%s2839 + $0xc8] sm:$0xff]
        %v2866 = vld [vmem:[%s2839 + $0xd0] sm:$0xff]
        %v2867 = vld [vmem:[%s2839 + $0xd8] sm:$0xff]
        %v2868 = vld [vmem:[%s2839 + $0xe0] sm:$0xff]
        %v2869 = vld [vmem:[%s2839 + $0xe8] sm:$0xff]
        %v2870 = vld [vmem:[%s2839 + $0xf0] sm:$0xff]
        %v2871 = vld [vmem:[%s2839 + $0xf8] sm:$0xff]
        %v2872 = vld [vmem:[%s2839 + $0x100] sm:$0xff]
        %v2873 = vld [vmem:[%s2839 + $0x108] sm:$0xff]
        %v2874 = vld [vmem:[%s2839 + $0x110] sm:$0xff]
        %v2875 = vld [vmem:[%s2839 + $0x118] sm:$0xff]
        %v2876 = vld [vmem:[%s2839 + $0x120] sm:$0xff]
        %v2877 = vld [vmem:[%s2839 + $0x128] sm:$0xff]
        %v2878 = vld [vmem:[%s2839 + $0x130] sm:$0xff]
        %v2879 = vld [vmem:[%s2839 + $0x138] sm:$0xff]
        %v2880 = vld [vmem:[%s2839 + $0x140] sm:$0xff]
        %v2881 = vld [vmem:[%s2839 + $0x148] sm:$0xff]
        %v2882 = vld [vmem:[%s2839 + $0x150] sm:$0xff]
        %v2883 = vld [vmem:[%s2839 + $0x158] sm:$0xff]
        %v2884 = vld [vmem:[%s2839 + $0x160] sm:$0xff]
        %v2885 = vld [vmem:[%s2839 + $0x168] sm:$0xff]
        %v2886 = vld [vmem:[%s2839 + $0x170] sm:$0xff]
        %v2887 = vld [vmem:[%s2839 + $0x178] sm:$0xff]
        %v2888 = vld [vmem:[%s2839 + $0x180] sm:$0xff]
        %v2889 = vld [vmem:[%s2839 + $0x188] sm:$0xff]
        %v2890 = vld [vmem:[%s2839 + $0x190] sm:$0xff]
        %v2891 = vld [vmem:[%s2839 + $0x198] sm:$0xff]
        %v2892 = vld [vmem:[%s2839 + $0x1a0] sm:$0xff]
        %v2893 = vld [vmem:[%s2839 + $0x1a8] sm:$0xff]
        %v2894 = vld [vmem:[%s2839 + $0x1b0] sm:$0xff]
        %v2895 = vld [vmem:[%s2839 + $0x1b8] sm:$0xff]
        %v2896 = vld [vmem:[%s2839 + $0x1c0] sm:$0xff]
        %v2897 = vld [vmem:[%s2839 + $0x1c8] sm:$0xff]
        %v2898 = vld [vmem:[%s2839 + $0x1d0] sm:$0xff]
        %v2899 = vld [vmem:[%s2839 + $0x1d8] sm:$0xff]
        %v2900 = vld [vmem:[%s2839 + $0x1e0] sm:$0xff]
        %v2901 = vld [vmem:[%s2839 + $0x1e8] sm:$0xff]
        %v2902 = vld [vmem:[%s2839 + $0x1f0] sm:$0xff]
        %v2903 = vld [vmem:[%s2839 + $0x1f8] sm:$0xff]
        %v2906 = vrot.slane %v2838, 7
        %v2907 = vsel %vm2327, %v2906, %v2837
        %2909 = vmatprep.subr.mxu0 %v2901
        %2910 = vmatpush1.msra.mxu0 %v2900
        %2911 = vmatprep.subr.mxu0 %v2897
        %2912 = vmatpush1.msra.mxu0 %v2896
        %2913 = vmatprep.subr.mxu0 %v2893
        %2914 = vmatpush1.msra.mxu0 %v2892
        %2915 = vmatprep.subr.mxu0 %v2889
        %2916 = vmatpush1.msra.mxu0 %v2888
        %2917 = vmatprep.subr.mxu0 %v2885
        %2918 = vmatpush1.msra.mxu0 %v2884
        %2919 = vmatprep.subr.mxu0 %v2881
        %2920 = vmatpush1.msra.mxu0 %v2880
        %2921 = vmatprep.subr.mxu0 %v2877
        %2922 = vmatpush1.msra.mxu0 %v2876
        %2923 = vmatprep.subr.mxu0 %v2873
        %2924 = vmatpush1.msra.mxu0 %v2872
        %2925 = vmatprep.subr.mxu0 %v2869
        %2926 = vmatpush1.msra.mxu0 %v2868
        %2927 = vmatprep.subr.mxu0 %v2865
        %2928 = vmatpush1.msra.mxu0 %v2864
        %2929 = vmatprep.subr.mxu0 %v2861
        %2930 = vmatpush1.msra.mxu0 %v2860
        %2931 = vmatprep.subr.mxu0 %v2857
        %2932 = vmatpush1.msra.mxu0 %v2856
        %2933 = vmatprep.subr.mxu0 %v2853
        %2934 = vmatpush1.msra.mxu0 %v2852
        %2935 = vmatprep.subr.mxu0 %v2849
        %2936 = vmatpush1.msra.mxu0 %v2848
        %2937 = vmatprep.subr.mxu0 %v2845
        %2938 = vmatpush1.msra.mxu0 %v2844
        %2939 = vmatprep.subr.mxu0 %v2841
        %2940 = vmatpush1.msra.mxu0 %v2840
        %2941 = vmatprep.subr.mxu0 0.0
        %2942 = vmatpush2.msra.mxu0 0.0
        %2943 = vmatprep.subr.mxu0 0.0
        %2944 = vmatpush2.msra.mxu0 0.0
        %2945 = vmatprep.subr.mxu0 0.0
        %2946 = vmatpush2.msra.mxu0 0.0
        %2947 = vmatprep.subr.mxu0 0.0
        %2948 = vmatpush2.msra.mxu0 0.0
        %2949 = vmatprep.subr.mxu0 0.0
        %2950 = vmatpush2.msra.mxu0 0.0
        %2951 = vmatprep.subr.mxu0 0.0
        %2952 = vmatpush2.msra.mxu0 0.0
        %2953 = vmatprep.subr.mxu0 0.0
        %2954 = vmatpush2.msra.mxu0 0.0
        %2955 = vmatprep.subr.mxu0 0.0
        %2956 = vmatpush2.msra.mxu0 0.0
        %2957 = vmatprep.subr.mxu0 0.0
        %2958 = vmatpush2.msra.mxu0 0.0
        %2959 = vmatprep.subr.mxu0 0.0
        %2960 = vmatpush2.msra.mxu0 0.0
        %2961 = vmatprep.subr.mxu0 0.0
        %2962 = vmatpush2.msra.mxu0 0.0
        %2963 = vmatprep.subr.mxu0 0.0
        %2964 = vmatpush2.msra.mxu0 0.0
        %2965 = vmatprep.subr.mxu0 0.0
        %2966 = vmatpush2.msra.mxu0 0.0
        %2967 = vmatprep.subr.mxu0 0.0
        %2968 = vmatpush2.msra.mxu0 0.0
        %2969 = vmatprep.subr.mxu0 0.0
        %2970 = vmatpush2.msra.mxu0 0.0
        %2971 = vmatprep.subr.mxu0 0.0
        %2972 = vmatpush2.msra.mxu0 0.0
        %2973 = vmatprep.mubr.f32.mxu0 0.0
        %2974 = vmatmul.mubr.f32.gmra.mxu0 %v2907
        %v2975 = vpop.f32.mrf.mxu0
        %v2976 = vadd.f32 0.0, %v2975
        %v2977 = vpop.f32.mrf.mxu0
        %v2978 = vadd.f32 0.0, %v2977
        %2979 = vdwg.mxu0
        %2980 = vmatprep.subr.mxu0 %v2903
        %2981 = vmatpush1.msra.mxu0 %v2902
        %2982 = vmatprep.subr.mxu0 %v2899
        %2983 = vmatpush1.msra.mxu0 %v2898
        %2984 = vmatprep.subr.mxu0 %v2895
        %2985 = vmatpush1.msra.mxu0 %v2894
        %2986 = vmatprep.subr.mxu0 %v2891
        %2987 = vmatpush1.msra.mxu0 %v2890
        %2988 = vmatprep.subr.mxu0 %v2887
        %2989 = vmatpush1.msra.mxu0 %v2886
        %2990 = vmatprep.subr.mxu0 %v2883
        %2991 = vmatpush1.msra.mxu0 %v2882
        %2992 = vmatprep.subr.mxu0 %v2879
        %2993 = vmatpush1.msra.mxu0 %v2878
        %2994 = vmatprep.subr.mxu0 %v2875
        %2995 = vmatpush1.msra.mxu0 %v2874
        %2996 = vmatprep.subr.mxu0 %v2871
        %2997 = vmatpush1.msra.mxu0 %v2870
        %2998 = vmatprep.subr.mxu0 %v2867
        %2999 = vmatpush1.msra.mxu0 %v2866
        %3000 = vmatprep.subr.mxu0 %v2863
        %3001 = vmatpush1.msra.mxu0 %v2862
        %3002 = vmatprep.subr.mxu0 %v2859
        %3003 = vmatpush1.msra.mxu0 %v2858
        %3004 = vmatprep.subr.mxu0 %v2855
        %3005 = vmatpush1.msra.mxu0 %v2854
        %3006 = vmatprep.subr.mxu0 %v2851
        %3007 = vmatpush1.msra.mxu0 %v2850
        %3008 = vmatprep.subr.mxu0 %v2847
        %3009 = vmatpush1.msra.mxu0 %v2846
        %3010 = vmatprep.subr.mxu0 %v2843
        %3011 = vmatpush1.msra.mxu0 %v2842
        %3012 = vmatprep.subr.mxu0 0.0
        %3013 = vmatpush2.msra.mxu0 0.0
        %3014 = vmatprep.subr.mxu0 0.0
        %3015 = vmatpush2.msra.mxu0 0.0
        %3016 = vmatprep.subr.mxu0 0.0
        %3017 = vmatpush2.msra.mxu0 0.0
        %3018 = vmatprep.subr.mxu0 0.0
        %3019 = vmatpush2.msra.mxu0 0.0
        %3020 = vmatprep.subr.mxu0 0.0
        %3021 = vmatpush2.msra.mxu0 0.0
        %3022 = vmatprep.subr.mxu0 0.0
        %3023 = vmatpush2.msra.mxu0 0.0
        %3024 = vmatprep.subr.mxu0 0.0
        %3025 = vmatpush2.msra.mxu0 0.0
        %3026 = vmatprep.subr.mxu0 0.0
        %3027 = vmatpush2.msra.mxu0 0.0
        %3028 = vmatprep.subr.mxu0 0.0
        %3029 = vmatpush2.msra.mxu0 0.0
        %3030 = vmatprep.subr.mxu0 0.0
        %3031 = vmatpush2.msra.mxu0 0.0
        %3032 = vmatprep.subr.mxu0 0.0
        %3033 = vmatpush2.msra.mxu0 0.0
        %3034 = vmatprep.subr.mxu0 0.0
        %3035 = vmatpush2.msra.mxu0 0.0
        %3036 = vmatprep.subr.mxu0 0.0
        %3037 = vmatpush2.msra.mxu0 0.0
        %3038 = vmatprep.subr.mxu0 0.0
        %3039 = vmatpush2.msra.mxu0 0.0
        %3040 = vmatprep.subr.mxu0 0.0
        %3041 = vmatpush2.msra.mxu0 0.0
        %3042 = vmatprep.subr.mxu0 0.0
        %3043 = vmatpush2.msra.mxu0 0.0
        %3044 = vmatprep.mubr.f32.mxu0 0.0
        %3045 = vmatmul.mubr.f32.gmra.mxu0 %v2907
        %v3046 = vpop.f32.mrf.mxu0
        %v3047 = vadd.f32 0.0, %v3046
        %v3048 = vpop.f32.mrf.mxu0
        %v3049 = vadd.f32 0.0, %v3048
        %3050 = vdwg.mxu0
        %v3051 = vadd.f32 %v2833, %v2976
        %v3052 = vadd.f32 %v2834, %v2978
        %v3053 = vadd.f32 %v2835, %v3047
        %v3054 = vadd.f32 %v2836, %v3049
        %v3055 = vld [vmem:[#allocation5 + $0x4] sm:$0x1]
        %v3056 = vld [vmem:[#allocation5 + $0x14] sm:$0x1]
        %s3057 = scalar_lea.vmem [#allocation17], 2048
        %v3058 = vld [vmem:[%s3057] sm:$0xff]
        %v3059 = vld [vmem:[%s3057 + $0x8] sm:$0xff]
        %v3060 = vld [vmem:[%s3057 + $0x10] sm:$0xff]
        %v3061 = vld [vmem:[%s3057 + $0x18] sm:$0xff]
        %v3062 = vld [vmem:[%s3057 + $0x20] sm:$0xff]
        %v3063 = vld [vmem:[%s3057 + $0x28] sm:$0xff]
        %v3064 = vld [vmem:[%s3057 + $0x30] sm:$0xff]
        %v3065 = vld [vmem:[%s3057 + $0x38] sm:$0xff]
        %v3066 = vld [vmem:[%s3057 + $0x40] sm:$0xff]
        %v3067 = vld [vmem:[%s3057 + $0x48] sm:$0xff]
        %v3068 = vld [vmem:[%s3057 + $0x50] sm:$0xff]
        %v3069 = vld [vmem:[%s3057 + $0x58] sm:$0xff]
        %v3070 = vld [vmem:[%s3057 + $0x60] sm:$0xff]
        %v3071 = vld [vmem:[%s3057 + $0x68] sm:$0xff]
        %v3072 = vld [vmem:[%s3057 + $0x70] sm:$0xff]
        %v3073 = vld [vmem:[%s3057 + $0x78] sm:$0xff]
        %v3074 = vld [vmem:[%s3057 + $0x80] sm:$0xff]
        %v3075 = vld [vmem:[%s3057 + $0x88] sm:$0xff]
        %v3076 = vld [vmem:[%s3057 + $0x90] sm:$0xff]
        %v3077 = vld [vmem:[%s3057 + $0x98] sm:$0xff]
        %v3078 = vld [vmem:[%s3057 + $0xa0] sm:$0xff]
        %v3079 = vld [vmem:[%s3057 + $0xa8] sm:$0xff]
        %v3080 = vld [vmem:[%s3057 + $0xb0] sm:$0xff]
        %v3081 = vld [vmem:[%s3057 + $0xb8] sm:$0xff]
        %v3082 = vld [vmem:[%s3057 + $0xc0] sm:$0xff]
        %v3083 = vld [vmem:[%s3057 + $0xc8] sm:$0xff]
        %v3084 = vld [vmem:[%s3057 + $0xd0] sm:$0xff]
        %v3085 = vld [vmem:[%s3057 + $0xd8] sm:$0xff]
        %v3086 = vld [vmem:[%s3057 + $0xe0] sm:$0xff]
        %v3087 = vld [vmem:[%s3057 + $0xe8] sm:$0xff]
        %v3088 = vld [vmem:[%s3057 + $0xf0] sm:$0xff]
        %v3089 = vld [vmem:[%s3057 + $0xf8] sm:$0xff]
        %v3090 = vld [vmem:[%s3057 + $0x100] sm:$0xff]
        %v3091 = vld [vmem:[%s3057 + $0x108] sm:$0xff]
        %v3092 = vld [vmem:[%s3057 + $0x110] sm:$0xff]
        %v3093 = vld [vmem:[%s3057 + $0x118] sm:$0xff]
        %v3094 = vld [vmem:[%s3057 + $0x120] sm:$0xff]
        %v3095 = vld [vmem:[%s3057 + $0x128] sm:$0xff]
        %v3096 = vld [vmem:[%s3057 + $0x130] sm:$0xff]
        %v3097 = vld [vmem:[%s3057 + $0x138] sm:$0xff]
        %v3098 = vld [vmem:[%s3057 + $0x140] sm:$0xff]
        %v3099 = vld [vmem:[%s3057 + $0x148] sm:$0xff]
        %v3100 = vld [vmem:[%s3057 + $0x150] sm:$0xff]
        %v3101 = vld [vmem:[%s3057 + $0x158] sm:$0xff]
        %v3102 = vld [vmem:[%s3057 + $0x160] sm:$0xff]
        %v3103 = vld [vmem:[%s3057 + $0x168] sm:$0xff]
        %v3104 = vld [vmem:[%s3057 + $0x170] sm:$0xff]
        %v3105 = vld [vmem:[%s3057 + $0x178] sm:$0xff]
        %v3106 = vld [vmem:[%s3057 + $0x180] sm:$0xff]
        %v3107 = vld [vmem:[%s3057 + $0x188] sm:$0xff]
        %v3108 = vld [vmem:[%s3057 + $0x190] sm:$0xff]
        %v3109 = vld [vmem:[%s3057 + $0x198] sm:$0xff]
        %v3110 = vld [vmem:[%s3057 + $0x1a0] sm:$0xff]
        %v3111 = vld [vmem:[%s3057 + $0x1a8] sm:$0xff]
        %v3112 = vld [vmem:[%s3057 + $0x1b0] sm:$0xff]
        %v3113 = vld [vmem:[%s3057 + $0x1b8] sm:$0xff]
        %v3114 = vld [vmem:[%s3057 + $0x1c0] sm:$0xff]
        %v3115 = vld [vmem:[%s3057 + $0x1c8] sm:$0xff]
        %v3116 = vld [vmem:[%s3057 + $0x1d0] sm:$0xff]
        %v3117 = vld [vmem:[%s3057 + $0x1d8] sm:$0xff]
        %v3118 = vld [vmem:[%s3057 + $0x1e0] sm:$0xff]
        %v3119 = vld [vmem:[%s3057 + $0x1e8] sm:$0xff]
        %v3120 = vld [vmem:[%s3057 + $0x1f0] sm:$0xff]
        %v3121 = vld [vmem:[%s3057 + $0x1f8] sm:$0xff]
        %v3124 = vrot.slane %v3056, 7
        %v3125 = vsel %vm2327, %v3124, %v3055
        %3127 = vmatprep.subr.mxu0 %v3119
        %3128 = vmatpush1.msra.mxu0 %v3118
        %3129 = vmatprep.subr.mxu0 %v3115
        %3130 = vmatpush1.msra.mxu0 %v3114
        %3131 = vmatprep.subr.mxu0 %v3111
        %3132 = vmatpush1.msra.mxu0 %v3110
        %3133 = vmatprep.subr.mxu0 %v3107
        %3134 = vmatpush1.msra.mxu0 %v3106
        %3135 = vmatprep.subr.mxu0 %v3103
        %3136 = vmatpush1.msra.mxu0 %v3102
        %3137 = vmatprep.subr.mxu0 %v3099
        %3138 = vmatpush1.msra.mxu0 %v3098
        %3139 = vmatprep.subr.mxu0 %v3095
        %3140 = vmatpush1.msra.mxu0 %v3094
        %3141 = vmatprep.subr.mxu0 %v3091
        %3142 = vmatpush1.msra.mxu0 %v3090
        %3143 = vmatprep.subr.mxu0 %v3087
        %3144 = vmatpush1.msra.mxu0 %v3086
        %3145 = vmatprep.subr.mxu0 %v3083
        %3146 = vmatpush1.msra.mxu0 %v3082
        %3147 = vmatprep.subr.mxu0 %v3079
        %3148 = vmatpush1.msra.mxu0 %v3078
        %3149 = vmatprep.subr.mxu0 %v3075
        %3150 = vmatpush1.msra.mxu0 %v3074
        %3151 = vmatprep.subr.mxu0 %v3071
        %3152 = vmatpush1.msra.mxu0 %v3070
        %3153 = vmatprep.subr.mxu0 %v3067
        %3154 = vmatpush1.msra.mxu0 %v3066
        %3155 = vmatprep.subr.mxu0 %v3063
        %3156 = vmatpush1.msra.mxu0 %v3062
        %3157 = vmatprep.subr.mxu0 %v3059
        %3158 = vmatpush1.msra.mxu0 %v3058
        %3159 = vmatprep.subr.mxu0 0.0
        %3160 = vmatpush2.msra.mxu0 0.0
        %3161 = vmatprep.subr.mxu0 0.0
        %3162 = vmatpush2.msra.mxu0 0.0
        %3163 = vmatprep.subr.mxu0 0.0
        %3164 = vmatpush2.msra.mxu0 0.0
        %3165 = vmatprep.subr.mxu0 0.0
        %3166 = vmatpush2.msra.mxu0 0.0
        %3167 = vmatprep.subr.mxu0 0.0
        %3168 = vmatpush2.msra.mxu0 0.0
        %3169 = vmatprep.subr.mxu0 0.0
        %3170 = vmatpush2.msra.mxu0 0.0
        %3171 = vmatprep.subr.mxu0 0.0
        %3172 = vmatpush2.msra.mxu0 0.0
        %3173 = vmatprep.subr.mxu0 0.0
        %3174 = vmatpush2.msra.mxu0 0.0
        %3175 = vmatprep.subr.mxu0 0.0
        %3176 = vmatpush2.msra.mxu0 0.0
        %3177 = vmatprep.subr.mxu0 0.0
        %3178 = vmatpush2.msra.mxu0 0.0
        %3179 = vmatprep.subr.mxu0 0.0
        %3180 = vmatpush2.msra.mxu0 0.0
        %3181 = vmatprep.subr.mxu0 0.0
        %3182 = vmatpush2.msra.mxu0 0.0
        %3183 = vmatprep.subr.mxu0 0.0
        %3184 = vmatpush2.msra.mxu0 0.0
        %3185 = vmatprep.subr.mxu0 0.0
        %3186 = vmatpush2.msra.mxu0 0.0
        %3187 = vmatprep.subr.mxu0 0.0
        %3188 = vmatpush2.msra.mxu0 0.0
        %3189 = vmatprep.subr.mxu0 0.0
        %3190 = vmatpush2.msra.mxu0 0.0
        %3191 = vmatprep.mubr.f32.mxu0 0.0
        %3192 = vmatmul.mubr.f32.gmra.mxu0 %v3125
        %v3193 = vpop.f32.mrf.mxu0
        %v3194 = vadd.f32 0.0, %v3193
        %v3195 = vpop.f32.mrf.mxu0
        %v3196 = vadd.f32 0.0, %v3195
        %3197 = vdwg.mxu0
        %3198 = vmatprep.subr.mxu0 %v3121
        %3199 = vmatpush1.msra.mxu0 %v3120
        %3200 = vmatprep.subr.mxu0 %v3117
        %3201 = vmatpush1.msra.mxu0 %v3116
        %3202 = vmatprep.subr.mxu0 %v3113
        %3203 = vmatpush1.msra.mxu0 %v3112
        %3204 = vmatprep.subr.mxu0 %v3109
        %3205 = vmatpush1.msra.mxu0 %v3108
        %3206 = vmatprep.subr.mxu0 %v3105
        %3207 = vmatpush1.msra.mxu0 %v3104
        %3208 = vmatprep.subr.mxu0 %v3101
        %3209 = vmatpush1.msra.mxu0 %v3100
        %3210 = vmatprep.subr.mxu0 %v3097
        %3211 = vmatpush1.msra.mxu0 %v3096
        %3212 = vmatprep.subr.mxu0 %v3093
        %3213 = vmatpush1.msra.mxu0 %v3092
        %3214 = vmatprep.subr.mxu0 %v3089
        %3215 = vmatpush1.msra.mxu0 %v3088
        %3216 = vmatprep.subr.mxu0 %v3085
        %3217 = vmatpush1.msra.mxu0 %v3084
        %3218 = vmatprep.subr.mxu0 %v3081
        %3219 = vmatpush1.msra.mxu0 %v3080
        %3220 = vmatprep.subr.mxu0 %v3077
        %3221 = vmatpush1.msra.mxu0 %v3076
        %3222 = vmatprep.subr.mxu0 %v3073
        %3223 = vmatpush1.msra.mxu0 %v3072
        %3224 = vmatprep.subr.mxu0 %v3069
        %3225 = vmatpush1.msra.mxu0 %v3068
        %3226 = vmatprep.subr.mxu0 %v3065
        %3227 = vmatpush1.msra.mxu0 %v3064
        %3228 = vmatprep.subr.mxu0 %v3061
        %3229 = vmatpush1.msra.mxu0 %v3060
        %3230 = vmatprep.subr.mxu0 0.0
        %3231 = vmatpush2.msra.mxu0 0.0
        %3232 = vmatprep.subr.mxu0 0.0
        %3233 = vmatpush2.msra.mxu0 0.0
        %3234 = vmatprep.subr.mxu0 0.0
        %3235 = vmatpush2.msra.mxu0 0.0
        %3236 = vmatprep.subr.mxu0 0.0
        %3237 = vmatpush2.msra.mxu0 0.0
        %3238 = vmatprep.subr.mxu0 0.0
        %3239 = vmatpush2.msra.mxu0 0.0
        %3240 = vmatprep.subr.mxu0 0.0
        %3241 = vmatpush2.msra.mxu0 0.0
        %3242 = vmatprep.subr.mxu0 0.0
        %3243 = vmatpush2.msra.mxu0 0.0
        %3244 = vmatprep.subr.mxu0 0.0
        %3245 = vmatpush2.msra.mxu0 0.0
        %3246 = vmatprep.subr.mxu0 0.0
        %3247 = vmatpush2.msra.mxu0 0.0
        %3248 = vmatprep.subr.mxu0 0.0
        %3249 = vmatpush2.msra.mxu0 0.0
        %3250 = vmatprep.subr.mxu0 0.0
        %3251 = vmatpush2.msra.mxu0 0.0
        %3252 = vmatprep.subr.mxu0 0.0
        %3253 = vmatpush2.msra.mxu0 0.0
        %3254 = vmatprep.subr.mxu0 0.0
        %3255 = vmatpush2.msra.mxu0 0.0
        %3256 = vmatprep.subr.mxu0 0.0
        %3257 = vmatpush2.msra.mxu0 0.0
        %3258 = vmatprep.subr.mxu0 0.0
        %3259 = vmatpush2.msra.mxu0 0.0
        %3260 = vmatprep.subr.mxu0 0.0
        %3261 = vmatpush2.msra.mxu0 0.0
        %3262 = vmatprep.mubr.f32.mxu0 0.0
        %3263 = vmatmul.mubr.f32.gmra.mxu0 %v3125
        %v3264 = vpop.f32.mrf.mxu0
        %v3265 = vadd.f32 0.0, %v3264
        %v3266 = vpop.f32.mrf.mxu0
        %v3267 = vadd.f32 0.0, %v3266
        %3268 = vdwg.mxu0
        %v3269 = vadd.f32 %v3051, %v3194
        %v3270 = vadd.f32 %v3052, %v3196
        %v3271 = vadd.f32 %v3053, %v3265
        %v3272 = vadd.f32 %v3054, %v3267
        %v3273 = vld [vmem:[#allocation5 + $0x5] sm:$0x1]
        %v3274 = vld [vmem:[#allocation5 + $0x15] sm:$0x1]
        %s3275 = scalar_lea.vmem [#allocation17], 2560
        %v3276 = vld [vmem:[%s3275] sm:$0xff]
        %v3277 = vld [vmem:[%s3275 + $0x8] sm:$0xff]
        %v3278 = vld [vmem:[%s3275 + $0x10] sm:$0xff]
        %v3279 = vld [vmem:[%s3275 + $0x18] sm:$0xff]
        %v3280 = vld [vmem:[%s3275 + $0x20] sm:$0xff]
        %v3281 = vld [vmem:[%s3275 + $0x28] sm:$0xff]
        %v3282 = vld [vmem:[%s3275 + $0x30] sm:$0xff]
        %v3283 = vld [vmem:[%s3275 + $0x38] sm:$0xff]
        %v3284 = vld [vmem:[%s3275 + $0x40] sm:$0xff]
        %v3285 = vld [vmem:[%s3275 + $0x48] sm:$0xff]
        %v3286 = vld [vmem:[%s3275 + $0x50] sm:$0xff]
        %v3287 = vld [vmem:[%s3275 + $0x58] sm:$0xff]
        %v3288 = vld [vmem:[%s3275 + $0x60] sm:$0xff]
        %v3289 = vld [vmem:[%s3275 + $0x68] sm:$0xff]
        %v3290 = vld [vmem:[%s3275 + $0x70] sm:$0xff]
        %v3291 = vld [vmem:[%s3275 + $0x78] sm:$0xff]
        %v3292 = vld [vmem:[%s3275 + $0x80] sm:$0xff]
        %v3293 = vld [vmem:[%s3275 + $0x88] sm:$0xff]
        %v3294 = vld [vmem:[%s3275 + $0x90] sm:$0xff]
        %v3295 = vld [vmem:[%s3275 + $0x98] sm:$0xff]
        %v3296 = vld [vmem:[%s3275 + $0xa0] sm:$0xff]
        %v3297 = vld [vmem:[%s3275 + $0xa8] sm:$0xff]
        %v3298 = vld [vmem:[%s3275 + $0xb0] sm:$0xff]
        %v3299 = vld [vmem:[%s3275 + $0xb8] sm:$0xff]
        %v3300 = vld [vmem:[%s3275 + $0xc0] sm:$0xff]
        %v3301 = vld [vmem:[%s3275 + $0xc8] sm:$0xff]
        %v3302 = vld [vmem:[%s3275 + $0xd0] sm:$0xff]
        %v3303 = vld [vmem:[%s3275 + $0xd8] sm:$0xff]
        %v3304 = vld [vmem:[%s3275 + $0xe0] sm:$0xff]
        %v3305 = vld [vmem:[%s3275 + $0xe8] sm:$0xff]
        %v3306 = vld [vmem:[%s3275 + $0xf0] sm:$0xff]
        %v3307 = vld [vmem:[%s3275 + $0xf8] sm:$0xff]
        %v3308 = vld [vmem:[%s3275 + $0x100] sm:$0xff]
        %v3309 = vld [vmem:[%s3275 + $0x108] sm:$0xff]
        %v3310 = vld [vmem:[%s3275 + $0x110] sm:$0xff]
        %v3311 = vld [vmem:[%s3275 + $0x118] sm:$0xff]
        %v3312 = vld [vmem:[%s3275 + $0x120] sm:$0xff]
        %v3313 = vld [vmem:[%s3275 + $0x128] sm:$0xff]
        %v3314 = vld [vmem:[%s3275 + $0x130] sm:$0xff]
        %v3315 = vld [vmem:[%s3275 + $0x138] sm:$0xff]
        %v3316 = vld [vmem:[%s3275 + $0x140] sm:$0xff]
        %v3317 = vld [vmem:[%s3275 + $0x148] sm:$0xff]
        %v3318 = vld [vmem:[%s3275 + $0x150] sm:$0xff]
        %v3319 = vld [vmem:[%s3275 + $0x158] sm:$0xff]
        %v3320 = vld [vmem:[%s3275 + $0x160] sm:$0xff]
        %v3321 = vld [vmem:[%s3275 + $0x168] sm:$0xff]
        %v3322 = vld [vmem:[%s3275 + $0x170] sm:$0xff]
        %v3323 = vld [vmem:[%s3275 + $0x178] sm:$0xff]
        %v3324 = vld [vmem:[%s3275 + $0x180] sm:$0xff]
        %v3325 = vld [vmem:[%s3275 + $0x188] sm:$0xff]
        %v3326 = vld [vmem:[%s3275 + $0x190] sm:$0xff]
        %v3327 = vld [vmem:[%s3275 + $0x198] sm:$0xff]
        %v3328 = vld [vmem:[%s3275 + $0x1a0] sm:$0xff]
        %v3329 = vld [vmem:[%s3275 + $0x1a8] sm:$0xff]
        %v3330 = vld [vmem:[%s3275 + $0x1b0] sm:$0xff]
        %v3331 = vld [vmem:[%s3275 + $0x1b8] sm:$0xff]
        %v3332 = vld [vmem:[%s3275 + $0x1c0] sm:$0xff]
        %v3333 = vld [vmem:[%s3275 + $0x1c8] sm:$0xff]
        %v3334 = vld [vmem:[%s3275 + $0x1d0] sm:$0xff]
        %v3335 = vld [vmem:[%s3275 + $0x1d8] sm:$0xff]
        %v3336 = vld [vmem:[%s3275 + $0x1e0] sm:$0xff]
        %v3337 = vld [vmem:[%s3275 + $0x1e8] sm:$0xff]
        %v3338 = vld [vmem:[%s3275 + $0x1f0] sm:$0xff]
        %v3339 = vld [vmem:[%s3275 + $0x1f8] sm:$0xff]
        %v3342 = vrot.slane %v3274, 7
        %v3343 = vsel %vm2327, %v3342, %v3273
        %3345 = vmatprep.subr.mxu0 %v3337
        %3346 = vmatpush1.msra.mxu0 %v3336
        %3347 = vmatprep.subr.mxu0 %v3333
        %3348 = vmatpush1.msra.mxu0 %v3332
        %3349 = vmatprep.subr.mxu0 %v3329
        %3350 = vmatpush1.msra.mxu0 %v3328
        %3351 = vmatprep.subr.mxu0 %v3325
        %3352 = vmatpush1.msra.mxu0 %v3324
        %3353 = vmatprep.subr.mxu0 %v3321
        %3354 = vmatpush1.msra.mxu0 %v3320
        %3355 = vmatprep.subr.mxu0 %v3317
        %3356 = vmatpush1.msra.mxu0 %v3316
        %3357 = vmatprep.subr.mxu0 %v3313
        %3358 = vmatpush1.msra.mxu0 %v3312
        %3359 = vmatprep.subr.mxu0 %v3309
        %3360 = vmatpush1.msra.mxu0 %v3308
        %3361 = vmatprep.subr.mxu0 %v3305
        %3362 = vmatpush1.msra.mxu0 %v3304
        %3363 = vmatprep.subr.mxu0 %v3301
        %3364 = vmatpush1.msra.mxu0 %v3300
        %3365 = vmatprep.subr.mxu0 %v3297
        %3366 = vmatpush1.msra.mxu0 %v3296
        %3367 = vmatprep.subr.mxu0 %v3293
        %3368 = vmatpush1.msra.mxu0 %v3292
        %3369 = vmatprep.subr.mxu0 %v3289
        %3370 = vmatpush1.msra.mxu0 %v3288
        %3371 = vmatprep.subr.mxu0 %v3285
        %3372 = vmatpush1.msra.mxu0 %v3284
        %3373 = vmatprep.subr.mxu0 %v3281
        %3374 = vmatpush1.msra.mxu0 %v3280
        %3375 = vmatprep.subr.mxu0 %v3277
        %3376 = vmatpush1.msra.mxu0 %v3276
        %3377 = vmatprep.subr.mxu0 0.0
        %3378 = vmatpush2.msra.mxu0 0.0
        %3379 = vmatprep.subr.mxu0 0.0
        %3380 = vmatpush2.msra.mxu0 0.0
        %3381 = vmatprep.subr.mxu0 0.0
        %3382 = vmatpush2.msra.mxu0 0.0
        %3383 = vmatprep.subr.mxu0 0.0
        %3384 = vmatpush2.msra.mxu0 0.0
        %3385 = vmatprep.subr.mxu0 0.0
        %3386 = vmatpush2.msra.mxu0 0.0
        %3387 = vmatprep.subr.mxu0 0.0
        %3388 = vmatpush2.msra.mxu0 0.0
        %3389 = vmatprep.subr.mxu0 0.0
        %3390 = vmatpush2.msra.mxu0 0.0
        %3391 = vmatprep.subr.mxu0 0.0
        %3392 = vmatpush2.msra.mxu0 0.0
        %3393 = vmatprep.subr.mxu0 0.0
        %3394 = vmatpush2.msra.mxu0 0.0
        %3395 = vmatprep.subr.mxu0 0.0
        %3396 = vmatpush2.msra.mxu0 0.0
        %3397 = vmatprep.subr.mxu0 0.0
        %3398 = vmatpush2.msra.mxu0 0.0
        %3399 = vmatprep.subr.mxu0 0.0
        %3400 = vmatpush2.msra.mxu0 0.0
        %3401 = vmatprep.subr.mxu0 0.0
        %3402 = vmatpush2.msra.mxu0 0.0
        %3403 = vmatprep.subr.mxu0 0.0
        %3404 = vmatpush2.msra.mxu0 0.0
        %3405 = vmatprep.subr.mxu0 0.0
        %3406 = vmatpush2.msra.mxu0 0.0
        %3407 = vmatprep.subr.mxu0 0.0
        %3408 = vmatpush2.msra.mxu0 0.0
        %3409 = vmatprep.mubr.f32.mxu0 0.0
        %3410 = vmatmul.mubr.f32.gmra.mxu0 %v3343
        %v3411 = vpop.f32.mrf.mxu0
        %v3412 = vadd.f32 0.0, %v3411
        %v3413 = vpop.f32.mrf.mxu0
        %v3414 = vadd.f32 0.0, %v3413
        %3415 = vdwg.mxu0
        %3416 = vmatprep.subr.mxu0 %v3339
        %3417 = vmatpush1.msra.mxu0 %v3338
        %3418 = vmatprep.subr.mxu0 %v3335
        %3419 = vmatpush1.msra.mxu0 %v3334
        %3420 = vmatprep.subr.mxu0 %v3331
        %3421 = vmatpush1.msra.mxu0 %v3330
        %3422 = vmatprep.subr.mxu0 %v3327
        %3423 = vmatpush1.msra.mxu0 %v3326
        %3424 = vmatprep.subr.mxu0 %v3323
        %3425 = vmatpush1.msra.mxu0 %v3322
        %3426 = vmatprep.subr.mxu0 %v3319
        %3427 = vmatpush1.msra.mxu0 %v3318
        %3428 = vmatprep.subr.mxu0 %v3315
        %3429 = vmatpush1.msra.mxu0 %v3314
        %3430 = vmatprep.subr.mxu0 %v3311
        %3431 = vmatpush1.msra.mxu0 %v3310
        %3432 = vmatprep.subr.mxu0 %v3307
        %3433 = vmatpush1.msra.mxu0 %v3306
        %3434 = vmatprep.subr.mxu0 %v3303
        %3435 = vmatpush1.msra.mxu0 %v3302
        %3436 = vmatprep.subr.mxu0 %v3299
        %3437 = vmatpush1.msra.mxu0 %v3298
        %3438 = vmatprep.subr.mxu0 %v3295
        %3439 = vmatpush1.msra.mxu0 %v3294
        %3440 = vmatprep.subr.mxu0 %v3291
        %3441 = vmatpush1.msra.mxu0 %v3290
        %3442 = vmatprep.subr.mxu0 %v3287
        %3443 = vmatpush1.msra.mxu0 %v3286
        %3444 = vmatprep.subr.mxu0 %v3283
        %3445 = vmatpush1.msra.mxu0 %v3282
        %3446 = vmatprep.subr.mxu0 %v3279
        %3447 = vmatpush1.msra.mxu0 %v3278
        %3448 = vmatprep.subr.mxu0 0.0
        %3449 = vmatpush2.msra.mxu0 0.0
        %3450 = vmatprep.subr.mxu0 0.0
        %3451 = vmatpush2.msra.mxu0 0.0
        %3452 = vmatprep.subr.mxu0 0.0
        %3453 = vmatpush2.msra.mxu0 0.0
        %3454 = vmatprep.subr.mxu0 0.0
        %3455 = vmatpush2.msra.mxu0 0.0
        %3456 = vmatprep.subr.mxu0 0.0
        %3457 = vmatpush2.msra.mxu0 0.0
        %3458 = vmatprep.subr.mxu0 0.0
        %3459 = vmatpush2.msra.mxu0 0.0
        %3460 = vmatprep.subr.mxu0 0.0
        %3461 = vmatpush2.msra.mxu0 0.0
        %3462 = vmatprep.subr.mxu0 0.0
        %3463 = vmatpush2.msra.mxu0 0.0
        %3464 = vmatprep.subr.mxu0 0.0
        %3465 = vmatpush2.msra.mxu0 0.0
        %3466 = vmatprep.subr.mxu0 0.0
        %3467 = vmatpush2.msra.mxu0 0.0
        %3468 = vmatprep.subr.mxu0 0.0
        %3469 = vmatpush2.msra.mxu0 0.0
        %3470 = vmatprep.subr.mxu0 0.0
        %3471 = vmatpush2.msra.mxu0 0.0
        %3472 = vmatprep.subr.mxu0 0.0
        %3473 = vmatpush2.msra.mxu0 0.0
        %3474 = vmatprep.subr.mxu0 0.0
        %3475 = vmatpush2.msra.mxu0 0.0
        %3476 = vmatprep.subr.mxu0 0.0
        %3477 = vmatpush2.msra.mxu0 0.0
        %3478 = vmatprep.subr.mxu0 0.0
        %3479 = vmatpush2.msra.mxu0 0.0
        %3480 = vmatprep.mubr.f32.mxu0 0.0
        %3481 = vmatmul.mubr.f32.gmra.mxu0 %v3343
        %v3482 = vpop.f32.mrf.mxu0
        %v3483 = vadd.f32 0.0, %v3482
        %v3484 = vpop.f32.mrf.mxu0
        %v3485 = vadd.f32 0.0, %v3484
        %3486 = vdwg.mxu0
        %v3487 = vadd.f32 %v3269, %v3412
        %v3488 = vadd.f32 %v3270, %v3414
        %v3489 = vadd.f32 %v3271, %v3483
        %v3490 = vadd.f32 %v3272, %v3485
        %v3491 = vld [vmem:[#allocation5 + $0x6] sm:$0x1]
        %v3492 = vld [vmem:[#allocation5 + $0x16] sm:$0x1]
        %s3493 = scalar_lea.vmem [#allocation17], 3072
        %v3494 = vld [vmem:[%s3493] sm:$0xff]
        %v3495 = vld [vmem:[%s3493 + $0x8] sm:$0xff]
        %v3496 = vld [vmem:[%s3493 + $0x10] sm:$0xff]
        %v3497 = vld [vmem:[%s3493 + $0x18] sm:$0xff]
        %v3498 = vld [vmem:[%s3493 + $0x20] sm:$0xff]
        %v3499 = vld [vmem:[%s3493 + $0x28] sm:$0xff]
        %v3500 = vld [vmem:[%s3493 + $0x30] sm:$0xff]
        %v3501 = vld [vmem:[%s3493 + $0x38] sm:$0xff]
        %v3502 = vld [vmem:[%s3493 + $0x40] sm:$0xff]
        %v3503 = vld [vmem:[%s3493 + $0x48] sm:$0xff]
        %v3504 = vld [vmem:[%s3493 + $0x50] sm:$0xff]
        %v3505 = vld [vmem:[%s3493 + $0x58] sm:$0xff]
        %v3506 = vld [vmem:[%s3493 + $0x60] sm:$0xff]
        %v3507 = vld [vmem:[%s3493 + $0x68] sm:$0xff]
        %v3508 = vld [vmem:[%s3493 + $0x70] sm:$0xff]
        %v3509 = vld [vmem:[%s3493 + $0x78] sm:$0xff]
        %v3510 = vld [vmem:[%s3493 + $0x80] sm:$0xff]
        %v3511 = vld [vmem:[%s3493 + $0x88] sm:$0xff]
        %v3512 = vld [vmem:[%s3493 + $0x90] sm:$0xff]
        %v3513 = vld [vmem:[%s3493 + $0x98] sm:$0xff]
        %v3514 = vld [vmem:[%s3493 + $0xa0] sm:$0xff]
        %v3515 = vld [vmem:[%s3493 + $0xa8] sm:$0xff]
        %v3516 = vld [vmem:[%s3493 + $0xb0] sm:$0xff]
        %v3517 = vld [vmem:[%s3493 + $0xb8] sm:$0xff]
        %v3518 = vld [vmem:[%s3493 + $0xc0] sm:$0xff]
        %v3519 = vld [vmem:[%s3493 + $0xc8] sm:$0xff]
        %v3520 = vld [vmem:[%s3493 + $0xd0] sm:$0xff]
        %v3521 = vld [vmem:[%s3493 + $0xd8] sm:$0xff]
        %v3522 = vld [vmem:[%s3493 + $0xe0] sm:$0xff]
        %v3523 = vld [vmem:[%s3493 + $0xe8] sm:$0xff]
        %v3524 = vld [vmem:[%s3493 + $0xf0] sm:$0xff]
        %v3525 = vld [vmem:[%s3493 + $0xf8] sm:$0xff]
        %v3526 = vld [vmem:[%s3493 + $0x100] sm:$0xff]
        %v3527 = vld [vmem:[%s3493 + $0x108] sm:$0xff]
        %v3528 = vld [vmem:[%s3493 + $0x110] sm:$0xff]
        %v3529 = vld [vmem:[%s3493 + $0x118] sm:$0xff]
        %v3530 = vld [vmem:[%s3493 + $0x120] sm:$0xff]
        %v3531 = vld [vmem:[%s3493 + $0x128] sm:$0xff]
        %v3532 = vld [vmem:[%s3493 + $0x130] sm:$0xff]
        %v3533 = vld [vmem:[%s3493 + $0x138] sm:$0xff]
        %v3534 = vld [vmem:[%s3493 + $0x140] sm:$0xff]
        %v3535 = vld [vmem:[%s3493 + $0x148] sm:$0xff]
        %v3536 = vld [vmem:[%s3493 + $0x150] sm:$0xff]
        %v3537 = vld [vmem:[%s3493 + $0x158] sm:$0xff]
        %v3538 = vld [vmem:[%s3493 + $0x160] sm:$0xff]
        %v3539 = vld [vmem:[%s3493 + $0x168] sm:$0xff]
        %v3540 = vld [vmem:[%s3493 + $0x170] sm:$0xff]
        %v3541 = vld [vmem:[%s3493 + $0x178] sm:$0xff]
        %v3542 = vld [vmem:[%s3493 + $0x180] sm:$0xff]
        %v3543 = vld [vmem:[%s3493 + $0x188] sm:$0xff]
        %v3544 = vld [vmem:[%s3493 + $0x190] sm:$0xff]
        %v3545 = vld [vmem:[%s3493 + $0x198] sm:$0xff]
        %v3546 = vld [vmem:[%s3493 + $0x1a0] sm:$0xff]
        %v3547 = vld [vmem:[%s3493 + $0x1a8] sm:$0xff]
        %v3548 = vld [vmem:[%s3493 + $0x1b0] sm:$0xff]
        %v3549 = vld [vmem:[%s3493 + $0x1b8] sm:$0xff]
        %v3550 = vld [vmem:[%s3493 + $0x1c0] sm:$0xff]
        %v3551 = vld [vmem:[%s3493 + $0x1c8] sm:$0xff]
        %v3552 = vld [vmem:[%s3493 + $0x1d0] sm:$0xff]
        %v3553 = vld [vmem:[%s3493 + $0x1d8] sm:$0xff]
        %v3554 = vld [vmem:[%s3493 + $0x1e0] sm:$0xff]
        %v3555 = vld [vmem:[%s3493 + $0x1e8] sm:$0xff]
        %v3556 = vld [vmem:[%s3493 + $0x1f0] sm:$0xff]
        %v3557 = vld [vmem:[%s3493 + $0x1f8] sm:$0xff]
        %v3560 = vrot.slane %v3492, 7
        %v3561 = vsel %vm2327, %v3560, %v3491
        %3563 = vmatprep.subr.mxu0 %v3555
        %3564 = vmatpush1.msra.mxu0 %v3554
        %3565 = vmatprep.subr.mxu0 %v3551
        %3566 = vmatpush1.msra.mxu0 %v3550
        %3567 = vmatprep.subr.mxu0 %v3547
        %3568 = vmatpush1.msra.mxu0 %v3546
        %3569 = vmatprep.subr.mxu0 %v3543
        %3570 = vmatpush1.msra.mxu0 %v3542
        %3571 = vmatprep.subr.mxu0 %v3539
        %3572 = vmatpush1.msra.mxu0 %v3538
        %3573 = vmatprep.subr.mxu0 %v3535
        %3574 = vmatpush1.msra.mxu0 %v3534
        %3575 = vmatprep.subr.mxu0 %v3531
        %3576 = vmatpush1.msra.mxu0 %v3530
        %3577 = vmatprep.subr.mxu0 %v3527
        %3578 = vmatpush1.msra.mxu0 %v3526
        %3579 = vmatprep.subr.mxu0 %v3523
        %3580 = vmatpush1.msra.mxu0 %v3522
        %3581 = vmatprep.subr.mxu0 %v3519
        %3582 = vmatpush1.msra.mxu0 %v3518
        %3583 = vmatprep.subr.mxu0 %v3515
        %3584 = vmatpush1.msra.mxu0 %v3514
        %3585 = vmatprep.subr.mxu0 %v3511
        %3586 = vmatpush1.msra.mxu0 %v3510
        %3587 = vmatprep.subr.mxu0 %v3507
        %3588 = vmatpush1.msra.mxu0 %v3506
        %3589 = vmatprep.subr.mxu0 %v3503
        %3590 = vmatpush1.msra.mxu0 %v3502
        %3591 = vmatprep.subr.mxu0 %v3499
        %3592 = vmatpush1.msra.mxu0 %v3498
        %3593 = vmatprep.subr.mxu0 %v3495
        %3594 = vmatpush1.msra.mxu0 %v3494
        %3595 = vmatprep.subr.mxu0 0.0
        %3596 = vmatpush2.msra.mxu0 0.0
        %3597 = vmatprep.subr.mxu0 0.0
        %3598 = vmatpush2.msra.mxu0 0.0
        %3599 = vmatprep.subr.mxu0 0.0
        %3600 = vmatpush2.msra.mxu0 0.0
        %3601 = vmatprep.subr.mxu0 0.0
        %3602 = vmatpush2.msra.mxu0 0.0
        %3603 = vmatprep.subr.mxu0 0.0
        %3604 = vmatpush2.msra.mxu0 0.0
        %3605 = vmatprep.subr.mxu0 0.0
        %3606 = vmatpush2.msra.mxu0 0.0
        %3607 = vmatprep.subr.mxu0 0.0
        %3608 = vmatpush2.msra.mxu0 0.0
        %3609 = vmatprep.subr.mxu0 0.0
        %3610 = vmatpush2.msra.mxu0 0.0
        %3611 = vmatprep.subr.mxu0 0.0
        %3612 = vmatpush2.msra.mxu0 0.0
        %3613 = vmatprep.subr.mxu0 0.0
        %3614 = vmatpush2.msra.mxu0 0.0
        %3615 = vmatprep.subr.mxu0 0.0
        %3616 = vmatpush2.msra.mxu0 0.0
        %3617 = vmatprep.subr.mxu0 0.0
        %3618 = vmatpush2.msra.mxu0 0.0
        %3619 = vmatprep.subr.mxu0 0.0
        %3620 = vmatpush2.msra.mxu0 0.0
        %3621 = vmatprep.subr.mxu0 0.0
        %3622 = vmatpush2.msra.mxu0 0.0
        %3623 = vmatprep.subr.mxu0 0.0
        %3624 = vmatpush2.msra.mxu0 0.0
        %3625 = vmatprep.subr.mxu0 0.0
        %3626 = vmatpush2.msra.mxu0 0.0
        %3627 = vmatprep.mubr.f32.mxu0 0.0
        %3628 = vmatmul.mubr.f32.gmra.mxu0 %v3561
        %v3629 = vpop.f32.mrf.mxu0
        %v3630 = vadd.f32 0.0, %v3629
        %v3631 = vpop.f32.mrf.mxu0
        %v3632 = vadd.f32 0.0, %v3631
        %3633 = vdwg.mxu0
        %3634 = vmatprep.subr.mxu0 %v3557
        %3635 = vmatpush1.msra.mxu0 %v3556
        %3636 = vmatprep.subr.mxu0 %v3553
        %3637 = vmatpush1.msra.mxu0 %v3552
        %3638 = vmatprep.subr.mxu0 %v3549
        %3639 = vmatpush1.msra.mxu0 %v3548
        %3640 = vmatprep.subr.mxu0 %v3545
        %3641 = vmatpush1.msra.mxu0 %v3544
        %3642 = vmatprep.subr.mxu0 %v3541
        %3643 = vmatpush1.msra.mxu0 %v3540
        %3644 = vmatprep.subr.mxu0 %v3537
        %3645 = vmatpush1.msra.mxu0 %v3536
        %3646 = vmatprep.subr.mxu0 %v3533
        %3647 = vmatpush1.msra.mxu0 %v3532
        %3648 = vmatprep.subr.mxu0 %v3529
        %3649 = vmatpush1.msra.mxu0 %v3528
        %3650 = vmatprep.subr.mxu0 %v3525
        %3651 = vmatpush1.msra.mxu0 %v3524
        %3652 = vmatprep.subr.mxu0 %v3521
        %3653 = vmatpush1.msra.mxu0 %v3520
        %3654 = vmatprep.subr.mxu0 %v3517
        %3655 = vmatpush1.msra.mxu0 %v3516
        %3656 = vmatprep.subr.mxu0 %v3513
        %3657 = vmatpush1.msra.mxu0 %v3512
        %3658 = vmatprep.subr.mxu0 %v3509
        %3659 = vmatpush1.msra.mxu0 %v3508
        %3660 = vmatprep.subr.mxu0 %v3505
        %3661 = vmatpush1.msra.mxu0 %v3504
        %3662 = vmatprep.subr.mxu0 %v3501
        %3663 = vmatpush1.msra.mxu0 %v3500
        %3664 = vmatprep.subr.mxu0 %v3497
        %3665 = vmatpush1.msra.mxu0 %v3496
        %3666 = vmatprep.subr.mxu0 0.0
        %3667 = vmatpush2.msra.mxu0 0.0
        %3668 = vmatprep.subr.mxu0 0.0
        %3669 = vmatpush2.msra.mxu0 0.0
        %3670 = vmatprep.subr.mxu0 0.0
        %3671 = vmatpush2.msra.mxu0 0.0
        %3672 = vmatprep.subr.mxu0 0.0
        %3673 = vmatpush2.msra.mxu0 0.0
        %3674 = vmatprep.subr.mxu0 0.0
        %3675 = vmatpush2.msra.mxu0 0.0
        %3676 = vmatprep.subr.mxu0 0.0
        %3677 = vmatpush2.msra.mxu0 0.0
        %3678 = vmatprep.subr.mxu0 0.0
        %3679 = vmatpush2.msra.mxu0 0.0
        %3680 = vmatprep.subr.mxu0 0.0
        %3681 = vmatpush2.msra.mxu0 0.0
        %3682 = vmatprep.subr.mxu0 0.0
        %3683 = vmatpush2.msra.mxu0 0.0
        %3684 = vmatprep.subr.mxu0 0.0
        %3685 = vmatpush2.msra.mxu0 0.0
        %3686 = vmatprep.subr.mxu0 0.0
        %3687 = vmatpush2.msra.mxu0 0.0
        %3688 = vmatprep.subr.mxu0 0.0
        %3689 = vmatpush2.msra.mxu0 0.0
        %3690 = vmatprep.subr.mxu0 0.0
        %3691 = vmatpush2.msra.mxu0 0.0
        %3692 = vmatprep.subr.mxu0 0.0
        %3693 = vmatpush2.msra.mxu0 0.0
        %3694 = vmatprep.subr.mxu0 0.0
        %3695 = vmatpush2.msra.mxu0 0.0
        %3696 = vmatprep.subr.mxu0 0.0
        %3697 = vmatpush2.msra.mxu0 0.0
        %3698 = vmatprep.mubr.f32.mxu0 0.0
        %3699 = vmatmul.mubr.f32.gmra.mxu0 %v3561
        %v3700 = vpop.f32.mrf.mxu0
        %v3701 = vadd.f32 0.0, %v3700
        %v3702 = vpop.f32.mrf.mxu0
        %v3703 = vadd.f32 0.0, %v3702
        %3704 = vdwg.mxu0
        %v3705 = vadd.f32 %v3487, %v3630
        %v3706 = vadd.f32 %v3488, %v3632
        %v3707 = vadd.f32 %v3489, %v3701
        %v3708 = vadd.f32 %v3490, %v3703
        %v3709 = vld [vmem:[#allocation5 + $0x7] sm:$0x1]
        %v3710 = vld [vmem:[#allocation5 + $0x17] sm:$0x1]
        %s3711 = scalar_lea.vmem [#allocation17], 3584
        %v3712 = vld [vmem:[%s3711] sm:$0xff]
        %v3713 = vld [vmem:[%s3711 + $0x8] sm:$0xff]
        %v3714 = vld [vmem:[%s3711 + $0x10] sm:$0xff]
        %v3715 = vld [vmem:[%s3711 + $0x18] sm:$0xff]
        %v3716 = vld [vmem:[%s3711 + $0x20] sm:$0xff]
        %v3717 = vld [vmem:[%s3711 + $0x28] sm:$0xff]
        %v3718 = vld [vmem:[%s3711 + $0x30] sm:$0xff]
        %v3719 = vld [vmem:[%s3711 + $0x38] sm:$0xff]
        %v3720 = vld [vmem:[%s3711 + $0x40] sm:$0xff]
        %v3721 = vld [vmem:[%s3711 + $0x48] sm:$0xff]
        %v3722 = vld [vmem:[%s3711 + $0x50] sm:$0xff]
        %v3723 = vld [vmem:[%s3711 + $0x58] sm:$0xff]
        %v3724 = vld [vmem:[%s3711 + $0x60] sm:$0xff]
        %v3725 = vld [vmem:[%s3711 + $0x68] sm:$0xff]
        %v3726 = vld [vmem:[%s3711 + $0x70] sm:$0xff]
        %v3727 = vld [vmem:[%s3711 + $0x78] sm:$0xff]
        %v3728 = vld [vmem:[%s3711 + $0x80] sm:$0xff]
        %v3729 = vld [vmem:[%s3711 + $0x88] sm:$0xff]
        %v3730 = vld [vmem:[%s3711 + $0x90] sm:$0xff]
        %v3731 = vld [vmem:[%s3711 + $0x98] sm:$0xff]
        %v3732 = vld [vmem:[%s3711 + $0xa0] sm:$0xff]
        %v3733 = vld [vmem:[%s3711 + $0xa8] sm:$0xff]
        %v3734 = vld [vmem:[%s3711 + $0xb0] sm:$0xff]
        %v3735 = vld [vmem:[%s3711 + $0xb8] sm:$0xff]
        %v3736 = vld [vmem:[%s3711 + $0xc0] sm:$0xff]
        %v3737 = vld [vmem:[%s3711 + $0xc8] sm:$0xff]
        %v3738 = vld [vmem:[%s3711 + $0xd0] sm:$0xff]
        %v3739 = vld [vmem:[%s3711 + $0xd8] sm:$0xff]
        %v3740 = vld [vmem:[%s3711 + $0xe0] sm:$0xff]
        %v3741 = vld [vmem:[%s3711 + $0xe8] sm:$0xff]
        %v3742 = vld [vmem:[%s3711 + $0xf0] sm:$0xff]
        %v3743 = vld [vmem:[%s3711 + $0xf8] sm:$0xff]
        %v3744 = vld [vmem:[%s3711 + $0x100] sm:$0xff]
        %v3745 = vld [vmem:[%s3711 + $0x108] sm:$0xff]
        %v3746 = vld [vmem:[%s3711 + $0x110] sm:$0xff]
        %v3747 = vld [vmem:[%s3711 + $0x118] sm:$0xff]
        %v3748 = vld [vmem:[%s3711 + $0x120] sm:$0xff]
        %v3749 = vld [vmem:[%s3711 + $0x128] sm:$0xff]
        %v3750 = vld [vmem:[%s3711 + $0x130] sm:$0xff]
        %v3751 = vld [vmem:[%s3711 + $0x138] sm:$0xff]
        %v3752 = vld [vmem:[%s3711 + $0x140] sm:$0xff]
        %v3753 = vld [vmem:[%s3711 + $0x148] sm:$0xff]
        %v3754 = vld [vmem:[%s3711 + $0x150] sm:$0xff]
        %v3755 = vld [vmem:[%s3711 + $0x158] sm:$0xff]
        %v3756 = vld [vmem:[%s3711 + $0x160] sm:$0xff]
        %v3757 = vld [vmem:[%s3711 + $0x168] sm:$0xff]
        %v3758 = vld [vmem:[%s3711 + $0x170] sm:$0xff]
        %v3759 = vld [vmem:[%s3711 + $0x178] sm:$0xff]
        %v3760 = vld [vmem:[%s3711 + $0x180] sm:$0xff]
        %v3761 = vld [vmem:[%s3711 + $0x188] sm:$0xff]
        %v3762 = vld [vmem:[%s3711 + $0x190] sm:$0xff]
        %v3763 = vld [vmem:[%s3711 + $0x198] sm:$0xff]
        %v3764 = vld [vmem:[%s3711 + $0x1a0] sm:$0xff]
        %v3765 = vld [vmem:[%s3711 + $0x1a8] sm:$0xff]
        %v3766 = vld [vmem:[%s3711 + $0x1b0] sm:$0xff]
        %v3767 = vld [vmem:[%s3711 + $0x1b8] sm:$0xff]
        %v3768 = vld [vmem:[%s3711 + $0x1c0] sm:$0xff]
        %v3769 = vld [vmem:[%s3711 + $0x1c8] sm:$0xff]
        %v3770 = vld [vmem:[%s3711 + $0x1d0] sm:$0xff]
        %v3771 = vld [vmem:[%s3711 + $0x1d8] sm:$0xff]
        %v3772 = vld [vmem:[%s3711 + $0x1e0] sm:$0xff]
        %v3773 = vld [vmem:[%s3711 + $0x1e8] sm:$0xff]
        %v3774 = vld [vmem:[%s3711 + $0x1f0] sm:$0xff]
        %v3775 = vld [vmem:[%s3711 + $0x1f8] sm:$0xff]
        %v3778 = vrot.slane %v3710, 7
        %v3779 = vsel %vm2327, %v3778, %v3709
        %3781 = vmatprep.subr.mxu0 %v3773
        %3782 = vmatpush1.msra.mxu0 %v3772
        %3783 = vmatprep.subr.mxu0 %v3769
        %3784 = vmatpush1.msra.mxu0 %v3768
        %3785 = vmatprep.subr.mxu0 %v3765
        %3786 = vmatpush1.msra.mxu0 %v3764
        %3787 = vmatprep.subr.mxu0 %v3761
        %3788 = vmatpush1.msra.mxu0 %v3760
        %3789 = vmatprep.subr.mxu0 %v3757
        %3790 = vmatpush1.msra.mxu0 %v3756
        %3791 = vmatprep.subr.mxu0 %v3753
        %3792 = vmatpush1.msra.mxu0 %v3752
        %3793 = vmatprep.subr.mxu0 %v3749
        %3794 = vmatpush1.msra.mxu0 %v3748
        %3795 = vmatprep.subr.mxu0 %v3745
        %3796 = vmatpush1.msra.mxu0 %v3744
        %3797 = vmatprep.subr.mxu0 %v3741
        %3798 = vmatpush1.msra.mxu0 %v3740
        %3799 = vmatprep.subr.mxu0 %v3737
        %3800 = vmatpush1.msra.mxu0 %v3736
        %3801 = vmatprep.subr.mxu0 %v3733
        %3802 = vmatpush1.msra.mxu0 %v3732
        %3803 = vmatprep.subr.mxu0 %v3729
        %3804 = vmatpush1.msra.mxu0 %v3728
        %3805 = vmatprep.subr.mxu0 %v3725
        %3806 = vmatpush1.msra.mxu0 %v3724
        %3807 = vmatprep.subr.mxu0 %v3721
        %3808 = vmatpush1.msra.mxu0 %v3720
        %3809 = vmatprep.subr.mxu0 %v3717
        %3810 = vmatpush1.msra.mxu0 %v3716
        %3811 = vmatprep.subr.mxu0 %v3713
        %3812 = vmatpush1.msra.mxu0 %v3712
        %3813 = vmatprep.subr.mxu0 0.0
        %3814 = vmatpush2.msra.mxu0 0.0
        %3815 = vmatprep.subr.mxu0 0.0
        %3816 = vmatpush2.msra.mxu0 0.0
        %3817 = vmatprep.subr.mxu0 0.0
        %3818 = vmatpush2.msra.mxu0 0.0
        %3819 = vmatprep.subr.mxu0 0.0
        %3820 = vmatpush2.msra.mxu0 0.0
        %3821 = vmatprep.subr.mxu0 0.0
        %3822 = vmatpush2.msra.mxu0 0.0
        %3823 = vmatprep.subr.mxu0 0.0
        %3824 = vmatpush2.msra.mxu0 0.0
        %3825 = vmatprep.subr.mxu0 0.0
        %3826 = vmatpush2.msra.mxu0 0.0
        %3827 = vmatprep.subr.mxu0 0.0
        %3828 = vmatpush2.msra.mxu0 0.0
        %3829 = vmatprep.subr.mxu0 0.0
        %3830 = vmatpush2.msra.mxu0 0.0
        %3831 = vmatprep.subr.mxu0 0.0
        %3832 = vmatpush2.msra.mxu0 0.0
        %3833 = vmatprep.subr.mxu0 0.0
        %3834 = vmatpush2.msra.mxu0 0.0
        %3835 = vmatprep.subr.mxu0 0.0
        %3836 = vmatpush2.msra.mxu0 0.0
        %3837 = vmatprep.subr.mxu0 0.0
        %3838 = vmatpush2.msra.mxu0 0.0
        %3839 = vmatprep.subr.mxu0 0.0
        %3840 = vmatpush2.msra.mxu0 0.0
        %3841 = vmatprep.subr.mxu0 0.0
        %3842 = vmatpush2.msra.mxu0 0.0
        %3843 = vmatprep.subr.mxu0 0.0
        %3844 = vmatpush2.msra.mxu0 0.0
        %3845 = vmatprep.mubr.f32.mxu0 0.0
        %3846 = vmatmul.mubr.f32.gmra.mxu0 %v3779
        %v3847 = vpop.f32.mrf.mxu0
        %v3848 = vadd.f32 0.0, %v3847
        %v3849 = vpop.f32.mrf.mxu0
        %v3850 = vadd.f32 0.0, %v3849
        %3851 = vdwg.mxu0
        %3852 = vmatprep.subr.mxu0 %v3775
        %3853 = vmatpush1.msra.mxu0 %v3774
        %3854 = vmatprep.subr.mxu0 %v3771
        %3855 = vmatpush1.msra.mxu0 %v3770
        %3856 = vmatprep.subr.mxu0 %v3767
        %3857 = vmatpush1.msra.mxu0 %v3766
        %3858 = vmatprep.subr.mxu0 %v3763
        %3859 = vmatpush1.msra.mxu0 %v3762
        %3860 = vmatprep.subr.mxu0 %v3759
        %3861 = vmatpush1.msra.mxu0 %v3758
        %3862 = vmatprep.subr.mxu0 %v3755
        %3863 = vmatpush1.msra.mxu0 %v3754
        %3864 = vmatprep.subr.mxu0 %v3751
        %3865 = vmatpush1.msra.mxu0 %v3750
        %3866 = vmatprep.subr.mxu0 %v3747
        %3867 = vmatpush1.msra.mxu0 %v3746
        %3868 = vmatprep.subr.mxu0 %v3743
        %3869 = vmatpush1.msra.mxu0 %v3742
        %3870 = vmatprep.subr.mxu0 %v3739
        %3871 = vmatpush1.msra.mxu0 %v3738
        %3872 = vmatprep.subr.mxu0 %v3735
        %3873 = vmatpush1.msra.mxu0 %v3734
        %3874 = vmatprep.subr.mxu0 %v3731
        %3875 = vmatpush1.msra.mxu0 %v3730
        %3876 = vmatprep.subr.mxu0 %v3727
        %3877 = vmatpush1.msra.mxu0 %v3726
        %3878 = vmatprep.subr.mxu0 %v3723
        %3879 = vmatpush1.msra.mxu0 %v3722
        %3880 = vmatprep.subr.mxu0 %v3719
        %3881 = vmatpush1.msra.mxu0 %v3718
        %3882 = vmatprep.subr.mxu0 %v3715
        %3883 = vmatpush1.msra.mxu0 %v3714
        %3884 = vmatprep.subr.mxu0 0.0
        %3885 = vmatpush2.msra.mxu0 0.0
        %3886 = vmatprep.subr.mxu0 0.0
        %3887 = vmatpush2.msra.mxu0 0.0
        %3888 = vmatprep.subr.mxu0 0.0
        %3889 = vmatpush2.msra.mxu0 0.0
        %3890 = vmatprep.subr.mxu0 0.0
        %3891 = vmatpush2.msra.mxu0 0.0
        %3892 = vmatprep.subr.mxu0 0.0
        %3893 = vmatpush2.msra.mxu0 0.0
        %3894 = vmatprep.subr.mxu0 0.0
        %3895 = vmatpush2.msra.mxu0 0.0
        %3896 = vmatprep.subr.mxu0 0.0
        %3897 = vmatpush2.msra.mxu0 0.0
        %3898 = vmatprep.subr.mxu0 0.0
        %3899 = vmatpush2.msra.mxu0 0.0
        %3900 = vmatprep.subr.mxu0 0.0
        %3901 = vmatpush2.msra.mxu0 0.0
        %3902 = vmatprep.subr.mxu0 0.0
        %3903 = vmatpush2.msra.mxu0 0.0
        %3904 = vmatprep.subr.mxu0 0.0
        %3905 = vmatpush2.msra.mxu0 0.0
        %3906 = vmatprep.subr.mxu0 0.0
        %3907 = vmatpush2.msra.mxu0 0.0
        %3908 = vmatprep.subr.mxu0 0.0
        %3909 = vmatpush2.msra.mxu0 0.0
        %3910 = vmatprep.subr.mxu0 0.0
        %3911 = vmatpush2.msra.mxu0 0.0
        %3912 = vmatprep.subr.mxu0 0.0
        %3913 = vmatpush2.msra.mxu0 0.0
        %3914 = vmatprep.subr.mxu0 0.0
        %3915 = vmatpush2.msra.mxu0 0.0
        %3916 = vmatprep.mubr.f32.mxu0 0.0
        %3917 = vmatmul.mubr.f32.gmra.mxu0 %v3779
        %v3918 = vpop.f32.mrf.mxu0
        %v3919 = vadd.f32 0.0, %v3918
        %v3920 = vpop.f32.mrf.mxu0
        %v3921 = vadd.f32 0.0, %v3920
        %3922 = vdwg.mxu0
        %v3923 = vadd.f32 %v3705, %v3848
        %v3924 = vadd.f32 %v3706, %v3850
        %v3925 = vadd.f32 %v3707, %v3919
        %v3926 = vadd.f32 %v3708, %v3921
        %v3927 = vld [vmem:[#allocation5 + $0x8] sm:$0x1]
        %v3928 = vld [vmem:[#allocation5 + $0x18] sm:$0x1]
        %s3929 = scalar_lea.vmem [#allocation17], 4096
        %v3930 = vld [vmem:[%s3929] sm:$0xff]
        %v3931 = vld [vmem:[%s3929 + $0x8] sm:$0xff]
        %v3932 = vld [vmem:[%s3929 + $0x10] sm:$0xff]
        %v3933 = vld [vmem:[%s3929 + $0x18] sm:$0xff]
        %v3934 = vld [vmem:[%s3929 + $0x20] sm:$0xff]
        %v3935 = vld [vmem:[%s3929 + $0x28] sm:$0xff]
        %v3936 = vld [vmem:[%s3929 + $0x30] sm:$0xff]
        %v3937 = vld [vmem:[%s3929 + $0x38] sm:$0xff]
        %v3938 = vld [vmem:[%s3929 + $0x40] sm:$0xff]
        %v3939 = vld [vmem:[%s3929 + $0x48] sm:$0xff]
        %v3940 = vld [vmem:[%s3929 + $0x50] sm:$0xff]
        %v3941 = vld [vmem:[%s3929 + $0x58] sm:$0xff]
        %v3942 = vld [vmem:[%s3929 + $0x60] sm:$0xff]
        %v3943 = vld [vmem:[%s3929 + $0x68] sm:$0xff]
        %v3944 = vld [vmem:[%s3929 + $0x70] sm:$0xff]
        %v3945 = vld [vmem:[%s3929 + $0x78] sm:$0xff]
        %v3946 = vld [vmem:[%s3929 + $0x80] sm:$0xff]
        %v3947 = vld [vmem:[%s3929 + $0x88] sm:$0xff]
        %v3948 = vld [vmem:[%s3929 + $0x90] sm:$0xff]
        %v3949 = vld [vmem:[%s3929 + $0x98] sm:$0xff]
        %v3950 = vld [vmem:[%s3929 + $0xa0] sm:$0xff]
        %v3951 = vld [vmem:[%s3929 + $0xa8] sm:$0xff]
        %v3952 = vld [vmem:[%s3929 + $0xb0] sm:$0xff]
        %v3953 = vld [vmem:[%s3929 + $0xb8] sm:$0xff]
        %v3954 = vld [vmem:[%s3929 + $0xc0] sm:$0xff]
        %v3955 = vld [vmem:[%s3929 + $0xc8] sm:$0xff]
        %v3956 = vld [vmem:[%s3929 + $0xd0] sm:$0xff]
        %v3957 = vld [vmem:[%s3929 + $0xd8] sm:$0xff]
        %v3958 = vld [vmem:[%s3929 + $0xe0] sm:$0xff]
        %v3959 = vld [vmem:[%s3929 + $0xe8] sm:$0xff]
        %v3960 = vld [vmem:[%s3929 + $0xf0] sm:$0xff]
        %v3961 = vld [vmem:[%s3929 + $0xf8] sm:$0xff]
        %v3962 = vld [vmem:[%s3929 + $0x100] sm:$0xff]
        %v3963 = vld [vmem:[%s3929 + $0x108] sm:$0xff]
        %v3964 = vld [vmem:[%s3929 + $0x110] sm:$0xff]
        %v3965 = vld [vmem:[%s3929 + $0x118] sm:$0xff]
        %v3966 = vld [vmem:[%s3929 + $0x120] sm:$0xff]
        %v3967 = vld [vmem:[%s3929 + $0x128] sm:$0xff]
        %v3968 = vld [vmem:[%s3929 + $0x130] sm:$0xff]
        %v3969 = vld [vmem:[%s3929 + $0x138] sm:$0xff]
        %v3970 = vld [vmem:[%s3929 + $0x140] sm:$0xff]
        %v3971 = vld [vmem:[%s3929 + $0x148] sm:$0xff]
        %v3972 = vld [vmem:[%s3929 + $0x150] sm:$0xff]
        %v3973 = vld [vmem:[%s3929 + $0x158] sm:$0xff]
        %v3974 = vld [vmem:[%s3929 + $0x160] sm:$0xff]
        %v3975 = vld [vmem:[%s3929 + $0x168] sm:$0xff]
        %v3976 = vld [vmem:[%s3929 + $0x170] sm:$0xff]
        %v3977 = vld [vmem:[%s3929 + $0x178] sm:$0xff]
        %v3978 = vld [vmem:[%s3929 + $0x180] sm:$0xff]
        %v3979 = vld [vmem:[%s3929 + $0x188] sm:$0xff]
        %v3980 = vld [vmem:[%s3929 + $0x190] sm:$0xff]
        %v3981 = vld [vmem:[%s3929 + $0x198] sm:$0xff]
        %v3982 = vld [vmem:[%s3929 + $0x1a0] sm:$0xff]
        %v3983 = vld [vmem:[%s3929 + $0x1a8] sm:$0xff]
        %v3984 = vld [vmem:[%s3929 + $0x1b0] sm:$0xff]
        %v3985 = vld [vmem:[%s3929 + $0x1b8] sm:$0xff]
        %v3986 = vld [vmem:[%s3929 + $0x1c0] sm:$0xff]
        %v3987 = vld [vmem:[%s3929 + $0x1c8] sm:$0xff]
        %v3988 = vld [vmem:[%s3929 + $0x1d0] sm:$0xff]
        %v3989 = vld [vmem:[%s3929 + $0x1d8] sm:$0xff]
        %v3990 = vld [vmem:[%s3929 + $0x1e0] sm:$0xff]
        %v3991 = vld [vmem:[%s3929 + $0x1e8] sm:$0xff]
        %v3992 = vld [vmem:[%s3929 + $0x1f0] sm:$0xff]
        %v3993 = vld [vmem:[%s3929 + $0x1f8] sm:$0xff]
        %v3996 = vrot.slane %v3928, 7
        %v3997 = vsel %vm2327, %v3996, %v3927
        %3999 = vmatprep.subr.mxu0 %v3991
        %4000 = vmatpush1.msra.mxu0 %v3990
        %4001 = vmatprep.subr.mxu0 %v3987
        %4002 = vmatpush1.msra.mxu0 %v3986
        %4003 = vmatprep.subr.mxu0 %v3983
        %4004 = vmatpush1.msra.mxu0 %v3982
        %4005 = vmatprep.subr.mxu0 %v3979
        %4006 = vmatpush1.msra.mxu0 %v3978
        %4007 = vmatprep.subr.mxu0 %v3975
        %4008 = vmatpush1.msra.mxu0 %v3974
        %4009 = vmatprep.subr.mxu0 %v3971
        %4010 = vmatpush1.msra.mxu0 %v3970
        %4011 = vmatprep.subr.mxu0 %v3967
        %4012 = vmatpush1.msra.mxu0 %v3966
        %4013 = vmatprep.subr.mxu0 %v3963
        %4014 = vmatpush1.msra.mxu0 %v3962
        %4015 = vmatprep.subr.mxu0 %v3959
        %4016 = vmatpush1.msra.mxu0 %v3958
        %4017 = vmatprep.subr.mxu0 %v3955
        %4018 = vmatpush1.msra.mxu0 %v3954
        %4019 = vmatprep.subr.mxu0 %v3951
        %4020 = vmatpush1.msra.mxu0 %v3950
        %4021 = vmatprep.subr.mxu0 %v3947
        %4022 = vmatpush1.msra.mxu0 %v3946
        %4023 = vmatprep.subr.mxu0 %v3943
        %4024 = vmatpush1.msra.mxu0 %v3942
        %4025 = vmatprep.subr.mxu0 %v3939
        %4026 = vmatpush1.msra.mxu0 %v3938
        %4027 = vmatprep.subr.mxu0 %v3935
        %4028 = vmatpush1.msra.mxu0 %v3934
        %4029 = vmatprep.subr.mxu0 %v3931
        %4030 = vmatpush1.msra.mxu0 %v3930
        %4031 = vmatprep.subr.mxu0 0.0
        %4032 = vmatpush2.msra.mxu0 0.0
        %4033 = vmatprep.subr.mxu0 0.0
        %4034 = vmatpush2.msra.mxu0 0.0
        %4035 = vmatprep.subr.mxu0 0.0
        %4036 = vmatpush2.msra.mxu0 0.0
        %4037 = vmatprep.subr.mxu0 0.0
        %4038 = vmatpush2.msra.mxu0 0.0
        %4039 = vmatprep.subr.mxu0 0.0
        %4040 = vmatpush2.msra.mxu0 0.0
        %4041 = vmatprep.subr.mxu0 0.0
        %4042 = vmatpush2.msra.mxu0 0.0
        %4043 = vmatprep.subr.mxu0 0.0
        %4044 = vmatpush2.msra.mxu0 0.0
        %4045 = vmatprep.subr.mxu0 0.0
        %4046 = vmatpush2.msra.mxu0 0.0
        %4047 = vmatprep.subr.mxu0 0.0
        %4048 = vmatpush2.msra.mxu0 0.0
        %4049 = vmatprep.subr.mxu0 0.0
        %4050 = vmatpush2.msra.mxu0 0.0
        %4051 = vmatprep.subr.mxu0 0.0
        %4052 = vmatpush2.msra.mxu0 0.0
        %4053 = vmatprep.subr.mxu0 0.0
        %4054 = vmatpush2.msra.mxu0 0.0
        %4055 = vmatprep.subr.mxu0 0.0
        %4056 = vmatpush2.msra.mxu0 0.0
        %4057 = vmatprep.subr.mxu0 0.0
        %4058 = vmatpush2.msra.mxu0 0.0
        %4059 = vmatprep.subr.mxu0 0.0
        %4060 = vmatpush2.msra.mxu0 0.0
        %4061 = vmatprep.subr.mxu0 0.0
        %4062 = vmatpush2.msra.mxu0 0.0
        %4063 = vmatprep.mubr.f32.mxu0 0.0
        %4064 = vmatmul.mubr.f32.gmra.mxu0 %v3997
        %v4065 = vpop.f32.mrf.mxu0
        %v4066 = vadd.f32 0.0, %v4065
        %v4067 = vpop.f32.mrf.mxu0
        %v4068 = vadd.f32 0.0, %v4067
        %4069 = vdwg.mxu0
        %4070 = vmatprep.subr.mxu0 %v3993
        %4071 = vmatpush1.msra.mxu0 %v3992
        %4072 = vmatprep.subr.mxu0 %v3989
        %4073 = vmatpush1.msra.mxu0 %v3988
        %4074 = vmatprep.subr.mxu0 %v3985
        %4075 = vmatpush1.msra.mxu0 %v3984
        %4076 = vmatprep.subr.mxu0 %v3981
        %4077 = vmatpush1.msra.mxu0 %v3980
        %4078 = vmatprep.subr.mxu0 %v3977
        %4079 = vmatpush1.msra.mxu0 %v3976
        %4080 = vmatprep.subr.mxu0 %v3973
        %4081 = vmatpush1.msra.mxu0 %v3972
        %4082 = vmatprep.subr.mxu0 %v3969
        %4083 = vmatpush1.msra.mxu0 %v3968
        %4084 = vmatprep.subr.mxu0 %v3965
        %4085 = vmatpush1.msra.mxu0 %v3964
        %4086 = vmatprep.subr.mxu0 %v3961
        %4087 = vmatpush1.msra.mxu0 %v3960
        %4088 = vmatprep.subr.mxu0 %v3957
        %4089 = vmatpush1.msra.mxu0 %v3956
        %4090 = vmatprep.subr.mxu0 %v3953
        %4091 = vmatpush1.msra.mxu0 %v3952
        %4092 = vmatprep.subr.mxu0 %v3949
        %4093 = vmatpush1.msra.mxu0 %v3948
        %4094 = vmatprep.subr.mxu0 %v3945
        %4095 = vmatpush1.msra.mxu0 %v3944
        %4096 = vmatprep.subr.mxu0 %v3941
        %4097 = vmatpush1.msra.mxu0 %v3940
        %4098 = vmatprep.subr.mxu0 %v3937
        %4099 = vmatpush1.msra.mxu0 %v3936
        %4100 = vmatprep.subr.mxu0 %v3933
        %4101 = vmatpush1.msra.mxu0 %v3932
        %4102 = vmatprep.subr.mxu0 0.0
        %4103 = vmatpush2.msra.mxu0 0.0
        %4104 = vmatprep.subr.mxu0 0.0
        %4105 = vmatpush2.msra.mxu0 0.0
        %4106 = vmatprep.subr.mxu0 0.0
        %4107 = vmatpush2.msra.mxu0 0.0
        %4108 = vmatprep.subr.mxu0 0.0
        %4109 = vmatpush2.msra.mxu0 0.0
        %4110 = vmatprep.subr.mxu0 0.0
        %4111 = vmatpush2.msra.mxu0 0.0
        %4112 = vmatprep.subr.mxu0 0.0
        %4113 = vmatpush2.msra.mxu0 0.0
        %4114 = vmatprep.subr.mxu0 0.0
        %4115 = vmatpush2.msra.mxu0 0.0
        %4116 = vmatprep.subr.mxu0 0.0
        %4117 = vmatpush2.msra.mxu0 0.0
        %4118 = vmatprep.subr.mxu0 0.0
        %4119 = vmatpush2.msra.mxu0 0.0
        %4120 = vmatprep.subr.mxu0 0.0
        %4121 = vmatpush2.msra.mxu0 0.0
        %4122 = vmatprep.subr.mxu0 0.0
        %4123 = vmatpush2.msra.mxu0 0.0
        %4124 = vmatprep.subr.mxu0 0.0
        %4125 = vmatpush2.msra.mxu0 0.0
        %4126 = vmatprep.subr.mxu0 0.0
        %4127 = vmatpush2.msra.mxu0 0.0
        %4128 = vmatprep.subr.mxu0 0.0
        %4129 = vmatpush2.msra.mxu0 0.0
        %4130 = vmatprep.subr.mxu0 0.0
        %4131 = vmatpush2.msra.mxu0 0.0
        %4132 = vmatprep.subr.mxu0 0.0
        %4133 = vmatpush2.msra.mxu0 0.0
        %4134 = vmatprep.mubr.f32.mxu0 0.0
        %4135 = vmatmul.mubr.f32.gmra.mxu0 %v3997
        %v4136 = vpop.f32.mrf.mxu0
        %v4137 = vadd.f32 0.0, %v4136
        %v4138 = vpop.f32.mrf.mxu0
        %v4139 = vadd.f32 0.0, %v4138
        %4140 = vdwg.mxu0
        %v4141 = vadd.f32 %v3923, %v4066
        %v4142 = vadd.f32 %v3924, %v4068
        %v4143 = vadd.f32 %v3925, %v4137
        %v4144 = vadd.f32 %v3926, %v4139
        %v4145 = vld [vmem:[#allocation5 + $0x9] sm:$0x1]
        %v4146 = vld [vmem:[#allocation5 + $0x19] sm:$0x1]
        %s4147 = scalar_lea.vmem [#allocation17], 4608
        %v4148 = vld [vmem:[%s4147] sm:$0xff]
        %v4149 = vld [vmem:[%s4147 + $0x8] sm:$0xff]
        %v4150 = vld [vmem:[%s4147 + $0x10] sm:$0xff]
        %v4151 = vld [vmem:[%s4147 + $0x18] sm:$0xff]
        %v4152 = vld [vmem:[%s4147 + $0x20] sm:$0xff]
        %v4153 = vld [vmem:[%s4147 + $0x28] sm:$0xff]
        %v4154 = vld [vmem:[%s4147 + $0x30] sm:$0xff]
        %v4155 = vld [vmem:[%s4147 + $0x38] sm:$0xff]
        %v4156 = vld [vmem:[%s4147 + $0x40] sm:$0xff]
        %v4157 = vld [vmem:[%s4147 + $0x48] sm:$0xff]
        %v4158 = vld [vmem:[%s4147 + $0x50] sm:$0xff]
        %v4159 = vld [vmem:[%s4147 + $0x58] sm:$0xff]
        %v4160 = vld [vmem:[%s4147 + $0x60] sm:$0xff]
        %v4161 = vld [vmem:[%s4147 + $0x68] sm:$0xff]
        %v4162 = vld [vmem:[%s4147 + $0x70] sm:$0xff]
        %v4163 = vld [vmem:[%s4147 + $0x78] sm:$0xff]
        %v4164 = vld [vmem:[%s4147 + $0x80] sm:$0xff]
        %v4165 = vld [vmem:[%s4147 + $0x88] sm:$0xff]
        %v4166 = vld [vmem:[%s4147 + $0x90] sm:$0xff]
        %v4167 = vld [vmem:[%s4147 + $0x98] sm:$0xff]
        %v4168 = vld [vmem:[%s4147 + $0xa0] sm:$0xff]
        %v4169 = vld [vmem:[%s4147 + $0xa8] sm:$0xff]
        %v4170 = vld [vmem:[%s4147 + $0xb0] sm:$0xff]
        %v4171 = vld [vmem:[%s4147 + $0xb8] sm:$0xff]
        %v4172 = vld [vmem:[%s4147 + $0xc0] sm:$0xff]
        %v4173 = vld [vmem:[%s4147 + $0xc8] sm:$0xff]
        %v4174 = vld [vmem:[%s4147 + $0xd0] sm:$0xff]
        %v4175 = vld [vmem:[%s4147 + $0xd8] sm:$0xff]
        %v4176 = vld [vmem:[%s4147 + $0xe0] sm:$0xff]
        %v4177 = vld [vmem:[%s4147 + $0xe8] sm:$0xff]
        %v4178 = vld [vmem:[%s4147 + $0xf0] sm:$0xff]
        %v4179 = vld [vmem:[%s4147 + $0xf8] sm:$0xff]
        %v4180 = vld [vmem:[%s4147 + $0x100] sm:$0xff]
        %v4181 = vld [vmem:[%s4147 + $0x108] sm:$0xff]
        %v4182 = vld [vmem:[%s4147 + $0x110] sm:$0xff]
        %v4183 = vld [vmem:[%s4147 + $0x118] sm:$0xff]
        %v4184 = vld [vmem:[%s4147 + $0x120] sm:$0xff]
        %v4185 = vld [vmem:[%s4147 + $0x128] sm:$0xff]
        %v4186 = vld [vmem:[%s4147 + $0x130] sm:$0xff]
        %v4187 = vld [vmem:[%s4147 + $0x138] sm:$0xff]
        %v4188 = vld [vmem:[%s4147 + $0x140] sm:$0xff]
        %v4189 = vld [vmem:[%s4147 + $0x148] sm:$0xff]
        %v4190 = vld [vmem:[%s4147 + $0x150] sm:$0xff]
        %v4191 = vld [vmem:[%s4147 + $0x158] sm:$0xff]
        %v4192 = vld [vmem:[%s4147 + $0x160] sm:$0xff]
        %v4193 = vld [vmem:[%s4147 + $0x168] sm:$0xff]
        %v4194 = vld [vmem:[%s4147 + $0x170] sm:$0xff]
        %v4195 = vld [vmem:[%s4147 + $0x178] sm:$0xff]
        %v4196 = vld [vmem:[%s4147 + $0x180] sm:$0xff]
        %v4197 = vld [vmem:[%s4147 + $0x188] sm:$0xff]
        %v4198 = vld [vmem:[%s4147 + $0x190] sm:$0xff]
        %v4199 = vld [vmem:[%s4147 + $0x198] sm:$0xff]
        %v4200 = vld [vmem:[%s4147 + $0x1a0] sm:$0xff]
        %v4201 = vld [vmem:[%s4147 + $0x1a8] sm:$0xff]
        %v4202 = vld [vmem:[%s4147 + $0x1b0] sm:$0xff]
        %v4203 = vld [vmem:[%s4147 + $0x1b8] sm:$0xff]
        %v4204 = vld [vmem:[%s4147 + $0x1c0] sm:$0xff]
        %v4205 = vld [vmem:[%s4147 + $0x1c8] sm:$0xff]
        %v4206 = vld [vmem:[%s4147 + $0x1d0] sm:$0xff]
        %v4207 = vld [vmem:[%s4147 + $0x1d8] sm:$0xff]
        %v4208 = vld [vmem:[%s4147 + $0x1e0] sm:$0xff]
        %v4209 = vld [vmem:[%s4147 + $0x1e8] sm:$0xff]
        %v4210 = vld [vmem:[%s4147 + $0x1f0] sm:$0xff]
        %v4211 = vld [vmem:[%s4147 + $0x1f8] sm:$0xff]
        %v4214 = vrot.slane %v4146, 7
        %v4215 = vsel %vm2327, %v4214, %v4145
        %4217 = vmatprep.subr.mxu0 %v4209
        %4218 = vmatpush1.msra.mxu0 %v4208
        %4219 = vmatprep.subr.mxu0 %v4205
        %4220 = vmatpush1.msra.mxu0 %v4204
        %4221 = vmatprep.subr.mxu0 %v4201
        %4222 = vmatpush1.msra.mxu0 %v4200
        %4223 = vmatprep.subr.mxu0 %v4197
        %4224 = vmatpush1.msra.mxu0 %v4196
        %4225 = vmatprep.subr.mxu0 %v4193
        %4226 = vmatpush1.msra.mxu0 %v4192
        %4227 = vmatprep.subr.mxu0 %v4189
        %4228 = vmatpush1.msra.mxu0 %v4188
        %4229 = vmatprep.subr.mxu0 %v4185
        %4230 = vmatpush1.msra.mxu0 %v4184
        %4231 = vmatprep.subr.mxu0 %v4181
        %4232 = vmatpush1.msra.mxu0 %v4180
        %4233 = vmatprep.subr.mxu0 %v4177
        %4234 = vmatpush1.msra.mxu0 %v4176
        %4235 = vmatprep.subr.mxu0 %v4173
        %4236 = vmatpush1.msra.mxu0 %v4172
        %4237 = vmatprep.subr.mxu0 %v4169
        %4238 = vmatpush1.msra.mxu0 %v4168
        %4239 = vmatprep.subr.mxu0 %v4165
        %4240 = vmatpush1.msra.mxu0 %v4164
        %4241 = vmatprep.subr.mxu0 %v4161
        %4242 = vmatpush1.msra.mxu0 %v4160
        %4243 = vmatprep.subr.mxu0 %v4157
        %4244 = vmatpush1.msra.mxu0 %v4156
        %4245 = vmatprep.subr.mxu0 %v4153
        %4246 = vmatpush1.msra.mxu0 %v4152
        %4247 = vmatprep.subr.mxu0 %v4149
        %4248 = vmatpush1.msra.mxu0 %v4148
        %4249 = vmatprep.subr.mxu0 0.0
        %4250 = vmatpush2.msra.mxu0 0.0
        %4251 = vmatprep.subr.mxu0 0.0
        %4252 = vmatpush2.msra.mxu0 0.0
        %4253 = vmatprep.subr.mxu0 0.0
        %4254 = vmatpush2.msra.mxu0 0.0
        %4255 = vmatprep.subr.mxu0 0.0
        %4256 = vmatpush2.msra.mxu0 0.0
        %4257 = vmatprep.subr.mxu0 0.0
        %4258 = vmatpush2.msra.mxu0 0.0
        %4259 = vmatprep.subr.mxu0 0.0
        %4260 = vmatpush2.msra.mxu0 0.0
        %4261 = vmatprep.subr.mxu0 0.0
        %4262 = vmatpush2.msra.mxu0 0.0
        %4263 = vmatprep.subr.mxu0 0.0
        %4264 = vmatpush2.msra.mxu0 0.0
        %4265 = vmatprep.subr.mxu0 0.0
        %4266 = vmatpush2.msra.mxu0 0.0
        %4267 = vmatprep.subr.mxu0 0.0
        %4268 = vmatpush2.msra.mxu0 0.0
        %4269 = vmatprep.subr.mxu0 0.0
        %4270 = vmatpush2.msra.mxu0 0.0
        %4271 = vmatprep.subr.mxu0 0.0
        %4272 = vmatpush2.msra.mxu0 0.0
        %4273 = vmatprep.subr.mxu0 0.0
        %4274 = vmatpush2.msra.mxu0 0.0
        %4275 = vmatprep.subr.mxu0 0.0
        %4276 = vmatpush2.msra.mxu0 0.0
        %4277 = vmatprep.subr.mxu0 0.0
        %4278 = vmatpush2.msra.mxu0 0.0
        %4279 = vmatprep.subr.mxu0 0.0
        %4280 = vmatpush2.msra.mxu0 0.0
        %4281 = vmatprep.mubr.f32.mxu0 0.0
        %4282 = vmatmul.mubr.f32.gmra.mxu0 %v4215
        %v4283 = vpop.f32.mrf.mxu0
        %v4284 = vadd.f32 0.0, %v4283
        %v4285 = vpop.f32.mrf.mxu0
        %v4286 = vadd.f32 0.0, %v4285
        %4287 = vdwg.mxu0
        %4288 = vmatprep.subr.mxu0 %v4211
        %4289 = vmatpush1.msra.mxu0 %v4210
        %4290 = vmatprep.subr.mxu0 %v4207
        %4291 = vmatpush1.msra.mxu0 %v4206
        %4292 = vmatprep.subr.mxu0 %v4203
        %4293 = vmatpush1.msra.mxu0 %v4202
        %4294 = vmatprep.subr.mxu0 %v4199
        %4295 = vmatpush1.msra.mxu0 %v4198
        %4296 = vmatprep.subr.mxu0 %v4195
        %4297 = vmatpush1.msra.mxu0 %v4194
        %4298 = vmatprep.subr.mxu0 %v4191
        %4299 = vmatpush1.msra.mxu0 %v4190
        %4300 = vmatprep.subr.mxu0 %v4187
        %4301 = vmatpush1.msra.mxu0 %v4186
        %4302 = vmatprep.subr.mxu0 %v4183
        %4303 = vmatpush1.msra.mxu0 %v4182
        %4304 = vmatprep.subr.mxu0 %v4179
        %4305 = vmatpush1.msra.mxu0 %v4178
        %4306 = vmatprep.subr.mxu0 %v4175
        %4307 = vmatpush1.msra.mxu0 %v4174
        %4308 = vmatprep.subr.mxu0 %v4171
        %4309 = vmatpush1.msra.mxu0 %v4170
        %4310 = vmatprep.subr.mxu0 %v4167
        %4311 = vmatpush1.msra.mxu0 %v4166
        %4312 = vmatprep.subr.mxu0 %v4163
        %4313 = vmatpush1.msra.mxu0 %v4162
        %4314 = vmatprep.subr.mxu0 %v4159
        %4315 = vmatpush1.msra.mxu0 %v4158
        %4316 = vmatprep.subr.mxu0 %v4155
        %4317 = vmatpush1.msra.mxu0 %v4154
        %4318 = vmatprep.subr.mxu0 %v4151
        %4319 = vmatpush1.msra.mxu0 %v4150
        %4320 = vmatprep.subr.mxu0 0.0
        %4321 = vmatpush2.msra.mxu0 0.0
        %4322 = vmatprep.subr.mxu0 0.0
        %4323 = vmatpush2.msra.mxu0 0.0
        %4324 = vmatprep.subr.mxu0 0.0
        %4325 = vmatpush2.msra.mxu0 0.0
        %4326 = vmatprep.subr.mxu0 0.0
        %4327 = vmatpush2.msra.mxu0 0.0
        %4328 = vmatprep.subr.mxu0 0.0
        %4329 = vmatpush2.msra.mxu0 0.0
        %4330 = vmatprep.subr.mxu0 0.0
        %4331 = vmatpush2.msra.mxu0 0.0
        %4332 = vmatprep.subr.mxu0 0.0
        %4333 = vmatpush2.msra.mxu0 0.0
        %4334 = vmatprep.subr.mxu0 0.0
        %4335 = vmatpush2.msra.mxu0 0.0
        %4336 = vmatprep.subr.mxu0 0.0
        %4337 = vmatpush2.msra.mxu0 0.0
        %4338 = vmatprep.subr.mxu0 0.0
        %4339 = vmatpush2.msra.mxu0 0.0
        %4340 = vmatprep.subr.mxu0 0.0
        %4341 = vmatpush2.msra.mxu0 0.0
        %4342 = vmatprep.subr.mxu0 0.0
        %4343 = vmatpush2.msra.mxu0 0.0
        %4344 = vmatprep.subr.mxu0 0.0
        %4345 = vmatpush2.msra.mxu0 0.0
        %4346 = vmatprep.subr.mxu0 0.0
        %4347 = vmatpush2.msra.mxu0 0.0
        %4348 = vmatprep.subr.mxu0 0.0
        %4349 = vmatpush2.msra.mxu0 0.0
        %4350 = vmatprep.subr.mxu0 0.0
        %4351 = vmatpush2.msra.mxu0 0.0
        %4352 = vmatprep.mubr.f32.mxu0 0.0
        %4353 = vmatmul.mubr.f32.gmra.mxu0 %v4215
        %v4354 = vpop.f32.mrf.mxu0
        %v4355 = vadd.f32 0.0, %v4354
        %v4356 = vpop.f32.mrf.mxu0
        %v4357 = vadd.f32 0.0, %v4356
        %4358 = vdwg.mxu0
        %v4359 = vadd.f32 %v4141, %v4284
        %v4360 = vadd.f32 %v4142, %v4286
        %v4361 = vadd.f32 %v4143, %v4355
        %v4362 = vadd.f32 %v4144, %v4357
        %v4363 = vld [vmem:[#allocation5 + $0xa] sm:$0x1]
        %v4364 = vld [vmem:[#allocation5 + $0x1a] sm:$0x1]
        %s4365 = scalar_lea.vmem [#allocation17], 5120
        %v4366 = vld [vmem:[%s4365] sm:$0xff]
        %v4367 = vld [vmem:[%s4365 + $0x8] sm:$0xff]
        %v4368 = vld [vmem:[%s4365 + $0x10] sm:$0xff]
        %v4369 = vld [vmem:[%s4365 + $0x18] sm:$0xff]
        %v4370 = vld [vmem:[%s4365 + $0x20] sm:$0xff]
        %v4371 = vld [vmem:[%s4365 + $0x28] sm:$0xff]
        %v4372 = vld [vmem:[%s4365 + $0x30] sm:$0xff]
        %v4373 = vld [vmem:[%s4365 + $0x38] sm:$0xff]
        %v4374 = vld [vmem:[%s4365 + $0x40] sm:$0xff]
        %v4375 = vld [vmem:[%s4365 + $0x48] sm:$0xff]
        %v4376 = vld [vmem:[%s4365 + $0x50] sm:$0xff]
        %v4377 = vld [vmem:[%s4365 + $0x58] sm:$0xff]
        %v4378 = vld [vmem:[%s4365 + $0x60] sm:$0xff]
        %v4379 = vld [vmem:[%s4365 + $0x68] sm:$0xff]
        %v4380 = vld [vmem:[%s4365 + $0x70] sm:$0xff]
        %v4381 = vld [vmem:[%s4365 + $0x78] sm:$0xff]
        %v4382 = vld [vmem:[%s4365 + $0x80] sm:$0xff]
        %v4383 = vld [vmem:[%s4365 + $0x88] sm:$0xff]
        %v4384 = vld [vmem:[%s4365 + $0x90] sm:$0xff]
        %v4385 = vld [vmem:[%s4365 + $0x98] sm:$0xff]
        %v4386 = vld [vmem:[%s4365 + $0xa0] sm:$0xff]
        %v4387 = vld [vmem:[%s4365 + $0xa8] sm:$0xff]
        %v4388 = vld [vmem:[%s4365 + $0xb0] sm:$0xff]
        %v4389 = vld [vmem:[%s4365 + $0xb8] sm:$0xff]
        %v4390 = vld [vmem:[%s4365 + $0xc0] sm:$0xff]
        %v4391 = vld [vmem:[%s4365 + $0xc8] sm:$0xff]
        %v4392 = vld [vmem:[%s4365 + $0xd0] sm:$0xff]
        %v4393 = vld [vmem:[%s4365 + $0xd8] sm:$0xff]
        %v4394 = vld [vmem:[%s4365 + $0xe0] sm:$0xff]
        %v4395 = vld [vmem:[%s4365 + $0xe8] sm:$0xff]
        %v4396 = vld [vmem:[%s4365 + $0xf0] sm:$0xff]
        %v4397 = vld [vmem:[%s4365 + $0xf8] sm:$0xff]
        %v4398 = vld [vmem:[%s4365 + $0x100] sm:$0xff]
        %v4399 = vld [vmem:[%s4365 + $0x108] sm:$0xff]
        %v4400 = vld [vmem:[%s4365 + $0x110] sm:$0xff]
        %v4401 = vld [vmem:[%s4365 + $0x118] sm:$0xff]
        %v4402 = vld [vmem:[%s4365 + $0x120] sm:$0xff]
        %v4403 = vld [vmem:[%s4365 + $0x128] sm:$0xff]
        %v4404 = vld [vmem:[%s4365 + $0x130] sm:$0xff]
        %v4405 = vld [vmem:[%s4365 + $0x138] sm:$0xff]
        %v4406 = vld [vmem:[%s4365 + $0x140] sm:$0xff]
        %v4407 = vld [vmem:[%s4365 + $0x148] sm:$0xff]
        %v4408 = vld [vmem:[%s4365 + $0x150] sm:$0xff]
        %v4409 = vld [vmem:[%s4365 + $0x158] sm:$0xff]
        %v4410 = vld [vmem:[%s4365 + $0x160] sm:$0xff]
        %v4411 = vld [vmem:[%s4365 + $0x168] sm:$0xff]
        %v4412 = vld [vmem:[%s4365 + $0x170] sm:$0xff]
        %v4413 = vld [vmem:[%s4365 + $0x178] sm:$0xff]
        %v4414 = vld [vmem:[%s4365 + $0x180] sm:$0xff]
        %v4415 = vld [vmem:[%s4365 + $0x188] sm:$0xff]
        %v4416 = vld [vmem:[%s4365 + $0x190] sm:$0xff]
        %v4417 = vld [vmem:[%s4365 + $0x198] sm:$0xff]
        %v4418 = vld [vmem:[%s4365 + $0x1a0] sm:$0xff]
        %v4419 = vld [vmem:[%s4365 + $0x1a8] sm:$0xff]
        %v4420 = vld [vmem:[%s4365 + $0x1b0] sm:$0xff]
        %v4421 = vld [vmem:[%s4365 + $0x1b8] sm:$0xff]
        %v4422 = vld [vmem:[%s4365 + $0x1c0] sm:$0xff]
        %v4423 = vld [vmem:[%s4365 + $0x1c8] sm:$0xff]
        %v4424 = vld [vmem:[%s4365 + $0x1d0] sm:$0xff]
        %v4425 = vld [vmem:[%s4365 + $0x1d8] sm:$0xff]
        %v4426 = vld [vmem:[%s4365 + $0x1e0] sm:$0xff]
        %v4427 = vld [vmem:[%s4365 + $0x1e8] sm:$0xff]
        %v4428 = vld [vmem:[%s4365 + $0x1f0] sm:$0xff]
        %v4429 = vld [vmem:[%s4365 + $0x1f8] sm:$0xff]
        %v4432 = vrot.slane %v4364, 7
        %v4433 = vsel %vm2327, %v4432, %v4363
        %4435 = vmatprep.subr.mxu0 %v4427
        %4436 = vmatpush1.msra.mxu0 %v4426
        %4437 = vmatprep.subr.mxu0 %v4423
        %4438 = vmatpush1.msra.mxu0 %v4422
        %4439 = vmatprep.subr.mxu0 %v4419
        %4440 = vmatpush1.msra.mxu0 %v4418
        %4441 = vmatprep.subr.mxu0 %v4415
        %4442 = vmatpush1.msra.mxu0 %v4414
        %4443 = vmatprep.subr.mxu0 %v4411
        %4444 = vmatpush1.msra.mxu0 %v4410
        %4445 = vmatprep.subr.mxu0 %v4407
        %4446 = vmatpush1.msra.mxu0 %v4406
        %4447 = vmatprep.subr.mxu0 %v4403
        %4448 = vmatpush1.msra.mxu0 %v4402
        %4449 = vmatprep.subr.mxu0 %v4399
        %4450 = vmatpush1.msra.mxu0 %v4398
        %4451 = vmatprep.subr.mxu0 %v4395
        %4452 = vmatpush1.msra.mxu0 %v4394
        %4453 = vmatprep.subr.mxu0 %v4391
        %4454 = vmatpush1.msra.mxu0 %v4390
        %4455 = vmatprep.subr.mxu0 %v4387
        %4456 = vmatpush1.msra.mxu0 %v4386
        %4457 = vmatprep.subr.mxu0 %v4383
        %4458 = vmatpush1.msra.mxu0 %v4382
        %4459 = vmatprep.subr.mxu0 %v4379
        %4460 = vmatpush1.msra.mxu0 %v4378
        %4461 = vmatprep.subr.mxu0 %v4375
        %4462 = vmatpush1.msra.mxu0 %v4374
        %4463 = vmatprep.subr.mxu0 %v4371
        %4464 = vmatpush1.msra.mxu0 %v4370
        %4465 = vmatprep.subr.mxu0 %v4367
        %4466 = vmatpush1.msra.mxu0 %v4366
        %4467 = vmatprep.subr.mxu0 0.0
        %4468 = vmatpush2.msra.mxu0 0.0
        %4469 = vmatprep.subr.mxu0 0.0
        %4470 = vmatpush2.msra.mxu0 0.0
        %4471 = vmatprep.subr.mxu0 0.0
        %4472 = vmatpush2.msra.mxu0 0.0
        %4473 = vmatprep.subr.mxu0 0.0
        %4474 = vmatpush2.msra.mxu0 0.0
        %4475 = vmatprep.subr.mxu0 0.0
        %4476 = vmatpush2.msra.mxu0 0.0
        %4477 = vmatprep.subr.mxu0 0.0
        %4478 = vmatpush2.msra.mxu0 0.0
        %4479 = vmatprep.subr.mxu0 0.0
        %4480 = vmatpush2.msra.mxu0 0.0
        %4481 = vmatprep.subr.mxu0 0.0
        %4482 = vmatpush2.msra.mxu0 0.0
        %4483 = vmatprep.subr.mxu0 0.0
        %4484 = vmatpush2.msra.mxu0 0.0
        %4485 = vmatprep.subr.mxu0 0.0
        %4486 = vmatpush2.msra.mxu0 0.0
        %4487 = vmatprep.subr.mxu0 0.0
        %4488 = vmatpush2.msra.mxu0 0.0
        %4489 = vmatprep.subr.mxu0 0.0
        %4490 = vmatpush2.msra.mxu0 0.0
        %4491 = vmatprep.subr.mxu0 0.0
        %4492 = vmatpush2.msra.mxu0 0.0
        %4493 = vmatprep.subr.mxu0 0.0
        %4494 = vmatpush2.msra.mxu0 0.0
        %4495 = vmatprep.subr.mxu0 0.0
        %4496 = vmatpush2.msra.mxu0 0.0
        %4497 = vmatprep.subr.mxu0 0.0
        %4498 = vmatpush2.msra.mxu0 0.0
        %4499 = vmatprep.mubr.f32.mxu0 0.0
        %4500 = vmatmul.mubr.f32.gmra.mxu0 %v4433
        %v4501 = vpop.f32.mrf.mxu0
        %v4502 = vadd.f32 0.0, %v4501
        %v4503 = vpop.f32.mrf.mxu0
        %v4504 = vadd.f32 0.0, %v4503
        %4505 = vdwg.mxu0
        %4506 = vmatprep.subr.mxu0 %v4429
        %4507 = vmatpush1.msra.mxu0 %v4428
        %4508 = vmatprep.subr.mxu0 %v4425
        %4509 = vmatpush1.msra.mxu0 %v4424
        %4510 = vmatprep.subr.mxu0 %v4421
        %4511 = vmatpush1.msra.mxu0 %v4420
        %4512 = vmatprep.subr.mxu0 %v4417
        %4513 = vmatpush1.msra.mxu0 %v4416
        %4514 = vmatprep.subr.mxu0 %v4413
        %4515 = vmatpush1.msra.mxu0 %v4412
        %4516 = vmatprep.subr.mxu0 %v4409
        %4517 = vmatpush1.msra.mxu0 %v4408
        %4518 = vmatprep.subr.mxu0 %v4405
        %4519 = vmatpush1.msra.mxu0 %v4404
        %4520 = vmatprep.subr.mxu0 %v4401
        %4521 = vmatpush1.msra.mxu0 %v4400
        %4522 = vmatprep.subr.mxu0 %v4397
        %4523 = vmatpush1.msra.mxu0 %v4396
        %4524 = vmatprep.subr.mxu0 %v4393
        %4525 = vmatpush1.msra.mxu0 %v4392
        %4526 = vmatprep.subr.mxu0 %v4389
        %4527 = vmatpush1.msra.mxu0 %v4388
        %4528 = vmatprep.subr.mxu0 %v4385
        %4529 = vmatpush1.msra.mxu0 %v4384
        %4530 = vmatprep.subr.mxu0 %v4381
        %4531 = vmatpush1.msra.mxu0 %v4380
        %4532 = vmatprep.subr.mxu0 %v4377
        %4533 = vmatpush1.msra.mxu0 %v4376
        %4534 = vmatprep.subr.mxu0 %v4373
        %4535 = vmatpush1.msra.mxu0 %v4372
        %4536 = vmatprep.subr.mxu0 %v4369
        %4537 = vmatpush1.msra.mxu0 %v4368
        %4538 = vmatprep.subr.mxu0 0.0
        %4539 = vmatpush2.msra.mxu0 0.0
        %4540 = vmatprep.subr.mxu0 0.0
        %4541 = vmatpush2.msra.mxu0 0.0
        %4542 = vmatprep.subr.mxu0 0.0
        %4543 = vmatpush2.msra.mxu0 0.0
        %4544 = vmatprep.subr.mxu0 0.0
        %4545 = vmatpush2.msra.mxu0 0.0
        %4546 = vmatprep.subr.mxu0 0.0
        %4547 = vmatpush2.msra.mxu0 0.0
        %4548 = vmatprep.subr.mxu0 0.0
        %4549 = vmatpush2.msra.mxu0 0.0
        %4550 = vmatprep.subr.mxu0 0.0
        %4551 = vmatpush2.msra.mxu0 0.0
        %4552 = vmatprep.subr.mxu0 0.0
        %4553 = vmatpush2.msra.mxu0 0.0
        %4554 = vmatprep.subr.mxu0 0.0
        %4555 = vmatpush2.msra.mxu0 0.0
        %4556 = vmatprep.subr.mxu0 0.0
        %4557 = vmatpush2.msra.mxu0 0.0
        %4558 = vmatprep.subr.mxu0 0.0
        %4559 = vmatpush2.msra.mxu0 0.0
        %4560 = vmatprep.subr.mxu0 0.0
        %4561 = vmatpush2.msra.mxu0 0.0
        %4562 = vmatprep.subr.mxu0 0.0
        %4563 = vmatpush2.msra.mxu0 0.0
        %4564 = vmatprep.subr.mxu0 0.0
        %4565 = vmatpush2.msra.mxu0 0.0
        %4566 = vmatprep.subr.mxu0 0.0
        %4567 = vmatpush2.msra.mxu0 0.0
        %4568 = vmatprep.subr.mxu0 0.0
        %4569 = vmatpush2.msra.mxu0 0.0
        %4570 = vmatprep.mubr.f32.mxu0 0.0
        %4571 = vmatmul.mubr.f32.gmra.mxu0 %v4433
        %v4572 = vpop.f32.mrf.mxu0
        %v4573 = vadd.f32 0.0, %v4572
        %v4574 = vpop.f32.mrf.mxu0
        %v4575 = vadd.f32 0.0, %v4574
        %4576 = vdwg.mxu0
        %v4577 = vadd.f32 %v4359, %v4502
        %v4578 = vadd.f32 %v4360, %v4504
        %v4579 = vadd.f32 %v4361, %v4573
        %v4580 = vadd.f32 %v4362, %v4575
        %v4581 = vld [vmem:[#allocation5 + $0xb] sm:$0x1]
        %v4582 = vld [vmem:[#allocation5 + $0x1b] sm:$0x1]
        %s4583 = scalar_lea.vmem [#allocation17], 5632
        %v4584 = vld [vmem:[%s4583] sm:$0xff]
        %v4585 = vld [vmem:[%s4583 + $0x8] sm:$0xff]
        %v4586 = vld [vmem:[%s4583 + $0x10] sm:$0xff]
        %v4587 = vld [vmem:[%s4583 + $0x18] sm:$0xff]
        %v4588 = vld [vmem:[%s4583 + $0x20] sm:$0xff]
        %v4589 = vld [vmem:[%s4583 + $0x28] sm:$0xff]
        %v4590 = vld [vmem:[%s4583 + $0x30] sm:$0xff]
        %v4591 = vld [vmem:[%s4583 + $0x38] sm:$0xff]
        %v4592 = vld [vmem:[%s4583 + $0x40] sm:$0xff]
        %v4593 = vld [vmem:[%s4583 + $0x48] sm:$0xff]
        %v4594 = vld [vmem:[%s4583 + $0x50] sm:$0xff]
        %v4595 = vld [vmem:[%s4583 + $0x58] sm:$0xff]
        %v4596 = vld [vmem:[%s4583 + $0x60] sm:$0xff]
        %v4597 = vld [vmem:[%s4583 + $0x68] sm:$0xff]
        %v4598 = vld [vmem:[%s4583 + $0x70] sm:$0xff]
        %v4599 = vld [vmem:[%s4583 + $0x78] sm:$0xff]
        %v4600 = vld [vmem:[%s4583 + $0x80] sm:$0xff]
        %v4601 = vld [vmem:[%s4583 + $0x88] sm:$0xff]
        %v4602 = vld [vmem:[%s4583 + $0x90] sm:$0xff]
        %v4603 = vld [vmem:[%s4583 + $0x98] sm:$0xff]
        %v4604 = vld [vmem:[%s4583 + $0xa0] sm:$0xff]
        %v4605 = vld [vmem:[%s4583 + $0xa8] sm:$0xff]
        %v4606 = vld [vmem:[%s4583 + $0xb0] sm:$0xff]
        %v4607 = vld [vmem:[%s4583 + $0xb8] sm:$0xff]
        %v4608 = vld [vmem:[%s4583 + $0xc0] sm:$0xff]
        %v4609 = vld [vmem:[%s4583 + $0xc8] sm:$0xff]
        %v4610 = vld [vmem:[%s4583 + $0xd0] sm:$0xff]
        %v4611 = vld [vmem:[%s4583 + $0xd8] sm:$0xff]
        %v4612 = vld [vmem:[%s4583 + $0xe0] sm:$0xff]
        %v4613 = vld [vmem:[%s4583 + $0xe8] sm:$0xff]
        %v4614 = vld [vmem:[%s4583 + $0xf0] sm:$0xff]
        %v4615 = vld [vmem:[%s4583 + $0xf8] sm:$0xff]
        %v4616 = vld [vmem:[%s4583 + $0x100] sm:$0xff]
        %v4617 = vld [vmem:[%s4583 + $0x108] sm:$0xff]
        %v4618 = vld [vmem:[%s4583 + $0x110] sm:$0xff]
        %v4619 = vld [vmem:[%s4583 + $0x118] sm:$0xff]
        %v4620 = vld [vmem:[%s4583 + $0x120] sm:$0xff]
        %v4621 = vld [vmem:[%s4583 + $0x128] sm:$0xff]
        %v4622 = vld [vmem:[%s4583 + $0x130] sm:$0xff]
        %v4623 = vld [vmem:[%s4583 + $0x138] sm:$0xff]
        %v4624 = vld [vmem:[%s4583 + $0x140] sm:$0xff]
        %v4625 = vld [vmem:[%s4583 + $0x148] sm:$0xff]
        %v4626 = vld [vmem:[%s4583 + $0x150] sm:$0xff]
        %v4627 = vld [vmem:[%s4583 + $0x158] sm:$0xff]
        %v4628 = vld [vmem:[%s4583 + $0x160] sm:$0xff]
        %v4629 = vld [vmem:[%s4583 + $0x168] sm:$0xff]
        %v4630 = vld [vmem:[%s4583 + $0x170] sm:$0xff]
        %v4631 = vld [vmem:[%s4583 + $0x178] sm:$0xff]
        %v4632 = vld [vmem:[%s4583 + $0x180] sm:$0xff]
        %v4633 = vld [vmem:[%s4583 + $0x188] sm:$0xff]
        %v4634 = vld [vmem:[%s4583 + $0x190] sm:$0xff]
        %v4635 = vld [vmem:[%s4583 + $0x198] sm:$0xff]
        %v4636 = vld [vmem:[%s4583 + $0x1a0] sm:$0xff]
        %v4637 = vld [vmem:[%s4583 + $0x1a8] sm:$0xff]
        %v4638 = vld [vmem:[%s4583 + $0x1b0] sm:$0xff]
        %v4639 = vld [vmem:[%s4583 + $0x1b8] sm:$0xff]
        %v4640 = vld [vmem:[%s4583 + $0x1c0] sm:$0xff]
        %v4641 = vld [vmem:[%s4583 + $0x1c8] sm:$0xff]
        %v4642 = vld [vmem:[%s4583 + $0x1d0] sm:$0xff]
        %v4643 = vld [vmem:[%s4583 + $0x1d8] sm:$0xff]
        %v4644 = vld [vmem:[%s4583 + $0x1e0] sm:$0xff]
        %v4645 = vld [vmem:[%s4583 + $0x1e8] sm:$0xff]
        %v4646 = vld [vmem:[%s4583 + $0x1f0] sm:$0xff]
        %v4647 = vld [vmem:[%s4583 + $0x1f8] sm:$0xff]
        %v4650 = vrot.slane %v4582, 7
        %v4651 = vsel %vm2327, %v4650, %v4581
        %4653 = vmatprep.subr.mxu0 %v4645
        %4654 = vmatpush1.msra.mxu0 %v4644
        %4655 = vmatprep.subr.mxu0 %v4641
        %4656 = vmatpush1.msra.mxu0 %v4640
        %4657 = vmatprep.subr.mxu0 %v4637
        %4658 = vmatpush1.msra.mxu0 %v4636
        %4659 = vmatprep.subr.mxu0 %v4633
        %4660 = vmatpush1.msra.mxu0 %v4632
        %4661 = vmatprep.subr.mxu0 %v4629
        %4662 = vmatpush1.msra.mxu0 %v4628
        %4663 = vmatprep.subr.mxu0 %v4625
        %4664 = vmatpush1.msra.mxu0 %v4624
        %4665 = vmatprep.subr.mxu0 %v4621
        %4666 = vmatpush1.msra.mxu0 %v4620
        %4667 = vmatprep.subr.mxu0 %v4617
        %4668 = vmatpush1.msra.mxu0 %v4616
        %4669 = vmatprep.subr.mxu0 %v4613
        %4670 = vmatpush1.msra.mxu0 %v4612
        %4671 = vmatprep.subr.mxu0 %v4609
        %4672 = vmatpush1.msra.mxu0 %v4608
        %4673 = vmatprep.subr.mxu0 %v4605
        %4674 = vmatpush1.msra.mxu0 %v4604
        %4675 = vmatprep.subr.mxu0 %v4601
        %4676 = vmatpush1.msra.mxu0 %v4600
        %4677 = vmatprep.subr.mxu0 %v4597
        %4678 = vmatpush1.msra.mxu0 %v4596
        %4679 = vmatprep.subr.mxu0 %v4593
        %4680 = vmatpush1.msra.mxu0 %v4592
        %4681 = vmatprep.subr.mxu0 %v4589
        %4682 = vmatpush1.msra.mxu0 %v4588
        %4683 = vmatprep.subr.mxu0 %v4585
        %4684 = vmatpush1.msra.mxu0 %v4584
        %4685 = vmatprep.subr.mxu0 0.0
        %4686 = vmatpush2.msra.mxu0 0.0
        %4687 = vmatprep.subr.mxu0 0.0
        %4688 = vmatpush2.msra.mxu0 0.0
        %4689 = vmatprep.subr.mxu0 0.0
        %4690 = vmatpush2.msra.mxu0 0.0
        %4691 = vmatprep.subr.mxu0 0.0
        %4692 = vmatpush2.msra.mxu0 0.0
        %4693 = vmatprep.subr.mxu0 0.0
        %4694 = vmatpush2.msra.mxu0 0.0
        %4695 = vmatprep.subr.mxu0 0.0
        %4696 = vmatpush2.msra.mxu0 0.0
        %4697 = vmatprep.subr.mxu0 0.0
        %4698 = vmatpush2.msra.mxu0 0.0
        %4699 = vmatprep.subr.mxu0 0.0
        %4700 = vmatpush2.msra.mxu0 0.0
        %4701 = vmatprep.subr.mxu0 0.0
        %4702 = vmatpush2.msra.mxu0 0.0
        %4703 = vmatprep.subr.mxu0 0.0
        %4704 = vmatpush2.msra.mxu0 0.0
        %4705 = vmatprep.subr.mxu0 0.0
        %4706 = vmatpush2.msra.mxu0 0.0
        %4707 = vmatprep.subr.mxu0 0.0
        %4708 = vmatpush2.msra.mxu0 0.0
        %4709 = vmatprep.subr.mxu0 0.0
        %4710 = vmatpush2.msra.mxu0 0.0
        %4711 = vmatprep.subr.mxu0 0.0
        %4712 = vmatpush2.msra.mxu0 0.0
        %4713 = vmatprep.subr.mxu0 0.0
        %4714 = vmatpush2.msra.mxu0 0.0
        %4715 = vmatprep.subr.mxu0 0.0
        %4716 = vmatpush2.msra.mxu0 0.0
        %4717 = vmatprep.mubr.f32.mxu0 0.0
        %4718 = vmatmul.mubr.f32.gmra.mxu0 %v4651
        %v4719 = vpop.f32.mrf.mxu0
        %v4720 = vadd.f32 0.0, %v4719
        %v4721 = vpop.f32.mrf.mxu0
        %v4722 = vadd.f32 0.0, %v4721
        %4723 = vdwg.mxu0
        %4724 = vmatprep.subr.mxu0 %v4647
        %4725 = vmatpush1.msra.mxu0 %v4646
        %4726 = vmatprep.subr.mxu0 %v4643
        %4727 = vmatpush1.msra.mxu0 %v4642
        %4728 = vmatprep.subr.mxu0 %v4639
        %4729 = vmatpush1.msra.mxu0 %v4638
        %4730 = vmatprep.subr.mxu0 %v4635
        %4731 = vmatpush1.msra.mxu0 %v4634
        %4732 = vmatprep.subr.mxu0 %v4631
        %4733 = vmatpush1.msra.mxu0 %v4630
        %4734 = vmatprep.subr.mxu0 %v4627
        %4735 = vmatpush1.msra.mxu0 %v4626
        %4736 = vmatprep.subr.mxu0 %v4623
        %4737 = vmatpush1.msra.mxu0 %v4622
        %4738 = vmatprep.subr.mxu0 %v4619
        %4739 = vmatpush1.msra.mxu0 %v4618
        %4740 = vmatprep.subr.mxu0 %v4615
        %4741 = vmatpush1.msra.mxu0 %v4614
        %4742 = vmatprep.subr.mxu0 %v4611
        %4743 = vmatpush1.msra.mxu0 %v4610
        %4744 = vmatprep.subr.mxu0 %v4607
        %4745 = vmatpush1.msra.mxu0 %v4606
        %4746 = vmatprep.subr.mxu0 %v4603
        %4747 = vmatpush1.msra.mxu0 %v4602
        %4748 = vmatprep.subr.mxu0 %v4599
        %4749 = vmatpush1.msra.mxu0 %v4598
        %4750 = vmatprep.subr.mxu0 %v4595
        %4751 = vmatpush1.msra.mxu0 %v4594
        %4752 = vmatprep.subr.mxu0 %v4591
        %4753 = vmatpush1.msra.mxu0 %v4590
        %4754 = vmatprep.subr.mxu0 %v4587
        %4755 = vmatpush1.msra.mxu0 %v4586
        %4756 = vmatprep.subr.mxu0 0.0
        %4757 = vmatpush2.msra.mxu0 0.0
        %4758 = vmatprep.subr.mxu0 0.0
        %4759 = vmatpush2.msra.mxu0 0.0
        %4760 = vmatprep.subr.mxu0 0.0
        %4761 = vmatpush2.msra.mxu0 0.0
        %4762 = vmatprep.subr.mxu0 0.0
        %4763 = vmatpush2.msra.mxu0 0.0
        %4764 = vmatprep.subr.mxu0 0.0
        %4765 = vmatpush2.msra.mxu0 0.0
        %4766 = vmatprep.subr.mxu0 0.0
        %4767 = vmatpush2.msra.mxu0 0.0
        %4768 = vmatprep.subr.mxu0 0.0
        %4769 = vmatpush2.msra.mxu0 0.0
        %4770 = vmatprep.subr.mxu0 0.0
        %4771 = vmatpush2.msra.mxu0 0.0
        %4772 = vmatprep.subr.mxu0 0.0
        %4773 = vmatpush2.msra.mxu0 0.0
        %4774 = vmatprep.subr.mxu0 0.0
        %4775 = vmatpush2.msra.mxu0 0.0
        %4776 = vmatprep.subr.mxu0 0.0
        %4777 = vmatpush2.msra.mxu0 0.0
        %4778 = vmatprep.subr.mxu0 0.0
        %4779 = vmatpush2.msra.mxu0 0.0
        %4780 = vmatprep.subr.mxu0 0.0
        %4781 = vmatpush2.msra.mxu0 0.0
        %4782 = vmatprep.subr.mxu0 0.0
        %4783 = vmatpush2.msra.mxu0 0.0
        %4784 = vmatprep.subr.mxu0 0.0
        %4785 = vmatpush2.msra.mxu0 0.0
        %4786 = vmatprep.subr.mxu0 0.0
        %4787 = vmatpush2.msra.mxu0 0.0
        %4788 = vmatprep.mubr.f32.mxu0 0.0
        %4789 = vmatmul.mubr.f32.gmra.mxu0 %v4651
        %v4790 = vpop.f32.mrf.mxu0
        %v4791 = vadd.f32 0.0, %v4790
        %v4792 = vpop.f32.mrf.mxu0
        %v4793 = vadd.f32 0.0, %v4792
        %4794 = vdwg.mxu0
        %v4795 = vadd.f32 %v4577, %v4720
        %v4796 = vadd.f32 %v4578, %v4722
        %v4797 = vadd.f32 %v4579, %v4791
        %v4798 = vadd.f32 %v4580, %v4793
        %v4799 = vld [vmem:[#allocation5 + $0xc] sm:$0x1]
        %v4800 = vld [vmem:[#allocation5 + $0x1c] sm:$0x1]
        %s4801 = scalar_lea.vmem [#allocation17], 6144
        %v4802 = vld [vmem:[%s4801] sm:$0xff]
        %v4803 = vld [vmem:[%s4801 + $0x8] sm:$0xff]
        %v4804 = vld [vmem:[%s4801 + $0x10] sm:$0xff]
        %v4805 = vld [vmem:[%s4801 + $0x18] sm:$0xff]
        %v4806 = vld [vmem:[%s4801 + $0x20] sm:$0xff]
        %v4807 = vld [vmem:[%s4801 + $0x28] sm:$0xff]
        %v4808 = vld [vmem:[%s4801 + $0x30] sm:$0xff]
        %v4809 = vld [vmem:[%s4801 + $0x38] sm:$0xff]
        %v4810 = vld [vmem:[%s4801 + $0x40] sm:$0xff]
        %v4811 = vld [vmem:[%s4801 + $0x48] sm:$0xff]
        %v4812 = vld [vmem:[%s4801 + $0x50] sm:$0xff]
        %v4813 = vld [vmem:[%s4801 + $0x58] sm:$0xff]
        %v4814 = vld [vmem:[%s4801 + $0x60] sm:$0xff]
        %v4815 = vld [vmem:[%s4801 + $0x68] sm:$0xff]
        %v4816 = vld [vmem:[%s4801 + $0x70] sm:$0xff]
        %v4817 = vld [vmem:[%s4801 + $0x78] sm:$0xff]
        %v4818 = vld [vmem:[%s4801 + $0x80] sm:$0xff]
        %v4819 = vld [vmem:[%s4801 + $0x88] sm:$0xff]
        %v4820 = vld [vmem:[%s4801 + $0x90] sm:$0xff]
        %v4821 = vld [vmem:[%s4801 + $0x98] sm:$0xff]
        %v4822 = vld [vmem:[%s4801 + $0xa0] sm:$0xff]
        %v4823 = vld [vmem:[%s4801 + $0xa8] sm:$0xff]
        %v4824 = vld [vmem:[%s4801 + $0xb0] sm:$0xff]
        %v4825 = vld [vmem:[%s4801 + $0xb8] sm:$0xff]
        %v4826 = vld [vmem:[%s4801 + $0xc0] sm:$0xff]
        %v4827 = vld [vmem:[%s4801 + $0xc8] sm:$0xff]
        %v4828 = vld [vmem:[%s4801 + $0xd0] sm:$0xff]
        %v4829 = vld [vmem:[%s4801 + $0xd8] sm:$0xff]
        %v4830 = vld [vmem:[%s4801 + $0xe0] sm:$0xff]
        %v4831 = vld [vmem:[%s4801 + $0xe8] sm:$0xff]
        %v4832 = vld [vmem:[%s4801 + $0xf0] sm:$0xff]
        %v4833 = vld [vmem:[%s4801 + $0xf8] sm:$0xff]
        %v4834 = vld [vmem:[%s4801 + $0x100] sm:$0xff]
        %v4835 = vld [vmem:[%s4801 + $0x108] sm:$0xff]
        %v4836 = vld [vmem:[%s4801 + $0x110] sm:$0xff]
        %v4837 = vld [vmem:[%s4801 + $0x118] sm:$0xff]
        %v4838 = vld [vmem:[%s4801 + $0x120] sm:$0xff]
        %v4839 = vld [vmem:[%s4801 + $0x128] sm:$0xff]
        %v4840 = vld [vmem:[%s4801 + $0x130] sm:$0xff]
        %v4841 = vld [vmem:[%s4801 + $0x138] sm:$0xff]
        %v4842 = vld [vmem:[%s4801 + $0x140] sm:$0xff]
        %v4843 = vld [vmem:[%s4801 + $0x148] sm:$0xff]
        %v4844 = vld [vmem:[%s4801 + $0x150] sm:$0xff]
        %v4845 = vld [vmem:[%s4801 + $0x158] sm:$0xff]
        %v4846 = vld [vmem:[%s4801 + $0x160] sm:$0xff]
        %v4847 = vld [vmem:[%s4801 + $0x168] sm:$0xff]
        %v4848 = vld [vmem:[%s4801 + $0x170] sm:$0xff]
        %v4849 = vld [vmem:[%s4801 + $0x178] sm:$0xff]
        %v4850 = vld [vmem:[%s4801 + $0x180] sm:$0xff]
        %v4851 = vld [vmem:[%s4801 + $0x188] sm:$0xff]
        %v4852 = vld [vmem:[%s4801 + $0x190] sm:$0xff]
        %v4853 = vld [vmem:[%s4801 + $0x198] sm:$0xff]
        %v4854 = vld [vmem:[%s4801 + $0x1a0] sm:$0xff]
        %v4855 = vld [vmem:[%s4801 + $0x1a8] sm:$0xff]
        %v4856 = vld [vmem:[%s4801 + $0x1b0] sm:$0xff]
        %v4857 = vld [vmem:[%s4801 + $0x1b8] sm:$0xff]
        %v4858 = vld [vmem:[%s4801 + $0x1c0] sm:$0xff]
        %v4859 = vld [vmem:[%s4801 + $0x1c8] sm:$0xff]
        %v4860 = vld [vmem:[%s4801 + $0x1d0] sm:$0xff]
        %v4861 = vld [vmem:[%s4801 + $0x1d8] sm:$0xff]
        %v4862 = vld [vmem:[%s4801 + $0x1e0] sm:$0xff]
        %v4863 = vld [vmem:[%s4801 + $0x1e8] sm:$0xff]
        %v4864 = vld [vmem:[%s4801 + $0x1f0] sm:$0xff]
        %v4865 = vld [vmem:[%s4801 + $0x1f8] sm:$0xff]
        %v4868 = vrot.slane %v4800, 7
        %v4869 = vsel %vm2327, %v4868, %v4799
        %4871 = vmatprep.subr.mxu0 %v4863
        %4872 = vmatpush1.msra.mxu0 %v4862
        %4873 = vmatprep.subr.mxu0 %v4859
        %4874 = vmatpush1.msra.mxu0 %v4858
        %4875 = vmatprep.subr.mxu0 %v4855
        %4876 = vmatpush1.msra.mxu0 %v4854
        %4877 = vmatprep.subr.mxu0 %v4851
        %4878 = vmatpush1.msra.mxu0 %v4850
        %4879 = vmatprep.subr.mxu0 %v4847
        %4880 = vmatpush1.msra.mxu0 %v4846
        %4881 = vmatprep.subr.mxu0 %v4843
        %4882 = vmatpush1.msra.mxu0 %v4842
        %4883 = vmatprep.subr.mxu0 %v4839
        %4884 = vmatpush1.msra.mxu0 %v4838
        %4885 = vmatprep.subr.mxu0 %v4835
        %4886 = vmatpush1.msra.mxu0 %v4834
        %4887 = vmatprep.subr.mxu0 %v4831
        %4888 = vmatpush1.msra.mxu0 %v4830
        %4889 = vmatprep.subr.mxu0 %v4827
        %4890 = vmatpush1.msra.mxu0 %v4826
        %4891 = vmatprep.subr.mxu0 %v4823
        %4892 = vmatpush1.msra.mxu0 %v4822
        %4893 = vmatprep.subr.mxu0 %v4819
        %4894 = vmatpush1.msra.mxu0 %v4818
        %4895 = vmatprep.subr.mxu0 %v4815
        %4896 = vmatpush1.msra.mxu0 %v4814
        %4897 = vmatprep.subr.mxu0 %v4811
        %4898 = vmatpush1.msra.mxu0 %v4810
        %4899 = vmatprep.subr.mxu0 %v4807
        %4900 = vmatpush1.msra.mxu0 %v4806
        %4901 = vmatprep.subr.mxu0 %v4803
        %4902 = vmatpush1.msra.mxu0 %v4802
        %4903 = vmatprep.subr.mxu0 0.0
        %4904 = vmatpush2.msra.mxu0 0.0
        %4905 = vmatprep.subr.mxu0 0.0
        %4906 = vmatpush2.msra.mxu0 0.0
        %4907 = vmatprep.subr.mxu0 0.0
        %4908 = vmatpush2.msra.mxu0 0.0
        %4909 = vmatprep.subr.mxu0 0.0
        %4910 = vmatpush2.msra.mxu0 0.0
        %4911 = vmatprep.subr.mxu0 0.0
        %4912 = vmatpush2.msra.mxu0 0.0
        %4913 = vmatprep.subr.mxu0 0.0
        %4914 = vmatpush2.msra.mxu0 0.0
        %4915 = vmatprep.subr.mxu0 0.0
        %4916 = vmatpush2.msra.mxu0 0.0
        %4917 = vmatprep.subr.mxu0 0.0
        %4918 = vmatpush2.msra.mxu0 0.0
        %4919 = vmatprep.subr.mxu0 0.0
        %4920 = vmatpush2.msra.mxu0 0.0
        %4921 = vmatprep.subr.mxu0 0.0
        %4922 = vmatpush2.msra.mxu0 0.0
        %4923 = vmatprep.subr.mxu0 0.0
        %4924 = vmatpush2.msra.mxu0 0.0
        %4925 = vmatprep.subr.mxu0 0.0
        %4926 = vmatpush2.msra.mxu0 0.0
        %4927 = vmatprep.subr.mxu0 0.0
        %4928 = vmatpush2.msra.mxu0 0.0
        %4929 = vmatprep.subr.mxu0 0.0
        %4930 = vmatpush2.msra.mxu0 0.0
        %4931 = vmatprep.subr.mxu0 0.0
        %4932 = vmatpush2.msra.mxu0 0.0
        %4933 = vmatprep.subr.mxu0 0.0
        %4934 = vmatpush2.msra.mxu0 0.0
        %4935 = vmatprep.mubr.f32.mxu0 0.0
        %4936 = vmatmul.mubr.f32.gmra.mxu0 %v4869
        %v4937 = vpop.f32.mrf.mxu0
        %v4938 = vadd.f32 0.0, %v4937
        %v4939 = vpop.f32.mrf.mxu0
        %v4940 = vadd.f32 0.0, %v4939
        %4941 = vdwg.mxu0
        %4942 = vmatprep.subr.mxu0 %v4865
        %4943 = vmatpush1.msra.mxu0 %v4864
        %4944 = vmatprep.subr.mxu0 %v4861
        %4945 = vmatpush1.msra.mxu0 %v4860
        %4946 = vmatprep.subr.mxu0 %v4857
        %4947 = vmatpush1.msra.mxu0 %v4856
        %4948 = vmatprep.subr.mxu0 %v4853
        %4949 = vmatpush1.msra.mxu0 %v4852
        %4950 = vmatprep.subr.mxu0 %v4849
        %4951 = vmatpush1.msra.mxu0 %v4848
        %4952 = vmatprep.subr.mxu0 %v4845
        %4953 = vmatpush1.msra.mxu0 %v4844
        %4954 = vmatprep.subr.mxu0 %v4841
        %4955 = vmatpush1.msra.mxu0 %v4840
        %4956 = vmatprep.subr.mxu0 %v4837
        %4957 = vmatpush1.msra.mxu0 %v4836
        %4958 = vmatprep.subr.mxu0 %v4833
        %4959 = vmatpush1.msra.mxu0 %v4832
        %4960 = vmatprep.subr.mxu0 %v4829
        %4961 = vmatpush1.msra.mxu0 %v4828
        %4962 = vmatprep.subr.mxu0 %v4825
        %4963 = vmatpush1.msra.mxu0 %v4824
        %4964 = vmatprep.subr.mxu0 %v4821
        %4965 = vmatpush1.msra.mxu0 %v4820
        %4966 = vmatprep.subr.mxu0 %v4817
        %4967 = vmatpush1.msra.mxu0 %v4816
        %4968 = vmatprep.subr.mxu0 %v4813
        %4969 = vmatpush1.msra.mxu0 %v4812
        %4970 = vmatprep.subr.mxu0 %v4809
        %4971 = vmatpush1.msra.mxu0 %v4808
        %4972 = vmatprep.subr.mxu0 %v4805
        %4973 = vmatpush1.msra.mxu0 %v4804
        %4974 = vmatprep.subr.mxu0 0.0
        %4975 = vmatpush2.msra.mxu0 0.0
        %4976 = vmatprep.subr.mxu0 0.0
        %4977 = vmatpush2.msra.mxu0 0.0
        %4978 = vmatprep.subr.mxu0 0.0
        %4979 = vmatpush2.msra.mxu0 0.0
        %4980 = vmatprep.subr.mxu0 0.0
        %4981 = vmatpush2.msra.mxu0 0.0
        %4982 = vmatprep.subr.mxu0 0.0
        %4983 = vmatpush2.msra.mxu0 0.0
        %4984 = vmatprep.subr.mxu0 0.0
        %4985 = vmatpush2.msra.mxu0 0.0
        %4986 = vmatprep.subr.mxu0 0.0
        %4987 = vmatpush2.msra.mxu0 0.0
        %4988 = vmatprep.subr.mxu0 0.0
        %4989 = vmatpush2.msra.mxu0 0.0
        %4990 = vmatprep.subr.mxu0 0.0
        %4991 = vmatpush2.msra.mxu0 0.0
        %4992 = vmatprep.subr.mxu0 0.0
        %4993 = vmatpush2.msra.mxu0 0.0
        %4994 = vmatprep.subr.mxu0 0.0
        %4995 = vmatpush2.msra.mxu0 0.0
        %4996 = vmatprep.subr.mxu0 0.0
        %4997 = vmatpush2.msra.mxu0 0.0
        %4998 = vmatprep.subr.mxu0 0.0
        %4999 = vmatpush2.msra.mxu0 0.0
        %5000 = vmatprep.subr.mxu0 0.0
        %5001 = vmatpush2.msra.mxu0 0.0
        %5002 = vmatprep.subr.mxu0 0.0
        %5003 = vmatpush2.msra.mxu0 0.0
        %5004 = vmatprep.subr.mxu0 0.0
        %5005 = vmatpush2.msra.mxu0 0.0
        %5006 = vmatprep.mubr.f32.mxu0 0.0
        %5007 = vmatmul.mubr.f32.gmra.mxu0 %v4869
        %v5008 = vpop.f32.mrf.mxu0
        %v5009 = vadd.f32 0.0, %v5008
        %v5010 = vpop.f32.mrf.mxu0
        %v5011 = vadd.f32 0.0, %v5010
        %5012 = vdwg.mxu0
        %v5013 = vadd.f32 %v4795, %v4938
        %v5014 = vadd.f32 %v4796, %v4940
        %v5015 = vadd.f32 %v4797, %v5009
        %v5016 = vadd.f32 %v4798, %v5011
        %v5017 = vld [vmem:[#allocation5 + $0xd] sm:$0x1]
        %v5018 = vld [vmem:[#allocation5 + $0x1d] sm:$0x1]
        %s5019 = scalar_lea.vmem [#allocation17], 6656
        %v5020 = vld [vmem:[%s5019] sm:$0xff]
        %v5021 = vld [vmem:[%s5019 + $0x8] sm:$0xff]
        %v5022 = vld [vmem:[%s5019 + $0x10] sm:$0xff]
        %v5023 = vld [vmem:[%s5019 + $0x18] sm:$0xff]
        %v5024 = vld [vmem:[%s5019 + $0x20] sm:$0xff]
        %v5025 = vld [vmem:[%s5019 + $0x28] sm:$0xff]
        %v5026 = vld [vmem:[%s5019 + $0x30] sm:$0xff]
        %v5027 = vld [vmem:[%s5019 + $0x38] sm:$0xff]
        %v5028 = vld [vmem:[%s5019 + $0x40] sm:$0xff]
        %v5029 = vld [vmem:[%s5019 + $0x48] sm:$0xff]
        %v5030 = vld [vmem:[%s5019 + $0x50] sm:$0xff]
        %v5031 = vld [vmem:[%s5019 + $0x58] sm:$0xff]
        %v5032 = vld [vmem:[%s5019 + $0x60] sm:$0xff]
        %v5033 = vld [vmem:[%s5019 + $0x68] sm:$0xff]
        %v5034 = vld [vmem:[%s5019 + $0x70] sm:$0xff]
        %v5035 = vld [vmem:[%s5019 + $0x78] sm:$0xff]
        %v5036 = vld [vmem:[%s5019 + $0x80] sm:$0xff]
        %v5037 = vld [vmem:[%s5019 + $0x88] sm:$0xff]
        %v5038 = vld [vmem:[%s5019 + $0x90] sm:$0xff]
        %v5039 = vld [vmem:[%s5019 + $0x98] sm:$0xff]
        %v5040 = vld [vmem:[%s5019 + $0xa0] sm:$0xff]
        %v5041 = vld [vmem:[%s5019 + $0xa8] sm:$0xff]
        %v5042 = vld [vmem:[%s5019 + $0xb0] sm:$0xff]
        %v5043 = vld [vmem:[%s5019 + $0xb8] sm:$0xff]
        %v5044 = vld [vmem:[%s5019 + $0xc0] sm:$0xff]
        %v5045 = vld [vmem:[%s5019 + $0xc8] sm:$0xff]
        %v5046 = vld [vmem:[%s5019 + $0xd0] sm:$0xff]
        %v5047 = vld [vmem:[%s5019 + $0xd8] sm:$0xff]
        %v5048 = vld [vmem:[%s5019 + $0xe0] sm:$0xff]
        %v5049 = vld [vmem:[%s5019 + $0xe8] sm:$0xff]
        %v5050 = vld [vmem:[%s5019 + $0xf0] sm:$0xff]
        %v5051 = vld [vmem:[%s5019 + $0xf8] sm:$0xff]
        %v5052 = vld [vmem:[%s5019 + $0x100] sm:$0xff]
        %v5053 = vld [vmem:[%s5019 + $0x108] sm:$0xff]
        %v5054 = vld [vmem:[%s5019 + $0x110] sm:$0xff]
        %v5055 = vld [vmem:[%s5019 + $0x118] sm:$0xff]
        %v5056 = vld [vmem:[%s5019 + $0x120] sm:$0xff]
        %v5057 = vld [vmem:[%s5019 + $0x128] sm:$0xff]
        %v5058 = vld [vmem:[%s5019 + $0x130] sm:$0xff]
        %v5059 = vld [vmem:[%s5019 + $0x138] sm:$0xff]
        %v5060 = vld [vmem:[%s5019 + $0x140] sm:$0xff]
        %v5061 = vld [vmem:[%s5019 + $0x148] sm:$0xff]
        %v5062 = vld [vmem:[%s5019 + $0x150] sm:$0xff]
        %v5063 = vld [vmem:[%s5019 + $0x158] sm:$0xff]
        %v5064 = vld [vmem:[%s5019 + $0x160] sm:$0xff]
        %v5065 = vld [vmem:[%s5019 + $0x168] sm:$0xff]
        %v5066 = vld [vmem:[%s5019 + $0x170] sm:$0xff]
        %v5067 = vld [vmem:[%s5019 + $0x178] sm:$0xff]
        %v5068 = vld [vmem:[%s5019 + $0x180] sm:$0xff]
        %v5069 = vld [vmem:[%s5019 + $0x188] sm:$0xff]
        %v5070 = vld [vmem:[%s5019 + $0x190] sm:$0xff]
        %v5071 = vld [vmem:[%s5019 + $0x198] sm:$0xff]
        %v5072 = vld [vmem:[%s5019 + $0x1a0] sm:$0xff]
        %v5073 = vld [vmem:[%s5019 + $0x1a8] sm:$0xff]
        %v5074 = vld [vmem:[%s5019 + $0x1b0] sm:$0xff]
        %v5075 = vld [vmem:[%s5019 + $0x1b8] sm:$0xff]
        %v5076 = vld [vmem:[%s5019 + $0x1c0] sm:$0xff]
        %v5077 = vld [vmem:[%s5019 + $0x1c8] sm:$0xff]
        %v5078 = vld [vmem:[%s5019 + $0x1d0] sm:$0xff]
        %v5079 = vld [vmem:[%s5019 + $0x1d8] sm:$0xff]
        %v5080 = vld [vmem:[%s5019 + $0x1e0] sm:$0xff]
        %v5081 = vld [vmem:[%s5019 + $0x1e8] sm:$0xff]
        %v5082 = vld [vmem:[%s5019 + $0x1f0] sm:$0xff]
        %v5083 = vld [vmem:[%s5019 + $0x1f8] sm:$0xff]
        %v5086 = vrot.slane %v5018, 7
        %v5087 = vsel %vm2327, %v5086, %v5017
        %5089 = vmatprep.subr.mxu0 %v5081
        %5090 = vmatpush1.msra.mxu0 %v5080
        %5091 = vmatprep.subr.mxu0 %v5077
        %5092 = vmatpush1.msra.mxu0 %v5076
        %5093 = vmatprep.subr.mxu0 %v5073
        %5094 = vmatpush1.msra.mxu0 %v5072
        %5095 = vmatprep.subr.mxu0 %v5069
        %5096 = vmatpush1.msra.mxu0 %v5068
        %5097 = vmatprep.subr.mxu0 %v5065
        %5098 = vmatpush1.msra.mxu0 %v5064
        %5099 = vmatprep.subr.mxu0 %v5061
        %5100 = vmatpush1.msra.mxu0 %v5060
        %5101 = vmatprep.subr.mxu0 %v5057
        %5102 = vmatpush1.msra.mxu0 %v5056
        %5103 = vmatprep.subr.mxu0 %v5053
        %5104 = vmatpush1.msra.mxu0 %v5052
        %5105 = vmatprep.subr.mxu0 %v5049
        %5106 = vmatpush1.msra.mxu0 %v5048
        %5107 = vmatprep.subr.mxu0 %v5045
        %5108 = vmatpush1.msra.mxu0 %v5044
        %5109 = vmatprep.subr.mxu0 %v5041
        %5110 = vmatpush1.msra.mxu0 %v5040
        %5111 = vmatprep.subr.mxu0 %v5037
        %5112 = vmatpush1.msra.mxu0 %v5036
        %5113 = vmatprep.subr.mxu0 %v5033
        %5114 = vmatpush1.msra.mxu0 %v5032
        %5115 = vmatprep.subr.mxu0 %v5029
        %5116 = vmatpush1.msra.mxu0 %v5028
        %5117 = vmatprep.subr.mxu0 %v5025
        %5118 = vmatpush1.msra.mxu0 %v5024
        %5119 = vmatprep.subr.mxu0 %v5021
        %5120 = vmatpush1.msra.mxu0 %v5020
        %5121 = vmatprep.subr.mxu0 0.0
        %5122 = vmatpush2.msra.mxu0 0.0
        %5123 = vmatprep.subr.mxu0 0.0
        %5124 = vmatpush2.msra.mxu0 0.0
        %5125 = vmatprep.subr.mxu0 0.0
        %5126 = vmatpush2.msra.mxu0 0.0
        %5127 = vmatprep.subr.mxu0 0.0
        %5128 = vmatpush2.msra.mxu0 0.0
        %5129 = vmatprep.subr.mxu0 0.0
        %5130 = vmatpush2.msra.mxu0 0.0
        %5131 = vmatprep.subr.mxu0 0.0
        %5132 = vmatpush2.msra.mxu0 0.0
        %5133 = vmatprep.subr.mxu0 0.0
        %5134 = vmatpush2.msra.mxu0 0.0
        %5135 = vmatprep.subr.mxu0 0.0
        %5136 = vmatpush2.msra.mxu0 0.0
        %5137 = vmatprep.subr.mxu0 0.0
        %5138 = vmatpush2.msra.mxu0 0.0
        %5139 = vmatprep.subr.mxu0 0.0
        %5140 = vmatpush2.msra.mxu0 0.0
        %5141 = vmatprep.subr.mxu0 0.0
        %5142 = vmatpush2.msra.mxu0 0.0
        %5143 = vmatprep.subr.mxu0 0.0
        %5144 = vmatpush2.msra.mxu0 0.0
        %5145 = vmatprep.subr.mxu0 0.0
        %5146 = vmatpush2.msra.mxu0 0.0
        %5147 = vmatprep.subr.mxu0 0.0
        %5148 = vmatpush2.msra.mxu0 0.0
        %5149 = vmatprep.subr.mxu0 0.0
        %5150 = vmatpush2.msra.mxu0 0.0
        %5151 = vmatprep.subr.mxu0 0.0
        %5152 = vmatpush2.msra.mxu0 0.0
        %5153 = vmatprep.mubr.f32.mxu0 0.0
        %5154 = vmatmul.mubr.f32.gmra.mxu0 %v5087
        %v5155 = vpop.f32.mrf.mxu0
        %v5156 = vadd.f32 0.0, %v5155
        %v5157 = vpop.f32.mrf.mxu0
        %v5158 = vadd.f32 0.0, %v5157
        %5159 = vdwg.mxu0
        %5160 = vmatprep.subr.mxu0 %v5083
        %5161 = vmatpush1.msra.mxu0 %v5082
        %5162 = vmatprep.subr.mxu0 %v5079
        %5163 = vmatpush1.msra.mxu0 %v5078
        %5164 = vmatprep.subr.mxu0 %v5075
        %5165 = vmatpush1.msra.mxu0 %v5074
        %5166 = vmatprep.subr.mxu0 %v5071
        %5167 = vmatpush1.msra.mxu0 %v5070
        %5168 = vmatprep.subr.mxu0 %v5067
        %5169 = vmatpush1.msra.mxu0 %v5066
        %5170 = vmatprep.subr.mxu0 %v5063
        %5171 = vmatpush1.msra.mxu0 %v5062
        %5172 = vmatprep.subr.mxu0 %v5059
        %5173 = vmatpush1.msra.mxu0 %v5058
        %5174 = vmatprep.subr.mxu0 %v5055
        %5175 = vmatpush1.msra.mxu0 %v5054
        %5176 = vmatprep.subr.mxu0 %v5051
        %5177 = vmatpush1.msra.mxu0 %v5050
        %5178 = vmatprep.subr.mxu0 %v5047
        %5179 = vmatpush1.msra.mxu0 %v5046
        %5180 = vmatprep.subr.mxu0 %v5043
        %5181 = vmatpush1.msra.mxu0 %v5042
        %5182 = vmatprep.subr.mxu0 %v5039
        %5183 = vmatpush1.msra.mxu0 %v5038
        %5184 = vmatprep.subr.mxu0 %v5035
        %5185 = vmatpush1.msra.mxu0 %v5034
        %5186 = vmatprep.subr.mxu0 %v5031
        %5187 = vmatpush1.msra.mxu0 %v5030
        %5188 = vmatprep.subr.mxu0 %v5027
        %5189 = vmatpush1.msra.mxu0 %v5026
        %5190 = vmatprep.subr.mxu0 %v5023
        %5191 = vmatpush1.msra.mxu0 %v5022
        %5192 = vmatprep.subr.mxu0 0.0
        %5193 = vmatpush2.msra.mxu0 0.0
        %5194 = vmatprep.subr.mxu0 0.0
        %5195 = vmatpush2.msra.mxu0 0.0
        %5196 = vmatprep.subr.mxu0 0.0
        %5197 = vmatpush2.msra.mxu0 0.0
        %5198 = vmatprep.subr.mxu0 0.0
        %5199 = vmatpush2.msra.mxu0 0.0
        %5200 = vmatprep.subr.mxu0 0.0
        %5201 = vmatpush2.msra.mxu0 0.0
        %5202 = vmatprep.subr.mxu0 0.0
        %5203 = vmatpush2.msra.mxu0 0.0
        %5204 = vmatprep.subr.mxu0 0.0
        %5205 = vmatpush2.msra.mxu0 0.0
        %5206 = vmatprep.subr.mxu0 0.0
        %5207 = vmatpush2.msra.mxu0 0.0
        %5208 = vmatprep.subr.mxu0 0.0
        %5209 = vmatpush2.msra.mxu0 0.0
        %5210 = vmatprep.subr.mxu0 0.0
        %5211 = vmatpush2.msra.mxu0 0.0
        %5212 = vmatprep.subr.mxu0 0.0
        %5213 = vmatpush2.msra.mxu0 0.0
        %5214 = vmatprep.subr.mxu0 0.0
        %5215 = vmatpush2.msra.mxu0 0.0
        %5216 = vmatprep.subr.mxu0 0.0
        %5217 = vmatpush2.msra.mxu0 0.0
        %5218 = vmatprep.subr.mxu0 0.0
        %5219 = vmatpush2.msra.mxu0 0.0
        %5220 = vmatprep.subr.mxu0 0.0
        %5221 = vmatpush2.msra.mxu0 0.0
        %5222 = vmatprep.subr.mxu0 0.0
        %5223 = vmatpush2.msra.mxu0 0.0
        %5224 = vmatprep.mubr.f32.mxu0 0.0
        %5225 = vmatmul.mubr.f32.gmra.mxu0 %v5087
        %v5226 = vpop.f32.mrf.mxu0
        %v5227 = vadd.f32 0.0, %v5226
        %v5228 = vpop.f32.mrf.mxu0
        %v5229 = vadd.f32 0.0, %v5228
        %5230 = vdwg.mxu0
        %v5231 = vadd.f32 %v5013, %v5156
        %v5232 = vadd.f32 %v5014, %v5158
        %v5233 = vadd.f32 %v5015, %v5227
        %v5234 = vadd.f32 %v5016, %v5229
        %v5235 = vld [vmem:[#allocation5 + $0xe] sm:$0x1]
        %v5236 = vld [vmem:[#allocation5 + $0x1e] sm:$0x1]
        %s5237 = scalar_lea.vmem [#allocation17], 7168
        %v5238 = vld [vmem:[%s5237] sm:$0xff]
        %v5239 = vld [vmem:[%s5237 + $0x8] sm:$0xff]
        %v5240 = vld [vmem:[%s5237 + $0x10] sm:$0xff]
        %v5241 = vld [vmem:[%s5237 + $0x18] sm:$0xff]
        %v5242 = vld [vmem:[%s5237 + $0x20] sm:$0xff]
        %v5243 = vld [vmem:[%s5237 + $0x28] sm:$0xff]
        %v5244 = vld [vmem:[%s5237 + $0x30] sm:$0xff]
        %v5245 = vld [vmem:[%s5237 + $0x38] sm:$0xff]
        %v5246 = vld [vmem:[%s5237 + $0x40] sm:$0xff]
        %v5247 = vld [vmem:[%s5237 + $0x48] sm:$0xff]
        %v5248 = vld [vmem:[%s5237 + $0x50] sm:$0xff]
        %v5249 = vld [vmem:[%s5237 + $0x58] sm:$0xff]
        %v5250 = vld [vmem:[%s5237 + $0x60] sm:$0xff]
        %v5251 = vld [vmem:[%s5237 + $0x68] sm:$0xff]
        %v5252 = vld [vmem:[%s5237 + $0x70] sm:$0xff]
        %v5253 = vld [vmem:[%s5237 + $0x78] sm:$0xff]
        %v5254 = vld [vmem:[%s5237 + $0x80] sm:$0xff]
        %v5255 = vld [vmem:[%s5237 + $0x88] sm:$0xff]
        %v5256 = vld [vmem:[%s5237 + $0x90] sm:$0xff]
        %v5257 = vld [vmem:[%s5237 + $0x98] sm:$0xff]
        %v5258 = vld [vmem:[%s5237 + $0xa0] sm:$0xff]
        %v5259 = vld [vmem:[%s5237 + $0xa8] sm:$0xff]
        %v5260 = vld [vmem:[%s5237 + $0xb0] sm:$0xff]
        %v5261 = vld [vmem:[%s5237 + $0xb8] sm:$0xff]
        %v5262 = vld [vmem:[%s5237 + $0xc0] sm:$0xff]
        %v5263 = vld [vmem:[%s5237 + $0xc8] sm:$0xff]
        %v5264 = vld [vmem:[%s5237 + $0xd0] sm:$0xff]
        %v5265 = vld [vmem:[%s5237 + $0xd8] sm:$0xff]
        %v5266 = vld [vmem:[%s5237 + $0xe0] sm:$0xff]
        %v5267 = vld [vmem:[%s5237 + $0xe8] sm:$0xff]
        %v5268 = vld [vmem:[%s5237 + $0xf0] sm:$0xff]
        %v5269 = vld [vmem:[%s5237 + $0xf8] sm:$0xff]
        %v5270 = vld [vmem:[%s5237 + $0x100] sm:$0xff]
        %v5271 = vld [vmem:[%s5237 + $0x108] sm:$0xff]
        %v5272 = vld [vmem:[%s5237 + $0x110] sm:$0xff]
        %v5273 = vld [vmem:[%s5237 + $0x118] sm:$0xff]
        %v5274 = vld [vmem:[%s5237 + $0x120] sm:$0xff]
        %v5275 = vld [vmem:[%s5237 + $0x128] sm:$0xff]
        %v5276 = vld [vmem:[%s5237 + $0x130] sm:$0xff]
        %v5277 = vld [vmem:[%s5237 + $0x138] sm:$0xff]
        %v5278 = vld [vmem:[%s5237 + $0x140] sm:$0xff]
        %v5279 = vld [vmem:[%s5237 + $0x148] sm:$0xff]
        %v5280 = vld [vmem:[%s5237 + $0x150] sm:$0xff]
        %v5281 = vld [vmem:[%s5237 + $0x158] sm:$0xff]
        %v5282 = vld [vmem:[%s5237 + $0x160] sm:$0xff]
        %v5283 = vld [vmem:[%s5237 + $0x168] sm:$0xff]
        %v5284 = vld [vmem:[%s5237 + $0x170] sm:$0xff]
        %v5285 = vld [vmem:[%s5237 + $0x178] sm:$0xff]
        %v5286 = vld [vmem:[%s5237 + $0x180] sm:$0xff]
        %v5287 = vld [vmem:[%s5237 + $0x188] sm:$0xff]
        %v5288 = vld [vmem:[%s5237 + $0x190] sm:$0xff]
        %v5289 = vld [vmem:[%s5237 + $0x198] sm:$0xff]
        %v5290 = vld [vmem:[%s5237 + $0x1a0] sm:$0xff]
        %v5291 = vld [vmem:[%s5237 + $0x1a8] sm:$0xff]
        %v5292 = vld [vmem:[%s5237 + $0x1b0] sm:$0xff]
        %v5293 = vld [vmem:[%s5237 + $0x1b8] sm:$0xff]
        %v5294 = vld [vmem:[%s5237 + $0x1c0] sm:$0xff]
        %v5295 = vld [vmem:[%s5237 + $0x1c8] sm:$0xff]
        %v5296 = vld [vmem:[%s5237 + $0x1d0] sm:$0xff]
        %v5297 = vld [vmem:[%s5237 + $0x1d8] sm:$0xff]
        %v5298 = vld [vmem:[%s5237 + $0x1e0] sm:$0xff]
        %v5299 = vld [vmem:[%s5237 + $0x1e8] sm:$0xff]
        %v5300 = vld [vmem:[%s5237 + $0x1f0] sm:$0xff]
        %v5301 = vld [vmem:[%s5237 + $0x1f8] sm:$0xff]
        %v5304 = vrot.slane %v5236, 7
        %v5305 = vsel %vm2327, %v5304, %v5235
        %5307 = vmatprep.subr.mxu0 %v5299
        %5308 = vmatpush1.msra.mxu0 %v5298
        %5309 = vmatprep.subr.mxu0 %v5295
        %5310 = vmatpush1.msra.mxu0 %v5294
        %5311 = vmatprep.subr.mxu0 %v5291
        %5312 = vmatpush1.msra.mxu0 %v5290
        %5313 = vmatprep.subr.mxu0 %v5287
        %5314 = vmatpush1.msra.mxu0 %v5286
        %5315 = vmatprep.subr.mxu0 %v5283
        %5316 = vmatpush1.msra.mxu0 %v5282
        %5317 = vmatprep.subr.mxu0 %v5279
        %5318 = vmatpush1.msra.mxu0 %v5278
        %5319 = vmatprep.subr.mxu0 %v5275
        %5320 = vmatpush1.msra.mxu0 %v5274
        %5321 = vmatprep.subr.mxu0 %v5271
        %5322 = vmatpush1.msra.mxu0 %v5270
        %5323 = vmatprep.subr.mxu0 %v5267
        %5324 = vmatpush1.msra.mxu0 %v5266
        %5325 = vmatprep.subr.mxu0 %v5263
        %5326 = vmatpush1.msra.mxu0 %v5262
        %5327 = vmatprep.subr.mxu0 %v5259
        %5328 = vmatpush1.msra.mxu0 %v5258
        %5329 = vmatprep.subr.mxu0 %v5255
        %5330 = vmatpush1.msra.mxu0 %v5254
        %5331 = vmatprep.subr.mxu0 %v5251
        %5332 = vmatpush1.msra.mxu0 %v5250
        %5333 = vmatprep.subr.mxu0 %v5247
        %5334 = vmatpush1.msra.mxu0 %v5246
        %5335 = vmatprep.subr.mxu0 %v5243
        %5336 = vmatpush1.msra.mxu0 %v5242
        %5337 = vmatprep.subr.mxu0 %v5239
        %5338 = vmatpush1.msra.mxu0 %v5238
        %5339 = vmatprep.subr.mxu0 0.0
        %5340 = vmatpush2.msra.mxu0 0.0
        %5341 = vmatprep.subr.mxu0 0.0
        %5342 = vmatpush2.msra.mxu0 0.0
        %5343 = vmatprep.subr.mxu0 0.0
        %5344 = vmatpush2.msra.mxu0 0.0
        %5345 = vmatprep.subr.mxu0 0.0
        %5346 = vmatpush2.msra.mxu0 0.0
        %5347 = vmatprep.subr.mxu0 0.0
        %5348 = vmatpush2.msra.mxu0 0.0
        %5349 = vmatprep.subr.mxu0 0.0
        %5350 = vmatpush2.msra.mxu0 0.0
        %5351 = vmatprep.subr.mxu0 0.0
        %5352 = vmatpush2.msra.mxu0 0.0
        %5353 = vmatprep.subr.mxu0 0.0
        %5354 = vmatpush2.msra.mxu0 0.0
        %5355 = vmatprep.subr.mxu0 0.0
        %5356 = vmatpush2.msra.mxu0 0.0
        %5357 = vmatprep.subr.mxu0 0.0
        %5358 = vmatpush2.msra.mxu0 0.0
        %5359 = vmatprep.subr.mxu0 0.0
        %5360 = vmatpush2.msra.mxu0 0.0
        %5361 = vmatprep.subr.mxu0 0.0
        %5362 = vmatpush2.msra.mxu0 0.0
        %5363 = vmatprep.subr.mxu0 0.0
        %5364 = vmatpush2.msra.mxu0 0.0
        %5365 = vmatprep.subr.mxu0 0.0
        %5366 = vmatpush2.msra.mxu0 0.0
        %5367 = vmatprep.subr.mxu0 0.0
        %5368 = vmatpush2.msra.mxu0 0.0
        %5369 = vmatprep.subr.mxu0 0.0
        %5370 = vmatpush2.msra.mxu0 0.0
        %5371 = vmatprep.mubr.f32.mxu0 0.0
        %5372 = vmatmul.mubr.f32.gmra.mxu0 %v5305
        %v5373 = vpop.f32.mrf.mxu0
        %v5374 = vadd.f32 0.0, %v5373
        %v5375 = vpop.f32.mrf.mxu0
        %v5376 = vadd.f32 0.0, %v5375
        %5377 = vdwg.mxu0
        %5378 = vmatprep.subr.mxu0 %v5301
        %5379 = vmatpush1.msra.mxu0 %v5300
        %5380 = vmatprep.subr.mxu0 %v5297
        %5381 = vmatpush1.msra.mxu0 %v5296
        %5382 = vmatprep.subr.mxu0 %v5293
        %5383 = vmatpush1.msra.mxu0 %v5292
        %5384 = vmatprep.subr.mxu0 %v5289
        %5385 = vmatpush1.msra.mxu0 %v5288
        %5386 = vmatprep.subr.mxu0 %v5285
        %5387 = vmatpush1.msra.mxu0 %v5284
        %5388 = vmatprep.subr.mxu0 %v5281
        %5389 = vmatpush1.msra.mxu0 %v5280
        %5390 = vmatprep.subr.mxu0 %v5277
        %5391 = vmatpush1.msra.mxu0 %v5276
        %5392 = vmatprep.subr.mxu0 %v5273
        %5393 = vmatpush1.msra.mxu0 %v5272
        %5394 = vmatprep.subr.mxu0 %v5269
        %5395 = vmatpush1.msra.mxu0 %v5268
        %5396 = vmatprep.subr.mxu0 %v5265
        %5397 = vmatpush1.msra.mxu0 %v5264
        %5398 = vmatprep.subr.mxu0 %v5261
        %5399 = vmatpush1.msra.mxu0 %v5260
        %5400 = vmatprep.subr.mxu0 %v5257
        %5401 = vmatpush1.msra.mxu0 %v5256
        %5402 = vmatprep.subr.mxu0 %v5253
        %5403 = vmatpush1.msra.mxu0 %v5252
        %5404 = vmatprep.subr.mxu0 %v5249
        %5405 = vmatpush1.msra.mxu0 %v5248
        %5406 = vmatprep.subr.mxu0 %v5245
        %5407 = vmatpush1.msra.mxu0 %v5244
        %5408 = vmatprep.subr.mxu0 %v5241
        %5409 = vmatpush1.msra.mxu0 %v5240
        %5410 = vmatprep.subr.mxu0 0.0
        %5411 = vmatpush2.msra.mxu0 0.0
        %5412 = vmatprep.subr.mxu0 0.0
        %5413 = vmatpush2.msra.mxu0 0.0
        %5414 = vmatprep.subr.mxu0 0.0
        %5415 = vmatpush2.msra.mxu0 0.0
        %5416 = vmatprep.subr.mxu0 0.0
        %5417 = vmatpush2.msra.mxu0 0.0
        %5418 = vmatprep.subr.mxu0 0.0
        %5419 = vmatpush2.msra.mxu0 0.0
        %5420 = vmatprep.subr.mxu0 0.0
        %5421 = vmatpush2.msra.mxu0 0.0
        %5422 = vmatprep.subr.mxu0 0.0
        %5423 = vmatpush2.msra.mxu0 0.0
        %5424 = vmatprep.subr.mxu0 0.0
        %5425 = vmatpush2.msra.mxu0 0.0
        %5426 = vmatprep.subr.mxu0 0.0
        %5427 = vmatpush2.msra.mxu0 0.0
        %5428 = vmatprep.subr.mxu0 0.0
        %5429 = vmatpush2.msra.mxu0 0.0
        %5430 = vmatprep.subr.mxu0 0.0
        %5431 = vmatpush2.msra.mxu0 0.0
        %5432 = vmatprep.subr.mxu0 0.0
        %5433 = vmatpush2.msra.mxu0 0.0
        %5434 = vmatprep.subr.mxu0 0.0
        %5435 = vmatpush2.msra.mxu0 0.0
        %5436 = vmatprep.subr.mxu0 0.0
        %5437 = vmatpush2.msra.mxu0 0.0
        %5438 = vmatprep.subr.mxu0 0.0
        %5439 = vmatpush2.msra.mxu0 0.0
        %5440 = vmatprep.subr.mxu0 0.0
        %5441 = vmatpush2.msra.mxu0 0.0
        %5442 = vmatprep.mubr.f32.mxu0 0.0
        %5443 = vmatmul.mubr.f32.gmra.mxu0 %v5305
        %v5444 = vpop.f32.mrf.mxu0
        %v5445 = vadd.f32 0.0, %v5444
        %v5446 = vpop.f32.mrf.mxu0
        %v5447 = vadd.f32 0.0, %v5446
        %5448 = vdwg.mxu0
        %v5449 = vadd.f32 %v5231, %v5374
        %v5450 = vadd.f32 %v5232, %v5376
        %v5451 = vadd.f32 %v5233, %v5445
        %v5452 = vadd.f32 %v5234, %v5447
        %v5453 = vld [vmem:[#allocation5 + $0xf] sm:$0x1]
        %v5454 = vld [vmem:[#allocation5 + $0x1f] sm:$0x1]
        %s5455 = scalar_lea.vmem [#allocation17], 7680
        %v5456 = vld [vmem:[%s5455] sm:$0xff]
        %v5457 = vld [vmem:[%s5455 + $0x8] sm:$0xff]
        %v5458 = vld [vmem:[%s5455 + $0x10] sm:$0xff]
        %v5459 = vld [vmem:[%s5455 + $0x18] sm:$0xff]
        %v5460 = vld [vmem:[%s5455 + $0x20] sm:$0xff]
        %v5461 = vld [vmem:[%s5455 + $0x28] sm:$0xff]
        %v5462 = vld [vmem:[%s5455 + $0x30] sm:$0xff]
        %v5463 = vld [vmem:[%s5455 + $0x38] sm:$0xff]
        %v5464 = vld [vmem:[%s5455 + $0x40] sm:$0xff]
        %v5465 = vld [vmem:[%s5455 + $0x48] sm:$0xff]
        %v5466 = vld [vmem:[%s5455 + $0x50] sm:$0xff]
        %v5467 = vld [vmem:[%s5455 + $0x58] sm:$0xff]
        %v5468 = vld [vmem:[%s5455 + $0x60] sm:$0xff]
        %v5469 = vld [vmem:[%s5455 + $0x68] sm:$0xff]
        %v5470 = vld [vmem:[%s5455 + $0x70] sm:$0xff]
        %v5471 = vld [vmem:[%s5455 + $0x78] sm:$0xff]
        %v5472 = vld [vmem:[%s5455 + $0x80] sm:$0xff]
        %v5473 = vld [vmem:[%s5455 + $0x88] sm:$0xff]
        %v5474 = vld [vmem:[%s5455 + $0x90] sm:$0xff]
        %v5475 = vld [vmem:[%s5455 + $0x98] sm:$0xff]
        %v5476 = vld [vmem:[%s5455 + $0xa0] sm:$0xff]
        %v5477 = vld [vmem:[%s5455 + $0xa8] sm:$0xff]
        %v5478 = vld [vmem:[%s5455 + $0xb0] sm:$0xff]
        %v5479 = vld [vmem:[%s5455 + $0xb8] sm:$0xff]
        %v5480 = vld [vmem:[%s5455 + $0xc0] sm:$0xff]
        %v5481 = vld [vmem:[%s5455 + $0xc8] sm:$0xff]
        %v5482 = vld [vmem:[%s5455 + $0xd0] sm:$0xff]
        %v5483 = vld [vmem:[%s5455 + $0xd8] sm:$0xff]
        %v5484 = vld [vmem:[%s5455 + $0xe0] sm:$0xff]
        %v5485 = vld [vmem:[%s5455 + $0xe8] sm:$0xff]
        %v5486 = vld [vmem:[%s5455 + $0xf0] sm:$0xff]
        %v5487 = vld [vmem:[%s5455 + $0xf8] sm:$0xff]
        %v5488 = vld [vmem:[%s5455 + $0x100] sm:$0xff]
        %v5489 = vld [vmem:[%s5455 + $0x108] sm:$0xff]
        %v5490 = vld [vmem:[%s5455 + $0x110] sm:$0xff]
        %v5491 = vld [vmem:[%s5455 + $0x118] sm:$0xff]
        %v5492 = vld [vmem:[%s5455 + $0x120] sm:$0xff]
        %v5493 = vld [vmem:[%s5455 + $0x128] sm:$0xff]
        %v5494 = vld [vmem:[%s5455 + $0x130] sm:$0xff]
        %v5495 = vld [vmem:[%s5455 + $0x138] sm:$0xff]
        %v5496 = vld [vmem:[%s5455 + $0x140] sm:$0xff]
        %v5497 = vld [vmem:[%s5455 + $0x148] sm:$0xff]
        %v5498 = vld [vmem:[%s5455 + $0x150] sm:$0xff]
        %v5499 = vld [vmem:[%s5455 + $0x158] sm:$0xff]
        %v5500 = vld [vmem:[%s5455 + $0x160] sm:$0xff]
        %v5501 = vld [vmem:[%s5455 + $0x168] sm:$0xff]
        %v5502 = vld [vmem:[%s5455 + $0x170] sm:$0xff]
        %v5503 = vld [vmem:[%s5455 + $0x178] sm:$0xff]
        %v5504 = vld [vmem:[%s5455 + $0x180] sm:$0xff]
        %v5505 = vld [vmem:[%s5455 + $0x188] sm:$0xff]
        %v5506 = vld [vmem:[%s5455 + $0x190] sm:$0xff]
        %v5507 = vld [vmem:[%s5455 + $0x198] sm:$0xff]
        %v5508 = vld [vmem:[%s5455 + $0x1a0] sm:$0xff]
        %v5509 = vld [vmem:[%s5455 + $0x1a8] sm:$0xff]
        %v5510 = vld [vmem:[%s5455 + $0x1b0] sm:$0xff]
        %v5511 = vld [vmem:[%s5455 + $0x1b8] sm:$0xff]
        %v5512 = vld [vmem:[%s5455 + $0x1c0] sm:$0xff]
        %v5513 = vld [vmem:[%s5455 + $0x1c8] sm:$0xff]
        %v5514 = vld [vmem:[%s5455 + $0x1d0] sm:$0xff]
        %v5515 = vld [vmem:[%s5455 + $0x1d8] sm:$0xff]
        %v5516 = vld [vmem:[%s5455 + $0x1e0] sm:$0xff]
        %v5517 = vld [vmem:[%s5455 + $0x1e8] sm:$0xff]
        %v5518 = vld [vmem:[%s5455 + $0x1f0] sm:$0xff]
        %v5519 = vld [vmem:[%s5455 + $0x1f8] sm:$0xff]
        %v5522 = vrot.slane %v5454, 7
        %v5523 = vsel %vm2327, %v5522, %v5453
        %5525 = vmatprep.subr.mxu0 %v5517
        %5526 = vmatpush1.msra.mxu0 %v5516
        %5527 = vmatprep.subr.mxu0 %v5513
        %5528 = vmatpush1.msra.mxu0 %v5512
        %5529 = vmatprep.subr.mxu0 %v5509
        %5530 = vmatpush1.msra.mxu0 %v5508
        %5531 = vmatprep.subr.mxu0 %v5505
        %5532 = vmatpush1.msra.mxu0 %v5504
        %5533 = vmatprep.subr.mxu0 %v5501
        %5534 = vmatpush1.msra.mxu0 %v5500
        %5535 = vmatprep.subr.mxu0 %v5497
        %5536 = vmatpush1.msra.mxu0 %v5496
        %5537 = vmatprep.subr.mxu0 %v5493
        %5538 = vmatpush1.msra.mxu0 %v5492
        %5539 = vmatprep.subr.mxu0 %v5489
        %5540 = vmatpush1.msra.mxu0 %v5488
        %5541 = vmatprep.subr.mxu0 %v5485
        %5542 = vmatpush1.msra.mxu0 %v5484
        %5543 = vmatprep.subr.mxu0 %v5481
        %5544 = vmatpush1.msra.mxu0 %v5480
        %5545 = vmatprep.subr.mxu0 %v5477
        %5546 = vmatpush1.msra.mxu0 %v5476
        %5547 = vmatprep.subr.mxu0 %v5473
        %5548 = vmatpush1.msra.mxu0 %v5472
        %5549 = vmatprep.subr.mxu0 %v5469
        %5550 = vmatpush1.msra.mxu0 %v5468
        %5551 = vmatprep.subr.mxu0 %v5465
        %5552 = vmatpush1.msra.mxu0 %v5464
        %5553 = vmatprep.subr.mxu0 %v5461
        %5554 = vmatpush1.msra.mxu0 %v5460
        %5555 = vmatprep.subr.mxu0 %v5457
        %5556 = vmatpush1.msra.mxu0 %v5456
        %5557 = vmatprep.subr.mxu0 0.0
        %5558 = vmatpush2.msra.mxu0 0.0
        %5559 = vmatprep.subr.mxu0 0.0
        %5560 = vmatpush2.msra.mxu0 0.0
        %5561 = vmatprep.subr.mxu0 0.0
        %5562 = vmatpush2.msra.mxu0 0.0
        %5563 = vmatprep.subr.mxu0 0.0
        %5564 = vmatpush2.msra.mxu0 0.0
        %5565 = vmatprep.subr.mxu0 0.0
        %5566 = vmatpush2.msra.mxu0 0.0
        %5567 = vmatprep.subr.mxu0 0.0
        %5568 = vmatpush2.msra.mxu0 0.0
        %5569 = vmatprep.subr.mxu0 0.0
        %5570 = vmatpush2.msra.mxu0 0.0
        %5571 = vmatprep.subr.mxu0 0.0
        %5572 = vmatpush2.msra.mxu0 0.0
        %5573 = vmatprep.subr.mxu0 0.0
        %5574 = vmatpush2.msra.mxu0 0.0
        %5575 = vmatprep.subr.mxu0 0.0
        %5576 = vmatpush2.msra.mxu0 0.0
        %5577 = vmatprep.subr.mxu0 0.0
        %5578 = vmatpush2.msra.mxu0 0.0
        %5579 = vmatprep.subr.mxu0 0.0
        %5580 = vmatpush2.msra.mxu0 0.0
        %5581 = vmatprep.subr.mxu0 0.0
        %5582 = vmatpush2.msra.mxu0 0.0
        %5583 = vmatprep.subr.mxu0 0.0
        %5584 = vmatpush2.msra.mxu0 0.0
        %5585 = vmatprep.subr.mxu0 0.0
        %5586 = vmatpush2.msra.mxu0 0.0
        %5587 = vmatprep.subr.mxu0 0.0
        %5588 = vmatpush2.msra.mxu0 0.0
        %5589 = vmatprep.mubr.f32.mxu0 0.0
        %5590 = vmatmul.mubr.f32.gmra.mxu0 %v5523
        %v5591 = vpop.f32.mrf.mxu0
        %v5592 = vadd.f32 0.0, %v5591
        %v5593 = vpop.f32.mrf.mxu0
        %v5594 = vadd.f32 0.0, %v5593
        %5595 = vdwg.mxu0
        %5596 = vmatprep.subr.mxu0 %v5519
        %5597 = vmatpush1.msra.mxu0 %v5518
        %5598 = vmatprep.subr.mxu0 %v5515
        %5599 = vmatpush1.msra.mxu0 %v5514
        %5600 = vmatprep.subr.mxu0 %v5511
        %5601 = vmatpush1.msra.mxu0 %v5510
        %5602 = vmatprep.subr.mxu0 %v5507
        %5603 = vmatpush1.msra.mxu0 %v5506
        %5604 = vmatprep.subr.mxu0 %v5503
        %5605 = vmatpush1.msra.mxu0 %v5502
        %5606 = vmatprep.subr.mxu0 %v5499
        %5607 = vmatpush1.msra.mxu0 %v5498
        %5608 = vmatprep.subr.mxu0 %v5495
        %5609 = vmatpush1.msra.mxu0 %v5494
        %5610 = vmatprep.subr.mxu0 %v5491
        %5611 = vmatpush1.msra.mxu0 %v5490
        %5612 = vmatprep.subr.mxu0 %v5487
        %5613 = vmatpush1.msra.mxu0 %v5486
        %5614 = vmatprep.subr.mxu0 %v5483
        %5615 = vmatpush1.msra.mxu0 %v5482
        %5616 = vmatprep.subr.mxu0 %v5479
        %5617 = vmatpush1.msra.mxu0 %v5478
        %5618 = vmatprep.subr.mxu0 %v5475
        %5619 = vmatpush1.msra.mxu0 %v5474
        %5620 = vmatprep.subr.mxu0 %v5471
        %5621 = vmatpush1.msra.mxu0 %v5470
        %5622 = vmatprep.subr.mxu0 %v5467
        %5623 = vmatpush1.msra.mxu0 %v5466
        %5624 = vmatprep.subr.mxu0 %v5463
        %5625 = vmatpush1.msra.mxu0 %v5462
        %5626 = vmatprep.subr.mxu0 %v5459
        %5627 = vmatpush1.msra.mxu0 %v5458
        %5628 = vmatprep.subr.mxu0 0.0
        %5629 = vmatpush2.msra.mxu0 0.0
        %5630 = vmatprep.subr.mxu0 0.0
        %5631 = vmatpush2.msra.mxu0 0.0
        %5632 = vmatprep.subr.mxu0 0.0
        %5633 = vmatpush2.msra.mxu0 0.0
        %5634 = vmatprep.subr.mxu0 0.0
        %5635 = vmatpush2.msra.mxu0 0.0
        %5636 = vmatprep.subr.mxu0 0.0
        %5637 = vmatpush2.msra.mxu0 0.0
        %5638 = vmatprep.subr.mxu0 0.0
        %5639 = vmatpush2.msra.mxu0 0.0
        %5640 = vmatprep.subr.mxu0 0.0
        %5641 = vmatpush2.msra.mxu0 0.0
        %5642 = vmatprep.subr.mxu0 0.0
        %5643 = vmatpush2.msra.mxu0 0.0
        %5644 = vmatprep.subr.mxu0 0.0
        %5645 = vmatpush2.msra.mxu0 0.0
        %5646 = vmatprep.subr.mxu0 0.0
        %5647 = vmatpush2.msra.mxu0 0.0
        %5648 = vmatprep.subr.mxu0 0.0
        %5649 = vmatpush2.msra.mxu0 0.0
        %5650 = vmatprep.subr.mxu0 0.0
        %5651 = vmatpush2.msra.mxu0 0.0
        %5652 = vmatprep.subr.mxu0 0.0
        %5653 = vmatpush2.msra.mxu0 0.0
        %5654 = vmatprep.subr.mxu0 0.0
        %5655 = vmatpush2.msra.mxu0 0.0
        %5656 = vmatprep.subr.mxu0 0.0
        %5657 = vmatpush2.msra.mxu0 0.0
        %5658 = vmatprep.subr.mxu0 0.0
        %5659 = vmatpush2.msra.mxu0 0.0
        %5660 = vmatprep.mubr.f32.mxu0 0.0
        %5661 = vmatmul.mubr.f32.gmra.mxu0 %v5523
        %v5662 = vpop.f32.mrf.mxu0
        %v5663 = vadd.f32 0.0, %v5662
        %v5664 = vpop.f32.mrf.mxu0
        %v5665 = vadd.f32 0.0, %v5664
        %5666 = vdwg.mxu0
        %v5667 = vadd.f32 %v5449, %v5592
        %v5668 = vadd.f32 %v5450, %v5594
        %v5669 = vadd.f32 %v5451, %v5663
        %v5670 = vadd.f32 %v5452, %v5665
        %v5671 = vld [vmem:[#allocation19] sm:$0xf]
        %v5673 = vlaneseq
        %v5674 = vshrl.u32 %v5673, 7
        %v5675 = vsub.s32 0, %v5674
        %v5676 = vrot.slane %v5671, %v5675
        %v5677 = vlaneseq
        %v5678 = vshrl.u32 %v5677, 7
        %v5679 = vsub.s32 1, %v5678
        %v5680 = vrot.slane %v5671, %v5679
        %v5681 = vlaneseq
        %v5682 = vshrl.u32 %v5681, 7
        %v5683 = vsub.s32 2, %v5682
        %v5684 = vrot.slane %v5671, %v5683
        %v5685 = vlaneseq
        %v5686 = vshrl.u32 %v5685, 7
        %v5687 = vsub.s32 3, %v5686
        %v5688 = vrot.slane %v5671, %v5687
        %v5693 = vadd.f32 %v5667, %v5676
        %v5694 = vadd.f32 %v5668, %v5680
        %v5695 = vadd.f32 %v5669, %v5684
        %v5696 = vadd.f32 %v5670, %v5688
        %v5697 = vmax.f32 %v5693, 0.0
        %v5698 = vmax.f32 %v5694, 0.0
        %v5699 = vmax.f32 %v5695, 0.0
        %v5700 = vmax.f32 %v5696, 0.0
        %v5701 = vld [vmem:[#allocation20] sm:$0xff]
        %v5702 = vld [vmem:[#allocation20 + $0x8] sm:$0xff]
        %v5703 = vld [vmem:[#allocation20 + $0x10] sm:$0xff]
        %v5704 = vld [vmem:[#allocation20 + $0x18] sm:$0xff]
        %v5705 = vld [vmem:[#allocation20 + $0x20] sm:$0xff]
        %v5706 = vld [vmem:[#allocation20 + $0x28] sm:$0xff]
        %v5707 = vld [vmem:[#allocation20 + $0x30] sm:$0xff]
        %v5708 = vld [vmem:[#allocation20 + $0x38] sm:$0xff]
        %v5709 = vld [vmem:[#allocation20 + $0x40] sm:$0xff]
        %v5710 = vld [vmem:[#allocation20 + $0x48] sm:$0xff]
        %v5711 = vld [vmem:[#allocation20 + $0x50] sm:$0xff]
        %v5712 = vld [vmem:[#allocation20 + $0x58] sm:$0xff]
        %v5713 = vld [vmem:[#allocation20 + $0x60] sm:$0xff]
        %v5714 = vld [vmem:[#allocation20 + $0x68] sm:$0xff]
        %v5715 = vld [vmem:[#allocation20 + $0x70] sm:$0xff]
        %v5716 = vld [vmem:[#allocation20 + $0x78] sm:$0xff]
        %v5717 = vld [vmem:[#allocation20 + $0x80] sm:$0xff]
        %v5718 = vld [vmem:[#allocation20 + $0x88] sm:$0xff]
        %v5719 = vld [vmem:[#allocation20 + $0x90] sm:$0xff]
        %v5720 = vld [vmem:[#allocation20 + $0x98] sm:$0xff]
        %v5721 = vld [vmem:[#allocation20 + $0xa0] sm:$0xff]
        %v5722 = vld [vmem:[#allocation20 + $0xa8] sm:$0xff]
        %v5723 = vld [vmem:[#allocation20 + $0xb0] sm:$0xff]
        %v5724 = vld [vmem:[#allocation20 + $0xb8] sm:$0xff]
        %v5725 = vld [vmem:[#allocation20 + $0xc0] sm:$0xff]
        %v5726 = vld [vmem:[#allocation20 + $0xc8] sm:$0xff]
        %v5727 = vld [vmem:[#allocation20 + $0xd0] sm:$0xff]
        %v5728 = vld [vmem:[#allocation20 + $0xd8] sm:$0xff]
        %v5729 = vld [vmem:[#allocation20 + $0xe0] sm:$0xff]
        %v5730 = vld [vmem:[#allocation20 + $0xe8] sm:$0xff]
        %v5731 = vld [vmem:[#allocation20 + $0xf0] sm:$0xff]
        %v5732 = vld [vmem:[#allocation20 + $0xf8] sm:$0xff]
        %v5733 = vld [vmem:[#allocation20 + $0x100] sm:$0xff]
        %v5734 = vld [vmem:[#allocation20 + $0x108] sm:$0xff]
        %v5735 = vld [vmem:[#allocation20 + $0x110] sm:$0xff]
        %v5736 = vld [vmem:[#allocation20 + $0x118] sm:$0xff]
        %v5737 = vld [vmem:[#allocation20 + $0x120] sm:$0xff]
        %v5738 = vld [vmem:[#allocation20 + $0x128] sm:$0xff]
        %v5739 = vld [vmem:[#allocation20 + $0x130] sm:$0xff]
        %v5740 = vld [vmem:[#allocation20 + $0x138] sm:$0xff]
        %v5741 = vld [vmem:[#allocation20 + $0x140] sm:$0xff]
        %v5742 = vld [vmem:[#allocation20 + $0x148] sm:$0xff]
        %v5743 = vld [vmem:[#allocation20 + $0x150] sm:$0xff]
        %v5744 = vld [vmem:[#allocation20 + $0x158] sm:$0xff]
        %v5745 = vld [vmem:[#allocation20 + $0x160] sm:$0xff]
        %v5746 = vld [vmem:[#allocation20 + $0x168] sm:$0xff]
        %v5747 = vld [vmem:[#allocation20 + $0x170] sm:$0xff]
        %v5748 = vld [vmem:[#allocation20 + $0x178] sm:$0xff]
        %v5749 = vld [vmem:[#allocation20 + $0x180] sm:$0xff]
        %v5750 = vld [vmem:[#allocation20 + $0x188] sm:$0xff]
        %v5751 = vld [vmem:[#allocation20 + $0x190] sm:$0xff]
        %v5752 = vld [vmem:[#allocation20 + $0x198] sm:$0xff]
        %v5753 = vld [vmem:[#allocation20 + $0x1a0] sm:$0xff]
        %v5754 = vld [vmem:[#allocation20 + $0x1a8] sm:$0xff]
        %v5755 = vld [vmem:[#allocation20 + $0x1b0] sm:$0xff]
        %v5756 = vld [vmem:[#allocation20 + $0x1b8] sm:$0xff]
        %v5757 = vld [vmem:[#allocation20 + $0x1c0] sm:$0xff]
        %v5758 = vld [vmem:[#allocation20 + $0x1c8] sm:$0xff]
        %v5759 = vld [vmem:[#allocation20 + $0x1d0] sm:$0xff]
        %v5760 = vld [vmem:[#allocation20 + $0x1d8] sm:$0xff]
        %v5761 = vld [vmem:[#allocation20 + $0x1e0] sm:$0xff]
        %v5762 = vld [vmem:[#allocation20 + $0x1e8] sm:$0xff]
        %v5763 = vld [vmem:[#allocation20 + $0x1f0] sm:$0xff]
        %v5764 = vld [vmem:[#allocation20 + $0x1f8] sm:$0xff]
        %v5765 = vld [vmem:[#allocation20 + $0x200] sm:$0xff]
        %v5766 = vld [vmem:[#allocation20 + $0x208] sm:$0xff]
        %v5767 = vld [vmem:[#allocation20 + $0x210] sm:$0xff]
        %v5768 = vld [vmem:[#allocation20 + $0x218] sm:$0xff]
        %v5769 = vld [vmem:[#allocation20 + $0x220] sm:$0xff]
        %v5770 = vld [vmem:[#allocation20 + $0x228] sm:$0xff]
        %v5771 = vld [vmem:[#allocation20 + $0x230] sm:$0xff]
        %v5772 = vld [vmem:[#allocation20 + $0x238] sm:$0xff]
        %v5773 = vld [vmem:[#allocation20 + $0x240] sm:$0xff]
        %v5774 = vld [vmem:[#allocation20 + $0x248] sm:$0xff]
        %v5775 = vld [vmem:[#allocation20 + $0x250] sm:$0xff]
        %v5776 = vld [vmem:[#allocation20 + $0x258] sm:$0xff]
        %v5777 = vld [vmem:[#allocation20 + $0x260] sm:$0xff]
        %v5778 = vld [vmem:[#allocation20 + $0x268] sm:$0xff]
        %v5779 = vld [vmem:[#allocation20 + $0x270] sm:$0xff]
        %v5780 = vld [vmem:[#allocation20 + $0x278] sm:$0xff]
        %v5781 = vld [vmem:[#allocation20 + $0x280] sm:$0xff]
        %v5782 = vld [vmem:[#allocation20 + $0x288] sm:$0xff]
        %v5783 = vld [vmem:[#allocation20 + $0x290] sm:$0xff]
        %v5784 = vld [vmem:[#allocation20 + $0x298] sm:$0xff]
        %v5785 = vld [vmem:[#allocation20 + $0x2a0] sm:$0xff]
        %v5786 = vld [vmem:[#allocation20 + $0x2a8] sm:$0xff]
        %v5787 = vld [vmem:[#allocation20 + $0x2b0] sm:$0xff]
        %v5788 = vld [vmem:[#allocation20 + $0x2b8] sm:$0xff]
        %v5789 = vld [vmem:[#allocation20 + $0x2c0] sm:$0xff]
        %v5790 = vld [vmem:[#allocation20 + $0x2c8] sm:$0xff]
        %v5791 = vld [vmem:[#allocation20 + $0x2d0] sm:$0xff]
        %v5792 = vld [vmem:[#allocation20 + $0x2d8] sm:$0xff]
        %v5793 = vld [vmem:[#allocation20 + $0x2e0] sm:$0xff]
        %v5794 = vld [vmem:[#allocation20 + $0x2e8] sm:$0xff]
        %v5795 = vld [vmem:[#allocation20 + $0x2f0] sm:$0xff]
        %v5796 = vld [vmem:[#allocation20 + $0x2f8] sm:$0xff]
        %v5797 = vld [vmem:[#allocation20 + $0x300] sm:$0xff]
        %v5798 = vld [vmem:[#allocation20 + $0x308] sm:$0xff]
        %v5799 = vld [vmem:[#allocation20 + $0x310] sm:$0xff]
        %v5800 = vld [vmem:[#allocation20 + $0x318] sm:$0xff]
        %v5801 = vld [vmem:[#allocation20 + $0x320] sm:$0xff]
        %v5802 = vld [vmem:[#allocation20 + $0x328] sm:$0xff]
        %v5803 = vld [vmem:[#allocation20 + $0x330] sm:$0xff]
        %v5804 = vld [vmem:[#allocation20 + $0x338] sm:$0xff]
        %v5805 = vld [vmem:[#allocation20 + $0x340] sm:$0xff]
        %v5806 = vld [vmem:[#allocation20 + $0x348] sm:$0xff]
        %v5807 = vld [vmem:[#allocation20 + $0x350] sm:$0xff]
        %v5808 = vld [vmem:[#allocation20 + $0x358] sm:$0xff]
        %v5809 = vld [vmem:[#allocation20 + $0x360] sm:$0xff]
        %v5810 = vld [vmem:[#allocation20 + $0x368] sm:$0xff]
        %v5811 = vld [vmem:[#allocation20 + $0x370] sm:$0xff]
        %v5812 = vld [vmem:[#allocation20 + $0x378] sm:$0xff]
        %v5813 = vld [vmem:[#allocation20 + $0x380] sm:$0xff]
        %v5814 = vld [vmem:[#allocation20 + $0x388] sm:$0xff]
        %v5815 = vld [vmem:[#allocation20 + $0x390] sm:$0xff]
        %v5816 = vld [vmem:[#allocation20 + $0x398] sm:$0xff]
        %v5817 = vld [vmem:[#allocation20 + $0x3a0] sm:$0xff]
        %v5818 = vld [vmem:[#allocation20 + $0x3a8] sm:$0xff]
        %v5819 = vld [vmem:[#allocation20 + $0x3b0] sm:$0xff]
        %v5820 = vld [vmem:[#allocation20 + $0x3b8] sm:$0xff]
        %v5821 = vld [vmem:[#allocation20 + $0x3c0] sm:$0xff]
        %v5822 = vld [vmem:[#allocation20 + $0x3c8] sm:$0xff]
        %v5823 = vld [vmem:[#allocation20 + $0x3d0] sm:$0xff]
        %v5824 = vld [vmem:[#allocation20 + $0x3d8] sm:$0xff]
        %v5825 = vld [vmem:[#allocation20 + $0x3e0] sm:$0xff]
        %v5826 = vld [vmem:[#allocation20 + $0x3e8] sm:$0xff]
        %v5827 = vld [vmem:[#allocation20 + $0x3f0] sm:$0xff]
        %v5828 = vld [vmem:[#allocation20 + $0x3f8] sm:$0xff]
        %v5829 = vld [vmem:[#allocation20 + $0x400] sm:$0xff]
        %v5830 = vld [vmem:[#allocation20 + $0x408] sm:$0xff]
        %v5831 = vld [vmem:[#allocation20 + $0x410] sm:$0xff]
        %v5832 = vld [vmem:[#allocation20 + $0x418] sm:$0xff]
        %v5833 = vld [vmem:[#allocation20 + $0x420] sm:$0xff]
        %v5834 = vld [vmem:[#allocation20 + $0x428] sm:$0xff]
        %v5835 = vld [vmem:[#allocation20 + $0x430] sm:$0xff]
        %v5836 = vld [vmem:[#allocation20 + $0x438] sm:$0xff]
        %v5837 = vld [vmem:[#allocation20 + $0x440] sm:$0xff]
        %v5838 = vld [vmem:[#allocation20 + $0x448] sm:$0xff]
        %v5839 = vld [vmem:[#allocation20 + $0x450] sm:$0xff]
        %v5840 = vld [vmem:[#allocation20 + $0x458] sm:$0xff]
        %v5841 = vld [vmem:[#allocation20 + $0x460] sm:$0xff]
        %v5842 = vld [vmem:[#allocation20 + $0x468] sm:$0xff]
        %v5843 = vld [vmem:[#allocation20 + $0x470] sm:$0xff]
        %v5844 = vld [vmem:[#allocation20 + $0x478] sm:$0xff]
        %v5845 = vld [vmem:[#allocation20 + $0x480] sm:$0xff]
        %v5846 = vld [vmem:[#allocation20 + $0x488] sm:$0xff]
        %v5847 = vld [vmem:[#allocation20 + $0x490] sm:$0xff]
        %v5848 = vld [vmem:[#allocation20 + $0x498] sm:$0xff]
        %v5849 = vld [vmem:[#allocation20 + $0x4a0] sm:$0xff]
        %v5850 = vld [vmem:[#allocation20 + $0x4a8] sm:$0xff]
        %v5851 = vld [vmem:[#allocation20 + $0x4b0] sm:$0xff]
        %v5852 = vld [vmem:[#allocation20 + $0x4b8] sm:$0xff]
        %v5853 = vld [vmem:[#allocation20 + $0x4c0] sm:$0xff]
        %v5854 = vld [vmem:[#allocation20 + $0x4c8] sm:$0xff]
        %v5855 = vld [vmem:[#allocation20 + $0x4d0] sm:$0xff]
        %v5856 = vld [vmem:[#allocation20 + $0x4d8] sm:$0xff]
        %v5857 = vld [vmem:[#allocation20 + $0x4e0] sm:$0xff]
        %v5858 = vld [vmem:[#allocation20 + $0x4e8] sm:$0xff]
        %v5859 = vld [vmem:[#allocation20 + $0x4f0] sm:$0xff]
        %v5860 = vld [vmem:[#allocation20 + $0x4f8] sm:$0xff]
        %v5861 = vld [vmem:[#allocation20 + $0x500] sm:$0xff]
        %v5862 = vld [vmem:[#allocation20 + $0x508] sm:$0xff]
        %v5863 = vld [vmem:[#allocation20 + $0x510] sm:$0xff]
        %v5864 = vld [vmem:[#allocation20 + $0x518] sm:$0xff]
        %v5865 = vld [vmem:[#allocation20 + $0x520] sm:$0xff]
        %v5866 = vld [vmem:[#allocation20 + $0x528] sm:$0xff]
        %v5867 = vld [vmem:[#allocation20 + $0x530] sm:$0xff]
        %v5868 = vld [vmem:[#allocation20 + $0x538] sm:$0xff]
        %v5869 = vld [vmem:[#allocation20 + $0x540] sm:$0xff]
        %v5870 = vld [vmem:[#allocation20 + $0x548] sm:$0xff]
        %v5871 = vld [vmem:[#allocation20 + $0x550] sm:$0xff]
        %v5872 = vld [vmem:[#allocation20 + $0x558] sm:$0xff]
        %v5873 = vld [vmem:[#allocation20 + $0x560] sm:$0xff]
        %v5874 = vld [vmem:[#allocation20 + $0x568] sm:$0xff]
        %v5875 = vld [vmem:[#allocation20 + $0x570] sm:$0xff]
        %v5876 = vld [vmem:[#allocation20 + $0x578] sm:$0xff]
        %v5877 = vld [vmem:[#allocation20 + $0x580] sm:$0xff]
        %v5878 = vld [vmem:[#allocation20 + $0x588] sm:$0xff]
        %v5879 = vld [vmem:[#allocation20 + $0x590] sm:$0xff]
        %v5880 = vld [vmem:[#allocation20 + $0x598] sm:$0xff]
        %v5881 = vld [vmem:[#allocation20 + $0x5a0] sm:$0xff]
        %v5882 = vld [vmem:[#allocation20 + $0x5a8] sm:$0xff]
        %v5883 = vld [vmem:[#allocation20 + $0x5b0] sm:$0xff]
        %v5884 = vld [vmem:[#allocation20 + $0x5b8] sm:$0xff]
        %v5885 = vld [vmem:[#allocation20 + $0x5c0] sm:$0xff]
        %v5886 = vld [vmem:[#allocation20 + $0x5c8] sm:$0xff]
        %v5887 = vld [vmem:[#allocation20 + $0x5d0] sm:$0xff]
        %v5888 = vld [vmem:[#allocation20 + $0x5d8] sm:$0xff]
        %v5889 = vld [vmem:[#allocation20 + $0x5e0] sm:$0xff]
        %v5890 = vld [vmem:[#allocation20 + $0x5e8] sm:$0xff]
        %v5891 = vld [vmem:[#allocation20 + $0x5f0] sm:$0xff]
        %v5892 = vld [vmem:[#allocation20 + $0x5f8] sm:$0xff]
        %v5893 = vld [vmem:[#allocation20 + $0x600] sm:$0xff]
        %v5894 = vld [vmem:[#allocation20 + $0x608] sm:$0xff]
        %v5895 = vld [vmem:[#allocation20 + $0x610] sm:$0xff]
        %v5896 = vld [vmem:[#allocation20 + $0x618] sm:$0xff]
        %v5897 = vld [vmem:[#allocation20 + $0x620] sm:$0xff]
        %v5898 = vld [vmem:[#allocation20 + $0x628] sm:$0xff]
        %v5899 = vld [vmem:[#allocation20 + $0x630] sm:$0xff]
        %v5900 = vld [vmem:[#allocation20 + $0x638] sm:$0xff]
        %v5901 = vld [vmem:[#allocation20 + $0x640] sm:$0xff]
        %v5902 = vld [vmem:[#allocation20 + $0x648] sm:$0xff]
        %v5903 = vld [vmem:[#allocation20 + $0x650] sm:$0xff]
        %v5904 = vld [vmem:[#allocation20 + $0x658] sm:$0xff]
        %v5905 = vld [vmem:[#allocation20 + $0x660] sm:$0xff]
        %v5906 = vld [vmem:[#allocation20 + $0x668] sm:$0xff]
        %v5907 = vld [vmem:[#allocation20 + $0x670] sm:$0xff]
        %v5908 = vld [vmem:[#allocation20 + $0x678] sm:$0xff]
        %v5909 = vld [vmem:[#allocation20 + $0x680] sm:$0xff]
        %v5910 = vld [vmem:[#allocation20 + $0x688] sm:$0xff]
        %v5911 = vld [vmem:[#allocation20 + $0x690] sm:$0xff]
        %v5912 = vld [vmem:[#allocation20 + $0x698] sm:$0xff]
        %v5913 = vld [vmem:[#allocation20 + $0x6a0] sm:$0xff]
        %v5914 = vld [vmem:[#allocation20 + $0x6a8] sm:$0xff]
        %v5915 = vld [vmem:[#allocation20 + $0x6b0] sm:$0xff]
        %v5916 = vld [vmem:[#allocation20 + $0x6b8] sm:$0xff]
        %v5917 = vld [vmem:[#allocation20 + $0x6c0] sm:$0xff]
        %v5918 = vld [vmem:[#allocation20 + $0x6c8] sm:$0xff]
        %v5919 = vld [vmem:[#allocation20 + $0x6d0] sm:$0xff]
        %v5920 = vld [vmem:[#allocation20 + $0x6d8] sm:$0xff]
        %v5921 = vld [vmem:[#allocation20 + $0x6e0] sm:$0xff]
        %v5922 = vld [vmem:[#allocation20 + $0x6e8] sm:$0xff]
        %v5923 = vld [vmem:[#allocation20 + $0x6f0] sm:$0xff]
        %v5924 = vld [vmem:[#allocation20 + $0x6f8] sm:$0xff]
        %v5925 = vld [vmem:[#allocation20 + $0x700] sm:$0xff]
        %v5926 = vld [vmem:[#allocation20 + $0x708] sm:$0xff]
        %v5927 = vld [vmem:[#allocation20 + $0x710] sm:$0xff]
        %v5928 = vld [vmem:[#allocation20 + $0x718] sm:$0xff]
        %v5929 = vld [vmem:[#allocation20 + $0x720] sm:$0xff]
        %v5930 = vld [vmem:[#allocation20 + $0x728] sm:$0xff]
        %v5931 = vld [vmem:[#allocation20 + $0x730] sm:$0xff]
        %v5932 = vld [vmem:[#allocation20 + $0x738] sm:$0xff]
        %v5933 = vld [vmem:[#allocation20 + $0x740] sm:$0xff]
        %v5934 = vld [vmem:[#allocation20 + $0x748] sm:$0xff]
        %v5935 = vld [vmem:[#allocation20 + $0x750] sm:$0xff]
        %v5936 = vld [vmem:[#allocation20 + $0x758] sm:$0xff]
        %v5937 = vld [vmem:[#allocation20 + $0x760] sm:$0xff]
        %v5938 = vld [vmem:[#allocation20 + $0x768] sm:$0xff]
        %v5939 = vld [vmem:[#allocation20 + $0x770] sm:$0xff]
        %v5940 = vld [vmem:[#allocation20 + $0x778] sm:$0xff]
        %v5941 = vld [vmem:[#allocation20 + $0x780] sm:$0xff]
        %v5942 = vld [vmem:[#allocation20 + $0x788] sm:$0xff]
        %v5943 = vld [vmem:[#allocation20 + $0x790] sm:$0xff]
        %v5944 = vld [vmem:[#allocation20 + $0x798] sm:$0xff]
        %v5945 = vld [vmem:[#allocation20 + $0x7a0] sm:$0xff]
        %v5946 = vld [vmem:[#allocation20 + $0x7a8] sm:$0xff]
        %v5947 = vld [vmem:[#allocation20 + $0x7b0] sm:$0xff]
        %v5948 = vld [vmem:[#allocation20 + $0x7b8] sm:$0xff]
        %v5949 = vld [vmem:[#allocation20 + $0x7c0] sm:$0xff]
        %v5950 = vld [vmem:[#allocation20 + $0x7c8] sm:$0xff]
        %v5951 = vld [vmem:[#allocation20 + $0x7d0] sm:$0xff]
        %v5952 = vld [vmem:[#allocation20 + $0x7d8] sm:$0xff]
        %v5953 = vld [vmem:[#allocation20 + $0x7e0] sm:$0xff]
        %v5954 = vld [vmem:[#allocation20 + $0x7e8] sm:$0xff]
        %v5955 = vld [vmem:[#allocation20 + $0x7f0] sm:$0xff]
        %v5956 = vld [vmem:[#allocation20 + $0x7f8] sm:$0xff]
        %v5957 = vld [vmem:[#allocation22] sm:$0xf]
        %v5959 = vlaneseq
        %v5960 = vshrl.u32 %v5959, 7
        %v5961 = vsub.s32 0, %v5960
        %v5962 = vrot.slane %v5957, %v5961
        %v5963 = vlaneseq
        %v5964 = vshrl.u32 %v5963, 7
        %v5965 = vsub.s32 1, %v5964
        %v5966 = vrot.slane %v5957, %v5965
        %v5967 = vlaneseq
        %v5968 = vshrl.u32 %v5967, 7
        %v5969 = vsub.s32 2, %v5968
        %v5970 = vrot.slane %v5957, %v5969
        %v5971 = vlaneseq
        %v5972 = vshrl.u32 %v5971, 7
        %v5973 = vsub.s32 3, %v5972
        %v5974 = vrot.slane %v5957, %v5973
        %5979 = vmatprep.subr.mxu0 %v5762
        %5980 = vmatpush1.msra.mxu0 %v5761
        %5981 = vmatprep.subr.mxu0 %v5758
        %5982 = vmatpush1.msra.mxu0 %v5757
        %5983 = vmatprep.subr.mxu0 %v5754
        %5984 = vmatpush1.msra.mxu0 %v5753
        %5985 = vmatprep.subr.mxu0 %v5750
        %5986 = vmatpush1.msra.mxu0 %v5749
        %5987 = vmatprep.subr.mxu0 %v5746
        %5988 = vmatpush1.msra.mxu0 %v5745
        %5989 = vmatprep.subr.mxu0 %v5742
        %5990 = vmatpush1.msra.mxu0 %v5741
        %5991 = vmatprep.subr.mxu0 %v5738
        %5992 = vmatpush1.msra.mxu0 %v5737
        %5993 = vmatprep.subr.mxu0 %v5734
        %5994 = vmatpush1.msra.mxu0 %v5733
        %5995 = vmatprep.subr.mxu0 %v5730
        %5996 = vmatpush1.msra.mxu0 %v5729
        %5997 = vmatprep.subr.mxu0 %v5726
        %5998 = vmatpush1.msra.mxu0 %v5725
        %5999 = vmatprep.subr.mxu0 %v5722
        %6000 = vmatpush1.msra.mxu0 %v5721
        %6001 = vmatprep.subr.mxu0 %v5718
        %6002 = vmatpush1.msra.mxu0 %v5717
        %6003 = vmatprep.subr.mxu0 %v5714
        %6004 = vmatpush1.msra.mxu0 %v5713
        %6005 = vmatprep.subr.mxu0 %v5710
        %6006 = vmatpush1.msra.mxu0 %v5709
        %6007 = vmatprep.subr.mxu0 %v5706
        %6008 = vmatpush1.msra.mxu0 %v5705
        %6009 = vmatprep.subr.mxu0 %v5702
        %6010 = vmatpush1.msra.mxu0 %v5701
        %6011 = vmatprep.subr.mxu0 %v5826
        %6012 = vmatpush2.msra.mxu0 %v5825
        %6013 = vmatprep.subr.mxu0 %v5822
        %6014 = vmatpush2.msra.mxu0 %v5821
        %6015 = vmatprep.subr.mxu0 %v5818
        %6016 = vmatpush2.msra.mxu0 %v5817
        %6017 = vmatprep.subr.mxu0 %v5814
        %6018 = vmatpush2.msra.mxu0 %v5813
        %6019 = vmatprep.subr.mxu0 %v5810
        %6020 = vmatpush2.msra.mxu0 %v5809
        %6021 = vmatprep.subr.mxu0 %v5806
        %6022 = vmatpush2.msra.mxu0 %v5805
        %6023 = vmatprep.subr.mxu0 %v5802
        %6024 = vmatpush2.msra.mxu0 %v5801
        %6025 = vmatprep.subr.mxu0 %v5798
        %6026 = vmatpush2.msra.mxu0 %v5797
        %6027 = vmatprep.subr.mxu0 %v5794
        %6028 = vmatpush2.msra.mxu0 %v5793
        %6029 = vmatprep.subr.mxu0 %v5790
        %6030 = vmatpush2.msra.mxu0 %v5789
        %6031 = vmatprep.subr.mxu0 %v5786
        %6032 = vmatpush2.msra.mxu0 %v5785
        %6033 = vmatprep.subr.mxu0 %v5782
        %6034 = vmatpush2.msra.mxu0 %v5781
        %6035 = vmatprep.subr.mxu0 %v5778
        %6036 = vmatpush2.msra.mxu0 %v5777
        %6037 = vmatprep.subr.mxu0 %v5774
        %6038 = vmatpush2.msra.mxu0 %v5773
        %6039 = vmatprep.subr.mxu0 %v5770
        %6040 = vmatpush2.msra.mxu0 %v5769
        %6041 = vmatprep.subr.mxu0 %v5766
        %6042 = vmatpush2.msra.mxu0 %v5765
        %6043 = vmatprep.mubr.f32.mxu0 %v5698
        %6044 = vmatmul.mubr.f32.gmra.mxu0 %v5697
        %v6045 = vpop.f32.mrf.mxu0
        %v6046 = vadd.f32 %v5962, %v6045
        %v6047 = vpop.f32.mrf.mxu0
        %v6048 = vadd.f32 %v5966, %v6047
        %6049 = vdwg.mxu0
        %6050 = vmatprep.subr.mxu0 %v5890
        %6051 = vmatpush1.msra.mxu0 %v5889
        %6052 = vmatprep.subr.mxu0 %v5886
        %6053 = vmatpush1.msra.mxu0 %v5885
        %6054 = vmatprep.subr.mxu0 %v5882
        %6055 = vmatpush1.msra.mxu0 %v5881
        %6056 = vmatprep.subr.mxu0 %v5878
        %6057 = vmatpush1.msra.mxu0 %v5877
        %6058 = vmatprep.subr.mxu0 %v5874
        %6059 = vmatpush1.msra.mxu0 %v5873
        %6060 = vmatprep.subr.mxu0 %v5870
        %6061 = vmatpush1.msra.mxu0 %v5869
        %6062 = vmatprep.subr.mxu0 %v5866
        %6063 = vmatpush1.msra.mxu0 %v5865
        %6064 = vmatprep.subr.mxu0 %v5862
        %6065 = vmatpush1.msra.mxu0 %v5861
        %6066 = vmatprep.subr.mxu0 %v5858
        %6067 = vmatpush1.msra.mxu0 %v5857
        %6068 = vmatprep.subr.mxu0 %v5854
        %6069 = vmatpush1.msra.mxu0 %v5853
        %6070 = vmatprep.subr.mxu0 %v5850
        %6071 = vmatpush1.msra.mxu0 %v5849
        %6072 = vmatprep.subr.mxu0 %v5846
        %6073 = vmatpush1.msra.mxu0 %v5845
        %6074 = vmatprep.subr.mxu0 %v5842
        %6075 = vmatpush1.msra.mxu0 %v5841
        %6076 = vmatprep.subr.mxu0 %v5838
        %6077 = vmatpush1.msra.mxu0 %v5837
        %6078 = vmatprep.subr.mxu0 %v5834
        %6079 = vmatpush1.msra.mxu0 %v5833
        %6080 = vmatprep.subr.mxu0 %v5830
        %6081 = vmatpush1.msra.mxu0 %v5829
        %6082 = vmatprep.subr.mxu0 %v5954
        %6083 = vmatpush2.msra.mxu0 %v5953
        %6084 = vmatprep.subr.mxu0 %v5950
        %6085 = vmatpush2.msra.mxu0 %v5949
        %6086 = vmatprep.subr.mxu0 %v5946
        %6087 = vmatpush2.msra.mxu0 %v5945
        %6088 = vmatprep.subr.mxu0 %v5942
        %6089 = vmatpush2.msra.mxu0 %v5941
        %6090 = vmatprep.subr.mxu0 %v5938
        %6091 = vmatpush2.msra.mxu0 %v5937
        %6092 = vmatprep.subr.mxu0 %v5934
        %6093 = vmatpush2.msra.mxu0 %v5933
        %6094 = vmatprep.subr.mxu0 %v5930
        %6095 = vmatpush2.msra.mxu0 %v5929
        %6096 = vmatprep.subr.mxu0 %v5926
        %6097 = vmatpush2.msra.mxu0 %v5925
        %6098 = vmatprep.subr.mxu0 %v5922
        %6099 = vmatpush2.msra.mxu0 %v5921
        %6100 = vmatprep.subr.mxu0 %v5918
        %6101 = vmatpush2.msra.mxu0 %v5917
        %6102 = vmatprep.subr.mxu0 %v5914
        %6103 = vmatpush2.msra.mxu0 %v5913
        %6104 = vmatprep.subr.mxu0 %v5910
        %6105 = vmatpush2.msra.mxu0 %v5909
        %6106 = vmatprep.subr.mxu0 %v5906
        %6107 = vmatpush2.msra.mxu0 %v5905
        %6108 = vmatprep.subr.mxu0 %v5902
        %6109 = vmatpush2.msra.mxu0 %v5901
        %6110 = vmatprep.subr.mxu0 %v5898
        %6111 = vmatpush2.msra.mxu0 %v5897
        %6112 = vmatprep.subr.mxu0 %v5894
        %6113 = vmatpush2.msra.mxu0 %v5893
        %6114 = vmatprep.mubr.f32.mxu0 %v5700
        %6115 = vmatmul.mubr.f32.gmra.mxu0 %v5699
        %v6116 = vpop.f32.mrf.mxu0
        %v6117 = vadd.f32 %v6046, %v6116
        %v6118 = vpop.f32.mrf.mxu0
        %v6119 = vadd.f32 %v6048, %v6118
        %6120 = vdwg.mxu0
        %6121 = vmatprep.subr.mxu0 %v5764
        %6122 = vmatpush1.msra.mxu0 %v5763
        %6123 = vmatprep.subr.mxu0 %v5760
        %6124 = vmatpush1.msra.mxu0 %v5759
        %6125 = vmatprep.subr.mxu0 %v5756
        %6126 = vmatpush1.msra.mxu0 %v5755
        %6127 = vmatprep.subr.mxu0 %v5752
        %6128 = vmatpush1.msra.mxu0 %v5751
        %6129 = vmatprep.subr.mxu0 %v5748
        %6130 = vmatpush1.msra.mxu0 %v5747
        %6131 = vmatprep.subr.mxu0 %v5744
        %6132 = vmatpush1.msra.mxu0 %v5743
        %6133 = vmatprep.subr.mxu0 %v5740
        %6134 = vmatpush1.msra.mxu0 %v5739
        %6135 = vmatprep.subr.mxu0 %v5736
        %6136 = vmatpush1.msra.mxu0 %v5735
        %6137 = vmatprep.subr.mxu0 %v5732
        %6138 = vmatpush1.msra.mxu0 %v5731
        %6139 = vmatprep.subr.mxu0 %v5728
        %6140 = vmatpush1.msra.mxu0 %v5727
        %6141 = vmatprep.subr.mxu0 %v5724
        %6142 = vmatpush1.msra.mxu0 %v5723
        %6143 = vmatprep.subr.mxu0 %v5720
        %6144 = vmatpush1.msra.mxu0 %v5719
        %6145 = vmatprep.subr.mxu0 %v5716
        %6146 = vmatpush1.msra.mxu0 %v5715
        %6147 = vmatprep.subr.mxu0 %v5712
        %6148 = vmatpush1.msra.mxu0 %v5711
        %6149 = vmatprep.subr.mxu0 %v5708
        %6150 = vmatpush1.msra.mxu0 %v5707
        %6151 = vmatprep.subr.mxu0 %v5704
        %6152 = vmatpush1.msra.mxu0 %v5703
        %6153 = vmatprep.subr.mxu0 %v5828
        %6154 = vmatpush2.msra.mxu0 %v5827
        %6155 = vmatprep.subr.mxu0 %v5824
        %6156 = vmatpush2.msra.mxu0 %v5823
        %6157 = vmatprep.subr.mxu0 %v5820
        %6158 = vmatpush2.msra.mxu0 %v5819
        %6159 = vmatprep.subr.mxu0 %v5816
        %6160 = vmatpush2.msra.mxu0 %v5815
        %6161 = vmatprep.subr.mxu0 %v5812
        %6162 = vmatpush2.msra.mxu0 %v5811
        %6163 = vmatprep.subr.mxu0 %v5808
        %6164 = vmatpush2.msra.mxu0 %v5807
        %6165 = vmatprep.subr.mxu0 %v5804
        %6166 = vmatpush2.msra.mxu0 %v5803
        %6167 = vmatprep.subr.mxu0 %v5800
        %6168 = vmatpush2.msra.mxu0 %v5799
        %6169 = vmatprep.subr.mxu0 %v5796
        %6170 = vmatpush2.msra.mxu0 %v5795
        %6171 = vmatprep.subr.mxu0 %v5792
        %6172 = vmatpush2.msra.mxu0 %v5791
        %6173 = vmatprep.subr.mxu0 %v5788
        %6174 = vmatpush2.msra.mxu0 %v5787
        %6175 = vmatprep.subr.mxu0 %v5784
        %6176 = vmatpush2.msra.mxu0 %v5783
        %6177 = vmatprep.subr.mxu0 %v5780
        %6178 = vmatpush2.msra.mxu0 %v5779
        %6179 = vmatprep.subr.mxu0 %v5776
        %6180 = vmatpush2.msra.mxu0 %v5775
        %6181 = vmatprep.subr.mxu0 %v5772
        %6182 = vmatpush2.msra.mxu0 %v5771
        %6183 = vmatprep.subr.mxu0 %v5768
        %6184 = vmatpush2.msra.mxu0 %v5767
        %6185 = vmatprep.mubr.f32.mxu0 %v5698
        %6186 = vmatmul.mubr.f32.gmra.mxu0 %v5697
        %v6187 = vpop.f32.mrf.mxu0
        %v6188 = vadd.f32 %v5970, %v6187
        %v6189 = vpop.f32.mrf.mxu0
        %v6190 = vadd.f32 %v5974, %v6189
        %6191 = vdwg.mxu0
        %6192 = vmatprep.subr.mxu0 %v5892
        %6193 = vmatpush1.msra.mxu0 %v5891
        %6194 = vmatprep.subr.mxu0 %v5888
        %6195 = vmatpush1.msra.mxu0 %v5887
        %6196 = vmatprep.subr.mxu0 %v5884
        %6197 = vmatpush1.msra.mxu0 %v5883
        %6198 = vmatprep.subr.mxu0 %v5880
        %6199 = vmatpush1.msra.mxu0 %v5879
        %6200 = vmatprep.subr.mxu0 %v5876
        %6201 = vmatpush1.msra.mxu0 %v5875
        %6202 = vmatprep.subr.mxu0 %v5872
        %6203 = vmatpush1.msra.mxu0 %v5871
        %6204 = vmatprep.subr.mxu0 %v5868
        %6205 = vmatpush1.msra.mxu0 %v5867
        %6206 = vmatprep.subr.mxu0 %v5864
        %6207 = vmatpush1.msra.mxu0 %v5863
        %6208 = vmatprep.subr.mxu0 %v5860
        %6209 = vmatpush1.msra.mxu0 %v5859
        %6210 = vmatprep.subr.mxu0 %v5856
        %6211 = vmatpush1.msra.mxu0 %v5855
        %6212 = vmatprep.subr.mxu0 %v5852
        %6213 = vmatpush1.msra.mxu0 %v5851
        %6214 = vmatprep.subr.mxu0 %v5848
        %6215 = vmatpush1.msra.mxu0 %v5847
        %6216 = vmatprep.subr.mxu0 %v5844
        %6217 = vmatpush1.msra.mxu0 %v5843
        %6218 = vmatprep.subr.mxu0 %v5840
        %6219 = vmatpush1.msra.mxu0 %v5839
        %6220 = vmatprep.subr.mxu0 %v5836
        %6221 = vmatpush1.msra.mxu0 %v5835
        %6222 = vmatprep.subr.mxu0 %v5832
        %6223 = vmatpush1.msra.mxu0 %v5831
        %6224 = vmatprep.subr.mxu0 %v5956
        %6225 = vmatpush2.msra.mxu0 %v5955
        %6226 = vmatprep.subr.mxu0 %v5952
        %6227 = vmatpush2.msra.mxu0 %v5951
        %6228 = vmatprep.subr.mxu0 %v5948
        %6229 = vmatpush2.msra.mxu0 %v5947
        %6230 = vmatprep.subr.mxu0 %v5944
        %6231 = vmatpush2.msra.mxu0 %v5943
        %6232 = vmatprep.subr.mxu0 %v5940
        %6233 = vmatpush2.msra.mxu0 %v5939
        %6234 = vmatprep.subr.mxu0 %v5936
        %6235 = vmatpush2.msra.mxu0 %v5935
        %6236 = vmatprep.subr.mxu0 %v5932
        %6237 = vmatpush2.msra.mxu0 %v5931
        %6238 = vmatprep.subr.mxu0 %v5928
        %6239 = vmatpush2.msra.mxu0 %v5927
        %6240 = vmatprep.subr.mxu0 %v5924
        %6241 = vmatpush2.msra.mxu0 %v5923
        %6242 = vmatprep.subr.mxu0 %v5920
        %6243 = vmatpush2.msra.mxu0 %v5919
        %6244 = vmatprep.subr.mxu0 %v5916
        %6245 = vmatpush2.msra.mxu0 %v5915
        %6246 = vmatprep.subr.mxu0 %v5912
        %6247 = vmatpush2.msra.mxu0 %v5911
        %6248 = vmatprep.subr.mxu0 %v5908
        %6249 = vmatpush2.msra.mxu0 %v5907
        %6250 = vmatprep.subr.mxu0 %v5904
        %6251 = vmatpush2.msra.mxu0 %v5903
        %6252 = vmatprep.subr.mxu0 %v5900
        %6253 = vmatpush2.msra.mxu0 %v5899
        %6254 = vmatprep.subr.mxu0 %v5896
        %6255 = vmatpush2.msra.mxu0 %v5895
        %6256 = vmatprep.mubr.f32.mxu0 %v5700
        %6257 = vmatmul.mubr.f32.gmra.mxu0 %v5699
        %v6258 = vpop.f32.mrf.mxu0
        %v6259 = vadd.f32 %v6188, %v6258
        %v6260 = vpop.f32.mrf.mxu0
        %v6261 = vadd.f32 %v6190, %v6260
        %6262 = vdwg.mxu0
        %v6263 = vmax.f32 %v6117, 0.0
        %v6264 = vmax.f32 %v6119, 0.0
        %v6265 = vmax.f32 %v6259, 0.0
        %v6266 = vmax.f32 %v6261, 0.0
        %v6267 = vld [vmem:[#allocation23] sm:$0xff]
        %v6268 = vld [vmem:[#allocation23 + $0x8] sm:$0xff]
        %v6269 = vld [vmem:[#allocation23 + $0x10] sm:$0xff]
        %v6270 = vld [vmem:[#allocation23 + $0x18] sm:$0xff]
        %v6271 = vld [vmem:[#allocation23 + $0x20] sm:$0xff]
        %v6272 = vld [vmem:[#allocation23 + $0x28] sm:$0xff]
        %v6273 = vld [vmem:[#allocation23 + $0x30] sm:$0xff]
        %v6274 = vld [vmem:[#allocation23 + $0x38] sm:$0xff]
        %v6275 = vld [vmem:[#allocation23 + $0x40] sm:$0xff]
        %v6276 = vld [vmem:[#allocation23 + $0x48] sm:$0xff]
        %v6277 = vld [vmem:[#allocation23 + $0x50] sm:$0xff]
        %v6278 = vld [vmem:[#allocation23 + $0x58] sm:$0xff]
        %v6279 = vld [vmem:[#allocation23 + $0x60] sm:$0xff]
        %v6280 = vld [vmem:[#allocation23 + $0x68] sm:$0xff]
        %v6281 = vld [vmem:[#allocation23 + $0x70] sm:$0xff]
        %v6282 = vld [vmem:[#allocation23 + $0x78] sm:$0xff]
        %v6283 = vld [vmem:[#allocation23 + $0x80] sm:$0xff]
        %v6284 = vld [vmem:[#allocation23 + $0x88] sm:$0xff]
        %v6285 = vld [vmem:[#allocation23 + $0x90] sm:$0xff]
        %v6286 = vld [vmem:[#allocation23 + $0x98] sm:$0xff]
        %v6287 = vld [vmem:[#allocation23 + $0xa0] sm:$0xff]
        %v6288 = vld [vmem:[#allocation23 + $0xa8] sm:$0xff]
        %v6289 = vld [vmem:[#allocation23 + $0xb0] sm:$0xff]
        %v6290 = vld [vmem:[#allocation23 + $0xb8] sm:$0xff]
        %v6291 = vld [vmem:[#allocation23 + $0xc0] sm:$0xff]
        %v6292 = vld [vmem:[#allocation23 + $0xc8] sm:$0xff]
        %v6293 = vld [vmem:[#allocation23 + $0xd0] sm:$0xff]
        %v6294 = vld [vmem:[#allocation23 + $0xd8] sm:$0xff]
        %v6295 = vld [vmem:[#allocation23 + $0xe0] sm:$0xff]
        %v6296 = vld [vmem:[#allocation23 + $0xe8] sm:$0xff]
        %v6297 = vld [vmem:[#allocation23 + $0xf0] sm:$0xff]
        %v6298 = vld [vmem:[#allocation23 + $0xf8] sm:$0xff]
        %v6299 = vld [vmem:[#allocation23 + $0x100] sm:$0xff]
        %v6300 = vld [vmem:[#allocation23 + $0x108] sm:$0xff]
        %v6301 = vld [vmem:[#allocation23 + $0x110] sm:$0xff]
        %v6302 = vld [vmem:[#allocation23 + $0x118] sm:$0xff]
        %v6303 = vld [vmem:[#allocation23 + $0x120] sm:$0xff]
        %v6304 = vld [vmem:[#allocation23 + $0x128] sm:$0xff]
        %v6305 = vld [vmem:[#allocation23 + $0x130] sm:$0xff]
        %v6306 = vld [vmem:[#allocation23 + $0x138] sm:$0xff]
        %v6307 = vld [vmem:[#allocation23 + $0x140] sm:$0xff]
        %v6308 = vld [vmem:[#allocation23 + $0x148] sm:$0xff]
        %v6309 = vld [vmem:[#allocation23 + $0x150] sm:$0xff]
        %v6310 = vld [vmem:[#allocation23 + $0x158] sm:$0xff]
        %v6311 = vld [vmem:[#allocation23 + $0x160] sm:$0xff]
        %v6312 = vld [vmem:[#allocation23 + $0x168] sm:$0xff]
        %v6313 = vld [vmem:[#allocation23 + $0x170] sm:$0xff]
        %v6314 = vld [vmem:[#allocation23 + $0x178] sm:$0xff]
        %v6315 = vld [vmem:[#allocation23 + $0x180] sm:$0xff]
        %v6316 = vld [vmem:[#allocation23 + $0x188] sm:$0xff]
        %v6317 = vld [vmem:[#allocation23 + $0x190] sm:$0xff]
        %v6318 = vld [vmem:[#allocation23 + $0x198] sm:$0xff]
        %v6319 = vld [vmem:[#allocation23 + $0x1a0] sm:$0xff]
        %v6320 = vld [vmem:[#allocation23 + $0x1a8] sm:$0xff]
        %v6321 = vld [vmem:[#allocation23 + $0x1b0] sm:$0xff]
        %v6322 = vld [vmem:[#allocation23 + $0x1b8] sm:$0xff]
        %v6323 = vld [vmem:[#allocation23 + $0x1c0] sm:$0xff]
        %v6324 = vld [vmem:[#allocation23 + $0x1c8] sm:$0xff]
        %v6325 = vld [vmem:[#allocation23 + $0x1d0] sm:$0xff]
        %v6326 = vld [vmem:[#allocation23 + $0x1d8] sm:$0xff]
        %v6327 = vld [vmem:[#allocation23 + $0x1e0] sm:$0xff]
        %v6328 = vld [vmem:[#allocation23 + $0x1e8] sm:$0xff]
        %v6329 = vld [vmem:[#allocation23 + $0x1f0] sm:$0xff]
        %v6330 = vld [vmem:[#allocation23 + $0x1f8] sm:$0xff]
        %v6331 = vld [vmem:[#allocation25] sm:$0x1]
        %v6333 = vlaneseq
        %v6334 = vshrl.u32 %v6333, 7
        %v6335 = vsub.s32 0, %v6334
        %v6336 = vrot.slane %v6331, %v6335
        %6338 = vmatprep.subr.mxu0 0.0
        %6339 = vmatpush1.msra.mxu0 %v6282
        %6340 = vmatprep.subr.mxu0 0.0
        %6341 = vmatpush1.msra.mxu0 %v6281
        %6342 = vmatprep.subr.mxu0 0.0
        %6343 = vmatpush1.msra.mxu0 %v6280
        %6344 = vmatprep.subr.mxu0 0.0
        %6345 = vmatpush1.msra.mxu0 %v6279
        %6346 = vmatprep.subr.mxu0 0.0
        %6347 = vmatpush1.msra.mxu0 %v6278
        %6348 = vmatprep.subr.mxu0 0.0
        %6349 = vmatpush1.msra.mxu0 %v6277
        %6350 = vmatprep.subr.mxu0 0.0
        %6351 = vmatpush1.msra.mxu0 %v6276
        %6352 = vmatprep.subr.mxu0 0.0
        %6353 = vmatpush1.msra.mxu0 %v6275
        %6354 = vmatprep.subr.mxu0 0.0
        %6355 = vmatpush1.msra.mxu0 %v6274
        %6356 = vmatprep.subr.mxu0 0.0
        %6357 = vmatpush1.msra.mxu0 %v6273
        %6358 = vmatprep.subr.mxu0 0.0
        %6359 = vmatpush1.msra.mxu0 %v6272
        %6360 = vmatprep.subr.mxu0 0.0
        %6361 = vmatpush1.msra.mxu0 %v6271
        %6362 = vmatprep.subr.mxu0 0.0
        %6363 = vmatpush1.msra.mxu0 %v6270
        %6364 = vmatprep.subr.mxu0 0.0
        %6365 = vmatpush1.msra.mxu0 %v6269
        %6366 = vmatprep.subr.mxu0 0.0
        %6367 = vmatpush1.msra.mxu0 %v6268
        %6368 = vmatprep.subr.mxu0 0.0
        %6369 = vmatpush1.msra.mxu0 %v6267
        %6370 = vmatprep.subr.mxu0 0.0
        %6371 = vmatpush2.msra.mxu0 %v6298
        %6372 = vmatprep.subr.mxu0 0.0
        %6373 = vmatpush2.msra.mxu0 %v6297
        %6374 = vmatprep.subr.mxu0 0.0
        %6375 = vmatpush2.msra.mxu0 %v6296
        %6376 = vmatprep.subr.mxu0 0.0
        %6377 = vmatpush2.msra.mxu0 %v6295
        %6378 = vmatprep.subr.mxu0 0.0
        %6379 = vmatpush2.msra.mxu0 %v6294
        %6380 = vmatprep.subr.mxu0 0.0
        %6381 = vmatpush2.msra.mxu0 %v6293
        %6382 = vmatprep.subr.mxu0 0.0
        %6383 = vmatpush2.msra.mxu0 %v6292
        %6384 = vmatprep.subr.mxu0 0.0
        %6385 = vmatpush2.msra.mxu0 %v6291
        %6386 = vmatprep.subr.mxu0 0.0
        %6387 = vmatpush2.msra.mxu0 %v6290
        %6388 = vmatprep.subr.mxu0 0.0
        %6389 = vmatpush2.msra.mxu0 %v6289
        %6390 = vmatprep.subr.mxu0 0.0
        %6391 = vmatpush2.msra.mxu0 %v6288
        %6392 = vmatprep.subr.mxu0 0.0
        %6393 = vmatpush2.msra.mxu0 %v6287
        %6394 = vmatprep.subr.mxu0 0.0
        %6395 = vmatpush2.msra.mxu0 %v6286
        %6396 = vmatprep.subr.mxu0 0.0
        %6397 = vmatpush2.msra.mxu0 %v6285
        %6398 = vmatprep.subr.mxu0 0.0
        %6399 = vmatpush2.msra.mxu0 %v6284
        %6400 = vmatprep.subr.mxu0 0.0
        %6401 = vmatpush2.msra.mxu0 %v6283
        %6402 = vmatprep.mubr.f32.mxu0 %v6264
        %6403 = vmatmul.mubr.f32.gmra.mxu0 %v6263
        %v6404 = vpop.f32.mrf.mxu0
        %v6405 = vadd.f32 %v6336, %v6404
        %v6406 = vpop.f32.mrf.mxu0
        %6407 = vdwg.mxu0
        %6408 = vmatprep.subr.mxu0 0.0
        %6409 = vmatpush1.msra.mxu0 %v6314
        %6410 = vmatprep.subr.mxu0 0.0
        %6411 = vmatpush1.msra.mxu0 %v6313
        %6412 = vmatprep.subr.mxu0 0.0
        %6413 = vmatpush1.msra.mxu0 %v6312
        %6414 = vmatprep.subr.mxu0 0.0
        %6415 = vmatpush1.msra.mxu0 %v6311
        %6416 = vmatprep.subr.mxu0 0.0
        %6417 = vmatpush1.msra.mxu0 %v6310
        %6418 = vmatprep.subr.mxu0 0.0
        %6419 = vmatpush1.msra.mxu0 %v6309
        %6420 = vmatprep.subr.mxu0 0.0
        %6421 = vmatpush1.msra.mxu0 %v6308
        %6422 = vmatprep.subr.mxu0 0.0
        %6423 = vmatpush1.msra.mxu0 %v6307
        %6424 = vmatprep.subr.mxu0 0.0
        %6425 = vmatpush1.msra.mxu0 %v6306
        %6426 = vmatprep.subr.mxu0 0.0
        %6427 = vmatpush1.msra.mxu0 %v6305
        %6428 = vmatprep.subr.mxu0 0.0
        %6429 = vmatpush1.msra.mxu0 %v6304
        %6430 = vmatprep.subr.mxu0 0.0
        %6431 = vmatpush1.msra.mxu0 %v6303
        %6432 = vmatprep.subr.mxu0 0.0
        %6433 = vmatpush1.msra.mxu0 %v6302
        %6434 = vmatprep.subr.mxu0 0.0
        %6435 = vmatpush1.msra.mxu0 %v6301
        %6436 = vmatprep.subr.mxu0 0.0
        %6437 = vmatpush1.msra.mxu0 %v6300
        %6438 = vmatprep.subr.mxu0 0.0
        %6439 = vmatpush1.msra.mxu0 %v6299
        %6440 = vmatprep.subr.mxu0 0.0
        %6441 = vmatpush2.msra.mxu0 %v6330
        %6442 = vmatprep.subr.mxu0 0.0
        %6443 = vmatpush2.msra.mxu0 %v6329
        %6444 = vmatprep.subr.mxu0 0.0
        %6445 = vmatpush2.msra.mxu0 %v6328
        %6446 = vmatprep.subr.mxu0 0.0
        %6447 = vmatpush2.msra.mxu0 %v6327
        %6448 = vmatprep.subr.mxu0 0.0
        %6449 = vmatpush2.msra.mxu0 %v6326
        %6450 = vmatprep.subr.mxu0 0.0
        %6451 = vmatpush2.msra.mxu0 %v6325
        %6452 = vmatprep.subr.mxu0 0.0
        %6453 = vmatpush2.msra.mxu0 %v6324
        %6454 = vmatprep.subr.mxu0 0.0
        %6455 = vmatpush2.msra.mxu0 %v6323
        %6456 = vmatprep.subr.mxu0 0.0
        %6457 = vmatpush2.msra.mxu0 %v6322
        %6458 = vmatprep.subr.mxu0 0.0
        %6459 = vmatpush2.msra.mxu0 %v6321
        %6460 = vmatprep.subr.mxu0 0.0
        %6461 = vmatpush2.msra.mxu0 %v6320
        %6462 = vmatprep.subr.mxu0 0.0
        %6463 = vmatpush2.msra.mxu0 %v6319
        %6464 = vmatprep.subr.mxu0 0.0
        %6465 = vmatpush2.msra.mxu0 %v6318
        %6466 = vmatprep.subr.mxu0 0.0
        %6467 = vmatpush2.msra.mxu0 %v6317
        %6468 = vmatprep.subr.mxu0 0.0
        %6469 = vmatpush2.msra.mxu0 %v6316
        %6470 = vmatprep.subr.mxu0 0.0
        %6471 = vmatpush2.msra.mxu0 %v6315
        %6472 = vmatprep.mubr.f32.mxu0 %v6266
        %6473 = vmatmul.mubr.f32.gmra.mxu0 %v6265
        %v6474 = vpop.f32.mrf.mxu0
        %v6475 = vadd.f32 %v6405, %v6474
        %v6476 = vpop.f32.mrf.mxu0
        %6477 = vdwg.mxu0
        %6478 = vst [vmem:[%s642] sm:$0x3] %v6475
        %p6479 = scmp.lt.s32.totalorder %s32, 1
        %s6480 = scalar_select %p6479, %s32, 1
        %s6481 = smul.addr %s6480, 2
        %s6482 = scalar_lea.vmem %s14, %s6481
        // Predicated region
        $region129: #{_lambda_.1} parent=75 // pred_check
          %p6483 = pneg %p349
        $region130: #{_lambda_.1} parent=75 // pred_check_branch
          %6485 = sbr.rel (%p6483) target = $region132
        $region131: #{_lambda_.1} parent=75 // pred_region
          _
        $region132: #{_lambda_.1} parent=75 // pred_fallthru
          _
      $region76: #{_lambda_.1} parent=5 // pred_fallthru
        _
      %p6486 = scmp.le.s32.totalorder 2, %s27
      // Predicated region
      $region133: #{_lambda_.1} parent=5 // pred_check
        %p6487 = pneg %p6486
      $region134: #{_lambda_.1} parent=5 // pred_check_branch
        %6489 = sbr.rel (%p6487) target = $region136
      $region135: #{_lambda_.1} parent=5 // pred_region
        %s6490 = ssub.s32 %s27, 2
        // Predicated region
        $region137: #{_lambda_.1} parent=135 // pred_check
          %p6491 = pneg %p355
        $region138: #{_lambda_.1} parent=135 // pred_check_branch
          %6493 = sbr.rel (%p6491) target = $region140
        $region139: #{_lambda_.1} parent=135 // pred_region
          %p6494 = scmp.lt.s32.totalorder %s33, 1
          %s6495 = scalar_select %p6494, %s33, 1
          %s6496 = smul.addr %s6495, 2
          %s6497 = scalar_lea.vmem %s14, %s6496
        $region140: #{_lambda_.1} parent=135 // pred_fallthru
          _
      $region136: #{_lambda_.1} parent=5 // pred_fallthru
        _
    $region6: #{_lambda_.1} parent=1 // loop_footer
      %s31 = sadd.s32 1, %s27
    $region7: #{_lambda_.1} parent=1 // loop_footer_branch
      %26 = sbr.rel target = $region3
    $region8: #{_lambda_.1} parent=1 // loop_exit
      _
    %6498 = vsyncpa [#allocation7], 1
    %s6499 = scalar_lea.sflag [#allocation7], 1
    %6500 = vsyncpa %s6499, 1
    %6501 = vsyncpa [#allocation9], 1
    %6502 = vsyncpa [#allocation12], 1
    %6503 = vsyncpa [#allocation15], 1
    %6504 = vsyncpa [#allocation18], 1
    %6505 = vsyncpa [#allocation21], 1
    %6506 = vsyncpa [#allocation24], 1

</llo_original>
